<compile_context>
chip_gen: v6e
topology: v6e:2x2x1
jax: 0.10.0
libtpu: 0.0.40
codegen_flags: <defaults>
</compile_context>

<pallas_src>
import jax
import jax.numpy as jnp
from jax.experimental import pallas as pl
from jax.experimental.pallas import tpu as pltpu

SELU_ALPHA = 1.6732632423543772
SELU_SCALE = 1.0507009873554805
KSIZE = 3


# ----------------------------------------------------------------------------
# Fused kernel: conv1+SELU -> conv2+SELU -> conv3 -> y^T = sum_l x3[:,l,:]@T_l
# ----------------------------------------------------------------------------
def _transform_kernel(xb_ref, mask_ref, w1_ref, w2_ref, w3_ref, tlt_ref,
                      ox_ref, oyt_ref, buf1, buf2):
    # xb_ref : (G+2, Cin)   batch-stacked, zero-padded, channel-last input
    # mask   : (G, 1)       1.0 on data rows, 0.0 on per-sample pad rows
    # wK_ref : (3, Cin_k, Cout_k)  per-tap transposed conv weights
    # tlt_ref: (L, C3, A)   T rearranged so y^T[b] = sum_l x3[b,l,:] @ tlt[l]
    # ox_ref : (B, L, C3)   conv3 output, channel last
    # oyt_ref: (B, A)       y^T (lane-dense, A == 128)
    B, L, _ = ox_ref.shape
    Lp = L + 2
    G = B * Lp
    mask = mask_ref[...]

    buf1[...] = jnp.zeros_like(buf1)
    buf2[...] = jnp.zeros_like(buf2)

    def conv_taps(load, w_ref):
        acc = jnp.dot(load(0), w_ref[0], preferred_element_type=jnp.float32)
        acc = acc + jnp.dot(load(1), w_ref[1], preferred_element_type=jnp.float32)
        acc = acc + jnp.dot(load(2), w_ref[2], preferred_element_type=jnp.float32)
        return acc

    def selu(v):
        neg = SELU_ALPHA * (jnp.exp(jnp.minimum(v, 0.0)) - 1.0)
        return SELU_SCALE * jnp.where(v > 0.0, v, neg)

    # conv1 + SELU (pad rows forced back to zero by the mask)
    h1 = selu(conv_taps(lambda d: xb_ref[d:d + G, :], w1_ref)) * mask
    buf1[1:G + 1, :] = h1
    # conv2 + SELU
    h2 = selu(conv_taps(lambda d: buf1[d:d + G, :], w2_ref)) * mask
    buf2[1:G + 1, :] = h2
    # conv3 (no activation, matching the reference forward)
    h3 = conv_taps(lambda d: buf2[d:d + G, :], w3_ref) * mask        # (G, C3)

    # per-sample: write channel-last conv3 output and accumulate y^T rows
    for b in range(B):
        x3_b = h3[b * Lp + 1:b * Lp + 1 + L, :]                      # (L, C3)
        ox_ref[b] = x3_b
        acc = jnp.dot(x3_b[0:1, :], tlt_ref[0],
                      preferred_element_type=jnp.float32)            # (1, A)
        for l in range(1, L):
            acc = acc + jnp.dot(x3_b[l:l + 1, :], tlt_ref[l],
                                preferred_element_type=jnp.float32)
        oyt_ref[b:b + 1, :] = acc


# ----------------------------------------------------------------------------
# Wrapper (jitted): layout plumbing in XLA, single fused Pallas launch.
# ----------------------------------------------------------------------------
@jax.jit
def transform_forward(x, T1, T2, T3, Tmat):
    B, Cin, L = x.shape
    C1, C2, C3 = T1.shape[0], T2.shape[0], T3.shape[0]
    A = Tmat.shape[0]
    Lp = L + 2
    G = B * Lp
    R = G + 2

    # channel-last, per-sample zero-padded, batch-stacked input (+1 halo row
    # at each end so every conv tap is one static slice of a single buffer).
    x_cl = jnp.swapaxes(x, 1, 2)                                     # (B, L, Cin)
    x_pad = jnp.pad(x_cl, ((0, 0), (1, 1), (0, 0)))                  # (B, Lp, Cin)
    xbuf = jnp.pad(x_pad.reshape(G, Cin), ((1, 1), (0, 0)))          # (R, Cin)

    pos = jnp.arange(G) % Lp
    mask = ((pos >= 1) & (pos <= L)).astype(jnp.float32)[:, None]    # (G, 1)

    # per-tap transposed conv weights: w[dk] = W[:, :, dk].T
    w1 = jnp.transpose(T1, (2, 1, 0))                                # (3, Cin, C1)
    w2 = jnp.transpose(T2, (2, 1, 0))                                # (3, C1, C2)
    w3 = jnp.transpose(T3, (2, 1, 0))                                # (3, C2, C3)

    # T[a, c*L + l] -> tlt[l, c, a]  (matches the channel-last x3 contraction)
    tlt = jnp.transpose(Tmat.reshape(A, C3, L), (2, 1, 0))           # (L, C3, A)

    ox_cl, y_t = pl.pallas_call(
        _transform_kernel,
        out_shape=(jax.ShapeDtypeStruct((B, L, C3), jnp.float32),
                   jax.ShapeDtypeStruct((B, A), jnp.float32)),
        in_specs=[pl.BlockSpec(memory_space=pltpu.MemorySpace.VMEM)
                  for _ in range(6)],
        out_specs=(pl.BlockSpec(memory_space=pltpu.MemorySpace.VMEM),
                   pl.BlockSpec(memory_space=pltpu.MemorySpace.VMEM)),
        scratch_shapes=[pltpu.VMEM((R, C1), jnp.float32),
                        pltpu.VMEM((R, C2), jnp.float32)],
    )(xbuf, mask, w1, w2, w3, tlt)

    x_out = jnp.swapaxes(ox_cl, 1, 2)      # (B, C3, L) -- torch layout
    y_out = y_t.T                          # (A, B)     -- torch.mm(T, flat.T)
    return x_out, y_out


# ----------------------------------------------------------------------------
# Plain-JAX reference of the torch forward (for a correctness check).
# ----------------------------------------------------------------------------
def _selu_ref(v):
    return SELU_SCALE * jnp.where(v > 0.0, v, SELU_ALPHA * jnp.expm1(v))


def _conv1d_ref(x, w):
    return jax.lax.conv_general_dilated(
        x, w, window_strides=(1,), padding=((KSIZE // 2, KSIZE // 2),),
        dimension_numbers=("NCH", "OIH", "NCH"))


def transform_forward_ref(x, T1, T2, T3, Tmat):
    h = _selu_ref(_conv1d_ref(x, T1))
    h = _selu_ref(_conv1d_ref(h, T2))
    h = _conv1d_ref(h, T3)
    y = Tmat @ h.reshape(h.shape[0], -1).T
    return h, y


if __name__ == "__main__":
    B, CIN, L = 4, 2, 16            # input_shape = (4, 2, 16)
    C1, C2, C3 = 8, 16, 16          # out_planes1/2/3 defaults
    ATOM_RATIO = 0.5

    key = jax.random.PRNGKey(0)
    kx, k1, k2, k3, kt = jax.random.split(key, 5)
    x = jax.random.normal(kx, (B, CIN, L), jnp.float32)
    T1 = jax.random.normal(k1, (C1, CIN, KSIZE), jnp.float32) / jnp.sqrt(CIN * KSIZE)
    T2 = jax.random.normal(k2, (C2, C1, KSIZE), jnp.float32) / jnp.sqrt(C1 * KSIZE)
    T3 = jax.random.normal(k3, (C3, C2, KSIZE), jnp.float32) / jnp.sqrt(C2 * KSIZE)

    num_features = C3 * L                       # dim1 == L ('same' conv, no maxpool)
    num_atoms = int(num_features * ATOM_RATIO)  # init_T_tilde: total_num_atoms
    Tmat = jax.random.normal(kt, (num_atoms, num_features), jnp.float32)

    x_out, y_out = transform_forward(x, T1, T2, T3, Tmat)
    jax.block_until_ready((x_out, y_out))
    assert x_out.shape == (B, C3, L)
    assert y_out.shape == (num_atoms, B)

    # correctness check against the pure-JAX reference (loose f32/MXU tol)
    x_ref, y_ref = transform_forward_ref(x, T1, T2, T3, Tmat)
    for got, ref in ((x_out, x_ref), (y_out, y_ref)):
        err = float(jnp.max(jnp.abs(got - ref)))
        scale = float(jnp.max(jnp.abs(ref)))
        assert err <= 2e-2 * scale + 1e-3, (err, scale)

    print("KERNEL_OK")
</pallas_src>

<mosaic_0001>
module attributes {stable_mosaic.version = 11 : i64} {
  func.func @_transform_kernel(%arg0: memref<74x2xf32, #tpu.memory_space<vmem>>, %arg1: memref<72x1xf32, #tpu.memory_space<vmem>>, %arg2: memref<3x2x8xf32, #tpu.memory_space<vmem>>, %arg3: memref<3x8x16xf32, #tpu.memory_space<vmem>>, %arg4: memref<3x16x16xf32, #tpu.memory_space<vmem>>, %arg5: memref<16x16x128xf32, #tpu.memory_space<vmem>>, %arg6: memref<4x16x16xf32, #tpu.memory_space<vmem>>, %arg7: memref<4x128xf32, #tpu.memory_space<vmem>>, %arg8: memref<74x8xf32, #tpu.memory_space<vmem>>, %arg9: memref<74x16xf32, #tpu.memory_space<vmem>>) attributes {dimension_semantics = [], scalar_prefetch = 0 : i64, scratch_operands = 2 : i64, tpu.core_type = #tpu.core_type<tc>} {
    %c0 = arith.constant 0 : index
    %c0_0 = arith.constant 0 : index
    %0 = vector.load %arg1[%c0, %c0_0] : memref<72x1xf32, #tpu.memory_space<vmem>>, vector<72x1xf32>
    %cst = arith.constant 0.000000e+00 : f32
    %1 = vector.broadcast %cst : f32 to vector<74x8xf32>
    %c0_1 = arith.constant 0 : index
    %c0_2 = arith.constant 0 : index
    %2 = vector.load %arg8[%c0_1, %c0_2] : memref<74x8xf32, #tpu.memory_space<vmem>>, vector<74x8xf32>
    tpu.vector_store %arg8[%c0_1, %c0_2], %1 {strides = array<i32>} : memref<74x8xf32, #tpu.memory_space<vmem>>, vector<74x8xf32>,
    %cst_3 = arith.constant 0.000000e+00 : f32
    %3 = vector.broadcast %cst_3 : f32 to vector<74x16xf32>
    %c0_4 = arith.constant 0 : index
    %c0_5 = arith.constant 0 : index
    %4 = vector.load %arg9[%c0_4, %c0_5] : memref<74x16xf32, #tpu.memory_space<vmem>>, vector<74x16xf32>
    tpu.vector_store %arg9[%c0_4, %c0_5], %3 {strides = array<i32>} : memref<74x16xf32, #tpu.memory_space<vmem>>, vector<74x16xf32>,
    %c0_6 = arith.constant 0 : index
    %c0_7 = arith.constant 0 : index
    %5 = vector.load %arg0[%c0_6, %c0_7] : memref<74x2xf32, #tpu.memory_space<vmem>>, vector<72x2xf32>
    %c0_8 = arith.constant 0 : index
    %c0_9 = arith.constant 0 : index
    %c0_10 = arith.constant 0 : index
    %6 = vector.load %arg2[%c0_8, %c0_9, %c0_10] : memref<3x2x8xf32, #tpu.memory_space<vmem>>, vector<1x2x8xf32>
    %7 = vector.shape_cast %6 : vector<1x2x8xf32> to vector<2x8xf32>
    %cst_11 = arith.constant dense<0.000000e+00> : vector<72x8xf32>
    %8 = tpu.matmul %5, %7, %cst_11 {dimension_numbers = #tpu.dot_dimension_numbers<[1], [0], [0], [1], [0, 0, 1, 1], [], []>} : vector<72x2xf32>, vector<2x8xf32>, vector<72x8xf32> -> vector<72x8xf32>
    %c1 = arith.constant 1 : index
    %c0_12 = arith.constant 0 : index
    %9 = vector.load %arg0[%c1, %c0_12] : memref<74x2xf32, #tpu.memory_space<vmem>>, vector<72x2xf32>
    %c1_13 = arith.constant 1 : index
    %c0_14 = arith.constant 0 : index
    %c0_15 = arith.constant 0 : index
    %10 = vector.load %arg2[%c1_13, %c0_14, %c0_15] : memref<3x2x8xf32, #tpu.memory_space<vmem>>, vector<1x2x8xf32>
    %11 = vector.shape_cast %10 : vector<1x2x8xf32> to vector<2x8xf32>
    %cst_16 = arith.constant dense<0.000000e+00> : vector<72x8xf32>
    %12 = tpu.matmul %9, %11, %cst_16 {dimension_numbers = #tpu.dot_dimension_numbers<[1], [0], [0], [1], [0, 0, 1, 1], [], []>} : vector<72x2xf32>, vector<2x8xf32>, vector<72x8xf32> -> vector<72x8xf32>
    %13 = arith.addf %8, %12 : vector<72x8xf32>
    %c2 = arith.constant 2 : index
    %c0_17 = arith.constant 0 : index
    %14 = vector.load %arg0[%c2, %c0_17] : memref<74x2xf32, #tpu.memory_space<vmem>>, vector<72x2xf32>
    %c2_18 = arith.constant 2 : index
    %c0_19 = arith.constant 0 : index
    %c0_20 = arith.constant 0 : index
    %15 = vector.load %arg2[%c2_18, %c0_19, %c0_20] : memref<3x2x8xf32, #tpu.memory_space<vmem>>, vector<1x2x8xf32>
    %16 = vector.shape_cast %15 : vector<1x2x8xf32> to vector<2x8xf32>
    %cst_21 = arith.constant dense<0.000000e+00> : vector<72x8xf32>
    %17 = tpu.matmul %14, %16, %cst_21 {dimension_numbers = #tpu.dot_dimension_numbers<[1], [0], [0], [1], [0, 0, 1, 1], [], []>} : vector<72x2xf32>, vector<2x8xf32>, vector<72x8xf32> -> vector<72x8xf32>
    %18 = arith.addf %13, %17 : vector<72x8xf32>
    %cst_22 = arith.constant 0.000000e+00 : f32
    %19 = vector.broadcast %cst_22 : f32 to vector<72x8xf32>
    %20 = arith.minimumf %18, %19 : vector<72x8xf32>
    %21 = math.exp %20 : vector<72x8xf32>
    %cst_23 = arith.constant 1.000000e+00 : f32
    %22 = vector.broadcast %cst_23 : f32 to vector<72x8xf32>
    %23 = arith.subf %21, %22 : vector<72x8xf32>
    %cst_24 = arith.constant 1.67326319 : f32
    %24 = vector.broadcast %cst_24 : f32 to vector<72x8xf32>
    %25 = arith.mulf %24, %23 : vector<72x8xf32>
    %cst_25 = arith.constant 0.000000e+00 : f32
    %26 = vector.broadcast %cst_25 : f32 to vector<72x8xf32>
    %27 = arith.cmpf ogt, %18, %26 : vector<72x8xf32>
    %28 = arith.select %27, %18, %25 : vector<72x8xi1>, vector<72x8xf32>
    %cst_26 = arith.constant 1.05070102 : f32
    %29 = vector.broadcast %cst_26 : f32 to vector<72x8xf32>
    %30 = arith.mulf %29, %28 : vector<72x8xf32>
    %31 = vector.broadcast %0 : vector<72x1xf32> to vector<72x8xf32>
    %32 = arith.mulf %30, %31 : vector<72x8xf32>
    %c1_27 = arith.constant 1 : index
    %c0_28 = arith.constant 0 : index
    %33 = vector.load %arg8[%c1_27, %c0_28] : memref<74x8xf32, #tpu.memory_space<vmem>>, vector<72x8xf32>
    tpu.vector_store %arg8[%c1_27, %c0_28], %32 {strides = array<i32>} : memref<74x8xf32, #tpu.memory_space<vmem>>, vector<72x8xf32>,
    %c0_29 = arith.constant 0 : index
    %c0_30 = arith.constant 0 : index
    %34 = vector.load %arg8[%c0_29, %c0_30] : memref<74x8xf32, #tpu.memory_space<vmem>>, vector<72x8xf32>
    %c0_31 = arith.constant 0 : index
    %c0_32 = arith.constant 0 : index
    %c0_33 = arith.constant 0 : index
    %35 = vector.load %arg3[%c0_31, %c0_32, %c0_33] : memref<3x8x16xf32, #tpu.memory_space<vmem>>, vector<1x8x16xf32>
    %36 = vector.shape_cast %35 : vector<1x8x16xf32> to vector<8x16xf32>
    %cst_34 = arith.constant dense<0.000000e+00> : vector<72x16xf32>
    %37 = tpu.matmul %34, %36, %cst_34 {dimension_numbers = #tpu.dot_dimension_numbers<[1], [0], [0], [1], [0, 0, 1, 1], [], []>} : vector<72x8xf32>, vector<8x16xf32>, vector<72x16xf32> -> vector<72x16xf32>
    %c1_35 = arith.constant 1 : index
    %c0_36 = arith.constant 0 : index
    %38 = vector.load %arg8[%c1_35, %c0_36] : memref<74x8xf32, #tpu.memory_space<vmem>>, vector<72x8xf32>
    %c1_37 = arith.constant 1 : index
    %c0_38 = arith.constant 0 : index
    %c0_39 = arith.constant 0 : index
    %39 = vector.load %arg3[%c1_37, %c0_38, %c0_39] : memref<3x8x16xf32, #tpu.memory_space<vmem>>, vector<1x8x16xf32>
    %40 = vector.shape_cast %39 : vector<1x8x16xf32> to vector<8x16xf32>
    %cst_40 = arith.constant dense<0.000000e+00> : vector<72x16xf32>
    %41 = tpu.matmul %38, %40, %cst_40 {dimension_numbers = #tpu.dot_dimension_numbers<[1], [0], [0], [1], [0, 0, 1, 1], [], []>} : vector<72x8xf32>, vector<8x16xf32>, vector<72x16xf32> -> vector<72x16xf32>
    %42 = arith.addf %37, %41 : vector<72x16xf32>
    %c2_41 = arith.constant 2 : index
    %c0_42 = arith.constant 0 : index
    %43 = vector.load %arg8[%c2_41, %c0_42] : memref<74x8xf32, #tpu.memory_space<vmem>>, vector<72x8xf32>
    %c2_43 = arith.constant 2 : index
    %c0_44 = arith.constant 0 : index
    %c0_45 = arith.constant 0 : index
    %44 = vector.load %arg3[%c2_43, %c0_44, %c0_45] : memref<3x8x16xf32, #tpu.memory_space<vmem>>, vector<1x8x16xf32>
    %45 = vector.shape_cast %44 : vector<1x8x16xf32> to vector<8x16xf32>
    %cst_46 = arith.constant dense<0.000000e+00> : vector<72x16xf32>
    %46 = tpu.matmul %43, %45, %cst_46 {dimension_numbers = #tpu.dot_dimension_numbers<[1], [0], [0], [1], [0, 0, 1, 1], [], []>} : vector<72x8xf32>, vector<8x16xf32>, vector<72x16xf32> -> vector<72x16xf32>
    %47 = arith.addf %42, %46 : vector<72x16xf32>
    %cst_47 = arith.constant 0.000000e+00 : f32
    %48 = vector.broadcast %cst_47 : f32 to vector<72x16xf32>
    %49 = arith.minimumf %47, %48 : vector<72x16xf32>
    %50 = math.exp %49 : vector<72x16xf32>
    %cst_48 = arith.constant 1.000000e+00 : f32
    %51 = vector.broadcast %cst_48 : f32 to vector<72x16xf32>
    %52 = arith.subf %50, %51 : vector<72x16xf32>
    %cst_49 = arith.constant 1.67326319 : f32
    %53 = vector.broadcast %cst_49 : f32 to vector<72x16xf32>
    %54 = arith.mulf %53, %52 : vector<72x16xf32>
    %cst_50 = arith.constant 0.000000e+00 : f32
    %55 = vector.broadcast %cst_50 : f32 to vector<72x16xf32>
    %56 = arith.cmpf ogt, %47, %55 : vector<72x16xf32>
    %57 = arith.select %56, %47, %54 : vector<72x16xi1>, vector<72x16xf32>
    %cst_51 = arith.constant 1.05070102 : f32
    %58 = vector.broadcast %cst_51 : f32 to vector<72x16xf32>
    %59 = arith.mulf %58, %57 : vector<72x16xf32>
    %60 = vector.broadcast %0 : vector<72x1xf32> to vector<72x16xf32>
    %61 = arith.mulf %59, %60 : vector<72x16xf32>
    %c1_52 = arith.constant 1 : index
    %c0_53 = arith.constant 0 : index
    %62 = vector.load %arg9[%c1_52, %c0_53] : memref<74x16xf32, #tpu.memory_space<vmem>>, vector<72x16xf32>
    tpu.vector_store %arg9[%c1_52, %c0_53], %61 {strides = array<i32>} : memref<74x16xf32, #tpu.memory_space<vmem>>, vector<72x16xf32>,
    %c0_54 = arith.constant 0 : index
    %c0_55 = arith.constant 0 : index
    %63 = vector.load %arg9[%c0_54, %c0_55] : memref<74x16xf32, #tpu.memory_space<vmem>>, vector<72x16xf32>
    %c0_56 = arith.constant 0 : index
    %c0_57 = arith.constant 0 : index
    %c0_58 = arith.constant 0 : index
    %64 = vector.load %arg4[%c0_56, %c0_57, %c0_58] : memref<3x16x16xf32, #tpu.memory_space<vmem>>, vector<1x16x16xf32>
    %65 = vector.shape_cast %64 : vector<1x16x16xf32> to vector<16x16xf32>
    %cst_59 = arith.constant dense<0.000000e+00> : vector<72x16xf32>
    %66 = tpu.matmul %63, %65, %cst_59 {dimension_numbers = #tpu.dot_dimension_numbers<[1], [0], [0], [1], [0, 0, 1, 1], [], []>} : vector<72x16xf32>, vector<16x16xf32>, vector<72x16xf32> -> vector<72x16xf32>
    %c1_60 = arith.constant 1 : index
    %c0_61 = arith.constant 0 : index
    %67 = vector.load %arg9[%c1_60, %c0_61] : memref<74x16xf32, #tpu.memory_space<vmem>>, vector<72x16xf32>
    %c1_62 = arith.constant 1 : index
    %c0_63 = arith.constant 0 : index
    %c0_64 = arith.constant 0 : index
    %68 = vector.load %arg4[%c1_62, %c0_63, %c0_64] : memref<3x16x16xf32, #tpu.memory_space<vmem>>, vector<1x16x16xf32>
    %69 = vector.shape_cast %68 : vector<1x16x16xf32> to vector<16x16xf32>
    %cst_65 = arith.constant dense<0.000000e+00> : vector<72x16xf32>
    %70 = tpu.matmul %67, %69, %cst_65 {dimension_numbers = #tpu.dot_dimension_numbers<[1], [0], [0], [1], [0, 0, 1, 1], [], []>} : vector<72x16xf32>, vector<16x16xf32>, vector<72x16xf32> -> vector<72x16xf32>
    %71 = arith.addf %66, %70 : vector<72x16xf32>
    %c2_66 = arith.constant 2 : index
    %c0_67 = arith.constant 0 : index
    %72 = vector.load %arg9[%c2_66, %c0_67] : memref<74x16xf32, #tpu.memory_space<vmem>>, vector<72x16xf32>
    %c2_68 = arith.constant 2 : index
    %c0_69 = arith.constant 0 : index
    %c0_70 = arith.constant 0 : index
    %73 = vector.load %arg4[%c2_68, %c0_69, %c0_70] : memref<3x16x16xf32, #tpu.memory_space<vmem>>, vector<1x16x16xf32>
    %74 = vector.shape_cast %73 : vector<1x16x16xf32> to vector<16x16xf32>
    %cst_71 = arith.constant dense<0.000000e+00> : vector<72x16xf32>
    %75 = tpu.matmul %72, %74, %cst_71 {dimension_numbers = #tpu.dot_dimension_numbers<[1], [0], [0], [1], [0, 0, 1, 1], [], []>} : vector<72x16xf32>, vector<16x16xf32>, vector<72x16xf32> -> vector<72x16xf32>
    %76 = arith.addf %71, %75 : vector<72x16xf32>
    %77 = vector.broadcast %0 : vector<72x1xf32> to vector<72x16xf32>
    %78 = arith.mulf %76, %77 : vector<72x16xf32>
    %79 = vector.extract_strided_slice %78 {offsets = [1, 0], sizes = [16, 16], strides = [1, 1]} : vector<72x16xf32> to vector<16x16xf32>
    %c0_72 = arith.constant 0 : index
    %c0_73 = arith.constant 0 : index
    %c0_74 = arith.constant 0 : index
    %80 = vector.load %arg6[%c0_72, %c0_73, %c0_74] : memref<4x16x16xf32, #tpu.memory_space<vmem>>, vector<1x16x16xf32>
    %81 = vector.shape_cast %80 : vector<1x16x16xf32> to vector<16x16xf32>
    %82 = vector.shape_cast %79 : vector<16x16xf32> to vector<1x16x16xf32>
    tpu.vector_store %arg6[%c0_72, %c0_73, %c0_74], %82 {strides = array<i32>} : memref<4x16x16xf32, #tpu.memory_space<vmem>>, vector<1x16x16xf32>,
    %83 = vector.extract_strided_slice %79 {offsets = [0, 0], sizes = [1, 16], strides = [1, 1]} : vector<16x16xf32> to vector<1x16xf32>
    %c0_75 = arith.constant 0 : index
    %c0_76 = arith.constant 0 : index
    %c0_77 = arith.constant 0 : index
    %84 = vector.load %arg5[%c0_75, %c0_76, %c0_77] : memref<16x16x128xf32, #tpu.memory_space<vmem>>, vector<1x16x128xf32>
    %85 = vector.shape_cast %84 : vector<1x16x128xf32> to vector<16x128xf32>
    %cst_78 = arith.constant dense<0.000000e+00> : vector<1x128xf32>
    %86 = tpu.matmul %83, %85, %cst_78 {dimension_numbers = #tpu.dot_dimension_numbers<[1], [0], [0], [1], [0, 0, 1, 1], [], []>} : vector<1x16xf32>, vector<16x128xf32>, vector<1x128xf32> -> vector<1x128xf32>
    %87 = vector.extract_strided_slice %79 {offsets = [1, 0], sizes = [1, 16], strides = [1, 1]} : vector<16x16xf32> to vector<1x16xf32>
    %c1_79 = arith.constant 1 : index
    %c0_80 = arith.constant 0 : index
    %c0_81 = arith.constant 0 : index
    %88 = vector.load %arg5[%c1_79, %c0_80, %c0_81] : memref<16x16x128xf32, #tpu.memory_space<vmem>>, vector<1x16x128xf32>
    %89 = vector.shape_cast %88 : vector<1x16x128xf32> to vector<16x128xf32>
    %cst_82 = arith.constant dense<0.000000e+00> : vector<1x128xf32>
    %90 = tpu.matmul %87, %89, %cst_82 {dimension_numbers = #tpu.dot_dimension_numbers<[1], [0], [0], [1], [0, 0, 1, 1], [], []>} : vector<1x16xf32>, vector<16x128xf32>, vector<1x128xf32> -> vector<1x128xf32>
    %91 = arith.addf %86, %90 : vector<1x128xf32>
    %92 = vector.extract_strided_slice %79 {offsets = [2, 0], sizes = [1, 16], strides = [1, 1]} : vector<16x16xf32> to vector<1x16xf32>
    %c2_83 = arith.constant 2 : index
    %c0_84 = arith.constant 0 : index
    %c0_85 = arith.constant 0 : index
    %93 = vector.load %arg5[%c2_83, %c0_84, %c0_85] : memref<16x16x128xf32, #tpu.memory_space<vmem>>, vector<1x16x128xf32>
    %94 = vector.shape_cast %93 : vector<1x16x128xf32> to vector<16x128xf32>
    %cst_86 = arith.constant dense<0.000000e+00> : vector<1x128xf32>
    %95 = tpu.matmul %92, %94, %cst_86 {dimension_numbers = #tpu.dot_dimension_numbers<[1], [0], [0], [1], [0, 0, 1, 1], [], []>} : vector<1x16xf32>, vector<16x128xf32>, vector<1x128xf32> -> vector<1x128xf32>
    %96 = arith.addf %91, %95 : vector<1x128xf32>
    %97 = vector.extract_strided_slice %79 {offsets = [3, 0], sizes = [1, 16], strides = [1, 1]} : vector<16x16xf32> to vector<1x16xf32>
    %c3 = arith.constant 3 : index
    %c0_87 = arith.constant 0 : index
    %c0_88 = arith.constant 0 : index
    %98 = vector.load %arg5[%c3, %c0_87, %c0_88] : memref<16x16x128xf32, #tpu.memory_space<vmem>>, vector<1x16x128xf32>
    %99 = vector.shape_cast %98 : vector<1x16x128xf32> to vector<16x128xf32>
    %cst_89 = arith.constant dense<0.000000e+00> : vector<1x128xf32>
    %100 = tpu.matmul %97, %99, %cst_89 {dimension_numbers = #tpu.dot_dimension_numbers<[1], [0], [0], [1], [0, 0, 1, 1], [], []>} : vector<1x16xf32>, vector<16x128xf32>, vector<1x128xf32> -> vector<1x128xf32>
    %101 = arith.addf %96, %100 : vector<1x128xf32>
    %102 = vector.extract_strided_slice %79 {offsets = [4, 0], sizes = [1, 16], strides = [1, 1]} : vector<16x16xf32> to vector<1x16xf32>
    %c4 = arith.constant 4 : index
    %c0_90 = arith.constant 0 : index
    %c0_91 = arith.constant 0 : index
    %103 = vector.load %arg5[%c4, %c0_90, %c0_91] : memref<16x16x128xf32, #tpu.memory_space<vmem>>, vector<1x16x128xf32>
    %104 = vector.shape_cast %103 : vector<1x16x128xf32> to vector<16x128xf32>
    %cst_92 = arith.constant dense<0.000000e+00> : vector<1x128xf32>
    %105 = tpu.matmul %102, %104, %cst_92 {dimension_numbers = #tpu.dot_dimension_numbers<[1], [0], [0], [1], [0, 0, 1, 1], [], []>} : vector<1x16xf32>, vector<16x128xf32>, vector<1x128xf32> -> vector<1x128xf32>
    %106 = arith.addf %101, %105 : vector<1x128xf32>
    %107 = vector.extract_strided_slice %79 {offsets = [5, 0], sizes = [1, 16], strides = [1, 1]} : vector<16x16xf32> to vector<1x16xf32>
    %c5 = arith.constant 5 : index
    %c0_93 = arith.constant 0 : index
    %c0_94 = arith.constant 0 : index
    %108 = vector.load %arg5[%c5, %c0_93, %c0_94] : memref<16x16x128xf32, #tpu.memory_space<vmem>>, vector<1x16x128xf32>
    %109 = vector.shape_cast %108 : vector<1x16x128xf32> to vector<16x128xf32>
    %cst_95 = arith.constant dense<0.000000e+00> : vector<1x128xf32>
    %110 = tpu.matmul %107, %109, %cst_95 {dimension_numbers = #tpu.dot_dimension_numbers<[1], [0], [0], [1], [0, 0, 1, 1], [], []>} : vector<1x16xf32>, vector<16x128xf32>, vector<1x128xf32> -> vector<1x128xf32>
    %111 = arith.addf %106, %110 : vector<1x128xf32>
    %112 = vector.extract_strided_slice %79 {offsets = [6, 0], sizes = [1, 16], strides = [1, 1]} : vector<16x16xf32> to vector<1x16xf32>
    %c6 = arith.constant 6 : index
    %c0_96 = arith.constant 0 : index
    %c0_97 = arith.constant 0 : index
    %113 = vector.load %arg5[%c6, %c0_96, %c0_97] : memref<16x16x128xf32, #tpu.memory_space<vmem>>, vector<1x16x128xf32>
    %114 = vector.shape_cast %113 : vector<1x16x128xf32> to vector<16x128xf32>
    %cst_98 = arith.constant dense<0.000000e+00> : vector<1x128xf32>
    %115 = tpu.matmul %112, %114, %cst_98 {dimension_numbers = #tpu.dot_dimension_numbers<[1], [0], [0], [1], [0, 0, 1, 1], [], []>} : vector<1x16xf32>, vector<16x128xf32>, vector<1x128xf32> -> vector<1x128xf32>
    %116 = arith.addf %111, %115 : vector<1x128xf32>
    %117 = vector.extract_strided_slice %79 {offsets = [7, 0], sizes = [1, 16], strides = [1, 1]} : vector<16x16xf32> to vector<1x16xf32>
    %c7 = arith.constant 7 : index
    %c0_99 = arith.constant 0 : index
    %c0_100 = arith.constant 0 : index
    %118 = vector.load %arg5[%c7, %c0_99, %c0_100] : memref<16x16x128xf32, #tpu.memory_space<vmem>>, vector<1x16x128xf32>
    %119 = vector.shape_cast %118 : vector<1x16x128xf32> to vector<16x128xf32>
    %cst_101 = arith.constant dense<0.000000e+00> : vector<1x128xf32>
    %120 = tpu.matmul %117, %119, %cst_101 {dimension_numbers = #tpu.dot_dimension_numbers<[1], [0], [0], [1], [0, 0, 1, 1], [], []>} : vector<1x16xf32>, vector<16x128xf32>, vector<1x128xf32> -> vector<1x128xf32>
    %121 = arith.addf %116, %120 : vector<1x128xf32>
    %122 = vector.extract_strided_slice %79 {offsets = [8, 0], sizes = [1, 16], strides = [1, 1]} : vector<16x16xf32> to vector<1x16xf32>
    %c8 = arith.constant 8 : index
    %c0_102 = arith.constant 0 : index
    %c0_103 = arith.constant 0 : index
    %123 = vector.load %arg5[%c8, %c0_102, %c0_103] : memref<16x16x128xf32, #tpu.memory_space<vmem>>, vector<1x16x128xf32>
    %124 = vector.shape_cast %123 : vector<1x16x128xf32> to vector<16x128xf32>
    %cst_104 = arith.constant dense<0.000000e+00> : vector<1x128xf32>
    %125 = tpu.matmul %122, %124, %cst_104 {dimension_numbers = #tpu.dot_dimension_numbers<[1], [0], [0], [1], [0, 0, 1, 1], [], []>} : vector<1x16xf32>, vector<16x128xf32>, vector<1x128xf32> -> vector<1x128xf32>
    %126 = arith.addf %121, %125 : vector<1x128xf32>
    %127 = vector.extract_strided_slice %79 {offsets = [9, 0], sizes = [1, 16], strides = [1, 1]} : vector<16x16xf32> to vector<1x16xf32>
    %c9 = arith.constant 9 : index
    %c0_105 = arith.constant 0 : index
    %c0_106 = arith.constant 0 : index
    %128 = vector.load %arg5[%c9, %c0_105, %c0_106] : memref<16x16x128xf32, #tpu.memory_space<vmem>>, vector<1x16x128xf32>
    %129 = vector.shape_cast %128 : vector<1x16x128xf32> to vector<16x128xf32>
    %cst_107 = arith.constant dense<0.000000e+00> : vector<1x128xf32>
    %130 = tpu.matmul %127, %129, %cst_107 {dimension_numbers = #tpu.dot_dimension_numbers<[1], [0], [0], [1], [0, 0, 1, 1], [], []>} : vector<1x16xf32>, vector<16x128xf32>, vector<1x128xf32> -> vector<1x128xf32>
    %131 = arith.addf %126, %130 : vector<1x128xf32>
    %132 = vector.extract_strided_slice %79 {offsets = [10, 0], sizes = [1, 16], strides = [1, 1]} : vector<16x16xf32> to vector<1x16xf32>
    %c10 = arith.constant 10 : index
    %c0_108 = arith.constant 0 : index
    %c0_109 = arith.constant 0 : index
    %133 = vector.load %arg5[%c10, %c0_108, %c0_109] : memref<16x16x128xf32, #tpu.memory_space<vmem>>, vector<1x16x128xf32>
    %134 = vector.shape_cast %133 : vector<1x16x128xf32> to vector<16x128xf32>
    %cst_110 = arith.constant dense<0.000000e+00> : vector<1x128xf32>
    %135 = tpu.matmul %132, %134, %cst_110 {dimension_numbers = #tpu.dot_dimension_numbers<[1], [0], [0], [1], [0, 0, 1, 1], [], []>} : vector<1x16xf32>, vector<16x128xf32>, vector<1x128xf32> -> vector<1x128xf32>
    %136 = arith.addf %131, %135 : vector<1x128xf32>
    %137 = vector.extract_strided_slice %79 {offsets = [11, 0], sizes = [1, 16], strides = [1, 1]} : vector<16x16xf32> to vector<1x16xf32>
    %c11 = arith.constant 11 : index
    %c0_111 = arith.constant 0 : index
    %c0_112 = arith.constant 0 : index
    %138 = vector.load %arg5[%c11, %c0_111, %c0_112] : memref<16x16x128xf32, #tpu.memory_space<vmem>>, vector<1x16x128xf32>
    %139 = vector.shape_cast %138 : vector<1x16x128xf32> to vector<16x128xf32>
    %cst_113 = arith.constant dense<0.000000e+00> : vector<1x128xf32>
    %140 = tpu.matmul %137, %139, %cst_113 {dimension_numbers = #tpu.dot_dimension_numbers<[1], [0], [0], [1], [0, 0, 1, 1], [], []>} : vector<1x16xf32>, vector<16x128xf32>, vector<1x128xf32> -> vector<1x128xf32>
    %141 = arith.addf %136, %140 : vector<1x128xf32>
    %142 = vector.extract_strided_slice %79 {offsets = [12, 0], sizes = [1, 16], strides = [1, 1]} : vector<16x16xf32> to vector<1x16xf32>
    %c12 = arith.constant 12 : index
    %c0_114 = arith.constant 0 : index
    %c0_115 = arith.constant 0 : index
    %143 = vector.load %arg5[%c12, %c0_114, %c0_115] : memref<16x16x128xf32, #tpu.memory_space<vmem>>, vector<1x16x128xf32>
    %144 = vector.shape_cast %143 : vector<1x16x128xf32> to vector<16x128xf32>
    %cst_116 = arith.constant dense<0.000000e+00> : vector<1x128xf32>
    %145 = tpu.matmul %142, %144, %cst_116 {dimension_numbers = #tpu.dot_dimension_numbers<[1], [0], [0], [1], [0, 0, 1, 1], [], []>} : vector<1x16xf32>, vector<16x128xf32>, vector<1x128xf32> -> vector<1x128xf32>
    %146 = arith.addf %141, %145 : vector<1x128xf32>
    %147 = vector.extract_strided_slice %79 {offsets = [13, 0], sizes = [1, 16], strides = [1, 1]} : vector<16x16xf32> to vector<1x16xf32>
    %c13 = arith.constant 13 : index
    %c0_117 = arith.constant 0 : index
    %c0_118 = arith.constant 0 : index
    %148 = vector.load %arg5[%c13, %c0_117, %c0_118] : memref<16x16x128xf32, #tpu.memory_space<vmem>>, vector<1x16x128xf32>
    %149 = vector.shape_cast %148 : vector<1x16x128xf32> to vector<16x128xf32>
    %cst_119 = arith.constant dense<0.000000e+00> : vector<1x128xf32>
    %150 = tpu.matmul %147, %149, %cst_119 {dimension_numbers = #tpu.dot_dimension_numbers<[1], [0], [0], [1], [0, 0, 1, 1], [], []>} : vector<1x16xf32>, vector<16x128xf32>, vector<1x128xf32> -> vector<1x128xf32>
    %151 = arith.addf %146, %150 : vector<1x128xf32>
    %152 = vector.extract_strided_slice %79 {offsets = [14, 0], sizes = [1, 16], strides = [1, 1]} : vector<16x16xf32> to vector<1x16xf32>
    %c14 = arith.constant 14 : index
    %c0_120 = arith.constant 0 : index
    %c0_121 = arith.constant 0 : index
    %153 = vector.load %arg5[%c14, %c0_120, %c0_121] : memref<16x16x128xf32, #tpu.memory_space<vmem>>, vector<1x16x128xf32>
    %154 = vector.shape_cast %153 : vector<1x16x128xf32> to vector<16x128xf32>
    %cst_122 = arith.constant dense<0.000000e+00> : vector<1x128xf32>
    %155 = tpu.matmul %152, %154, %cst_122 {dimension_numbers = #tpu.dot_dimension_numbers<[1], [0], [0], [1], [0, 0, 1, 1], [], []>} : vector<1x16xf32>, vector<16x128xf32>, vector<1x128xf32> -> vector<1x128xf32>
    %156 = arith.addf %151, %155 : vector<1x128xf32>
    %157 = vector.extract_strided_slice %79 {offsets = [15, 0], sizes = [1, 16], strides = [1, 1]} : vector<16x16xf32> to vector<1x16xf32>
    %c15 = arith.constant 15 : index
    %c0_123 = arith.constant 0 : index
    %c0_124 = arith.constant 0 : index
    %158 = vector.load %arg5[%c15, %c0_123, %c0_124] : memref<16x16x128xf32, #tpu.memory_space<vmem>>, vector<1x16x128xf32>
    %159 = vector.shape_cast %158 : vector<1x16x128xf32> to vector<16x128xf32>
    %cst_125 = arith.constant dense<0.000000e+00> : vector<1x128xf32>
    %160 = tpu.matmul %157, %159, %cst_125 {dimension_numbers = #tpu.dot_dimension_numbers<[1], [0], [0], [1], [0, 0, 1, 1], [], []>} : vector<1x16xf32>, vector<16x128xf32>, vector<1x128xf32> -> vector<1x128xf32>
    %161 = arith.addf %156, %160 : vector<1x128xf32>
    %c0_126 = arith.constant 0 : index
    %c0_127 = arith.constant 0 : index
    %162 = vector.load %arg7[%c0_126, %c0_127] : memref<4x128xf32, #tpu.memory_space<vmem>>, vector<1x128xf32>
    tpu.vector_store %arg7[%c0_126, %c0_127], %161 {strides = array<i32>} : memref<4x128xf32, #tpu.memory_space<vmem>>, vector<1x128xf32>,
    %163 = vector.extract_strided_slice %78 {offsets = [19, 0], sizes = [16, 16], strides = [1, 1]} : vector<72x16xf32> to vector<16x16xf32>
    %c1_128 = arith.constant 1 : index
    %c0_129 = arith.constant 0 : index
    %c0_130 = arith.constant 0 : index
    %164 = vector.load %arg6[%c1_128, %c0_129, %c0_130] : memref<4x16x16xf32, #tpu.memory_space<vmem>>, vector<1x16x16xf32>
    %165 = vector.shape_cast %164 : vector<1x16x16xf32> to vector<16x16xf32>
    %166 = vector.shape_cast %163 : vector<16x16xf32> to vector<1x16x16xf32>
    tpu.vector_store %arg6[%c1_128, %c0_129, %c0_130], %166 {strides = array<i32>} : memref<4x16x16xf32, #tpu.memory_space<vmem>>, vector<1x16x16xf32>,
    %167 = vector.extract_strided_slice %163 {offsets = [0, 0], sizes = [1, 16], strides = [1, 1]} : vector<16x16xf32> to vector<1x16xf32>
    %c0_131 = arith.constant 0 : index
    %c0_132 = arith.constant 0 : index
    %c0_133 = arith.constant 0 : index
    %168 = vector.load %arg5[%c0_131, %c0_132, %c0_133] : memref<16x16x128xf32, #tpu.memory_space<vmem>>, vector<1x16x128xf32>
    %169 = vector.shape_cast %168 : vector<1x16x128xf32> to vector<16x128xf32>
    %cst_134 = arith.constant dense<0.000000e+00> : vector<1x128xf32>
    %170 = tpu.matmul %167, %169, %cst_134 {dimension_numbers = #tpu.dot_dimension_numbers<[1], [0], [0], [1], [0, 0, 1, 1], [], []>} : vector<1x16xf32>, vector<16x128xf32>, vector<1x128xf32> -> vector<1x128xf32>
    %171 = vector.extract_strided_slice %163 {offsets = [1, 0], sizes = [1, 16], strides = [1, 1]} : vector<16x16xf32> to vector<1x16xf32>
    %c1_135 = arith.constant 1 : index
    %c0_136 = arith.constant 0 : index
    %c0_137 = arith.constant 0 : index
    %172 = vector.load %arg5[%c1_135, %c0_136, %c0_137] : memref<16x16x128xf32, #tpu.memory_space<vmem>>, vector<1x16x128xf32>
    %173 = vector.shape_cast %172 : vector<1x16x128xf32> to vector<16x128xf32>
    %cst_138 = arith.constant dense<0.000000e+00> : vector<1x128xf32>
    %174 = tpu.matmul %171, %173, %cst_138 {dimension_numbers = #tpu.dot_dimension_numbers<[1], [0], [0], [1], [0, 0, 1, 1], [], []>} : vector<1x16xf32>, vector<16x128xf32>, vector<1x128xf32> -> vector<1x128xf32>
    %175 = arith.addf %170, %174 : vector<1x128xf32>
    %176 = vector.extract_strided_slice %163 {offsets = [2, 0], sizes = [1, 16], strides = [1, 1]} : vector<16x16xf32> to vector<1x16xf32>
    %c2_139 = arith.constant 2 : index
    %c0_140 = arith.constant 0 : index
    %c0_141 = arith.constant 0 : index
    %177 = vector.load %arg5[%c2_139, %c0_140, %c0_141] : memref<16x16x128xf32, #tpu.memory_space<vmem>>, vector<1x16x128xf32>
    %178 = vector.shape_cast %177 : vector<1x16x128xf32> to vector<16x128xf32>
    %cst_142 = arith.constant dense<0.000000e+00> : vector<1x128xf32>
    %179 = tpu.matmul %176, %178, %cst_142 {dimension_numbers = #tpu.dot_dimension_numbers<[1], [0], [0], [1], [0, 0, 1, 1], [], []>} : vector<1x16xf32>, vector<16x128xf32>, vector<1x128xf32> -> vector<1x128xf32>
    %180 = arith.addf %175, %179 : vector<1x128xf32>
    %181 = vector.extract_strided_slice %163 {offsets = [3, 0], sizes = [1, 16], strides = [1, 1]} : vector<16x16xf32> to vector<1x16xf32>
    %c3_143 = arith.constant 3 : index
    %c0_144 = arith.constant 0 : index
    %c0_145 = arith.constant 0 : index
    %182 = vector.load %arg5[%c3_143, %c0_144, %c0_145] : memref<16x16x128xf32, #tpu.memory_space<vmem>>, vector<1x16x128xf32>
    %183 = vector.shape_cast %182 : vector<1x16x128xf32> to vector<16x128xf32>
    %cst_146 = arith.constant dense<0.000000e+00> : vector<1x128xf32>
    %184 = tpu.matmul %181, %183, %cst_146 {dimension_numbers = #tpu.dot_dimension_numbers<[1], [0], [0], [1], [0, 0, 1, 1], [], []>} : vector<1x16xf32>, vector<16x128xf32>, vector<1x128xf32> -> vector<1x128xf32>
    %185 = arith.addf %180, %184 : vector<1x128xf32>
    %186 = vector.extract_strided_slice %163 {offsets = [4, 0], sizes = [1, 16], strides = [1, 1]} : vector<16x16xf32> to vector<1x16xf32>
    %c4_147 = arith.constant 4 : index
    %c0_148 = arith.constant 0 : index
    %c0_149 = arith.constant 0 : index
    %187 = vector.load %arg5[%c4_147, %c0_148, %c0_149] : memref<16x16x128xf32, #tpu.memory_space<vmem>>, vector<1x16x128xf32>
    %188 = vector.shape_cast %187 : vector<1x16x128xf32> to vector<16x128xf32>
    %cst_150 = arith.constant dense<0.000000e+00> : vector<1x128xf32>
    %189 = tpu.matmul %186, %188, %cst_150 {dimension_numbers = #tpu.dot_dimension_numbers<[1], [0], [0], [1], [0, 0, 1, 1], [], []>} : vector<1x16xf32>, vector<16x128xf32>, vector<1x128xf32> -> vector<1x128xf32>
    %190 = arith.addf %185, %189 : vector<1x128xf32>
    %191 = vector.extract_strided_slice %163 {offsets = [5, 0], sizes = [1, 16], strides = [1, 1]} : vector<16x16xf32> to vector<1x16xf32>
    %c5_151 = arith.constant 5 : index
    %c0_152 = arith.constant 0 : index
    %c0_153 = arith.constant 0 : index
    %192 = vector.load %arg5[%c5_151, %c0_152, %c0_153] : memref<16x16x128xf32, #tpu.memory_space<vmem>>, vector<1x16x128xf32>
    %193 = vector.shape_cast %192 : vector<1x16x128xf32> to vector<16x128xf32>
    %cst_154 = arith.constant dense<0.000000e+00> : vector<1x128xf32>
    %194 = tpu.matmul %191, %193, %cst_154 {dimension_numbers = #tpu.dot_dimension_numbers<[1], [0], [0], [1], [0, 0, 1, 1], [], []>} : vector<1x16xf32>, vector<16x128xf32>, vector<1x128xf32> -> vector<1x128xf32>
    %195 = arith.addf %190, %194 : vector<1x128xf32>
    %196 = vector.extract_strided_slice %163 {offsets = [6, 0], sizes = [1, 16], strides = [1, 1]} : vector<16x16xf32> to vector<1x16xf32>
    %c6_155 = arith.constant 6 : index
    %c0_156 = arith.constant 0 : index
    %c0_157 = arith.constant 0 : index
    %197 = vector.load %arg5[%c6_155, %c0_156, %c0_157] : memref<16x16x128xf32, #tpu.memory_space<vmem>>, vector<1x16x128xf32>
    %198 = vector.shape_cast %197 : vector<1x16x128xf32> to vector<16x128xf32>
    %cst_158 = arith.constant dense<0.000000e+00> : vector<1x128xf32>
    %199 = tpu.matmul %196, %198, %cst_158 {dimension_numbers = #tpu.dot_dimension_numbers<[1], [0], [0], [1], [0, 0, 1, 1], [], []>} : vector<1x16xf32>, vector<16x128xf32>, vector<1x128xf32> -> vector<1x128xf32>
    %200 = arith.addf %195, %199 : vector<1x128xf32>
    %201 = vector.extract_strided_slice %163 {offsets = [7, 0], sizes = [1, 16], strides = [1, 1]} : vector<16x16xf32> to vector<1x16xf32>
    %c7_159 = arith.constant 7 : index
    %c0_160 = arith.constant 0 : index
    %c0_161 = arith.constant 0 : index
    %202 = vector.load %arg5[%c7_159, %c0_160, %c0_161] : memref<16x16x128xf32, #tpu.memory_space<vmem>>, vector<1x16x128xf32>
    %203 = vector.shape_cast %202 : vector<1x16x128xf32> to vector<16x128xf32>
    %cst_162 = arith.constant dense<0.000000e+00> : vector<1x128xf32>
    %204 = tpu.matmul %201, %203, %cst_162 {dimension_numbers = #tpu.dot_dimension_numbers<[1], [0], [0], [1], [0, 0, 1, 1], [], []>} : vector<1x16xf32>, vector<16x128xf32>, vector<1x128xf32> -> vector<1x128xf32>
    %205 = arith.addf %200, %204 : vector<1x128xf32>
    %206 = vector.extract_strided_slice %163 {offsets = [8, 0], sizes = [1, 16], strides = [1, 1]} : vector<16x16xf32> to vector<1x16xf32>
    %c8_163 = arith.constant 8 : index
    %c0_164 = arith.constant 0 : index
    %c0_165 = arith.constant 0 : index
    %207 = vector.load %arg5[%c8_163, %c0_164, %c0_165] : memref<16x16x128xf32, #tpu.memory_space<vmem>>, vector<1x16x128xf32>
    %208 = vector.shape_cast %207 : vector<1x16x128xf32> to vector<16x128xf32>
    %cst_166 = arith.constant dense<0.000000e+00> : vector<1x128xf32>
    %209 = tpu.matmul %206, %208, %cst_166 {dimension_numbers = #tpu.dot_dimension_numbers<[1], [0], [0], [1], [0, 0, 1, 1], [], []>} : vector<1x16xf32>, vector<16x128xf32>, vector<1x128xf32> -> vector<1x128xf32>
    %210 = arith.addf %205, %209 : vector<1x128xf32>
    %211 = vector.extract_strided_slice %163 {offsets = [9, 0], sizes = [1, 16], strides = [1, 1]} : vector<16x16xf32> to vector<1x16xf32>
    %c9_167 = arith.constant 9 : index
    %c0_168 = arith.constant 0 : index
    %c0_169 = arith.constant 0 : index
    %212 = vector.load %arg5[%c9_167, %c0_168, %c0_169] : memref<16x16x128xf32, #tpu.memory_space<vmem>>, vector<1x16x128xf32>
    %213 = vector.shape_cast %212 : vector<1x16x128xf32> to vector<16x128xf32>
    %cst_170 = arith.constant dense<0.000000e+00> : vector<1x128xf32>
    %214 = tpu.matmul %211, %213, %cst_170 {dimension_numbers = #tpu.dot_dimension_numbers<[1], [0], [0], [1], [0, 0, 1, 1], [], []>} : vector<1x16xf32>, vector<16x128xf32>, vector<1x128xf32> -> vector<1x128xf32>
    %215 = arith.addf %210, %214 : vector<1x128xf32>
    %216 = vector.extract_strided_slice %163 {offsets = [10, 0], sizes = [1, 16], strides = [1, 1]} : vector<16x16xf32> to vector<1x16xf32>
    %c10_171 = arith.constant 10 : index
    %c0_172 = arith.constant 0 : index
    %c0_173 = arith.constant 0 : index
    %217 = vector.load %arg5[%c10_171, %c0_172, %c0_173] : memref<16x16x128xf32, #tpu.memory_space<vmem>>, vector<1x16x128xf32>
    %218 = vector.shape_cast %217 : vector<1x16x128xf32> to vector<16x128xf32>
    %cst_174 = arith.constant dense<0.000000e+00> : vector<1x128xf32>
    %219 = tpu.matmul %216, %218, %cst_174 {dimension_numbers = #tpu.dot_dimension_numbers<[1], [0], [0], [1], [0, 0, 1, 1], [], []>} : vector<1x16xf32>, vector<16x128xf32>, vector<1x128xf32> -> vector<1x128xf32>
    %220 = arith.addf %215, %219 : vector<1x128xf32>
    %221 = vector.extract_strided_slice %163 {offsets = [11, 0], sizes = [1, 16], strides = [1, 1]} : vector<16x16xf32> to vector<1x16xf32>
    %c11_175 = arith.constant 11 : index
    %c0_176 = arith.constant 0 : index
    %c0_177 = arith.constant 0 : index
    %222 = vector.load %arg5[%c11_175, %c0_176, %c0_177] : memref<16x16x128xf32, #tpu.memory_space<vmem>>, vector<1x16x128xf32>
    %223 = vector.shape_cast %222 : vector<1x16x128xf32> to vector<16x128xf32>
    %cst_178 = arith.constant dense<0.000000e+00> : vector<1x128xf32>
    %224 = tpu.matmul %221, %223, %cst_178 {dimension_numbers = #tpu.dot_dimension_numbers<[1], [0], [0], [1], [0, 0, 1, 1], [], []>} : vector<1x16xf32>, vector<16x128xf32>, vector<1x128xf32> -> vector<1x128xf32>
    %225 = arith.addf %220, %224 : vector<1x128xf32>
    %226 = vector.extract_strided_slice %163 {offsets = [12, 0], sizes = [1, 16], strides = [1, 1]} : vector<16x16xf32> to vector<1x16xf32>
    %c12_179 = arith.constant 12 : index
    %c0_180 = arith.constant 0 : index
    %c0_181 = arith.constant 0 : index
    %227 = vector.load %arg5[%c12_179, %c0_180, %c0_181] : memref<16x16x128xf32, #tpu.memory_space<vmem>>, vector<1x16x128xf32>
    %228 = vector.shape_cast %227 : vector<1x16x128xf32> to vector<16x128xf32>
    %cst_182 = arith.constant dense<0.000000e+00> : vector<1x128xf32>
    %229 = tpu.matmul %226, %228, %cst_182 {dimension_numbers = #tpu.dot_dimension_numbers<[1], [0], [0], [1], [0, 0, 1, 1], [], []>} : vector<1x16xf32>, vector<16x128xf32>, vector<1x128xf32> -> vector<1x128xf32>
    %230 = arith.addf %225, %229 : vector<1x128xf32>
    %231 = vector.extract_strided_slice %163 {offsets = [13, 0], sizes = [1, 16], strides = [1, 1]} : vector<16x16xf32> to vector<1x16xf32>
    %c13_183 = arith.constant 13 : index
    %c0_184 = arith.constant 0 : index
    %c0_185 = arith.constant 0 : index
    %232 = vector.load %arg5[%c13_183, %c0_184, %c0_185] : memref<16x16x128xf32, #tpu.memory_space<vmem>>, vector<1x16x128xf32>
    %233 = vector.shape_cast %232 : vector<1x16x128xf32> to vector<16x128xf32>
    %cst_186 = arith.constant dense<0.000000e+00> : vector<1x128xf32>
    %234 = tpu.matmul %231, %233, %cst_186 {dimension_numbers = #tpu.dot_dimension_numbers<[1], [0], [0], [1], [0, 0, 1, 1], [], []>} : vector<1x16xf32>, vector<16x128xf32>, vector<1x128xf32> -> vector<1x128xf32>
    %235 = arith.addf %230, %234 : vector<1x128xf32>
    %236 = vector.extract_strided_slice %163 {offsets = [14, 0], sizes = [1, 16], strides = [1, 1]} : vector<16x16xf32> to vector<1x16xf32>
    %c14_187 = arith.constant 14 : index
    %c0_188 = arith.constant 0 : index
    %c0_189 = arith.constant 0 : index
    %237 = vector.load %arg5[%c14_187, %c0_188, %c0_189] : memref<16x16x128xf32, #tpu.memory_space<vmem>>, vector<1x16x128xf32>
    %238 = vector.shape_cast %237 : vector<1x16x128xf32> to vector<16x128xf32>
    %cst_190 = arith.constant dense<0.000000e+00> : vector<1x128xf32>
    %239 = tpu.matmul %236, %238, %cst_190 {dimension_numbers = #tpu.dot_dimension_numbers<[1], [0], [0], [1], [0, 0, 1, 1], [], []>} : vector<1x16xf32>, vector<16x128xf32>, vector<1x128xf32> -> vector<1x128xf32>
    %240 = arith.addf %235, %239 : vector<1x128xf32>
    %241 = vector.extract_strided_slice %163 {offsets = [15, 0], sizes = [1, 16], strides = [1, 1]} : vector<16x16xf32> to vector<1x16xf32>
    %c15_191 = arith.constant 15 : index
    %c0_192 = arith.constant 0 : index
    %c0_193 = arith.constant 0 : index
    %242 = vector.load %arg5[%c15_191, %c0_192, %c0_193] : memref<16x16x128xf32, #tpu.memory_space<vmem>>, vector<1x16x128xf32>
    %243 = vector.shape_cast %242 : vector<1x16x128xf32> to vector<16x128xf32>
    %cst_194 = arith.constant dense<0.000000e+00> : vector<1x128xf32>
    %244 = tpu.matmul %241, %243, %cst_194 {dimension_numbers = #tpu.dot_dimension_numbers<[1], [0], [0], [1], [0, 0, 1, 1], [], []>} : vector<1x16xf32>, vector<16x128xf32>, vector<1x128xf32> -> vector<1x128xf32>
    %245 = arith.addf %240, %244 : vector<1x128xf32>
    %c1_195 = arith.constant 1 : index
    %c0_196 = arith.constant 0 : index
    %246 = vector.load %arg7[%c1_195, %c0_196] : memref<4x128xf32, #tpu.memory_space<vmem>>, vector<1x128xf32>
    tpu.vector_store %arg7[%c1_195, %c0_196], %245 {strides = array<i32>} : memref<4x128xf32, #tpu.memory_space<vmem>>, vector<1x128xf32>,
    %247 = vector.extract_strided_slice %78 {offsets = [37, 0], sizes = [16, 16], strides = [1, 1]} : vector<72x16xf32> to vector<16x16xf32>
    %c2_197 = arith.constant 2 : index
    %c0_198 = arith.constant 0 : index
    %c0_199 = arith.constant 0 : index
    %248 = vector.load %arg6[%c2_197, %c0_198, %c0_199] : memref<4x16x16xf32, #tpu.memory_space<vmem>>, vector<1x16x16xf32>
    %249 = vector.shape_cast %248 : vector<1x16x16xf32> to vector<16x16xf32>
    %250 = vector.shape_cast %247 : vector<16x16xf32> to vector<1x16x16xf32>
    tpu.vector_store %arg6[%c2_197, %c0_198, %c0_199], %250 {strides = array<i32>} : memref<4x16x16xf32, #tpu.memory_space<vmem>>, vector<1x16x16xf32>,
    %251 = vector.extract_strided_slice %247 {offsets = [0, 0], sizes = [1, 16], strides = [1, 1]} : vector<16x16xf32> to vector<1x16xf32>
    %c0_200 = arith.constant 0 : index
    %c0_201 = arith.constant 0 : index
    %c0_202 = arith.constant 0 : index
    %252 = vector.load %arg5[%c0_200, %c0_201, %c0_202] : memref<16x16x128xf32, #tpu.memory_space<vmem>>, vector<1x16x128xf32>
    %253 = vector.shape_cast %252 : vector<1x16x128xf32> to vector<16x128xf32>
    %cst_203 = arith.constant dense<0.000000e+00> : vector<1x128xf32>
    %254 = tpu.matmul %251, %253, %cst_203 {dimension_numbers = #tpu.dot_dimension_numbers<[1], [0], [0], [1], [0, 0, 1, 1], [], []>} : vector<1x16xf32>, vector<16x128xf32>, vector<1x128xf32> -> vector<1x128xf32>
    %255 = vector.extract_strided_slice %247 {offsets = [1, 0], sizes = [1, 16], strides = [1, 1]} : vector<16x16xf32> to vector<1x16xf32>
    %c1_204 = arith.constant 1 : index
    %c0_205 = arith.constant 0 : index
    %c0_206 = arith.constant 0 : index
    %256 = vector.load %arg5[%c1_204, %c0_205, %c0_206] : memref<16x16x128xf32, #tpu.memory_space<vmem>>, vector<1x16x128xf32>
    %257 = vector.shape_cast %256 : vector<1x16x128xf32> to vector<16x128xf32>
    %cst_207 = arith.constant dense<0.000000e+00> : vector<1x128xf32>
    %258 = tpu.matmul %255, %257, %cst_207 {dimension_numbers = #tpu.dot_dimension_numbers<[1], [0], [0], [1], [0, 0, 1, 1], [], []>} : vector<1x16xf32>, vector<16x128xf32>, vector<1x128xf32> -> vector<1x128xf32>
    %259 = arith.addf %254, %258 : vector<1x128xf32>
    %260 = vector.extract_strided_slice %247 {offsets = [2, 0], sizes = [1, 16], strides = [1, 1]} : vector<16x16xf32> to vector<1x16xf32>
    %c2_208 = arith.constant 2 : index
    %c0_209 = arith.constant 0 : index
    %c0_210 = arith.constant 0 : index
    %261 = vector.load %arg5[%c2_208, %c0_209, %c0_210] : memref<16x16x128xf32, #tpu.memory_space<vmem>>, vector<1x16x128xf32>
    %262 = vector.shape_cast %261 : vector<1x16x128xf32> to vector<16x128xf32>
    %cst_211 = arith.constant dense<0.000000e+00> : vector<1x128xf32>
    %263 = tpu.matmul %260, %262, %cst_211 {dimension_numbers = #tpu.dot_dimension_numbers<[1], [0], [0], [1], [0, 0, 1, 1], [], []>} : vector<1x16xf32>, vector<16x128xf32>, vector<1x128xf32> -> vector<1x128xf32>
    %264 = arith.addf %259, %263 : vector<1x128xf32>
    %265 = vector.extract_strided_slice %247 {offsets = [3, 0], sizes = [1, 16], strides = [1, 1]} : vector<16x16xf32> to vector<1x16xf32>
    %c3_212 = arith.constant 3 : index
    %c0_213 = arith.constant 0 : index
    %c0_214 = arith.constant 0 : index
    %266 = vector.load %arg5[%c3_212, %c0_213, %c0_214] : memref<16x16x128xf32, #tpu.memory_space<vmem>>, vector<1x16x128xf32>
    %267 = vector.shape_cast %266 : vector<1x16x128xf32> to vector<16x128xf32>
    %cst_215 = arith.constant dense<0.000000e+00> : vector<1x128xf32>
    %268 = tpu.matmul %265, %267, %cst_215 {dimension_numbers = #tpu.dot_dimension_numbers<[1], [0], [0], [1], [0, 0, 1, 1], [], []>} : vector<1x16xf32>, vector<16x128xf32>, vector<1x128xf32> -> vector<1x128xf32>
    %269 = arith.addf %264, %268 : vector<1x128xf32>
    %270 = vector.extract_strided_slice %247 {offsets = [4, 0], sizes = [1, 16], strides = [1, 1]} : vector<16x16xf32> to vector<1x16xf32>
    %c4_216 = arith.constant 4 : index
    %c0_217 = arith.constant 0 : index
    %c0_218 = arith.constant 0 : index
    %271 = vector.load %arg5[%c4_216, %c0_217, %c0_218] : memref<16x16x128xf32, #tpu.memory_space<vmem>>, vector<1x16x128xf32>
    %272 = vector.shape_cast %271 : vector<1x16x128xf32> to vector<16x128xf32>
    %cst_219 = arith.constant dense<0.000000e+00> : vector<1x128xf32>
    %273 = tpu.matmul %270, %272, %cst_219 {dimension_numbers = #tpu.dot_dimension_numbers<[1], [0], [0], [1], [0, 0, 1, 1], [], []>} : vector<1x16xf32>, vector<16x128xf32>, vector<1x128xf32> -> vector<1x128xf32>
    %274 = arith.addf %269, %273 : vector<1x128xf32>
    %275 = vector.extract_strided_slice %247 {offsets = [5, 0], sizes = [1, 16], strides = [1, 1]} : vector<16x16xf32> to vector<1x16xf32>
    %c5_220 = arith.constant 5 : index
    %c0_221 = arith.constant 0 : index
    %c0_222 = arith.constant 0 : index
    %276 = vector.load %arg5[%c5_220, %c0_221, %c0_222] : memref<16x16x128xf32, #tpu.memory_space<vmem>>, vector<1x16x128xf32>
    %277 = vector.shape_cast %276 : vector<1x16x128xf32> to vector<16x128xf32>
    %cst_223 = arith.constant dense<0.000000e+00> : vector<1x128xf32>
    %278 = tpu.matmul %275, %277, %cst_223 {dimension_numbers = #tpu.dot_dimension_numbers<[1], [0], [0], [1], [0, 0, 1, 1], [], []>} : vector<1x16xf32>, vector<16x128xf32>, vector<1x128xf32> -> vector<1x128xf32>
    %279 = arith.addf %274, %278 : vector<1x128xf32>
    %280 = vector.extract_strided_slice %247 {offsets = [6, 0], sizes = [1, 16], strides = [1, 1]} : vector<16x16xf32> to vector<1x16xf32>
    %c6_224 = arith.constant 6 : index
    %c0_225 = arith.constant 0 : index
    %c0_226 = arith.constant 0 : index
    %281 = vector.load %arg5[%c6_224, %c0_225, %c0_226] : memref<16x16x128xf32, #tpu.memory_space<vmem>>, vector<1x16x128xf32>
    %282 = vector.shape_cast %281 : vector<1x16x128xf32> to vector<16x128xf32>
    %cst_227 = arith.constant dense<0.000000e+00> : vector<1x128xf32>
    %283 = tpu.matmul %280, %282, %cst_227 {dimension_numbers = #tpu.dot_dimension_numbers<[1], [0], [0], [1], [0, 0, 1, 1], [], []>} : vector<1x16xf32>, vector<16x128xf32>, vector<1x128xf32> -> vector<1x128xf32>
    %284 = arith.addf %279, %283 : vector<1x128xf32>
    %285 = vector.extract_strided_slice %247 {offsets = [7, 0], sizes = [1, 16], strides = [1, 1]} : vector<16x16xf32> to vector<1x16xf32>
    %c7_228 = arith.constant 7 : index
    %c0_229 = arith.constant 0 : index
    %c0_230 = arith.constant 0 : index
    %286 = vector.load %arg5[%c7_228, %c0_229, %c0_230] : memref<16x16x128xf32, #tpu.memory_space<vmem>>, vector<1x16x128xf32>
    %287 = vector.shape_cast %286 : vector<1x16x128xf32> to vector<16x128xf32>
    %cst_231 = arith.constant dense<0.000000e+00> : vector<1x128xf32>
    %288 = tpu.matmul %285, %287, %cst_231 {dimension_numbers = #tpu.dot_dimension_numbers<[1], [0], [0], [1], [0, 0, 1, 1], [], []>} : vector<1x16xf32>, vector<16x128xf32>, vector<1x128xf32> -> vector<1x128xf32>
    %289 = arith.addf %284, %288 : vector<1x128xf32>
    %290 = vector.extract_strided_slice %247 {offsets = [8, 0], sizes = [1, 16], strides = [1, 1]} : vector<16x16xf32> to vector<1x16xf32>
    %c8_232 = arith.constant 8 : index
    %c0_233 = arith.constant 0 : index
    %c0_234 = arith.constant 0 : index
    %291 = vector.load %arg5[%c8_232, %c0_233, %c0_234] : memref<16x16x128xf32, #tpu.memory_space<vmem>>, vector<1x16x128xf32>
    %292 = vector.shape_cast %291 : vector<1x16x128xf32> to vector<16x128xf32>
    %cst_235 = arith.constant dense<0.000000e+00> : vector<1x128xf32>
    %293 = tpu.matmul %290, %292, %cst_235 {dimension_numbers = #tpu.dot_dimension_numbers<[1], [0], [0], [1], [0, 0, 1, 1], [], []>} : vector<1x16xf32>, vector<16x128xf32>, vector<1x128xf32> -> vector<1x128xf32>
    %294 = arith.addf %289, %293 : vector<1x128xf32>
    %295 = vector.extract_strided_slice %247 {offsets = [9, 0], sizes = [1, 16], strides = [1, 1]} : vector<16x16xf32> to vector<1x16xf32>
    %c9_236 = arith.constant 9 : index
    %c0_237 = arith.constant 0 : index
    %c0_238 = arith.constant 0 : index
    %296 = vector.load %arg5[%c9_236, %c0_237, %c0_238] : memref<16x16x128xf32, #tpu.memory_space<vmem>>, vector<1x16x128xf32>
    %297 = vector.shape_cast %296 : vector<1x16x128xf32> to vector<16x128xf32>
    %cst_239 = arith.constant dense<0.000000e+00> : vector<1x128xf32>
    %298 = tpu.matmul %295, %297, %cst_239 {dimension_numbers = #tpu.dot_dimension_numbers<[1], [0], [0], [1], [0, 0, 1, 1], [], []>} : vector<1x16xf32>, vector<16x128xf32>, vector<1x128xf32> -> vector<1x128xf32>
    %299 = arith.addf %294, %298 : vector<1x128xf32>
    %300 = vector.extract_strided_slice %247 {offsets = [10, 0], sizes = [1, 16], strides = [1, 1]} : vector<16x16xf32> to vector<1x16xf32>
    %c10_240 = arith.constant 10 : index
    %c0_241 = arith.constant 0 : index
    %c0_242 = arith.constant 0 : index
    %301 = vector.load %arg5[%c10_240, %c0_241, %c0_242] : memref<16x16x128xf32, #tpu.memory_space<vmem>>, vector<1x16x128xf32>
    %302 = vector.shape_cast %301 : vector<1x16x128xf32> to vector<16x128xf32>
    %cst_243 = arith.constant dense<0.000000e+00> : vector<1x128xf32>
    %303 = tpu.matmul %300, %302, %cst_243 {dimension_numbers = #tpu.dot_dimension_numbers<[1], [0], [0], [1], [0, 0, 1, 1], [], []>} : vector<1x16xf32>, vector<16x128xf32>, vector<1x128xf32> -> vector<1x128xf32>
    %304 = arith.addf %299, %303 : vector<1x128xf32>
    %305 = vector.extract_strided_slice %247 {offsets = [11, 0], sizes = [1, 16], strides = [1, 1]} : vector<16x16xf32> to vector<1x16xf32>
    %c11_244 = arith.constant 11 : index
    %c0_245 = arith.constant 0 : index
    %c0_246 = arith.constant 0 : index
    %306 = vector.load %arg5[%c11_244, %c0_245, %c0_246] : memref<16x16x128xf32, #tpu.memory_space<vmem>>, vector<1x16x128xf32>
    %307 = vector.shape_cast %306 : vector<1x16x128xf32> to vector<16x128xf32>
    %cst_247 = arith.constant dense<0.000000e+00> : vector<1x128xf32>
    %308 = tpu.matmul %305, %307, %cst_247 {dimension_numbers = #tpu.dot_dimension_numbers<[1], [0], [0], [1], [0, 0, 1, 1], [], []>} : vector<1x16xf32>, vector<16x128xf32>, vector<1x128xf32> -> vector<1x128xf32>
    %309 = arith.addf %304, %308 : vector<1x128xf32>
    %310 = vector.extract_strided_slice %247 {offsets = [12, 0], sizes = [1, 16], strides = [1, 1]} : vector<16x16xf32> to vector<1x16xf32>
    %c12_248 = arith.constant 12 : index
    %c0_249 = arith.constant 0 : index
    %c0_250 = arith.constant 0 : index
    %311 = vector.load %arg5[%c12_248, %c0_249, %c0_250] : memref<16x16x128xf32, #tpu.memory_space<vmem>>, vector<1x16x128xf32>
    %312 = vector.shape_cast %311 : vector<1x16x128xf32> to vector<16x128xf32>
    %cst_251 = arith.constant dense<0.000000e+00> : vector<1x128xf32>
    %313 = tpu.matmul %310, %312, %cst_251 {dimension_numbers = #tpu.dot_dimension_numbers<[1], [0], [0], [1], [0, 0, 1, 1], [], []>} : vector<1x16xf32>, vector<16x128xf32>, vector<1x128xf32> -> vector<1x128xf32>
    %314 = arith.addf %309, %313 : vector<1x128xf32>
    %315 = vector.extract_strided_slice %247 {offsets = [13, 0], sizes = [1, 16], strides = [1, 1]} : vector<16x16xf32> to vector<1x16xf32>
    %c13_252 = arith.constant 13 : index
    %c0_253 = arith.constant 0 : index
    %c0_254 = arith.constant 0 : index
    %316 = vector.load %arg5[%c13_252, %c0_253, %c0_254] : memref<16x16x128xf32, #tpu.memory_space<vmem>>, vector<1x16x128xf32>
    %317 = vector.shape_cast %316 : vector<1x16x128xf32> to vector<16x128xf32>
    %cst_255 = arith.constant dense<0.000000e+00> : vector<1x128xf32>
    %318 = tpu.matmul %315, %317, %cst_255 {dimension_numbers = #tpu.dot_dimension_numbers<[1], [0], [0], [1], [0, 0, 1, 1], [], []>} : vector<1x16xf32>, vector<16x128xf32>, vector<1x128xf32> -> vector<1x128xf32>
    %319 = arith.addf %314, %318 : vector<1x128xf32>
    %320 = vector.extract_strided_slice %247 {offsets = [14, 0], sizes = [1, 16], strides = [1, 1]} : vector<16x16xf32> to vector<1x16xf32>
    %c14_256 = arith.constant 14 : index
    %c0_257 = arith.constant 0 : index
    %c0_258 = arith.constant 0 : index
    %321 = vector.load %arg5[%c14_256, %c0_257, %c0_258] : memref<16x16x128xf32, #tpu.memory_space<vmem>>, vector<1x16x128xf32>
    %322 = vector.shape_cast %321 : vector<1x16x128xf32> to vector<16x128xf32>
    %cst_259 = arith.constant dense<0.000000e+00> : vector<1x128xf32>
    %323 = tpu.matmul %320, %322, %cst_259 {dimension_numbers = #tpu.dot_dimension_numbers<[1], [0], [0], [1], [0, 0, 1, 1], [], []>} : vector<1x16xf32>, vector<16x128xf32>, vector<1x128xf32> -> vector<1x128xf32>
    %324 = arith.addf %319, %323 : vector<1x128xf32>
    %325 = vector.extract_strided_slice %247 {offsets = [15, 0], sizes = [1, 16], strides = [1, 1]} : vector<16x16xf32> to vector<1x16xf32>
    %c15_260 = arith.constant 15 : index
    %c0_261 = arith.constant 0 : index
    %c0_262 = arith.constant 0 : index
    %326 = vector.load %arg5[%c15_260, %c0_261, %c0_262] : memref<16x16x128xf32, #tpu.memory_space<vmem>>, vector<1x16x128xf32>
    %327 = vector.shape_cast %326 : vector<1x16x128xf32> to vector<16x128xf32>
    %cst_263 = arith.constant dense<0.000000e+00> : vector<1x128xf32>
    %328 = tpu.matmul %325, %327, %cst_263 {dimension_numbers = #tpu.dot_dimension_numbers<[1], [0], [0], [1], [0, 0, 1, 1], [], []>} : vector<1x16xf32>, vector<16x128xf32>, vector<1x128xf32> -> vector<1x128xf32>
    %329 = arith.addf %324, %328 : vector<1x128xf32>
    %c2_264 = arith.constant 2 : index
    %c0_265 = arith.constant 0 : index
    %330 = vector.load %arg7[%c2_264, %c0_265] : memref<4x128xf32, #tpu.memory_space<vmem>>, vector<1x128xf32>
    tpu.vector_store %arg7[%c2_264, %c0_265], %329 {strides = array<i32>} : memref<4x128xf32, #tpu.memory_space<vmem>>, vector<1x128xf32>,
    %331 = vector.extract_strided_slice %78 {offsets = [55, 0], sizes = [16, 16], strides = [1, 1]} : vector<72x16xf32> to vector<16x16xf32>
    %c3_266 = arith.constant 3 : index
    %c0_267 = arith.constant 0 : index
    %c0_268 = arith.constant 0 : index
    %332 = vector.load %arg6[%c3_266, %c0_267, %c0_268] : memref<4x16x16xf32, #tpu.memory_space<vmem>>, vector<1x16x16xf32>
    %333 = vector.shape_cast %332 : vector<1x16x16xf32> to vector<16x16xf32>
    %334 = vector.shape_cast %331 : vector<16x16xf32> to vector<1x16x16xf32>
    tpu.vector_store %arg6[%c3_266, %c0_267, %c0_268], %334 {strides = array<i32>} : memref<4x16x16xf32, #tpu.memory_space<vmem>>, vector<1x16x16xf32>,
    %335 = vector.extract_strided_slice %331 {offsets = [0, 0], sizes = [1, 16], strides = [1, 1]} : vector<16x16xf32> to vector<1x16xf32>
    %c0_269 = arith.constant 0 : index
    %c0_270 = arith.constant 0 : index
    %c0_271 = arith.constant 0 : index
    %336 = vector.load %arg5[%c0_269, %c0_270, %c0_271] : memref<16x16x128xf32, #tpu.memory_space<vmem>>, vector<1x16x128xf32>
    %337 = vector.shape_cast %336 : vector<1x16x128xf32> to vector<16x128xf32>
    %cst_272 = arith.constant dense<0.000000e+00> : vector<1x128xf32>
    %338 = tpu.matmul %335, %337, %cst_272 {dimension_numbers = #tpu.dot_dimension_numbers<[1], [0], [0], [1], [0, 0, 1, 1], [], []>} : vector<1x16xf32>, vector<16x128xf32>, vector<1x128xf32> -> vector<1x128xf32>
    %339 = vector.extract_strided_slice %331 {offsets = [1, 0], sizes = [1, 16], strides = [1, 1]} : vector<16x16xf32> to vector<1x16xf32>
    %c1_273 = arith.constant 1 : index
    %c0_274 = arith.constant 0 : index
    %c0_275 = arith.constant 0 : index
    %340 = vector.load %arg5[%c1_273, %c0_274, %c0_275] : memref<16x16x128xf32, #tpu.memory_space<vmem>>, vector<1x16x128xf32>
    %341 = vector.shape_cast %340 : vector<1x16x128xf32> to vector<16x128xf32>
    %cst_276 = arith.constant dense<0.000000e+00> : vector<1x128xf32>
    %342 = tpu.matmul %339, %341, %cst_276 {dimension_numbers = #tpu.dot_dimension_numbers<[1], [0], [0], [1], [0, 0, 1, 1], [], []>} : vector<1x16xf32>, vector<16x128xf32>, vector<1x128xf32> -> vector<1x128xf32>
    %343 = arith.addf %338, %342 : vector<1x128xf32>
    %344 = vector.extract_strided_slice %331 {offsets = [2, 0], sizes = [1, 16], strides = [1, 1]} : vector<16x16xf32> to vector<1x16xf32>
    %c2_277 = arith.constant 2 : index
    %c0_278 = arith.constant 0 : index
    %c0_279 = arith.constant 0 : index
    %345 = vector.load %arg5[%c2_277, %c0_278, %c0_279] : memref<16x16x128xf32, #tpu.memory_space<vmem>>, vector<1x16x128xf32>
    %346 = vector.shape_cast %345 : vector<1x16x128xf32> to vector<16x128xf32>
    %cst_280 = arith.constant dense<0.000000e+00> : vector<1x128xf32>
    %347 = tpu.matmul %344, %346, %cst_280 {dimension_numbers = #tpu.dot_dimension_numbers<[1], [0], [0], [1], [0, 0, 1, 1], [], []>} : vector<1x16xf32>, vector<16x128xf32>, vector<1x128xf32> -> vector<1x128xf32>
    %348 = arith.addf %343, %347 : vector<1x128xf32>
    %349 = vector.extract_strided_slice %331 {offsets = [3, 0], sizes = [1, 16], strides = [1, 1]} : vector<16x16xf32> to vector<1x16xf32>
    %c3_281 = arith.constant 3 : index
    %c0_282 = arith.constant 0 : index
    %c0_283 = arith.constant 0 : index
    %350 = vector.load %arg5[%c3_281, %c0_282, %c0_283] : memref<16x16x128xf32, #tpu.memory_space<vmem>>, vector<1x16x128xf32>
    %351 = vector.shape_cast %350 : vector<1x16x128xf32> to vector<16x128xf32>
    %cst_284 = arith.constant dense<0.000000e+00> : vector<1x128xf32>
    %352 = tpu.matmul %349, %351, %cst_284 {dimension_numbers = #tpu.dot_dimension_numbers<[1], [0], [0], [1], [0, 0, 1, 1], [], []>} : vector<1x16xf32>, vector<16x128xf32>, vector<1x128xf32> -> vector<1x128xf32>
    %353 = arith.addf %348, %352 : vector<1x128xf32>
    %354 = vector.extract_strided_slice %331 {offsets = [4, 0], sizes = [1, 16], strides = [1, 1]} : vector<16x16xf32> to vector<1x16xf32>
    %c4_285 = arith.constant 4 : index
    %c0_286 = arith.constant 0 : index
    %c0_287 = arith.constant 0 : index
    %355 = vector.load %arg5[%c4_285, %c0_286, %c0_287] : memref<16x16x128xf32, #tpu.memory_space<vmem>>, vector<1x16x128xf32>
    %356 = vector.shape_cast %355 : vector<1x16x128xf32> to vector<16x128xf32>
    %cst_288 = arith.constant dense<0.000000e+00> : vector<1x128xf32>
    %357 = tpu.matmul %354, %356, %cst_288 {dimension_numbers = #tpu.dot_dimension_numbers<[1], [0], [0], [1], [0, 0, 1, 1], [], []>} : vector<1x16xf32>, vector<16x128xf32>, vector<1x128xf32> -> vector<1x128xf32>
    %358 = arith.addf %353, %357 : vector<1x128xf32>
    %359 = vector.extract_strided_slice %331 {offsets = [5, 0], sizes = [1, 16], strides = [1, 1]} : vector<16x16xf32> to vector<1x16xf32>
    %c5_289 = arith.constant 5 : index
    %c0_290 = arith.constant 0 : index
    %c0_291 = arith.constant 0 : index
    %360 = vector.load %arg5[%c5_289, %c0_290, %c0_291] : memref<16x16x128xf32, #tpu.memory_space<vmem>>, vector<1x16x128xf32>
    %361 = vector.shape_cast %360 : vector<1x16x128xf32> to vector<16x128xf32>
    %cst_292 = arith.constant dense<0.000000e+00> : vector<1x128xf32>
    %362 = tpu.matmul %359, %361, %cst_292 {dimension_numbers = #tpu.dot_dimension_numbers<[1], [0], [0], [1], [0, 0, 1, 1], [], []>} : vector<1x16xf32>, vector<16x128xf32>, vector<1x128xf32> -> vector<1x128xf32>
    %363 = arith.addf %358, %362 : vector<1x128xf32>
    %364 = vector.extract_strided_slice %331 {offsets = [6, 0], sizes = [1, 16], strides = [1, 1]} : vector<16x16xf32> to vector<1x16xf32>
    %c6_293 = arith.constant 6 : index
    %c0_294 = arith.constant 0 : index
    %c0_295 = arith.constant 0 : index
    %365 = vector.load %arg5[%c6_293, %c0_294, %c0_295] : memref<16x16x128xf32, #tpu.memory_space<vmem>>, vector<1x16x128xf32>
    %366 = vector.shape_cast %365 : vector<1x16x128xf32> to vector<16x128xf32>
    %cst_296 = arith.constant dense<0.000000e+00> : vector<1x128xf32>
    %367 = tpu.matmul %364, %366, %cst_296 {dimension_numbers = #tpu.dot_dimension_numbers<[1], [0], [0], [1], [0, 0, 1, 1], [], []>} : vector<1x16xf32>, vector<16x128xf32>, vector<1x128xf32> -> vector<1x128xf32>
    %368 = arith.addf %363, %367 : vector<1x128xf32>
    %369 = vector.extract_strided_slice %331 {offsets = [7, 0], sizes = [1, 16], strides = [1, 1]} : vector<16x16xf32> to vector<1x16xf32>
    %c7_297 = arith.constant 7 : index
    %c0_298 = arith.constant 0 : index
    %c0_299 = arith.constant 0 : index
    %370 = vector.load %arg5[%c7_297, %c0_298, %c0_299] : memref<16x16x128xf32, #tpu.memory_space<vmem>>, vector<1x16x128xf32>
    %371 = vector.shape_cast %370 : vector<1x16x128xf32> to vector<16x128xf32>
    %cst_300 = arith.constant dense<0.000000e+00> : vector<1x128xf32>
    %372 = tpu.matmul %369, %371, %cst_300 {dimension_numbers = #tpu.dot_dimension_numbers<[1], [0], [0], [1], [0, 0, 1, 1], [], []>} : vector<1x16xf32>, vector<16x128xf32>, vector<1x128xf32> -> vector<1x128xf32>
    %373 = arith.addf %368, %372 : vector<1x128xf32>
    %374 = vector.extract_strided_slice %331 {offsets = [8, 0], sizes = [1, 16], strides = [1, 1]} : vector<16x16xf32> to vector<1x16xf32>
    %c8_301 = arith.constant 8 : index
    %c0_302 = arith.constant 0 : index
    %c0_303 = arith.constant 0 : index
    %375 = vector.load %arg5[%c8_301, %c0_302, %c0_303] : memref<16x16x128xf32, #tpu.memory_space<vmem>>, vector<1x16x128xf32>
    %376 = vector.shape_cast %375 : vector<1x16x128xf32> to vector<16x128xf32>
    %cst_304 = arith.constant dense<0.000000e+00> : vector<1x128xf32>
    %377 = tpu.matmul %374, %376, %cst_304 {dimension_numbers = #tpu.dot_dimension_numbers<[1], [0], [0], [1], [0, 0, 1, 1], [], []>} : vector<1x16xf32>, vector<16x128xf32>, vector<1x128xf32> -> vector<1x128xf32>
    %378 = arith.addf %373, %377 : vector<1x128xf32>
    %379 = vector.extract_strided_slice %331 {offsets = [9, 0], sizes = [1, 16], strides = [1, 1]} : vector<16x16xf32> to vector<1x16xf32>
    %c9_305 = arith.constant 9 : index
    %c0_306 = arith.constant 0 : index
    %c0_307 = arith.constant 0 : index
    %380 = vector.load %arg5[%c9_305, %c0_306, %c0_307] : memref<16x16x128xf32, #tpu.memory_space<vmem>>, vector<1x16x128xf32>
    %381 = vector.shape_cast %380 : vector<1x16x128xf32> to vector<16x128xf32>
    %cst_308 = arith.constant dense<0.000000e+00> : vector<1x128xf32>
    %382 = tpu.matmul %379, %381, %cst_308 {dimension_numbers = #tpu.dot_dimension_numbers<[1], [0], [0], [1], [0, 0, 1, 1], [], []>} : vector<1x16xf32>, vector<16x128xf32>, vector<1x128xf32> -> vector<1x128xf32>
    %383 = arith.addf %378, %382 : vector<1x128xf32>
    %384 = vector.extract_strided_slice %331 {offsets = [10, 0], sizes = [1, 16], strides = [1, 1]} : vector<16x16xf32> to vector<1x16xf32>
    %c10_309 = arith.constant 10 : index
    %c0_310 = arith.constant 0 : index
    %c0_311 = arith.constant 0 : index
    %385 = vector.load %arg5[%c10_309, %c0_310, %c0_311] : memref<16x16x128xf32, #tpu.memory_space<vmem>>, vector<1x16x128xf32>
    %386 = vector.shape_cast %385 : vector<1x16x128xf32> to vector<16x128xf32>
    %cst_312 = arith.constant dense<0.000000e+00> : vector<1x128xf32>
    %387 = tpu.matmul %384, %386, %cst_312 {dimension_numbers = #tpu.dot_dimension_numbers<[1], [0], [0], [1], [0, 0, 1, 1], [], []>} : vector<1x16xf32>, vector<16x128xf32>, vector<1x128xf32> -> vector<1x128xf32>
    %388 = arith.addf %383, %387 : vector<1x128xf32>
    %389 = vector.extract_strided_slice %331 {offsets = [11, 0], sizes = [1, 16], strides = [1, 1]} : vector<16x16xf32> to vector<1x16xf32>
    %c11_313 = arith.constant 11 : index
    %c0_314 = arith.constant 0 : index
    %c0_315 = arith.constant 0 : index
    %390 = vector.load %arg5[%c11_313, %c0_314, %c0_315] : memref<16x16x128xf32, #tpu.memory_space<vmem>>, vector<1x16x128xf32>
    %391 = vector.shape_cast %390 : vector<1x16x128xf32> to vector<16x128xf32>
    %cst_316 = arith.constant dense<0.000000e+00> : vector<1x128xf32>
    %392 = tpu.matmul %389, %391, %cst_316 {dimension_numbers = #tpu.dot_dimension_numbers<[1], [0], [0], [1], [0, 0, 1, 1], [], []>} : vector<1x16xf32>, vector<16x128xf32>, vector<1x128xf32> -> vector<1x128xf32>
    %393 = arith.addf %388, %392 : vector<1x128xf32>
    %394 = vector.extract_strided_slice %331 {offsets = [12, 0], sizes = [1, 16], strides = [1, 1]} : vector<16x16xf32> to vector<1x16xf32>
    %c12_317 = arith.constant 12 : index
    %c0_318 = arith.constant 0 : index
    %c0_319 = arith.constant 0 : index
    %395 = vector.load %arg5[%c12_317, %c0_318, %c0_319] : memref<16x16x128xf32, #tpu.memory_space<vmem>>, vector<1x16x128xf32>
    %396 = vector.shape_cast %395 : vector<1x16x128xf32> to vector<16x128xf32>
    %cst_320 = arith.constant dense<0.000000e+00> : vector<1x128xf32>
    %397 = tpu.matmul %394, %396, %cst_320 {dimension_numbers = #tpu.dot_dimension_numbers<[1], [0], [0], [1], [0, 0, 1, 1], [], []>} : vector<1x16xf32>, vector<16x128xf32>, vector<1x128xf32> -> vector<1x128xf32>
    %398 = arith.addf %393, %397 : vector<1x128xf32>
    %399 = vector.extract_strided_slice %331 {offsets = [13, 0], sizes = [1, 16], strides = [1, 1]} : vector<16x16xf32> to vector<1x16xf32>
    %c13_321 = arith.constant 13 : index
    %c0_322 = arith.constant 0 : index
    %c0_323 = arith.constant 0 : index
    %400 = vector.load %arg5[%c13_321, %c0_322, %c0_323] : memref<16x16x128xf32, #tpu.memory_space<vmem>>, vector<1x16x128xf32>
    %401 = vector.shape_cast %400 : vector<1x16x128xf32> to vector<16x128xf32>
    %cst_324 = arith.constant dense<0.000000e+00> : vector<1x128xf32>
    %402 = tpu.matmul %399, %401, %cst_324 {dimension_numbers = #tpu.dot_dimension_numbers<[1], [0], [0], [1], [0, 0, 1, 1], [], []>} : vector<1x16xf32>, vector<16x128xf32>, vector<1x128xf32> -> vector<1x128xf32>
    %403 = arith.addf %398, %402 : vector<1x128xf32>
    %404 = vector.extract_strided_slice %331 {offsets = [14, 0], sizes = [1, 16], strides = [1, 1]} : vector<16x16xf32> to vector<1x16xf32>
    %c14_325 = arith.constant 14 : index
    %c0_326 = arith.constant 0 : index
    %c0_327 = arith.constant 0 : index
    %405 = vector.load %arg5[%c14_325, %c0_326, %c0_327] : memref<16x16x128xf32, #tpu.memory_space<vmem>>, vector<1x16x128xf32>
    %406 = vector.shape_cast %405 : vector<1x16x128xf32> to vector<16x128xf32>
    %cst_328 = arith.constant dense<0.000000e+00> : vector<1x128xf32>
    %407 = tpu.matmul %404, %406, %cst_328 {dimension_numbers = #tpu.dot_dimension_numbers<[1], [0], [0], [1], [0, 0, 1, 1], [], []>} : vector<1x16xf32>, vector<16x128xf32>, vector<1x128xf32> -> vector<1x128xf32>
    %408 = arith.addf %403, %407 : vector<1x128xf32>
    %409 = vector.extract_strided_slice %331 {offsets = [15, 0], sizes = [1, 16], strides = [1, 1]} : vector<16x16xf32> to vector<1x16xf32>
    %c15_329 = arith.constant 15 : index
    %c0_330 = arith.constant 0 : index
    %c0_331 = arith.constant 0 : index
    %410 = vector.load %arg5[%c15_329, %c0_330, %c0_331] : memref<16x16x128xf32, #tpu.memory_space<vmem>>, vector<1x16x128xf32>
    %411 = vector.shape_cast %410 : vector<1x16x128xf32> to vector<16x128xf32>
    %cst_332 = arith.constant dense<0.000000e+00> : vector<1x128xf32>
    %412 = tpu.matmul %409, %411, %cst_332 {dimension_numbers = #tpu.dot_dimension_numbers<[1], [0], [0], [1], [0, 0, 1, 1], [], []>} : vector<1x16xf32>, vector<16x128xf32>, vector<1x128xf32> -> vector<1x128xf32>
    %413 = arith.addf %408, %412 : vector<1x128xf32>
    %c3_333 = arith.constant 3 : index
    %c0_334 = arith.constant 0 : index
    %414 = vector.load %arg7[%c3_333, %c0_334] : memref<4x128xf32, #tpu.memory_space<vmem>>, vector<1x128xf32>
    tpu.vector_store %arg7[%c3_333, %c0_334], %413 {strides = array<i32>} : memref<4x128xf32, #tpu.memory_space<vmem>>, vector<1x128xf32>,
    return
  }
}

</mosaic_0001>

<llo_original>
// kernel: transform_forward.1
$region0: #{transform_forward.1}
  #allocation0 [shape = 'u32[]', space=smem, size = 0x4, offset = 0x4, fixed_abs, tag = 'smem constant byte address 0x4 - core index']
  #allocation1 [shape = 'u32[144,128]{1,0:T(1,128)}', space=vmem, size = 0x12000, scoped, tag = 'internal scratch']
  #allocation2 [shape = 'f32[74,8]{1,0:T(8,128)}', space=vmem, size = 0xa000, scoped, tag = 'scratch operand']
  #allocation3 [shape = 'f32[74,16]{1,0:T(8,128)}', space=vmem, size = 0xa000, scoped, tag = 'scratch operand']
  %s0 = inlined_call_operand.vmem [shape: f32[74,2], index: 0, kind: input, shape index: {}]
  %s1 = inlined_call_operand.vmem [shape: f32[72,1], index: 1, kind: input, shape index: {}]
  %s2 = inlined_call_operand.vmem [shape: f32[3,2,8], index: 2, kind: input, shape index: {}]
  %s3 = inlined_call_operand.vmem [shape: f32[3,8,16], index: 3, kind: input, shape index: {}]
  %s4 = inlined_call_operand.vmem [shape: f32[3,16,16], index: 4, kind: input, shape index: {}]
  %s5 = inlined_call_operand.vmem [shape: f32[16,16,128], index: 5, kind: input, shape index: {}]
  %s6 = inlined_call_operand.vmem [shape: f32[4,16,16], index: 6, kind: output, shape index: {0}]
  %s7 = inlined_call_operand.hbm [shape: f32[4,128], index: 7, kind: output, shape index: {1}]
  %8 = xla_tuple %s6, %s7
  %s9 = sld [smem:[#allocation0]]
  $region42: #{transform_forward.1} parent=0
    _
  %s11 = ssub.s32 1, %s9
  %s12 = scalar_select 0, %s11, %s9
  $region1: #{transform_forward.1} parent=0
    #allocation4 [shape = 'u8[2048]{0}', space=vmem, size = 0x800, scoped, tag = 'output window, operand 1, single buffered']
    #allocation5 [shape = 's32[1]{0}', space=sflag, size = 0x4, scoped, tag = 'scoped memory for transform_forward.1']
    %13 = vsyncpa [#allocation5], 0
    // Predicated region
    $region2: #{transform_forward.1} parent=1 // pred_check
      _
    $region3: #{transform_forward.1} parent=1 // pred_check_branch
      %15 = sbr.rel (0) target = $region5
    $region4: #{transform_forward.1} parent=1 // pred_region
      _
    $region5: #{transform_forward.1} parent=1 // pred_fallthru
      _
    // Predicated region
    $region6: #{transform_forward.1} parent=1 // pred_check
      _
    $region7: #{transform_forward.1} parent=1 // pred_check_branch
      %17 = sbr.rel (0) target = $region9
    $region8: #{transform_forward.1} parent=1 // pred_region
      _
    $region9: #{transform_forward.1} parent=1 // pred_fallthru
      _
    // Predicated region
    $region10: #{transform_forward.1} parent=1 // pred_check
      _
    $region11: #{transform_forward.1} parent=1 // pred_check_branch
      %19 = sbr.rel (0) target = $region13
    $region12: #{transform_forward.1} parent=1 // pred_region
      _
    $region13: #{transform_forward.1} parent=1 // pred_fallthru
      _
    // Predicated region
    $region14: #{transform_forward.1} parent=1 // pred_check
      _
    $region15: #{transform_forward.1} parent=1 // pred_check_branch
      %21 = sbr.rel (0) target = $region17
    $region16: #{transform_forward.1} parent=1 // pred_region
      _
    $region17: #{transform_forward.1} parent=1 // pred_fallthru
      _
    // Predicated region
    $region18: #{transform_forward.1} parent=1 // pred_check
      _
    $region19: #{transform_forward.1} parent=1 // pred_check_branch
      %23 = sbr.rel (0) target = $region21
    $region20: #{transform_forward.1} parent=1 // pred_region
      _
    $region21: #{transform_forward.1} parent=1 // pred_fallthru
      _
    // Predicated region
    $region22: #{transform_forward.1} parent=1 // pred_check
      _
    $region23: #{transform_forward.1} parent=1 // pred_check_branch
      %25 = sbr.rel (0) target = $region25
    $region24: #{transform_forward.1} parent=1 // pred_region
      _
    $region25: #{transform_forward.1} parent=1 // pred_fallthru
      _
    %v26 = vld [vmem:[%s1] sm:$0xff]
    %v27 = vld [vmem:[%s1 + $0x8] sm:$0xff]
    %v28 = vld [vmem:[%s1 + $0x10] sm:$0xff]
    %v29 = vld [vmem:[%s1 + $0x18] sm:$0xff]
    %v30 = vld [vmem:[%s1 + $0x20] sm:$0xff]
    %v31 = vld [vmem:[%s1 + $0x28] sm:$0xff]
    %v32 = vld [vmem:[%s1 + $0x30] sm:$0xff]
    %v33 = vld [vmem:[%s1 + $0x38] sm:$0xff]
    %v34 = vld [vmem:[%s1 + $0x40] sm:$0xff]
    %vm35 = vcmask 64512
    %36 = vst.msk [vmem:[#allocation2] sm:$0xff] %vm35, 0.0
    %37 = vst.msk [vmem:[#allocation2 + $0x8] sm:$0xff] %vm35, 0.0
    %38 = vst.msk [vmem:[#allocation2 + $0x10] sm:$0xff] %vm35, 0.0
    %39 = vst.msk [vmem:[#allocation2 + $0x18] sm:$0xff] %vm35, 0.0
    %40 = vst.msk [vmem:[#allocation2 + $0x20] sm:$0xff] %vm35, 0.0
    %41 = vst.msk [vmem:[#allocation2 + $0x28] sm:$0xff] %vm35, 0.0
    %42 = vst.msk [vmem:[#allocation2 + $0x30] sm:$0xff] %vm35, 0.0
    %43 = vst.msk [vmem:[#allocation2 + $0x38] sm:$0xff] %vm35, 0.0
    %44 = vst.msk [vmem:[#allocation2 + $0x40] sm:$0xff] %vm35, 0.0
    %vm45 = vcmask 58368
    %46 = vst.msk [vmem:[#allocation2 + $0x48] sm:$0x3] %vm45, 0.0
    %vm47 = vcmask 130048
    %48 = vst.msk [vmem:[#allocation3] sm:$0xff] %vm47, 0.0
    %49 = vst.msk [vmem:[#allocation3 + $0x8] sm:$0xff] %vm47, 0.0
    %50 = vst.msk [vmem:[#allocation3 + $0x10] sm:$0xff] %vm47, 0.0
    %51 = vst.msk [vmem:[#allocation3 + $0x18] sm:$0xff] %vm47, 0.0
    %52 = vst.msk [vmem:[#allocation3 + $0x20] sm:$0xff] %vm47, 0.0
    %53 = vst.msk [vmem:[#allocation3 + $0x28] sm:$0xff] %vm47, 0.0
    %54 = vst.msk [vmem:[#allocation3 + $0x30] sm:$0xff] %vm47, 0.0
    %55 = vst.msk [vmem:[#allocation3 + $0x38] sm:$0xff] %vm47, 0.0
    %56 = vst.msk [vmem:[#allocation3 + $0x40] sm:$0xff] %vm47, 0.0
    %vm57 = vcmask 123904
    %58 = vst.msk [vmem:[#allocation3 + $0x48] sm:$0x3] %vm57, 0.0
    %v59 = vld [vmem:[%s0] sm:$0xff]
    %v60 = vld [vmem:[%s0 + $0x8] sm:$0xff]
    %v61 = vld [vmem:[%s0 + $0x10] sm:$0xff]
    %v62 = vld [vmem:[%s0 + $0x18] sm:$0xff]
    %v63 = vld [vmem:[%s0 + $0x20] sm:$0xff]
    %v64 = vld [vmem:[%s0 + $0x28] sm:$0xff]
    %v65 = vld [vmem:[%s0 + $0x30] sm:$0xff]
    %v66 = vld [vmem:[%s0 + $0x38] sm:$0xff]
    %v67 = vld [vmem:[%s0 + $0x40] sm:$0xff]
    %v68 = vld [vmem:[%s2] sm:$0x3]
    %v69 = vld [vmem:[%s0 + $0x1] sm:$0xff]
    %v70 = vld [vmem:[%s0 + $0x9] sm:$0xff]
    %v71 = vld [vmem:[%s0 + $0x11] sm:$0xff]
    %v72 = vld [vmem:[%s0 + $0x19] sm:$0xff]
    %v73 = vld [vmem:[%s0 + $0x21] sm:$0xff]
    %v74 = vld [vmem:[%s0 + $0x29] sm:$0xff]
    %v75 = vld [vmem:[%s0 + $0x31] sm:$0xff]
    %v76 = vld [vmem:[%s0 + $0x39] sm:$0xff]
    %v77 = vld [vmem:[%s0 + $0x41] sm:$0xff]
    %s78 = scalar_lea.vmem %s2, 2
    %v79 = vld [vmem:[%s78] sm:$0x3]
    %vm80 = vcmask 15360
    %v82 = vsel %vm80, %v69, 0
    %v85 = vsel %vm80, %v70, 0
    %v88 = vsel %vm80, %v71, 0
    %v91 = vsel %vm80, %v72, 0
    %v94 = vsel %vm80, %v73, 0
    %v97 = vsel %vm80, %v74, 0
    %v100 = vsel %vm80, %v75, 0
    %v103 = vsel %vm80, %v76, 0
    %v106 = vsel %vm80, %v77, 0
    %vm108 = vcmask 1041408
    %v110 = vsel %vm108, %v79, 0
    %112 = vmatprep.subr.mxu0 0.0
    %113 = vmatpush1.msra.mxu0 0.0
    %114 = vmatprep.subr.mxu0 0.0
    %115 = vmatpush1.msra.mxu0 0.0
    %116 = vmatprep.subr.mxu0 0.0
    %117 = vmatpush1.msra.mxu0 0.0
    %118 = vmatprep.subr.mxu0 0.0
    %119 = vmatpush1.msra.mxu0 0.0
    %120 = vmatprep.subr.mxu0 0.0
    %121 = vmatpush1.msra.mxu0 0.0
    %122 = vmatprep.subr.mxu0 0.0
    %123 = vmatpush1.msra.mxu0 0.0
    %124 = vmatprep.subr.mxu0 0.0
    %125 = vmatpush1.msra.mxu0 0.0
    %126 = vmatprep.subr.mxu0 0.0
    %127 = vmatpush1.msra.mxu0 0.0
    %128 = vmatprep.subr.mxu0 0.0
    %129 = vmatpush1.msra.mxu0 0.0
    %130 = vmatprep.subr.mxu0 0.0
    %131 = vmatpush1.msra.mxu0 0.0
    %132 = vmatprep.subr.mxu0 0.0
    %133 = vmatpush1.msra.mxu0 0.0
    %134 = vmatprep.subr.mxu0 0.0
    %135 = vmatpush1.msra.mxu0 0.0
    %136 = vmatprep.subr.mxu0 0.0
    %137 = vmatpush1.msra.mxu0 0.0
    %138 = vmatprep.subr.mxu0 0.0
    %139 = vmatpush1.msra.mxu0 0.0
    %140 = vmatprep.subr.mxu0 0.0
    %141 = vmatpush1.msra.mxu0 0.0
    %142 = vmatprep.subr.mxu0 0.0
    %143 = vmatpush1.msra.mxu0 %v110
    %144 = vmatprep.subr.mxu0 0.0
    %145 = vmatpush2.msra.mxu0 0.0
    %146 = vmatprep.subr.mxu0 0.0
    %147 = vmatpush2.msra.mxu0 0.0
    %148 = vmatprep.subr.mxu0 0.0
    %149 = vmatpush2.msra.mxu0 0.0
    %150 = vmatprep.subr.mxu0 0.0
    %151 = vmatpush2.msra.mxu0 0.0
    %152 = vmatprep.subr.mxu0 0.0
    %153 = vmatpush2.msra.mxu0 0.0
    %154 = vmatprep.subr.mxu0 0.0
    %155 = vmatpush2.msra.mxu0 0.0
    %156 = vmatprep.subr.mxu0 0.0
    %157 = vmatpush2.msra.mxu0 0.0
    %158 = vmatprep.subr.mxu0 0.0
    %159 = vmatpush2.msra.mxu0 0.0
    %160 = vmatprep.subr.mxu0 0.0
    %161 = vmatpush2.msra.mxu0 0.0
    %162 = vmatprep.subr.mxu0 0.0
    %163 = vmatpush2.msra.mxu0 0.0
    %164 = vmatprep.subr.mxu0 0.0
    %165 = vmatpush2.msra.mxu0 0.0
    %166 = vmatprep.subr.mxu0 0.0
    %167 = vmatpush2.msra.mxu0 0.0
    %168 = vmatprep.subr.mxu0 0.0
    %169 = vmatpush2.msra.mxu0 0.0
    %170 = vmatprep.subr.mxu0 0.0
    %171 = vmatpush2.msra.mxu0 0.0
    %172 = vmatprep.subr.mxu0 0.0
    %173 = vmatpush2.msra.mxu0 0.0
    %174 = vmatprep.subr.mxu0 0.0
    %175 = vmatpush2.msra.mxu0 0.0
    %176 = vmatprep.mubr.f32.mxu0 0.0
    %177 = vmatmul.mubr.f32.gmra.mxu0 %v82
    %v178 = vpop.f32.mrf.mxu0
    %v179 = vadd.f32 0.0, %v178
    %v180 = vpop.f32.mrf.mxu0
    %181 = vmatprep.mubr.f32.mxu0 0.0
    %182 = vmatmul.mubr.f32.gmra.mxu0 %v85
    %v183 = vpop.f32.mrf.mxu0
    %v184 = vadd.f32 0.0, %v183
    %v185 = vpop.f32.mrf.mxu0
    %186 = vmatprep.mubr.f32.mxu0 0.0
    %187 = vmatmul.mubr.f32.gmra.mxu0 %v88
    %v188 = vpop.f32.mrf.mxu0
    %v189 = vadd.f32 0.0, %v188
    %v190 = vpop.f32.mrf.mxu0
    %191 = vmatprep.mubr.f32.mxu0 0.0
    %192 = vmatmul.mubr.f32.gmra.mxu0 %v91
    %v193 = vpop.f32.mrf.mxu0
    %v194 = vadd.f32 0.0, %v193
    %v195 = vpop.f32.mrf.mxu0
    %196 = vmatprep.mubr.f32.mxu0 0.0
    %197 = vmatmul.mubr.f32.gmra.mxu0 %v94
    %v198 = vpop.f32.mrf.mxu0
    %v199 = vadd.f32 0.0, %v198
    %v200 = vpop.f32.mrf.mxu0
    %201 = vmatprep.mubr.f32.mxu0 0.0
    %202 = vmatmul.mubr.f32.gmra.mxu0 %v97
    %v203 = vpop.f32.mrf.mxu0
    %v204 = vadd.f32 0.0, %v203
    %v205 = vpop.f32.mrf.mxu0
    %206 = vmatprep.mubr.f32.mxu0 0.0
    %207 = vmatmul.mubr.f32.gmra.mxu0 %v100
    %v208 = vpop.f32.mrf.mxu0
    %v209 = vadd.f32 0.0, %v208
    %v210 = vpop.f32.mrf.mxu0
    %211 = vmatprep.mubr.f32.mxu0 0.0
    %212 = vmatmul.mubr.f32.gmra.mxu0 %v103
    %v213 = vpop.f32.mrf.mxu0
    %v214 = vadd.f32 0.0, %v213
    %v215 = vpop.f32.mrf.mxu0
    %216 = vmatprep.mubr.f32.mxu0 0.0
    %217 = vmatmul.mubr.f32.gmra.mxu0 %v106
    %v218 = vpop.f32.mrf.mxu0
    %v219 = vadd.f32 0.0, %v218
    %v220 = vpop.f32.mrf.mxu0
    %221 = vdwg.mxu0
    %v223 = vsel %vm80, %v59, 0
    %v226 = vsel %vm80, %v60, 0
    %v229 = vsel %vm80, %v61, 0
    %v232 = vsel %vm80, %v62, 0
    %v235 = vsel %vm80, %v63, 0
    %v238 = vsel %vm80, %v64, 0
    %v241 = vsel %vm80, %v65, 0
    %v244 = vsel %vm80, %v66, 0
    %v247 = vsel %vm80, %v67, 0
    %v250 = vsel %vm108, %v68, 0
    %252 = vmatprep.subr.mxu0 0.0
    %253 = vmatpush1.msra.mxu0 0.0
    %254 = vmatprep.subr.mxu0 0.0
    %255 = vmatpush1.msra.mxu0 0.0
    %256 = vmatprep.subr.mxu0 0.0
    %257 = vmatpush1.msra.mxu0 0.0
    %258 = vmatprep.subr.mxu0 0.0
    %259 = vmatpush1.msra.mxu0 0.0
    %260 = vmatprep.subr.mxu0 0.0
    %261 = vmatpush1.msra.mxu0 0.0
    %262 = vmatprep.subr.mxu0 0.0
    %263 = vmatpush1.msra.mxu0 0.0
    %264 = vmatprep.subr.mxu0 0.0
    %265 = vmatpush1.msra.mxu0 0.0
    %266 = vmatprep.subr.mxu0 0.0
    %267 = vmatpush1.msra.mxu0 0.0
    %268 = vmatprep.subr.mxu0 0.0
    %269 = vmatpush1.msra.mxu0 0.0
    %270 = vmatprep.subr.mxu0 0.0
    %271 = vmatpush1.msra.mxu0 0.0
    %272 = vmatprep.subr.mxu0 0.0
    %273 = vmatpush1.msra.mxu0 0.0
    %274 = vmatprep.subr.mxu0 0.0
    %275 = vmatpush1.msra.mxu0 0.0
    %276 = vmatprep.subr.mxu0 0.0
    %277 = vmatpush1.msra.mxu0 0.0
    %278 = vmatprep.subr.mxu0 0.0
    %279 = vmatpush1.msra.mxu0 0.0
    %280 = vmatprep.subr.mxu0 0.0
    %281 = vmatpush1.msra.mxu0 0.0
    %282 = vmatprep.subr.mxu0 0.0
    %283 = vmatpush1.msra.mxu0 %v250
    %284 = vmatprep.subr.mxu0 0.0
    %285 = vmatpush2.msra.mxu0 0.0
    %286 = vmatprep.subr.mxu0 0.0
    %287 = vmatpush2.msra.mxu0 0.0
    %288 = vmatprep.subr.mxu0 0.0
    %289 = vmatpush2.msra.mxu0 0.0
    %290 = vmatprep.subr.mxu0 0.0
    %291 = vmatpush2.msra.mxu0 0.0
    %292 = vmatprep.subr.mxu0 0.0
    %293 = vmatpush2.msra.mxu0 0.0
    %294 = vmatprep.subr.mxu0 0.0
    %295 = vmatpush2.msra.mxu0 0.0
    %296 = vmatprep.subr.mxu0 0.0
    %297 = vmatpush2.msra.mxu0 0.0
    %298 = vmatprep.subr.mxu0 0.0
    %299 = vmatpush2.msra.mxu0 0.0
    %300 = vmatprep.subr.mxu0 0.0
    %301 = vmatpush2.msra.mxu0 0.0
    %302 = vmatprep.subr.mxu0 0.0
    %303 = vmatpush2.msra.mxu0 0.0
    %304 = vmatprep.subr.mxu0 0.0
    %305 = vmatpush2.msra.mxu0 0.0
    %306 = vmatprep.subr.mxu0 0.0
    %307 = vmatpush2.msra.mxu0 0.0
    %308 = vmatprep.subr.mxu0 0.0
    %309 = vmatpush2.msra.mxu0 0.0
    %310 = vmatprep.subr.mxu0 0.0
    %311 = vmatpush2.msra.mxu0 0.0
    %312 = vmatprep.subr.mxu0 0.0
    %313 = vmatpush2.msra.mxu0 0.0
    %314 = vmatprep.subr.mxu0 0.0
    %315 = vmatpush2.msra.mxu0 0.0
    %316 = vmatprep.mubr.f32.mxu0 0.0
    %317 = vmatmul.mubr.f32.gmra.mxu0 %v223
    %v318 = vpop.f32.mrf.mxu0
    %v319 = vadd.f32 %v179, %v318
    %v320 = vpop.f32.mrf.mxu0
    %321 = vmatprep.mubr.f32.mxu0 0.0
    %322 = vmatmul.mubr.f32.gmra.mxu0 %v226
    %v323 = vpop.f32.mrf.mxu0
    %v324 = vadd.f32 %v184, %v323
    %v325 = vpop.f32.mrf.mxu0
    %326 = vmatprep.mubr.f32.mxu0 0.0
    %327 = vmatmul.mubr.f32.gmra.mxu0 %v229
    %v328 = vpop.f32.mrf.mxu0
    %v329 = vadd.f32 %v189, %v328
    %v330 = vpop.f32.mrf.mxu0
    %331 = vmatprep.mubr.f32.mxu0 0.0
    %332 = vmatmul.mubr.f32.gmra.mxu0 %v232
    %v333 = vpop.f32.mrf.mxu0
    %v334 = vadd.f32 %v194, %v333
    %v335 = vpop.f32.mrf.mxu0
    %336 = vmatprep.mubr.f32.mxu0 0.0
    %337 = vmatmul.mubr.f32.gmra.mxu0 %v235
    %v338 = vpop.f32.mrf.mxu0
    %v339 = vadd.f32 %v199, %v338
    %v340 = vpop.f32.mrf.mxu0
    %341 = vmatprep.mubr.f32.mxu0 0.0
    %342 = vmatmul.mubr.f32.gmra.mxu0 %v238
    %v343 = vpop.f32.mrf.mxu0
    %v344 = vadd.f32 %v204, %v343
    %v345 = vpop.f32.mrf.mxu0
    %346 = vmatprep.mubr.f32.mxu0 0.0
    %347 = vmatmul.mubr.f32.gmra.mxu0 %v241
    %v348 = vpop.f32.mrf.mxu0
    %v349 = vadd.f32 %v209, %v348
    %v350 = vpop.f32.mrf.mxu0
    %351 = vmatprep.mubr.f32.mxu0 0.0
    %352 = vmatmul.mubr.f32.gmra.mxu0 %v244
    %v353 = vpop.f32.mrf.mxu0
    %v354 = vadd.f32 %v214, %v353
    %v355 = vpop.f32.mrf.mxu0
    %356 = vmatprep.mubr.f32.mxu0 0.0
    %357 = vmatmul.mubr.f32.gmra.mxu0 %v247
    %v358 = vpop.f32.mrf.mxu0
    %v359 = vadd.f32 %v219, %v358
    %v360 = vpop.f32.mrf.mxu0
    %361 = vdwg.mxu0
    %v362 = vld [vmem:[%s0 + $0x2] sm:$0xff]
    %v363 = vld [vmem:[%s0 + $0xa] sm:$0xff]
    %v364 = vld [vmem:[%s0 + $0x12] sm:$0xff]
    %v365 = vld [vmem:[%s0 + $0x1a] sm:$0xff]
    %v366 = vld [vmem:[%s0 + $0x22] sm:$0xff]
    %v367 = vld [vmem:[%s0 + $0x2a] sm:$0xff]
    %v368 = vld [vmem:[%s0 + $0x32] sm:$0xff]
    %v369 = vld [vmem:[%s0 + $0x3a] sm:$0xff]
    %v370 = vld [vmem:[%s0 + $0x42] sm:$0xff]
    %s371 = scalar_lea.vmem %s2, 4
    %v372 = vld [vmem:[%s371] sm:$0x3]
    %v374 = vsel %vm80, %v362, 0
    %v377 = vsel %vm80, %v363, 0
    %v380 = vsel %vm80, %v364, 0
    %v383 = vsel %vm80, %v365, 0
    %v386 = vsel %vm80, %v366, 0
    %v389 = vsel %vm80, %v367, 0
    %v392 = vsel %vm80, %v368, 0
    %v395 = vsel %vm80, %v369, 0
    %v398 = vsel %vm80, %v370, 0
    %v401 = vsel %vm108, %v372, 0
    %403 = vmatprep.subr.mxu0 0.0
    %404 = vmatpush1.msra.mxu0 0.0
    %405 = vmatprep.subr.mxu0 0.0
    %406 = vmatpush1.msra.mxu0 0.0
    %407 = vmatprep.subr.mxu0 0.0
    %408 = vmatpush1.msra.mxu0 0.0
    %409 = vmatprep.subr.mxu0 0.0
    %410 = vmatpush1.msra.mxu0 0.0
    %411 = vmatprep.subr.mxu0 0.0
    %412 = vmatpush1.msra.mxu0 0.0
    %413 = vmatprep.subr.mxu0 0.0
    %414 = vmatpush1.msra.mxu0 0.0
    %415 = vmatprep.subr.mxu0 0.0
    %416 = vmatpush1.msra.mxu0 0.0
    %417 = vmatprep.subr.mxu0 0.0
    %418 = vmatpush1.msra.mxu0 0.0
    %419 = vmatprep.subr.mxu0 0.0
    %420 = vmatpush1.msra.mxu0 0.0
    %421 = vmatprep.subr.mxu0 0.0
    %422 = vmatpush1.msra.mxu0 0.0
    %423 = vmatprep.subr.mxu0 0.0
    %424 = vmatpush1.msra.mxu0 0.0
    %425 = vmatprep.subr.mxu0 0.0
    %426 = vmatpush1.msra.mxu0 0.0
    %427 = vmatprep.subr.mxu0 0.0
    %428 = vmatpush1.msra.mxu0 0.0
    %429 = vmatprep.subr.mxu0 0.0
    %430 = vmatpush1.msra.mxu0 0.0
    %431 = vmatprep.subr.mxu0 0.0
    %432 = vmatpush1.msra.mxu0 0.0
    %433 = vmatprep.subr.mxu0 0.0
    %434 = vmatpush1.msra.mxu0 %v401
    %435 = vmatprep.subr.mxu0 0.0
    %436 = vmatpush2.msra.mxu0 0.0
    %437 = vmatprep.subr.mxu0 0.0
    %438 = vmatpush2.msra.mxu0 0.0
    %439 = vmatprep.subr.mxu0 0.0
    %440 = vmatpush2.msra.mxu0 0.0
    %441 = vmatprep.subr.mxu0 0.0
    %442 = vmatpush2.msra.mxu0 0.0
    %443 = vmatprep.subr.mxu0 0.0
    %444 = vmatpush2.msra.mxu0 0.0
    %445 = vmatprep.subr.mxu0 0.0
    %446 = vmatpush2.msra.mxu0 0.0
    %447 = vmatprep.subr.mxu0 0.0
    %448 = vmatpush2.msra.mxu0 0.0
    %449 = vmatprep.subr.mxu0 0.0
    %450 = vmatpush2.msra.mxu0 0.0
    %451 = vmatprep.subr.mxu0 0.0
    %452 = vmatpush2.msra.mxu0 0.0
    %453 = vmatprep.subr.mxu0 0.0
    %454 = vmatpush2.msra.mxu0 0.0
    %455 = vmatprep.subr.mxu0 0.0
    %456 = vmatpush2.msra.mxu0 0.0
    %457 = vmatprep.subr.mxu0 0.0
    %458 = vmatpush2.msra.mxu0 0.0
    %459 = vmatprep.subr.mxu0 0.0
    %460 = vmatpush2.msra.mxu0 0.0
    %461 = vmatprep.subr.mxu0 0.0
    %462 = vmatpush2.msra.mxu0 0.0
    %463 = vmatprep.subr.mxu0 0.0
    %464 = vmatpush2.msra.mxu0 0.0
    %465 = vmatprep.subr.mxu0 0.0
    %466 = vmatpush2.msra.mxu0 0.0
    %467 = vmatprep.mubr.f32.mxu0 0.0
    %468 = vmatmul.mubr.f32.gmra.mxu0 %v374
    %v469 = vpop.f32.mrf.mxu0
    %v470 = vadd.f32 0.0, %v469
    %v471 = vpop.f32.mrf.mxu0
    %472 = vmatprep.mubr.f32.mxu0 0.0
    %473 = vmatmul.mubr.f32.gmra.mxu0 %v377
    %v474 = vpop.f32.mrf.mxu0
    %v475 = vadd.f32 0.0, %v474
    %v476 = vpop.f32.mrf.mxu0
    %477 = vmatprep.mubr.f32.mxu0 0.0
    %478 = vmatmul.mubr.f32.gmra.mxu0 %v380
    %v479 = vpop.f32.mrf.mxu0
    %v480 = vadd.f32 0.0, %v479
    %v481 = vpop.f32.mrf.mxu0
    %482 = vmatprep.mubr.f32.mxu0 0.0
    %483 = vmatmul.mubr.f32.gmra.mxu0 %v383
    %v484 = vpop.f32.mrf.mxu0
    %v485 = vadd.f32 0.0, %v484
    %v486 = vpop.f32.mrf.mxu0
    %487 = vmatprep.mubr.f32.mxu0 0.0
    %488 = vmatmul.mubr.f32.gmra.mxu0 %v386
    %v489 = vpop.f32.mrf.mxu0
    %v490 = vadd.f32 0.0, %v489
    %v491 = vpop.f32.mrf.mxu0
    %492 = vmatprep.mubr.f32.mxu0 0.0
    %493 = vmatmul.mubr.f32.gmra.mxu0 %v389
    %v494 = vpop.f32.mrf.mxu0
    %v495 = vadd.f32 0.0, %v494
    %v496 = vpop.f32.mrf.mxu0
    %497 = vmatprep.mubr.f32.mxu0 0.0
    %498 = vmatmul.mubr.f32.gmra.mxu0 %v392
    %v499 = vpop.f32.mrf.mxu0
    %v500 = vadd.f32 0.0, %v499
    %v501 = vpop.f32.mrf.mxu0
    %502 = vmatprep.mubr.f32.mxu0 0.0
    %503 = vmatmul.mubr.f32.gmra.mxu0 %v395
    %v504 = vpop.f32.mrf.mxu0
    %v505 = vadd.f32 0.0, %v504
    %v506 = vpop.f32.mrf.mxu0
    %507 = vmatprep.mubr.f32.mxu0 0.0
    %508 = vmatmul.mubr.f32.gmra.mxu0 %v398
    %v509 = vpop.f32.mrf.mxu0
    %v510 = vadd.f32 0.0, %v509
    %v511 = vpop.f32.mrf.mxu0
    %512 = vdwg.mxu0
    %v513 = vadd.f32 %v319, %v470
    %v514 = vadd.f32 %v324, %v475
    %v515 = vadd.f32 %v329, %v480
    %v516 = vadd.f32 %v334, %v485
    %v517 = vadd.f32 %v339, %v490
    %v518 = vadd.f32 %v344, %v495
    %v519 = vadd.f32 %v349, %v500
    %v520 = vadd.f32 %v354, %v505
    %v521 = vadd.f32 %v359, %v510
    %v522 = vmin.f32 %v513, 0.0
    %v523 = vmin.f32 %v514, 0.0
    %v524 = vmin.f32 %v515, 0.0
    %v525 = vmin.f32 %v516, 0.0
    %v526 = vmin.f32 %v517, 0.0
    %v527 = vmin.f32 %v518, 0.0
    %v528 = vmin.f32 %v519, 0.0
    %v529 = vmin.f32 %v520, 0.0
    %v530 = vmin.f32 %v521, 0.0
    %v531 = vmul.f32 %v522, 1.442695
    %v532 = vpow.pop %v531
    %v533 = vmul.f32 %v523, 1.442695
    %v534 = vpow.pop %v533
    %v535 = vmul.f32 %v524, 1.442695
    %v536 = vpow.pop %v535
    %v537 = vmul.f32 %v525, 1.442695
    %v538 = vpow.pop %v537
    %v539 = vmul.f32 %v526, 1.442695
    %v540 = vpow.pop %v539
    %v541 = vmul.f32 %v527, 1.442695
    %v542 = vpow.pop %v541
    %v543 = vmul.f32 %v528, 1.442695
    %v544 = vpow.pop %v543
    %v545 = vmul.f32 %v529, 1.442695
    %v546 = vpow.pop %v545
    %v547 = vmul.f32 %v530, 1.442695
    %v548 = vpow.pop %v547
    %v549 = vsub.f32 %v532, 1.0
    %v550 = vsub.f32 %v534, 1.0
    %v551 = vsub.f32 %v536, 1.0
    %v552 = vsub.f32 %v538, 1.0
    %v553 = vsub.f32 %v540, 1.0
    %v554 = vsub.f32 %v542, 1.0
    %v555 = vsub.f32 %v544, 1.0
    %v556 = vsub.f32 %v546, 1.0
    %v557 = vsub.f32 %v548, 1.0
    %v558 = vmul.f32 %v549, 1.6732632
    %v559 = vmul.f32 %v550, 1.6732632
    %v560 = vmul.f32 %v551, 1.6732632
    %v561 = vmul.f32 %v552, 1.6732632
    %v562 = vmul.f32 %v553, 1.6732632
    %v563 = vmul.f32 %v554, 1.6732632
    %v564 = vmul.f32 %v555, 1.6732632
    %v565 = vmul.f32 %v556, 1.6732632
    %v566 = vmul.f32 %v557, 1.6732632
    %vm567 = vcmp.gt.f32.partialorder %v513, 0.0
    %vm568 = vcmp.gt.f32.partialorder %v514, 0.0
    %vm569 = vcmp.gt.f32.partialorder %v515, 0.0
    %vm570 = vcmp.gt.f32.partialorder %v516, 0.0
    %vm571 = vcmp.gt.f32.partialorder %v517, 0.0
    %vm572 = vcmp.gt.f32.partialorder %v518, 0.0
    %vm573 = vcmp.gt.f32.partialorder %v519, 0.0
    %vm574 = vcmp.gt.f32.partialorder %v520, 0.0
    %vm575 = vcmp.gt.f32.partialorder %v521, 0.0
    %v576 = vsel %vm567, %v513, %v558
    %v577 = vsel %vm568, %v514, %v559
    %v578 = vsel %vm569, %v515, %v560
    %v579 = vsel %vm570, %v516, %v561
    %v580 = vsel %vm571, %v517, %v562
    %v581 = vsel %vm572, %v518, %v563
    %v582 = vsel %vm573, %v519, %v564
    %v583 = vsel %vm574, %v520, %v565
    %v584 = vsel %vm575, %v521, %v566
    %v585 = vmul.f32 %v576, 1.050701
    %v586 = vmul.f32 %v577, 1.050701
    %v587 = vmul.f32 %v578, 1.050701
    %v588 = vmul.f32 %v579, 1.050701
    %v589 = vmul.f32 %v580, 1.050701
    %v590 = vmul.f32 %v581, 1.050701
    %v591 = vmul.f32 %v582, 1.050701
    %v592 = vmul.f32 %v583, 1.050701
    %v593 = vmul.f32 %v584, 1.050701
    %595 = vset.pattern.permute.xlu0 0
    %596 = vperm.xlu0 %595, %v26
    %v597 = vpop.permute.xlu0 %596
    %600 = vset.pattern.permute.xlu0 0
    %601 = vperm.xlu0 %600, %v27
    %v602 = vpop.permute.xlu0 %601
    %605 = vset.pattern.permute.xlu0 0
    %606 = vperm.xlu0 %605, %v28
    %v607 = vpop.permute.xlu0 %606
    %610 = vset.pattern.permute.xlu0 0
    %611 = vperm.xlu0 %610, %v29
    %v612 = vpop.permute.xlu0 %611
    %615 = vset.pattern.permute.xlu0 0
    %616 = vperm.xlu0 %615, %v30
    %v617 = vpop.permute.xlu0 %616
    %620 = vset.pattern.permute.xlu0 0
    %621 = vperm.xlu0 %620, %v31
    %v622 = vpop.permute.xlu0 %621
    %625 = vset.pattern.permute.xlu0 0
    %626 = vperm.xlu0 %625, %v32
    %v627 = vpop.permute.xlu0 %626
    %630 = vset.pattern.permute.xlu0 0
    %631 = vperm.xlu0 %630, %v33
    %v632 = vpop.permute.xlu0 %631
    %635 = vset.pattern.permute.xlu0 0
    %636 = vperm.xlu0 %635, %v34
    %v637 = vpop.permute.xlu0 %636
    %v639 = vmul.f32 %v585, %v597
    %v640 = vmul.f32 %v586, %v602
    %v641 = vmul.f32 %v587, %v607
    %v642 = vmul.f32 %v588, %v612
    %v643 = vmul.f32 %v589, %v617
    %v644 = vmul.f32 %v590, %v622
    %v645 = vmul.f32 %v591, %v627
    %v646 = vmul.f32 %v592, %v632
    %v647 = vmul.f32 %v593, %v637
    %648 = vst.msk [vmem:[#allocation2 + $0x1] sm:$0xff] %vm35, %v639
    %649 = vst.msk [vmem:[#allocation2 + $0x9] sm:$0xff] %vm35, %v640
    %650 = vst.msk [vmem:[#allocation2 + $0x11] sm:$0xff] %vm35, %v641
    %651 = vst.msk [vmem:[#allocation2 + $0x19] sm:$0xff] %vm35, %v642
    %652 = vst.msk [vmem:[#allocation2 + $0x21] sm:$0xff] %vm35, %v643
    %653 = vst.msk [vmem:[#allocation2 + $0x29] sm:$0xff] %vm35, %v644
    %654 = vst.msk [vmem:[#allocation2 + $0x31] sm:$0xff] %vm35, %v645
    %655 = vst.msk [vmem:[#allocation2 + $0x39] sm:$0xff] %vm35, %v646
    %656 = vst.msk [vmem:[#allocation2 + $0x41] sm:$0xff] %vm35, %v647
    %v657 = vld [vmem:[#allocation2] sm:$0xff]
    %v658 = vld [vmem:[#allocation2 + $0x8] sm:$0xff]
    %v659 = vld [vmem:[#allocation2 + $0x10] sm:$0xff]
    %v660 = vld [vmem:[#allocation2 + $0x18] sm:$0xff]
    %v661 = vld [vmem:[#allocation2 + $0x20] sm:$0xff]
    %v662 = vld [vmem:[#allocation2 + $0x28] sm:$0xff]
    %v663 = vld [vmem:[#allocation2 + $0x30] sm:$0xff]
    %v664 = vld [vmem:[#allocation2 + $0x38] sm:$0xff]
    %v665 = vld [vmem:[#allocation2 + $0x40] sm:$0xff]
    %v666 = vld [vmem:[%s3] sm:$0xff]
    %v667 = vld [vmem:[#allocation2 + $0x1] sm:$0xff]
    %v668 = vld [vmem:[#allocation2 + $0x9] sm:$0xff]
    %v669 = vld [vmem:[#allocation2 + $0x11] sm:$0xff]
    %v670 = vld [vmem:[#allocation2 + $0x19] sm:$0xff]
    %v671 = vld [vmem:[#allocation2 + $0x21] sm:$0xff]
    %v672 = vld [vmem:[#allocation2 + $0x29] sm:$0xff]
    %v673 = vld [vmem:[#allocation2 + $0x31] sm:$0xff]
    %v674 = vld [vmem:[#allocation2 + $0x39] sm:$0xff]
    %v675 = vld [vmem:[#allocation2 + $0x41] sm:$0xff]
    %s676 = scalar_lea.vmem %s3, 8
    %v677 = vld [vmem:[%s676] sm:$0xff]
    %v679 = vsel %vm35, %v667, 0
    %v682 = vsel %vm35, %v668, 0
    %v685 = vsel %vm35, %v669, 0
    %v688 = vsel %vm35, %v670, 0
    %v691 = vsel %vm35, %v671, 0
    %v694 = vsel %vm35, %v672, 0
    %v697 = vsel %vm35, %v673, 0
    %v700 = vsel %vm35, %v674, 0
    %v703 = vsel %vm35, %v675, 0
    %705 = vmatprep.subr.mxu0 0.0
    %706 = vmatpush1.msra.mxu0 0.0
    %707 = vmatprep.subr.mxu0 0.0
    %708 = vmatpush1.msra.mxu0 0.0
    %709 = vmatprep.subr.mxu0 0.0
    %710 = vmatpush1.msra.mxu0 0.0
    %711 = vmatprep.subr.mxu0 0.0
    %712 = vmatpush1.msra.mxu0 0.0
    %713 = vmatprep.subr.mxu0 0.0
    %714 = vmatpush1.msra.mxu0 0.0
    %715 = vmatprep.subr.mxu0 0.0
    %716 = vmatpush1.msra.mxu0 0.0
    %717 = vmatprep.subr.mxu0 0.0
    %718 = vmatpush1.msra.mxu0 0.0
    %719 = vmatprep.subr.mxu0 0.0
    %720 = vmatpush1.msra.mxu0 0.0
    %721 = vmatprep.subr.mxu0 0.0
    %722 = vmatpush1.msra.mxu0 0.0
    %723 = vmatprep.subr.mxu0 0.0
    %724 = vmatpush1.msra.mxu0 0.0
    %725 = vmatprep.subr.mxu0 0.0
    %726 = vmatpush1.msra.mxu0 0.0
    %727 = vmatprep.subr.mxu0 0.0
    %728 = vmatpush1.msra.mxu0 0.0
    %729 = vmatprep.subr.mxu0 0.0
    %730 = vmatpush1.msra.mxu0 0.0
    %731 = vmatprep.subr.mxu0 0.0
    %732 = vmatpush1.msra.mxu0 0.0
    %733 = vmatprep.subr.mxu0 0.0
    %734 = vmatpush1.msra.mxu0 0.0
    %735 = vmatprep.subr.mxu0 0.0
    %736 = vmatpush1.msra.mxu0 %v677
    %737 = vmatprep.subr.mxu0 0.0
    %738 = vmatpush2.msra.mxu0 0.0
    %739 = vmatprep.subr.mxu0 0.0
    %740 = vmatpush2.msra.mxu0 0.0
    %741 = vmatprep.subr.mxu0 0.0
    %742 = vmatpush2.msra.mxu0 0.0
    %743 = vmatprep.subr.mxu0 0.0
    %744 = vmatpush2.msra.mxu0 0.0
    %745 = vmatprep.subr.mxu0 0.0
    %746 = vmatpush2.msra.mxu0 0.0
    %747 = vmatprep.subr.mxu0 0.0
    %748 = vmatpush2.msra.mxu0 0.0
    %749 = vmatprep.subr.mxu0 0.0
    %750 = vmatpush2.msra.mxu0 0.0
    %751 = vmatprep.subr.mxu0 0.0
    %752 = vmatpush2.msra.mxu0 0.0
    %753 = vmatprep.subr.mxu0 0.0
    %754 = vmatpush2.msra.mxu0 0.0
    %755 = vmatprep.subr.mxu0 0.0
    %756 = vmatpush2.msra.mxu0 0.0
    %757 = vmatprep.subr.mxu0 0.0
    %758 = vmatpush2.msra.mxu0 0.0
    %759 = vmatprep.subr.mxu0 0.0
    %760 = vmatpush2.msra.mxu0 0.0
    %761 = vmatprep.subr.mxu0 0.0
    %762 = vmatpush2.msra.mxu0 0.0
    %763 = vmatprep.subr.mxu0 0.0
    %764 = vmatpush2.msra.mxu0 0.0
    %765 = vmatprep.subr.mxu0 0.0
    %766 = vmatpush2.msra.mxu0 0.0
    %767 = vmatprep.subr.mxu0 0.0
    %768 = vmatpush2.msra.mxu0 0.0
    %769 = vmatprep.mubr.f32.mxu0 0.0
    %770 = vmatmul.mubr.f32.gmra.mxu0 %v679
    %v771 = vpop.f32.mrf.mxu0
    %v772 = vadd.f32 0.0, %v771
    %v773 = vpop.f32.mrf.mxu0
    %774 = vmatprep.mubr.f32.mxu0 0.0
    %775 = vmatmul.mubr.f32.gmra.mxu0 %v682
    %v776 = vpop.f32.mrf.mxu0
    %v777 = vadd.f32 0.0, %v776
    %v778 = vpop.f32.mrf.mxu0
    %779 = vmatprep.mubr.f32.mxu0 0.0
    %780 = vmatmul.mubr.f32.gmra.mxu0 %v685
    %v781 = vpop.f32.mrf.mxu0
    %v782 = vadd.f32 0.0, %v781
    %v783 = vpop.f32.mrf.mxu0
    %784 = vmatprep.mubr.f32.mxu0 0.0
    %785 = vmatmul.mubr.f32.gmra.mxu0 %v688
    %v786 = vpop.f32.mrf.mxu0
    %v787 = vadd.f32 0.0, %v786
    %v788 = vpop.f32.mrf.mxu0
    %789 = vmatprep.mubr.f32.mxu0 0.0
    %790 = vmatmul.mubr.f32.gmra.mxu0 %v691
    %v791 = vpop.f32.mrf.mxu0
    %v792 = vadd.f32 0.0, %v791
    %v793 = vpop.f32.mrf.mxu0
    %794 = vmatprep.mubr.f32.mxu0 0.0
    %795 = vmatmul.mubr.f32.gmra.mxu0 %v694
    %v796 = vpop.f32.mrf.mxu0
    %v797 = vadd.f32 0.0, %v796
    %v798 = vpop.f32.mrf.mxu0
    %799 = vmatprep.mubr.f32.mxu0 0.0
    %800 = vmatmul.mubr.f32.gmra.mxu0 %v697
    %v801 = vpop.f32.mrf.mxu0
    %v802 = vadd.f32 0.0, %v801
    %v803 = vpop.f32.mrf.mxu0
    %804 = vmatprep.mubr.f32.mxu0 0.0
    %805 = vmatmul.mubr.f32.gmra.mxu0 %v700
    %v806 = vpop.f32.mrf.mxu0
    %v807 = vadd.f32 0.0, %v806
    %v808 = vpop.f32.mrf.mxu0
    %809 = vmatprep.mubr.f32.mxu0 0.0
    %810 = vmatmul.mubr.f32.gmra.mxu0 %v703
    %v811 = vpop.f32.mrf.mxu0
    %v812 = vadd.f32 0.0, %v811
    %v813 = vpop.f32.mrf.mxu0
    %814 = vdwg.mxu0
    %v816 = vsel %vm35, %v657, 0
    %v819 = vsel %vm35, %v658, 0
    %v822 = vsel %vm35, %v659, 0
    %v825 = vsel %vm35, %v660, 0
    %v828 = vsel %vm35, %v661, 0
    %v831 = vsel %vm35, %v662, 0
    %v834 = vsel %vm35, %v663, 0
    %v837 = vsel %vm35, %v664, 0
    %v840 = vsel %vm35, %v665, 0
    %842 = vmatprep.subr.mxu0 0.0
    %843 = vmatpush1.msra.mxu0 0.0
    %844 = vmatprep.subr.mxu0 0.0
    %845 = vmatpush1.msra.mxu0 0.0
    %846 = vmatprep.subr.mxu0 0.0
    %847 = vmatpush1.msra.mxu0 0.0
    %848 = vmatprep.subr.mxu0 0.0
    %849 = vmatpush1.msra.mxu0 0.0
    %850 = vmatprep.subr.mxu0 0.0
    %851 = vmatpush1.msra.mxu0 0.0
    %852 = vmatprep.subr.mxu0 0.0
    %853 = vmatpush1.msra.mxu0 0.0
    %854 = vmatprep.subr.mxu0 0.0
    %855 = vmatpush1.msra.mxu0 0.0
    %856 = vmatprep.subr.mxu0 0.0
    %857 = vmatpush1.msra.mxu0 0.0
    %858 = vmatprep.subr.mxu0 0.0
    %859 = vmatpush1.msra.mxu0 0.0
    %860 = vmatprep.subr.mxu0 0.0
    %861 = vmatpush1.msra.mxu0 0.0
    %862 = vmatprep.subr.mxu0 0.0
    %863 = vmatpush1.msra.mxu0 0.0
    %864 = vmatprep.subr.mxu0 0.0
    %865 = vmatpush1.msra.mxu0 0.0
    %866 = vmatprep.subr.mxu0 0.0
    %867 = vmatpush1.msra.mxu0 0.0
    %868 = vmatprep.subr.mxu0 0.0
    %869 = vmatpush1.msra.mxu0 0.0
    %870 = vmatprep.subr.mxu0 0.0
    %871 = vmatpush1.msra.mxu0 0.0
    %872 = vmatprep.subr.mxu0 0.0
    %873 = vmatpush1.msra.mxu0 %v666
    %874 = vmatprep.subr.mxu0 0.0
    %875 = vmatpush2.msra.mxu0 0.0
    %876 = vmatprep.subr.mxu0 0.0
    %877 = vmatpush2.msra.mxu0 0.0
    %878 = vmatprep.subr.mxu0 0.0
    %879 = vmatpush2.msra.mxu0 0.0
    %880 = vmatprep.subr.mxu0 0.0
    %881 = vmatpush2.msra.mxu0 0.0
    %882 = vmatprep.subr.mxu0 0.0
    %883 = vmatpush2.msra.mxu0 0.0
    %884 = vmatprep.subr.mxu0 0.0
    %885 = vmatpush2.msra.mxu0 0.0
    %886 = vmatprep.subr.mxu0 0.0
    %887 = vmatpush2.msra.mxu0 0.0
    %888 = vmatprep.subr.mxu0 0.0
    %889 = vmatpush2.msra.mxu0 0.0
    %890 = vmatprep.subr.mxu0 0.0
    %891 = vmatpush2.msra.mxu0 0.0
    %892 = vmatprep.subr.mxu0 0.0
    %893 = vmatpush2.msra.mxu0 0.0
    %894 = vmatprep.subr.mxu0 0.0
    %895 = vmatpush2.msra.mxu0 0.0
    %896 = vmatprep.subr.mxu0 0.0
    %897 = vmatpush2.msra.mxu0 0.0
    %898 = vmatprep.subr.mxu0 0.0
    %899 = vmatpush2.msra.mxu0 0.0
    %900 = vmatprep.subr.mxu0 0.0
    %901 = vmatpush2.msra.mxu0 0.0
    %902 = vmatprep.subr.mxu0 0.0
    %903 = vmatpush2.msra.mxu0 0.0
    %904 = vmatprep.subr.mxu0 0.0
    %905 = vmatpush2.msra.mxu0 0.0
    %906 = vmatprep.mubr.f32.mxu0 0.0
    %907 = vmatmul.mubr.f32.gmra.mxu0 %v816
    %v908 = vpop.f32.mrf.mxu0
    %v909 = vadd.f32 %v772, %v908
    %v910 = vpop.f32.mrf.mxu0
    %911 = vmatprep.mubr.f32.mxu0 0.0
    %912 = vmatmul.mubr.f32.gmra.mxu0 %v819
    %v913 = vpop.f32.mrf.mxu0
    %v914 = vadd.f32 %v777, %v913
    %v915 = vpop.f32.mrf.mxu0
    %916 = vmatprep.mubr.f32.mxu0 0.0
    %917 = vmatmul.mubr.f32.gmra.mxu0 %v822
    %v918 = vpop.f32.mrf.mxu0
    %v919 = vadd.f32 %v782, %v918
    %v920 = vpop.f32.mrf.mxu0
    %921 = vmatprep.mubr.f32.mxu0 0.0
    %922 = vmatmul.mubr.f32.gmra.mxu0 %v825
    %v923 = vpop.f32.mrf.mxu0
    %v924 = vadd.f32 %v787, %v923
    %v925 = vpop.f32.mrf.mxu0
    %926 = vmatprep.mubr.f32.mxu0 0.0
    %927 = vmatmul.mubr.f32.gmra.mxu0 %v828
    %v928 = vpop.f32.mrf.mxu0
    %v929 = vadd.f32 %v792, %v928
    %v930 = vpop.f32.mrf.mxu0
    %931 = vmatprep.mubr.f32.mxu0 0.0
    %932 = vmatmul.mubr.f32.gmra.mxu0 %v831
    %v933 = vpop.f32.mrf.mxu0
    %v934 = vadd.f32 %v797, %v933
    %v935 = vpop.f32.mrf.mxu0
    %936 = vmatprep.mubr.f32.mxu0 0.0
    %937 = vmatmul.mubr.f32.gmra.mxu0 %v834
    %v938 = vpop.f32.mrf.mxu0
    %v939 = vadd.f32 %v802, %v938
    %v940 = vpop.f32.mrf.mxu0
    %941 = vmatprep.mubr.f32.mxu0 0.0
    %942 = vmatmul.mubr.f32.gmra.mxu0 %v837
    %v943 = vpop.f32.mrf.mxu0
    %v944 = vadd.f32 %v807, %v943
    %v945 = vpop.f32.mrf.mxu0
    %946 = vmatprep.mubr.f32.mxu0 0.0
    %947 = vmatmul.mubr.f32.gmra.mxu0 %v840
    %v948 = vpop.f32.mrf.mxu0
    %v949 = vadd.f32 %v812, %v948
    %v950 = vpop.f32.mrf.mxu0
    %951 = vdwg.mxu0
    %v952 = vld [vmem:[#allocation2 + $0x2] sm:$0xff]
    %v953 = vld [vmem:[#allocation2 + $0xa] sm:$0xff]
    %v954 = vld [vmem:[#allocation2 + $0x12] sm:$0xff]
    %v955 = vld [vmem:[#allocation2 + $0x1a] sm:$0xff]
    %v956 = vld [vmem:[#allocation2 + $0x22] sm:$0xff]
    %v957 = vld [vmem:[#allocation2 + $0x2a] sm:$0xff]
    %v958 = vld [vmem:[#allocation2 + $0x32] sm:$0xff]
    %v959 = vld [vmem:[#allocation2 + $0x3a] sm:$0xff]
    %v960 = vld [vmem:[#allocation2 + $0x42] sm:$0xff]
    %s961 = scalar_lea.vmem %s3, 16
    %v962 = vld [vmem:[%s961] sm:$0xff]
    %v964 = vsel %vm35, %v952, 0
    %v967 = vsel %vm35, %v953, 0
    %v970 = vsel %vm35, %v954, 0
    %v973 = vsel %vm35, %v955, 0
    %v976 = vsel %vm35, %v956, 0
    %v979 = vsel %vm35, %v957, 0
    %v982 = vsel %vm35, %v958, 0
    %v985 = vsel %vm35, %v959, 0
    %v988 = vsel %vm35, %v960, 0
    %990 = vmatprep.subr.mxu0 0.0
    %991 = vmatpush1.msra.mxu0 0.0
    %992 = vmatprep.subr.mxu0 0.0
    %993 = vmatpush1.msra.mxu0 0.0
    %994 = vmatprep.subr.mxu0 0.0
    %995 = vmatpush1.msra.mxu0 0.0
    %996 = vmatprep.subr.mxu0 0.0
    %997 = vmatpush1.msra.mxu0 0.0
    %998 = vmatprep.subr.mxu0 0.0
    %999 = vmatpush1.msra.mxu0 0.0
    %1000 = vmatprep.subr.mxu0 0.0
    %1001 = vmatpush1.msra.mxu0 0.0
    %1002 = vmatprep.subr.mxu0 0.0
    %1003 = vmatpush1.msra.mxu0 0.0
    %1004 = vmatprep.subr.mxu0 0.0
    %1005 = vmatpush1.msra.mxu0 0.0
    %1006 = vmatprep.subr.mxu0 0.0
    %1007 = vmatpush1.msra.mxu0 0.0
    %1008 = vmatprep.subr.mxu0 0.0
    %1009 = vmatpush1.msra.mxu0 0.0
    %1010 = vmatprep.subr.mxu0 0.0
    %1011 = vmatpush1.msra.mxu0 0.0
    %1012 = vmatprep.subr.mxu0 0.0
    %1013 = vmatpush1.msra.mxu0 0.0
    %1014 = vmatprep.subr.mxu0 0.0
    %1015 = vmatpush1.msra.mxu0 0.0
    %1016 = vmatprep.subr.mxu0 0.0
    %1017 = vmatpush1.msra.mxu0 0.0
    %1018 = vmatprep.subr.mxu0 0.0
    %1019 = vmatpush1.msra.mxu0 0.0
    %1020 = vmatprep.subr.mxu0 0.0
    %1021 = vmatpush1.msra.mxu0 %v962
    %1022 = vmatprep.subr.mxu0 0.0
    %1023 = vmatpush2.msra.mxu0 0.0
    %1024 = vmatprep.subr.mxu0 0.0
    %1025 = vmatpush2.msra.mxu0 0.0
    %1026 = vmatprep.subr.mxu0 0.0
    %1027 = vmatpush2.msra.mxu0 0.0
    %1028 = vmatprep.subr.mxu0 0.0
    %1029 = vmatpush2.msra.mxu0 0.0
    %1030 = vmatprep.subr.mxu0 0.0
    %1031 = vmatpush2.msra.mxu0 0.0
    %1032 = vmatprep.subr.mxu0 0.0
    %1033 = vmatpush2.msra.mxu0 0.0
    %1034 = vmatprep.subr.mxu0 0.0
    %1035 = vmatpush2.msra.mxu0 0.0
    %1036 = vmatprep.subr.mxu0 0.0
    %1037 = vmatpush2.msra.mxu0 0.0
    %1038 = vmatprep.subr.mxu0 0.0
    %1039 = vmatpush2.msra.mxu0 0.0
    %1040 = vmatprep.subr.mxu0 0.0
    %1041 = vmatpush2.msra.mxu0 0.0
    %1042 = vmatprep.subr.mxu0 0.0
    %1043 = vmatpush2.msra.mxu0 0.0
    %1044 = vmatprep.subr.mxu0 0.0
    %1045 = vmatpush2.msra.mxu0 0.0
    %1046 = vmatprep.subr.mxu0 0.0
    %1047 = vmatpush2.msra.mxu0 0.0
    %1048 = vmatprep.subr.mxu0 0.0
    %1049 = vmatpush2.msra.mxu0 0.0
    %1050 = vmatprep.subr.mxu0 0.0
    %1051 = vmatpush2.msra.mxu0 0.0
    %1052 = vmatprep.subr.mxu0 0.0
    %1053 = vmatpush2.msra.mxu0 0.0
    %1054 = vmatprep.mubr.f32.mxu0 0.0
    %1055 = vmatmul.mubr.f32.gmra.mxu0 %v964
    %v1056 = vpop.f32.mrf.mxu0
    %v1057 = vadd.f32 0.0, %v1056
    %v1058 = vpop.f32.mrf.mxu0
    %1059 = vmatprep.mubr.f32.mxu0 0.0
    %1060 = vmatmul.mubr.f32.gmra.mxu0 %v967
    %v1061 = vpop.f32.mrf.mxu0
    %v1062 = vadd.f32 0.0, %v1061
    %v1063 = vpop.f32.mrf.mxu0
    %1064 = vmatprep.mubr.f32.mxu0 0.0
    %1065 = vmatmul.mubr.f32.gmra.mxu0 %v970
    %v1066 = vpop.f32.mrf.mxu0
    %v1067 = vadd.f32 0.0, %v1066
    %v1068 = vpop.f32.mrf.mxu0
    %1069 = vmatprep.mubr.f32.mxu0 0.0
    %1070 = vmatmul.mubr.f32.gmra.mxu0 %v973
    %v1071 = vpop.f32.mrf.mxu0
    %v1072 = vadd.f32 0.0, %v1071
    %v1073 = vpop.f32.mrf.mxu0
    %1074 = vmatprep.mubr.f32.mxu0 0.0
    %1075 = vmatmul.mubr.f32.gmra.mxu0 %v976
    %v1076 = vpop.f32.mrf.mxu0
    %v1077 = vadd.f32 0.0, %v1076
    %v1078 = vpop.f32.mrf.mxu0
    %1079 = vmatprep.mubr.f32.mxu0 0.0
    %1080 = vmatmul.mubr.f32.gmra.mxu0 %v979
    %v1081 = vpop.f32.mrf.mxu0
    %v1082 = vadd.f32 0.0, %v1081
    %v1083 = vpop.f32.mrf.mxu0
    %1084 = vmatprep.mubr.f32.mxu0 0.0
    %1085 = vmatmul.mubr.f32.gmra.mxu0 %v982
    %v1086 = vpop.f32.mrf.mxu0
    %v1087 = vadd.f32 0.0, %v1086
    %v1088 = vpop.f32.mrf.mxu0
    %1089 = vmatprep.mubr.f32.mxu0 0.0
    %1090 = vmatmul.mubr.f32.gmra.mxu0 %v985
    %v1091 = vpop.f32.mrf.mxu0
    %v1092 = vadd.f32 0.0, %v1091
    %v1093 = vpop.f32.mrf.mxu0
    %1094 = vmatprep.mubr.f32.mxu0 0.0
    %1095 = vmatmul.mubr.f32.gmra.mxu0 %v988
    %v1096 = vpop.f32.mrf.mxu0
    %v1097 = vadd.f32 0.0, %v1096
    %v1098 = vpop.f32.mrf.mxu0
    %1099 = vdwg.mxu0
    %v1100 = vadd.f32 %v909, %v1057
    %v1101 = vadd.f32 %v914, %v1062
    %v1102 = vadd.f32 %v919, %v1067
    %v1103 = vadd.f32 %v924, %v1072
    %v1104 = vadd.f32 %v929, %v1077
    %v1105 = vadd.f32 %v934, %v1082
    %v1106 = vadd.f32 %v939, %v1087
    %v1107 = vadd.f32 %v944, %v1092
    %v1108 = vadd.f32 %v949, %v1097
    %v1109 = vmin.f32 %v1100, 0.0
    %v1110 = vmin.f32 %v1101, 0.0
    %v1111 = vmin.f32 %v1102, 0.0
    %v1112 = vmin.f32 %v1103, 0.0
    %v1113 = vmin.f32 %v1104, 0.0
    %v1114 = vmin.f32 %v1105, 0.0
    %v1115 = vmin.f32 %v1106, 0.0
    %v1116 = vmin.f32 %v1107, 0.0
    %v1117 = vmin.f32 %v1108, 0.0
    %v1118 = vmul.f32 %v1109, 1.442695
    %v1119 = vpow.pop %v1118
    %v1120 = vmul.f32 %v1110, 1.442695
    %v1121 = vpow.pop %v1120
    %v1122 = vmul.f32 %v1111, 1.442695
    %v1123 = vpow.pop %v1122
    %v1124 = vmul.f32 %v1112, 1.442695
    %v1125 = vpow.pop %v1124
    %v1126 = vmul.f32 %v1113, 1.442695
    %v1127 = vpow.pop %v1126
    %v1128 = vmul.f32 %v1114, 1.442695
    %v1129 = vpow.pop %v1128
    %v1130 = vmul.f32 %v1115, 1.442695
    %v1131 = vpow.pop %v1130
    %v1132 = vmul.f32 %v1116, 1.442695
    %v1133 = vpow.pop %v1132
    %v1134 = vmul.f32 %v1117, 1.442695
    %v1135 = vpow.pop %v1134
    %v1136 = vsub.f32 %v1119, 1.0
    %v1137 = vsub.f32 %v1121, 1.0
    %v1138 = vsub.f32 %v1123, 1.0
    %v1139 = vsub.f32 %v1125, 1.0
    %v1140 = vsub.f32 %v1127, 1.0
    %v1141 = vsub.f32 %v1129, 1.0
    %v1142 = vsub.f32 %v1131, 1.0
    %v1143 = vsub.f32 %v1133, 1.0
    %v1144 = vsub.f32 %v1135, 1.0
    %v1145 = vmul.f32 %v1136, 1.6732632
    %v1146 = vmul.f32 %v1137, 1.6732632
    %v1147 = vmul.f32 %v1138, 1.6732632
    %v1148 = vmul.f32 %v1139, 1.6732632
    %v1149 = vmul.f32 %v1140, 1.6732632
    %v1150 = vmul.f32 %v1141, 1.6732632
    %v1151 = vmul.f32 %v1142, 1.6732632
    %v1152 = vmul.f32 %v1143, 1.6732632
    %v1153 = vmul.f32 %v1144, 1.6732632
    %vm1154 = vcmp.gt.f32.partialorder %v1100, 0.0
    %vm1155 = vcmp.gt.f32.partialorder %v1101, 0.0
    %vm1156 = vcmp.gt.f32.partialorder %v1102, 0.0
    %vm1157 = vcmp.gt.f32.partialorder %v1103, 0.0
    %vm1158 = vcmp.gt.f32.partialorder %v1104, 0.0
    %vm1159 = vcmp.gt.f32.partialorder %v1105, 0.0
    %vm1160 = vcmp.gt.f32.partialorder %v1106, 0.0
    %vm1161 = vcmp.gt.f32.partialorder %v1107, 0.0
    %vm1162 = vcmp.gt.f32.partialorder %v1108, 0.0
    %v1163 = vsel %vm1154, %v1100, %v1145
    %v1164 = vsel %vm1155, %v1101, %v1146
    %v1165 = vsel %vm1156, %v1102, %v1147
    %v1166 = vsel %vm1157, %v1103, %v1148
    %v1167 = vsel %vm1158, %v1104, %v1149
    %v1168 = vsel %vm1159, %v1105, %v1150
    %v1169 = vsel %vm1160, %v1106, %v1151
    %v1170 = vsel %vm1161, %v1107, %v1152
    %v1171 = vsel %vm1162, %v1108, %v1153
    %v1172 = vmul.f32 %v1163, 1.050701
    %v1173 = vmul.f32 %v1164, 1.050701
    %v1174 = vmul.f32 %v1165, 1.050701
    %v1175 = vmul.f32 %v1166, 1.050701
    %v1176 = vmul.f32 %v1167, 1.050701
    %v1177 = vmul.f32 %v1168, 1.050701
    %v1178 = vmul.f32 %v1169, 1.050701
    %v1179 = vmul.f32 %v1170, 1.050701
    %v1180 = vmul.f32 %v1171, 1.050701
    %v1181 = vmul.f32 %v1172, %v597
    %v1182 = vmul.f32 %v1173, %v602
    %v1183 = vmul.f32 %v1174, %v607
    %v1184 = vmul.f32 %v1175, %v612
    %v1185 = vmul.f32 %v1176, %v617
    %v1186 = vmul.f32 %v1177, %v622
    %v1187 = vmul.f32 %v1178, %v627
    %v1188 = vmul.f32 %v1179, %v632
    %v1189 = vmul.f32 %v1180, %v637
    %1190 = vst.msk [vmem:[#allocation3 + $0x1] sm:$0xff] %vm47, %v1181
    %1191 = vst.msk [vmem:[#allocation3 + $0x9] sm:$0xff] %vm47, %v1182
    %1192 = vst.msk [vmem:[#allocation3 + $0x11] sm:$0xff] %vm47, %v1183
    %1193 = vst.msk [vmem:[#allocation3 + $0x19] sm:$0xff] %vm47, %v1184
    %1194 = vst.msk [vmem:[#allocation3 + $0x21] sm:$0xff] %vm47, %v1185
    %1195 = vst.msk [vmem:[#allocation3 + $0x29] sm:$0xff] %vm47, %v1186
    %1196 = vst.msk [vmem:[#allocation3 + $0x31] sm:$0xff] %vm47, %v1187
    %1197 = vst.msk [vmem:[#allocation3 + $0x39] sm:$0xff] %vm47, %v1188
    %1198 = vst.msk [vmem:[#allocation3 + $0x41] sm:$0xff] %vm47, %v1189
    %v1199 = vld [vmem:[#allocation3] sm:$0xff]
    %v1200 = vld [vmem:[#allocation3 + $0x8] sm:$0xff]
    %v1201 = vld [vmem:[#allocation3 + $0x10] sm:$0xff]
    %v1202 = vld [vmem:[#allocation3 + $0x18] sm:$0xff]
    %v1203 = vld [vmem:[#allocation3 + $0x20] sm:$0xff]
    %v1204 = vld [vmem:[#allocation3 + $0x28] sm:$0xff]
    %v1205 = vld [vmem:[#allocation3 + $0x30] sm:$0xff]
    %v1206 = vld [vmem:[#allocation3 + $0x38] sm:$0xff]
    %v1207 = vld [vmem:[#allocation3 + $0x40] sm:$0xff]
    %v1208 = vld [vmem:[%s4] sm:$0xff]
    %v1209 = vld [vmem:[%s4 + $0x8] sm:$0xff]
    %v1210 = vld [vmem:[#allocation3 + $0x1] sm:$0xff]
    %v1211 = vld [vmem:[#allocation3 + $0x9] sm:$0xff]
    %v1212 = vld [vmem:[#allocation3 + $0x11] sm:$0xff]
    %v1213 = vld [vmem:[#allocation3 + $0x19] sm:$0xff]
    %v1214 = vld [vmem:[#allocation3 + $0x21] sm:$0xff]
    %v1215 = vld [vmem:[#allocation3 + $0x29] sm:$0xff]
    %v1216 = vld [vmem:[#allocation3 + $0x31] sm:$0xff]
    %v1217 = vld [vmem:[#allocation3 + $0x39] sm:$0xff]
    %v1218 = vld [vmem:[#allocation3 + $0x41] sm:$0xff]
    %s1219 = scalar_lea.vmem %s4, 16
    %v1220 = vld [vmem:[%s1219] sm:$0xff]
    %v1221 = vld [vmem:[%s1219 + $0x8] sm:$0xff]
    %v1223 = vsel %vm47, %v1210, 0
    %v1226 = vsel %vm47, %v1211, 0
    %v1229 = vsel %vm47, %v1212, 0
    %v1232 = vsel %vm47, %v1213, 0
    %v1235 = vsel %vm47, %v1214, 0
    %v1238 = vsel %vm47, %v1215, 0
    %v1241 = vsel %vm47, %v1216, 0
    %v1244 = vsel %vm47, %v1217, 0
    %v1247 = vsel %vm47, %v1218, 0
    %1249 = vmatprep.subr.mxu0 0.0
    %1250 = vmatpush1.msra.mxu0 0.0
    %1251 = vmatprep.subr.mxu0 0.0
    %1252 = vmatpush1.msra.mxu0 0.0
    %1253 = vmatprep.subr.mxu0 0.0
    %1254 = vmatpush1.msra.mxu0 0.0
    %1255 = vmatprep.subr.mxu0 0.0
    %1256 = vmatpush1.msra.mxu0 0.0
    %1257 = vmatprep.subr.mxu0 0.0
    %1258 = vmatpush1.msra.mxu0 0.0
    %1259 = vmatprep.subr.mxu0 0.0
    %1260 = vmatpush1.msra.mxu0 0.0
    %1261 = vmatprep.subr.mxu0 0.0
    %1262 = vmatpush1.msra.mxu0 0.0
    %1263 = vmatprep.subr.mxu0 0.0
    %1264 = vmatpush1.msra.mxu0 0.0
    %1265 = vmatprep.subr.mxu0 0.0
    %1266 = vmatpush1.msra.mxu0 0.0
    %1267 = vmatprep.subr.mxu0 0.0
    %1268 = vmatpush1.msra.mxu0 0.0
    %1269 = vmatprep.subr.mxu0 0.0
    %1270 = vmatpush1.msra.mxu0 0.0
    %1271 = vmatprep.subr.mxu0 0.0
    %1272 = vmatpush1.msra.mxu0 0.0
    %1273 = vmatprep.subr.mxu0 0.0
    %1274 = vmatpush1.msra.mxu0 0.0
    %1275 = vmatprep.subr.mxu0 0.0
    %1276 = vmatpush1.msra.mxu0 0.0
    %1277 = vmatprep.subr.mxu0 0.0
    %1278 = vmatpush1.msra.mxu0 %v1221
    %1279 = vmatprep.subr.mxu0 0.0
    %1280 = vmatpush1.msra.mxu0 %v1220
    %1281 = vmatprep.subr.mxu0 0.0
    %1282 = vmatpush2.msra.mxu0 0.0
    %1283 = vmatprep.subr.mxu0 0.0
    %1284 = vmatpush2.msra.mxu0 0.0
    %1285 = vmatprep.subr.mxu0 0.0
    %1286 = vmatpush2.msra.mxu0 0.0
    %1287 = vmatprep.subr.mxu0 0.0
    %1288 = vmatpush2.msra.mxu0 0.0
    %1289 = vmatprep.subr.mxu0 0.0
    %1290 = vmatpush2.msra.mxu0 0.0
    %1291 = vmatprep.subr.mxu0 0.0
    %1292 = vmatpush2.msra.mxu0 0.0
    %1293 = vmatprep.subr.mxu0 0.0
    %1294 = vmatpush2.msra.mxu0 0.0
    %1295 = vmatprep.subr.mxu0 0.0
    %1296 = vmatpush2.msra.mxu0 0.0
    %1297 = vmatprep.subr.mxu0 0.0
    %1298 = vmatpush2.msra.mxu0 0.0
    %1299 = vmatprep.subr.mxu0 0.0
    %1300 = vmatpush2.msra.mxu0 0.0
    %1301 = vmatprep.subr.mxu0 0.0
    %1302 = vmatpush2.msra.mxu0 0.0
    %1303 = vmatprep.subr.mxu0 0.0
    %1304 = vmatpush2.msra.mxu0 0.0
    %1305 = vmatprep.subr.mxu0 0.0
    %1306 = vmatpush2.msra.mxu0 0.0
    %1307 = vmatprep.subr.mxu0 0.0
    %1308 = vmatpush2.msra.mxu0 0.0
    %1309 = vmatprep.subr.mxu0 0.0
    %1310 = vmatpush2.msra.mxu0 0.0
    %1311 = vmatprep.subr.mxu0 0.0
    %1312 = vmatpush2.msra.mxu0 0.0
    %1313 = vmatprep.mubr.f32.mxu0 0.0
    %1314 = vmatmul.mubr.f32.gmra.mxu0 %v1223
    %v1315 = vpop.f32.mrf.mxu0
    %v1316 = vadd.f32 0.0, %v1315
    %v1317 = vpop.f32.mrf.mxu0
    %1318 = vmatprep.mubr.f32.mxu0 0.0
    %1319 = vmatmul.mubr.f32.gmra.mxu0 %v1226
    %v1320 = vpop.f32.mrf.mxu0
    %v1321 = vadd.f32 0.0, %v1320
    %v1322 = vpop.f32.mrf.mxu0
    %1323 = vmatprep.mubr.f32.mxu0 0.0
    %1324 = vmatmul.mubr.f32.gmra.mxu0 %v1229
    %v1325 = vpop.f32.mrf.mxu0
    %v1326 = vadd.f32 0.0, %v1325
    %v1327 = vpop.f32.mrf.mxu0
    %1328 = vmatprep.mubr.f32.mxu0 0.0
    %1329 = vmatmul.mubr.f32.gmra.mxu0 %v1232
    %v1330 = vpop.f32.mrf.mxu0
    %v1331 = vadd.f32 0.0, %v1330
    %v1332 = vpop.f32.mrf.mxu0
    %1333 = vmatprep.mubr.f32.mxu0 0.0
    %1334 = vmatmul.mubr.f32.gmra.mxu0 %v1235
    %v1335 = vpop.f32.mrf.mxu0
    %v1336 = vadd.f32 0.0, %v1335
    %v1337 = vpop.f32.mrf.mxu0
    %1338 = vmatprep.mubr.f32.mxu0 0.0
    %1339 = vmatmul.mubr.f32.gmra.mxu0 %v1238
    %v1340 = vpop.f32.mrf.mxu0
    %v1341 = vadd.f32 0.0, %v1340
    %v1342 = vpop.f32.mrf.mxu0
    %1343 = vmatprep.mubr.f32.mxu0 0.0
    %1344 = vmatmul.mubr.f32.gmra.mxu0 %v1241
    %v1345 = vpop.f32.mrf.mxu0
    %v1346 = vadd.f32 0.0, %v1345
    %v1347 = vpop.f32.mrf.mxu0
    %1348 = vmatprep.mubr.f32.mxu0 0.0
    %1349 = vmatmul.mubr.f32.gmra.mxu0 %v1244
    %v1350 = vpop.f32.mrf.mxu0
    %v1351 = vadd.f32 0.0, %v1350
    %v1352 = vpop.f32.mrf.mxu0
    %1353 = vmatprep.mubr.f32.mxu0 0.0
    %1354 = vmatmul.mubr.f32.gmra.mxu0 %v1247
    %v1355 = vpop.f32.mrf.mxu0
    %v1356 = vadd.f32 0.0, %v1355
    %v1357 = vpop.f32.mrf.mxu0
    %1358 = vdwg.mxu0
    %v1360 = vsel %vm47, %v1199, 0
    %v1363 = vsel %vm47, %v1200, 0
    %v1366 = vsel %vm47, %v1201, 0
    %v1369 = vsel %vm47, %v1202, 0
    %v1372 = vsel %vm47, %v1203, 0
    %v1375 = vsel %vm47, %v1204, 0
    %v1378 = vsel %vm47, %v1205, 0
    %v1381 = vsel %vm47, %v1206, 0
    %v1384 = vsel %vm47, %v1207, 0
    %1386 = vmatprep.subr.mxu0 0.0
    %1387 = vmatpush1.msra.mxu0 0.0
    %1388 = vmatprep.subr.mxu0 0.0
    %1389 = vmatpush1.msra.mxu0 0.0
    %1390 = vmatprep.subr.mxu0 0.0
    %1391 = vmatpush1.msra.mxu0 0.0
    %1392 = vmatprep.subr.mxu0 0.0
    %1393 = vmatpush1.msra.mxu0 0.0
    %1394 = vmatprep.subr.mxu0 0.0
    %1395 = vmatpush1.msra.mxu0 0.0
    %1396 = vmatprep.subr.mxu0 0.0
    %1397 = vmatpush1.msra.mxu0 0.0
    %1398 = vmatprep.subr.mxu0 0.0
    %1399 = vmatpush1.msra.mxu0 0.0
    %1400 = vmatprep.subr.mxu0 0.0
    %1401 = vmatpush1.msra.mxu0 0.0
    %1402 = vmatprep.subr.mxu0 0.0
    %1403 = vmatpush1.msra.mxu0 0.0
    %1404 = vmatprep.subr.mxu0 0.0
    %1405 = vmatpush1.msra.mxu0 0.0
    %1406 = vmatprep.subr.mxu0 0.0
    %1407 = vmatpush1.msra.mxu0 0.0
    %1408 = vmatprep.subr.mxu0 0.0
    %1409 = vmatpush1.msra.mxu0 0.0
    %1410 = vmatprep.subr.mxu0 0.0
    %1411 = vmatpush1.msra.mxu0 0.0
    %1412 = vmatprep.subr.mxu0 0.0
    %1413 = vmatpush1.msra.mxu0 0.0
    %1414 = vmatprep.subr.mxu0 0.0
    %1415 = vmatpush1.msra.mxu0 %v1209
    %1416 = vmatprep.subr.mxu0 0.0
    %1417 = vmatpush1.msra.mxu0 %v1208
    %1418 = vmatprep.subr.mxu0 0.0
    %1419 = vmatpush2.msra.mxu0 0.0
    %1420 = vmatprep.subr.mxu0 0.0
    %1421 = vmatpush2.msra.mxu0 0.0
    %1422 = vmatprep.subr.mxu0 0.0
    %1423 = vmatpush2.msra.mxu0 0.0
    %1424 = vmatprep.subr.mxu0 0.0
    %1425 = vmatpush2.msra.mxu0 0.0
    %1426 = vmatprep.subr.mxu0 0.0
    %1427 = vmatpush2.msra.mxu0 0.0
    %1428 = vmatprep.subr.mxu0 0.0
    %1429 = vmatpush2.msra.mxu0 0.0
    %1430 = vmatprep.subr.mxu0 0.0
    %1431 = vmatpush2.msra.mxu0 0.0
    %1432 = vmatprep.subr.mxu0 0.0
    %1433 = vmatpush2.msra.mxu0 0.0
    %1434 = vmatprep.subr.mxu0 0.0
    %1435 = vmatpush2.msra.mxu0 0.0
    %1436 = vmatprep.subr.mxu0 0.0
    %1437 = vmatpush2.msra.mxu0 0.0
    %1438 = vmatprep.subr.mxu0 0.0
    %1439 = vmatpush2.msra.mxu0 0.0
    %1440 = vmatprep.subr.mxu0 0.0
    %1441 = vmatpush2.msra.mxu0 0.0
    %1442 = vmatprep.subr.mxu0 0.0
    %1443 = vmatpush2.msra.mxu0 0.0
    %1444 = vmatprep.subr.mxu0 0.0
    %1445 = vmatpush2.msra.mxu0 0.0
    %1446 = vmatprep.subr.mxu0 0.0
    %1447 = vmatpush2.msra.mxu0 0.0
    %1448 = vmatprep.subr.mxu0 0.0
    %1449 = vmatpush2.msra.mxu0 0.0
    %1450 = vmatprep.mubr.f32.mxu0 0.0
    %1451 = vmatmul.mubr.f32.gmra.mxu0 %v1360
    %v1452 = vpop.f32.mrf.mxu0
    %v1453 = vadd.f32 %v1316, %v1452
    %v1454 = vpop.f32.mrf.mxu0
    %1455 = vmatprep.mubr.f32.mxu0 0.0
    %1456 = vmatmul.mubr.f32.gmra.mxu0 %v1363
    %v1457 = vpop.f32.mrf.mxu0
    %v1458 = vadd.f32 %v1321, %v1457
    %v1459 = vpop.f32.mrf.mxu0
    %1460 = vmatprep.mubr.f32.mxu0 0.0
    %1461 = vmatmul.mubr.f32.gmra.mxu0 %v1366
    %v1462 = vpop.f32.mrf.mxu0
    %v1463 = vadd.f32 %v1326, %v1462
    %v1464 = vpop.f32.mrf.mxu0
    %1465 = vmatprep.mubr.f32.mxu0 0.0
    %1466 = vmatmul.mubr.f32.gmra.mxu0 %v1369
    %v1467 = vpop.f32.mrf.mxu0
    %v1468 = vadd.f32 %v1331, %v1467
    %v1469 = vpop.f32.mrf.mxu0
    %1470 = vmatprep.mubr.f32.mxu0 0.0
    %1471 = vmatmul.mubr.f32.gmra.mxu0 %v1372
    %v1472 = vpop.f32.mrf.mxu0
    %v1473 = vadd.f32 %v1336, %v1472
    %v1474 = vpop.f32.mrf.mxu0
    %1475 = vmatprep.mubr.f32.mxu0 0.0
    %1476 = vmatmul.mubr.f32.gmra.mxu0 %v1375
    %v1477 = vpop.f32.mrf.mxu0
    %v1478 = vadd.f32 %v1341, %v1477
    %v1479 = vpop.f32.mrf.mxu0
    %1480 = vmatprep.mubr.f32.mxu0 0.0
    %1481 = vmatmul.mubr.f32.gmra.mxu0 %v1378
    %v1482 = vpop.f32.mrf.mxu0
    %v1483 = vadd.f32 %v1346, %v1482
    %v1484 = vpop.f32.mrf.mxu0
    %1485 = vmatprep.mubr.f32.mxu0 0.0
    %1486 = vmatmul.mubr.f32.gmra.mxu0 %v1381
    %v1487 = vpop.f32.mrf.mxu0
    %v1488 = vadd.f32 %v1351, %v1487
    %v1489 = vpop.f32.mrf.mxu0
    %1490 = vmatprep.mubr.f32.mxu0 0.0
    %1491 = vmatmul.mubr.f32.gmra.mxu0 %v1384
    %v1492 = vpop.f32.mrf.mxu0
    %v1493 = vadd.f32 %v1356, %v1492
    %v1494 = vpop.f32.mrf.mxu0
    %1495 = vdwg.mxu0
    %v1496 = vld [vmem:[#allocation3 + $0x2] sm:$0xff]
    %v1497 = vld [vmem:[#allocation3 + $0xa] sm:$0xff]
    %v1498 = vld [vmem:[#allocation3 + $0x12] sm:$0xff]
    %v1499 = vld [vmem:[#allocation3 + $0x1a] sm:$0xff]
    %v1500 = vld [vmem:[#allocation3 + $0x22] sm:$0xff]
    %v1501 = vld [vmem:[#allocation3 + $0x2a] sm:$0xff]
    %v1502 = vld [vmem:[#allocation3 + $0x32] sm:$0xff]
    %v1503 = vld [vmem:[#allocation3 + $0x3a] sm:$0xff]
    %v1504 = vld [vmem:[#allocation3 + $0x42] sm:$0xff]
    %s1505 = scalar_lea.vmem %s4, 32
    %v1506 = vld [vmem:[%s1505] sm:$0xff]
    %v1507 = vld [vmem:[%s1505 + $0x8] sm:$0xff]
    %v1509 = vsel %vm47, %v1496, 0
    %v1512 = vsel %vm47, %v1497, 0
    %v1515 = vsel %vm47, %v1498, 0
    %v1518 = vsel %vm47, %v1499, 0
    %v1521 = vsel %vm47, %v1500, 0
    %v1524 = vsel %vm47, %v1501, 0
    %v1527 = vsel %vm47, %v1502, 0
    %v1530 = vsel %vm47, %v1503, 0
    %v1533 = vsel %vm47, %v1504, 0
    %1535 = vmatprep.subr.mxu0 0.0
    %1536 = vmatpush1.msra.mxu0 0.0
    %1537 = vmatprep.subr.mxu0 0.0
    %1538 = vmatpush1.msra.mxu0 0.0
    %1539 = vmatprep.subr.mxu0 0.0
    %1540 = vmatpush1.msra.mxu0 0.0
    %1541 = vmatprep.subr.mxu0 0.0
    %1542 = vmatpush1.msra.mxu0 0.0
    %1543 = vmatprep.subr.mxu0 0.0
    %1544 = vmatpush1.msra.mxu0 0.0
    %1545 = vmatprep.subr.mxu0 0.0
    %1546 = vmatpush1.msra.mxu0 0.0
    %1547 = vmatprep.subr.mxu0 0.0
    %1548 = vmatpush1.msra.mxu0 0.0
    %1549 = vmatprep.subr.mxu0 0.0
    %1550 = vmatpush1.msra.mxu0 0.0
    %1551 = vmatprep.subr.mxu0 0.0
    %1552 = vmatpush1.msra.mxu0 0.0
    %1553 = vmatprep.subr.mxu0 0.0
    %1554 = vmatpush1.msra.mxu0 0.0
    %1555 = vmatprep.subr.mxu0 0.0
    %1556 = vmatpush1.msra.mxu0 0.0
    %1557 = vmatprep.subr.mxu0 0.0
    %1558 = vmatpush1.msra.mxu0 0.0
    %1559 = vmatprep.subr.mxu0 0.0
    %1560 = vmatpush1.msra.mxu0 0.0
    %1561 = vmatprep.subr.mxu0 0.0
    %1562 = vmatpush1.msra.mxu0 0.0
    %1563 = vmatprep.subr.mxu0 0.0
    %1564 = vmatpush1.msra.mxu0 %v1507
    %1565 = vmatprep.subr.mxu0 0.0
    %1566 = vmatpush1.msra.mxu0 %v1506
    %1567 = vmatprep.subr.mxu0 0.0
    %1568 = vmatpush2.msra.mxu0 0.0
    %1569 = vmatprep.subr.mxu0 0.0
    %1570 = vmatpush2.msra.mxu0 0.0
    %1571 = vmatprep.subr.mxu0 0.0
    %1572 = vmatpush2.msra.mxu0 0.0
    %1573 = vmatprep.subr.mxu0 0.0
    %1574 = vmatpush2.msra.mxu0 0.0
    %1575 = vmatprep.subr.mxu0 0.0
    %1576 = vmatpush2.msra.mxu0 0.0
    %1577 = vmatprep.subr.mxu0 0.0
    %1578 = vmatpush2.msra.mxu0 0.0
    %1579 = vmatprep.subr.mxu0 0.0
    %1580 = vmatpush2.msra.mxu0 0.0
    %1581 = vmatprep.subr.mxu0 0.0
    %1582 = vmatpush2.msra.mxu0 0.0
    %1583 = vmatprep.subr.mxu0 0.0
    %1584 = vmatpush2.msra.mxu0 0.0
    %1585 = vmatprep.subr.mxu0 0.0
    %1586 = vmatpush2.msra.mxu0 0.0
    %1587 = vmatprep.subr.mxu0 0.0
    %1588 = vmatpush2.msra.mxu0 0.0
    %1589 = vmatprep.subr.mxu0 0.0
    %1590 = vmatpush2.msra.mxu0 0.0
    %1591 = vmatprep.subr.mxu0 0.0
    %1592 = vmatpush2.msra.mxu0 0.0
    %1593 = vmatprep.subr.mxu0 0.0
    %1594 = vmatpush2.msra.mxu0 0.0
    %1595 = vmatprep.subr.mxu0 0.0
    %1596 = vmatpush2.msra.mxu0 0.0
    %1597 = vmatprep.subr.mxu0 0.0
    %1598 = vmatpush2.msra.mxu0 0.0
    %1599 = vmatprep.mubr.f32.mxu0 0.0
    %1600 = vmatmul.mubr.f32.gmra.mxu0 %v1509
    %v1601 = vpop.f32.mrf.mxu0
    %v1602 = vadd.f32 0.0, %v1601
    %v1603 = vpop.f32.mrf.mxu0
    %1604 = vmatprep.mubr.f32.mxu0 0.0
    %1605 = vmatmul.mubr.f32.gmra.mxu0 %v1512
    %v1606 = vpop.f32.mrf.mxu0
    %v1607 = vadd.f32 0.0, %v1606
    %v1608 = vpop.f32.mrf.mxu0
    %1609 = vmatprep.mubr.f32.mxu0 0.0
    %1610 = vmatmul.mubr.f32.gmra.mxu0 %v1515
    %v1611 = vpop.f32.mrf.mxu0
    %v1612 = vadd.f32 0.0, %v1611
    %v1613 = vpop.f32.mrf.mxu0
    %1614 = vmatprep.mubr.f32.mxu0 0.0
    %1615 = vmatmul.mubr.f32.gmra.mxu0 %v1518
    %v1616 = vpop.f32.mrf.mxu0
    %v1617 = vadd.f32 0.0, %v1616
    %v1618 = vpop.f32.mrf.mxu0
    %1619 = vmatprep.mubr.f32.mxu0 0.0
    %1620 = vmatmul.mubr.f32.gmra.mxu0 %v1521
    %v1621 = vpop.f32.mrf.mxu0
    %v1622 = vadd.f32 0.0, %v1621
    %v1623 = vpop.f32.mrf.mxu0
    %1624 = vmatprep.mubr.f32.mxu0 0.0
    %1625 = vmatmul.mubr.f32.gmra.mxu0 %v1524
    %v1626 = vpop.f32.mrf.mxu0
    %v1627 = vadd.f32 0.0, %v1626
    %v1628 = vpop.f32.mrf.mxu0
    %1629 = vmatprep.mubr.f32.mxu0 0.0
    %1630 = vmatmul.mubr.f32.gmra.mxu0 %v1527
    %v1631 = vpop.f32.mrf.mxu0
    %v1632 = vadd.f32 0.0, %v1631
    %v1633 = vpop.f32.mrf.mxu0
    %1634 = vmatprep.mubr.f32.mxu0 0.0
    %1635 = vmatmul.mubr.f32.gmra.mxu0 %v1530
    %v1636 = vpop.f32.mrf.mxu0
    %v1637 = vadd.f32 0.0, %v1636
    %v1638 = vpop.f32.mrf.mxu0
    %1639 = vmatprep.mubr.f32.mxu0 0.0
    %1640 = vmatmul.mubr.f32.gmra.mxu0 %v1533
    %v1641 = vpop.f32.mrf.mxu0
    %v1642 = vadd.f32 0.0, %v1641
    %v1643 = vpop.f32.mrf.mxu0
    %1644 = vdwg.mxu0
    %v1645 = vadd.f32 %v1453, %v1602
    %v1646 = vadd.f32 %v1458, %v1607
    %v1647 = vadd.f32 %v1463, %v1612
    %v1648 = vadd.f32 %v1468, %v1617
    %v1649 = vadd.f32 %v1473, %v1622
    %v1650 = vadd.f32 %v1478, %v1627
    %v1651 = vadd.f32 %v1483, %v1632
    %v1652 = vadd.f32 %v1488, %v1637
    %v1653 = vadd.f32 %v1493, %v1642
    %v1654 = vmul.f32 %v1645, %v597
    %v1655 = vmul.f32 %v1646, %v602
    %v1656 = vmul.f32 %v1647, %v607
    %v1657 = vmul.f32 %v1648, %v612
    %v1658 = vmul.f32 %v1649, %v617
    %v1659 = vmul.f32 %v1650, %v622
    %v1660 = vmul.f32 %v1651, %v627
    %v1661 = vmul.f32 %v1652, %v632
    %v1662 = vmul.f32 %v1653, %v637
    %vm1663 = vcmask 130049
    %1664 = vst.msk [vmem:[%s6 - $0x1] sm:$0xfe] %vm1663, %v1654
    %1665 = vst.msk [vmem:[%s6 + $0x7] sm:$0xff] %vm47, %v1655
    %vm1666 = vcmask 122880
    %1667 = vst.msk [vmem:[%s6 + $0xf] sm:$0x1] %vm1666, %v1656
    %v1668 = vld [vmem:[%s5] sm:$0xff]
    %v1669 = vld [vmem:[%s5 + $0x8] sm:$0xff]
    %s1670 = scalar_lea.vmem %s5, 16
    %v1671 = vld [vmem:[%s1670] sm:$0xff]
    %v1672 = vld [vmem:[%s1670 + $0x8] sm:$0xff]
    %v1674 = vrot.slane %v1654, 2
    %v1675 = vsel %vm47, %v1674, 0
    %1677 = vmatprep.subr.mxu0 0.0
    %1678 = vmatpush1.msra.mxu0 0.0
    %1679 = vmatprep.subr.mxu0 0.0
    %1680 = vmatpush1.msra.mxu0 0.0
    %1681 = vmatprep.subr.mxu0 0.0
    %1682 = vmatpush1.msra.mxu0 0.0
    %1683 = vmatprep.subr.mxu0 0.0
    %1684 = vmatpush1.msra.mxu0 0.0
    %1685 = vmatprep.subr.mxu0 0.0
    %1686 = vmatpush1.msra.mxu0 0.0
    %1687 = vmatprep.subr.mxu0 0.0
    %1688 = vmatpush1.msra.mxu0 0.0
    %1689 = vmatprep.subr.mxu0 0.0
    %1690 = vmatpush1.msra.mxu0 0.0
    %1691 = vmatprep.subr.mxu0 0.0
    %1692 = vmatpush1.msra.mxu0 0.0
    %1693 = vmatprep.subr.mxu0 0.0
    %1694 = vmatpush1.msra.mxu0 0.0
    %1695 = vmatprep.subr.mxu0 0.0
    %1696 = vmatpush1.msra.mxu0 0.0
    %1697 = vmatprep.subr.mxu0 0.0
    %1698 = vmatpush1.msra.mxu0 0.0
    %1699 = vmatprep.subr.mxu0 0.0
    %1700 = vmatpush1.msra.mxu0 0.0
    %1701 = vmatprep.subr.mxu0 0.0
    %1702 = vmatpush1.msra.mxu0 0.0
    %1703 = vmatprep.subr.mxu0 0.0
    %1704 = vmatpush1.msra.mxu0 0.0
    %1705 = vmatprep.subr.mxu0 0.0
    %1706 = vmatpush1.msra.mxu0 %v1672
    %1707 = vmatprep.subr.mxu0 0.0
    %1708 = vmatpush1.msra.mxu0 %v1671
    %1709 = vmatprep.subr.mxu0 0.0
    %1710 = vmatpush2.msra.mxu0 0.0
    %1711 = vmatprep.subr.mxu0 0.0
    %1712 = vmatpush2.msra.mxu0 0.0
    %1713 = vmatprep.subr.mxu0 0.0
    %1714 = vmatpush2.msra.mxu0 0.0
    %1715 = vmatprep.subr.mxu0 0.0
    %1716 = vmatpush2.msra.mxu0 0.0
    %1717 = vmatprep.subr.mxu0 0.0
    %1718 = vmatpush2.msra.mxu0 0.0
    %1719 = vmatprep.subr.mxu0 0.0
    %1720 = vmatpush2.msra.mxu0 0.0
    %1721 = vmatprep.subr.mxu0 0.0
    %1722 = vmatpush2.msra.mxu0 0.0
    %1723 = vmatprep.subr.mxu0 0.0
    %1724 = vmatpush2.msra.mxu0 0.0
    %1725 = vmatprep.subr.mxu0 0.0
    %1726 = vmatpush2.msra.mxu0 0.0
    %1727 = vmatprep.subr.mxu0 0.0
    %1728 = vmatpush2.msra.mxu0 0.0
    %1729 = vmatprep.subr.mxu0 0.0
    %1730 = vmatpush2.msra.mxu0 0.0
    %1731 = vmatprep.subr.mxu0 0.0
    %1732 = vmatpush2.msra.mxu0 0.0
    %1733 = vmatprep.subr.mxu0 0.0
    %1734 = vmatpush2.msra.mxu0 0.0
    %1735 = vmatprep.subr.mxu0 0.0
    %1736 = vmatpush2.msra.mxu0 0.0
    %1737 = vmatprep.subr.mxu0 0.0
    %1738 = vmatpush2.msra.mxu0 0.0
    %1739 = vmatprep.subr.mxu0 0.0
    %1740 = vmatpush2.msra.mxu0 0.0
    %1741 = vmatprep.mubr.f32.mxu0 0.0
    %1742 = vmatmul.mubr.f32.gmra.mxu0 %v1675
    %v1743 = vpop.f32.mrf.mxu0
    %v1744 = vadd.f32 0.0, %v1743
    %v1745 = vpop.f32.mrf.mxu0
    %1746 = vdwg.mxu0
    %v1747 = vrot.slane %v1654, 1
    %v1748 = vsel %vm47, %v1747, 0
    %1750 = vmatprep.subr.mxu0 0.0
    %1751 = vmatpush1.msra.mxu0 0.0
    %1752 = vmatprep.subr.mxu0 0.0
    %1753 = vmatpush1.msra.mxu0 0.0
    %1754 = vmatprep.subr.mxu0 0.0
    %1755 = vmatpush1.msra.mxu0 0.0
    %1756 = vmatprep.subr.mxu0 0.0
    %1757 = vmatpush1.msra.mxu0 0.0
    %1758 = vmatprep.subr.mxu0 0.0
    %1759 = vmatpush1.msra.mxu0 0.0
    %1760 = vmatprep.subr.mxu0 0.0
    %1761 = vmatpush1.msra.mxu0 0.0
    %1762 = vmatprep.subr.mxu0 0.0
    %1763 = vmatpush1.msra.mxu0 0.0
    %1764 = vmatprep.subr.mxu0 0.0
    %1765 = vmatpush1.msra.mxu0 0.0
    %1766 = vmatprep.subr.mxu0 0.0
    %1767 = vmatpush1.msra.mxu0 0.0
    %1768 = vmatprep.subr.mxu0 0.0
    %1769 = vmatpush1.msra.mxu0 0.0
    %1770 = vmatprep.subr.mxu0 0.0
    %1771 = vmatpush1.msra.mxu0 0.0
    %1772 = vmatprep.subr.mxu0 0.0
    %1773 = vmatpush1.msra.mxu0 0.0
    %1774 = vmatprep.subr.mxu0 0.0
    %1775 = vmatpush1.msra.mxu0 0.0
    %1776 = vmatprep.subr.mxu0 0.0
    %1777 = vmatpush1.msra.mxu0 0.0
    %1778 = vmatprep.subr.mxu0 0.0
    %1779 = vmatpush1.msra.mxu0 %v1669
    %1780 = vmatprep.subr.mxu0 0.0
    %1781 = vmatpush1.msra.mxu0 %v1668
    %1782 = vmatprep.subr.mxu0 0.0
    %1783 = vmatpush2.msra.mxu0 0.0
    %1784 = vmatprep.subr.mxu0 0.0
    %1785 = vmatpush2.msra.mxu0 0.0
    %1786 = vmatprep.subr.mxu0 0.0
    %1787 = vmatpush2.msra.mxu0 0.0
    %1788 = vmatprep.subr.mxu0 0.0
    %1789 = vmatpush2.msra.mxu0 0.0
    %1790 = vmatprep.subr.mxu0 0.0
    %1791 = vmatpush2.msra.mxu0 0.0
    %1792 = vmatprep.subr.mxu0 0.0
    %1793 = vmatpush2.msra.mxu0 0.0
    %1794 = vmatprep.subr.mxu0 0.0
    %1795 = vmatpush2.msra.mxu0 0.0
    %1796 = vmatprep.subr.mxu0 0.0
    %1797 = vmatpush2.msra.mxu0 0.0
    %1798 = vmatprep.subr.mxu0 0.0
    %1799 = vmatpush2.msra.mxu0 0.0
    %1800 = vmatprep.subr.mxu0 0.0
    %1801 = vmatpush2.msra.mxu0 0.0
    %1802 = vmatprep.subr.mxu0 0.0
    %1803 = vmatpush2.msra.mxu0 0.0
    %1804 = vmatprep.subr.mxu0 0.0
    %1805 = vmatpush2.msra.mxu0 0.0
    %1806 = vmatprep.subr.mxu0 0.0
    %1807 = vmatpush2.msra.mxu0 0.0
    %1808 = vmatprep.subr.mxu0 0.0
    %1809 = vmatpush2.msra.mxu0 0.0
    %1810 = vmatprep.subr.mxu0 0.0
    %1811 = vmatpush2.msra.mxu0 0.0
    %1812 = vmatprep.subr.mxu0 0.0
    %1813 = vmatpush2.msra.mxu0 0.0
    %1814 = vmatprep.mubr.f32.mxu0 0.0
    %1815 = vmatmul.mubr.f32.gmra.mxu0 %v1748
    %v1816 = vpop.f32.mrf.mxu0
    %v1817 = vadd.f32 %v1744, %v1816
    %v1818 = vpop.f32.mrf.mxu0
    %1819 = vdwg.mxu0
    %s1820 = scalar_lea.vmem %s5, 32
    %v1821 = vld [vmem:[%s1820] sm:$0xff]
    %v1822 = vld [vmem:[%s1820 + $0x8] sm:$0xff]
    %v1823 = vrot.slane %v1654, 3
    %v1824 = vsel %vm47, %v1823, 0
    %1826 = vmatprep.subr.mxu0 0.0
    %1827 = vmatpush1.msra.mxu0 0.0
    %1828 = vmatprep.subr.mxu0 0.0
    %1829 = vmatpush1.msra.mxu0 0.0
    %1830 = vmatprep.subr.mxu0 0.0
    %1831 = vmatpush1.msra.mxu0 0.0
    %1832 = vmatprep.subr.mxu0 0.0
    %1833 = vmatpush1.msra.mxu0 0.0
    %1834 = vmatprep.subr.mxu0 0.0
    %1835 = vmatpush1.msra.mxu0 0.0
    %1836 = vmatprep.subr.mxu0 0.0
    %1837 = vmatpush1.msra.mxu0 0.0
    %1838 = vmatprep.subr.mxu0 0.0
    %1839 = vmatpush1.msra.mxu0 0.0
    %1840 = vmatprep.subr.mxu0 0.0
    %1841 = vmatpush1.msra.mxu0 0.0
    %1842 = vmatprep.subr.mxu0 0.0
    %1843 = vmatpush1.msra.mxu0 0.0
    %1844 = vmatprep.subr.mxu0 0.0
    %1845 = vmatpush1.msra.mxu0 0.0
    %1846 = vmatprep.subr.mxu0 0.0
    %1847 = vmatpush1.msra.mxu0 0.0
    %1848 = vmatprep.subr.mxu0 0.0
    %1849 = vmatpush1.msra.mxu0 0.0
    %1850 = vmatprep.subr.mxu0 0.0
    %1851 = vmatpush1.msra.mxu0 0.0
    %1852 = vmatprep.subr.mxu0 0.0
    %1853 = vmatpush1.msra.mxu0 0.0
    %1854 = vmatprep.subr.mxu0 0.0
    %1855 = vmatpush1.msra.mxu0 %v1822
    %1856 = vmatprep.subr.mxu0 0.0
    %1857 = vmatpush1.msra.mxu0 %v1821
    %1858 = vmatprep.subr.mxu0 0.0
    %1859 = vmatpush2.msra.mxu0 0.0
    %1860 = vmatprep.subr.mxu0 0.0
    %1861 = vmatpush2.msra.mxu0 0.0
    %1862 = vmatprep.subr.mxu0 0.0
    %1863 = vmatpush2.msra.mxu0 0.0
    %1864 = vmatprep.subr.mxu0 0.0
    %1865 = vmatpush2.msra.mxu0 0.0
    %1866 = vmatprep.subr.mxu0 0.0
    %1867 = vmatpush2.msra.mxu0 0.0
    %1868 = vmatprep.subr.mxu0 0.0
    %1869 = vmatpush2.msra.mxu0 0.0
    %1870 = vmatprep.subr.mxu0 0.0
    %1871 = vmatpush2.msra.mxu0 0.0
    %1872 = vmatprep.subr.mxu0 0.0
    %1873 = vmatpush2.msra.mxu0 0.0
    %1874 = vmatprep.subr.mxu0 0.0
    %1875 = vmatpush2.msra.mxu0 0.0
    %1876 = vmatprep.subr.mxu0 0.0
    %1877 = vmatpush2.msra.mxu0 0.0
    %1878 = vmatprep.subr.mxu0 0.0
    %1879 = vmatpush2.msra.mxu0 0.0
    %1880 = vmatprep.subr.mxu0 0.0
    %1881 = vmatpush2.msra.mxu0 0.0
    %1882 = vmatprep.subr.mxu0 0.0
    %1883 = vmatpush2.msra.mxu0 0.0
    %1884 = vmatprep.subr.mxu0 0.0
    %1885 = vmatpush2.msra.mxu0 0.0
    %1886 = vmatprep.subr.mxu0 0.0
    %1887 = vmatpush2.msra.mxu0 0.0
    %1888 = vmatprep.subr.mxu0 0.0
    %1889 = vmatpush2.msra.mxu0 0.0
    %1890 = vmatprep.mubr.f32.mxu0 0.0
    %1891 = vmatmul.mubr.f32.gmra.mxu0 %v1824
    %v1892 = vpop.f32.mrf.mxu0
    %v1893 = vadd.f32 0.0, %v1892
    %v1894 = vpop.f32.mrf.mxu0
    %1895 = vdwg.mxu0
    %v1896 = vadd.f32 %v1817, %v1893
    %s1897 = scalar_lea.vmem %s5, 48
    %v1898 = vld [vmem:[%s1897] sm:$0xff]
    %v1899 = vld [vmem:[%s1897 + $0x8] sm:$0xff]
    %v1900 = vrot.slane %v1654, 4
    %v1901 = vsel %vm47, %v1900, 0
    %1903 = vmatprep.subr.mxu0 0.0
    %1904 = vmatpush1.msra.mxu0 0.0
    %1905 = vmatprep.subr.mxu0 0.0
    %1906 = vmatpush1.msra.mxu0 0.0
    %1907 = vmatprep.subr.mxu0 0.0
    %1908 = vmatpush1.msra.mxu0 0.0
    %1909 = vmatprep.subr.mxu0 0.0
    %1910 = vmatpush1.msra.mxu0 0.0
    %1911 = vmatprep.subr.mxu0 0.0
    %1912 = vmatpush1.msra.mxu0 0.0
    %1913 = vmatprep.subr.mxu0 0.0
    %1914 = vmatpush1.msra.mxu0 0.0
    %1915 = vmatprep.subr.mxu0 0.0
    %1916 = vmatpush1.msra.mxu0 0.0
    %1917 = vmatprep.subr.mxu0 0.0
    %1918 = vmatpush1.msra.mxu0 0.0
    %1919 = vmatprep.subr.mxu0 0.0
    %1920 = vmatpush1.msra.mxu0 0.0
    %1921 = vmatprep.subr.mxu0 0.0
    %1922 = vmatpush1.msra.mxu0 0.0
    %1923 = vmatprep.subr.mxu0 0.0
    %1924 = vmatpush1.msra.mxu0 0.0
    %1925 = vmatprep.subr.mxu0 0.0
    %1926 = vmatpush1.msra.mxu0 0.0
    %1927 = vmatprep.subr.mxu0 0.0
    %1928 = vmatpush1.msra.mxu0 0.0
    %1929 = vmatprep.subr.mxu0 0.0
    %1930 = vmatpush1.msra.mxu0 0.0
    %1931 = vmatprep.subr.mxu0 0.0
    %1932 = vmatpush1.msra.mxu0 %v1899
    %1933 = vmatprep.subr.mxu0 0.0
    %1934 = vmatpush1.msra.mxu0 %v1898
    %1935 = vmatprep.subr.mxu0 0.0
    %1936 = vmatpush2.msra.mxu0 0.0
    %1937 = vmatprep.subr.mxu0 0.0
    %1938 = vmatpush2.msra.mxu0 0.0
    %1939 = vmatprep.subr.mxu0 0.0
    %1940 = vmatpush2.msra.mxu0 0.0
    %1941 = vmatprep.subr.mxu0 0.0
    %1942 = vmatpush2.msra.mxu0 0.0
    %1943 = vmatprep.subr.mxu0 0.0
    %1944 = vmatpush2.msra.mxu0 0.0
    %1945 = vmatprep.subr.mxu0 0.0
    %1946 = vmatpush2.msra.mxu0 0.0
    %1947 = vmatprep.subr.mxu0 0.0
    %1948 = vmatpush2.msra.mxu0 0.0
    %1949 = vmatprep.subr.mxu0 0.0
    %1950 = vmatpush2.msra.mxu0 0.0
    %1951 = vmatprep.subr.mxu0 0.0
    %1952 = vmatpush2.msra.mxu0 0.0
    %1953 = vmatprep.subr.mxu0 0.0
    %1954 = vmatpush2.msra.mxu0 0.0
    %1955 = vmatprep.subr.mxu0 0.0
    %1956 = vmatpush2.msra.mxu0 0.0
    %1957 = vmatprep.subr.mxu0 0.0
    %1958 = vmatpush2.msra.mxu0 0.0
    %1959 = vmatprep.subr.mxu0 0.0
    %1960 = vmatpush2.msra.mxu0 0.0
    %1961 = vmatprep.subr.mxu0 0.0
    %1962 = vmatpush2.msra.mxu0 0.0
    %1963 = vmatprep.subr.mxu0 0.0
    %1964 = vmatpush2.msra.mxu0 0.0
    %1965 = vmatprep.subr.mxu0 0.0
    %1966 = vmatpush2.msra.mxu0 0.0
    %1967 = vmatprep.mubr.f32.mxu0 0.0
    %1968 = vmatmul.mubr.f32.gmra.mxu0 %v1901
    %v1969 = vpop.f32.mrf.mxu0
    %v1970 = vadd.f32 0.0, %v1969
    %v1971 = vpop.f32.mrf.mxu0
    %1972 = vdwg.mxu0
    %v1973 = vadd.f32 %v1896, %v1970
    %s1974 = scalar_lea.vmem %s5, 64
    %v1975 = vld [vmem:[%s1974] sm:$0xff]
    %v1976 = vld [vmem:[%s1974 + $0x8] sm:$0xff]
    %v1977 = vrot.slane %v1654, 5
    %v1978 = vsel %vm47, %v1977, 0
    %1980 = vmatprep.subr.mxu0 0.0
    %1981 = vmatpush1.msra.mxu0 0.0
    %1982 = vmatprep.subr.mxu0 0.0
    %1983 = vmatpush1.msra.mxu0 0.0
    %1984 = vmatprep.subr.mxu0 0.0
    %1985 = vmatpush1.msra.mxu0 0.0
    %1986 = vmatprep.subr.mxu0 0.0
    %1987 = vmatpush1.msra.mxu0 0.0
    %1988 = vmatprep.subr.mxu0 0.0
    %1989 = vmatpush1.msra.mxu0 0.0
    %1990 = vmatprep.subr.mxu0 0.0
    %1991 = vmatpush1.msra.mxu0 0.0
    %1992 = vmatprep.subr.mxu0 0.0
    %1993 = vmatpush1.msra.mxu0 0.0
    %1994 = vmatprep.subr.mxu0 0.0
    %1995 = vmatpush1.msra.mxu0 0.0
    %1996 = vmatprep.subr.mxu0 0.0
    %1997 = vmatpush1.msra.mxu0 0.0
    %1998 = vmatprep.subr.mxu0 0.0
    %1999 = vmatpush1.msra.mxu0 0.0
    %2000 = vmatprep.subr.mxu0 0.0
    %2001 = vmatpush1.msra.mxu0 0.0
    %2002 = vmatprep.subr.mxu0 0.0
    %2003 = vmatpush1.msra.mxu0 0.0
    %2004 = vmatprep.subr.mxu0 0.0
    %2005 = vmatpush1.msra.mxu0 0.0
    %2006 = vmatprep.subr.mxu0 0.0
    %2007 = vmatpush1.msra.mxu0 0.0
    %2008 = vmatprep.subr.mxu0 0.0
    %2009 = vmatpush1.msra.mxu0 %v1976
    %2010 = vmatprep.subr.mxu0 0.0
    %2011 = vmatpush1.msra.mxu0 %v1975
    %2012 = vmatprep.subr.mxu0 0.0
    %2013 = vmatpush2.msra.mxu0 0.0
    %2014 = vmatprep.subr.mxu0 0.0
    %2015 = vmatpush2.msra.mxu0 0.0
    %2016 = vmatprep.subr.mxu0 0.0
    %2017 = vmatpush2.msra.mxu0 0.0
    %2018 = vmatprep.subr.mxu0 0.0
    %2019 = vmatpush2.msra.mxu0 0.0
    %2020 = vmatprep.subr.mxu0 0.0
    %2021 = vmatpush2.msra.mxu0 0.0
    %2022 = vmatprep.subr.mxu0 0.0
    %2023 = vmatpush2.msra.mxu0 0.0
    %2024 = vmatprep.subr.mxu0 0.0
    %2025 = vmatpush2.msra.mxu0 0.0
    %2026 = vmatprep.subr.mxu0 0.0
    %2027 = vmatpush2.msra.mxu0 0.0
    %2028 = vmatprep.subr.mxu0 0.0
    %2029 = vmatpush2.msra.mxu0 0.0
    %2030 = vmatprep.subr.mxu0 0.0
    %2031 = vmatpush2.msra.mxu0 0.0
    %2032 = vmatprep.subr.mxu0 0.0
    %2033 = vmatpush2.msra.mxu0 0.0
    %2034 = vmatprep.subr.mxu0 0.0
    %2035 = vmatpush2.msra.mxu0 0.0
    %2036 = vmatprep.subr.mxu0 0.0
    %2037 = vmatpush2.msra.mxu0 0.0
    %2038 = vmatprep.subr.mxu0 0.0
    %2039 = vmatpush2.msra.mxu0 0.0
    %2040 = vmatprep.subr.mxu0 0.0
    %2041 = vmatpush2.msra.mxu0 0.0
    %2042 = vmatprep.subr.mxu0 0.0
    %2043 = vmatpush2.msra.mxu0 0.0
    %2044 = vmatprep.mubr.f32.mxu0 0.0
    %2045 = vmatmul.mubr.f32.gmra.mxu0 %v1978
    %v2046 = vpop.f32.mrf.mxu0
    %v2047 = vadd.f32 0.0, %v2046
    %v2048 = vpop.f32.mrf.mxu0
    %2049 = vdwg.mxu0
    %v2050 = vadd.f32 %v1973, %v2047
    %s2051 = scalar_lea.vmem %s5, 80
    %v2052 = vld [vmem:[%s2051] sm:$0xff]
    %v2053 = vld [vmem:[%s2051 + $0x8] sm:$0xff]
    %v2054 = vrot.slane %v1654, 6
    %v2055 = vsel %vm47, %v2054, 0
    %2057 = vmatprep.subr.mxu0 0.0
    %2058 = vmatpush1.msra.mxu0 0.0
    %2059 = vmatprep.subr.mxu0 0.0
    %2060 = vmatpush1.msra.mxu0 0.0
    %2061 = vmatprep.subr.mxu0 0.0
    %2062 = vmatpush1.msra.mxu0 0.0
    %2063 = vmatprep.subr.mxu0 0.0
    %2064 = vmatpush1.msra.mxu0 0.0
    %2065 = vmatprep.subr.mxu0 0.0
    %2066 = vmatpush1.msra.mxu0 0.0
    %2067 = vmatprep.subr.mxu0 0.0
    %2068 = vmatpush1.msra.mxu0 0.0
    %2069 = vmatprep.subr.mxu0 0.0
    %2070 = vmatpush1.msra.mxu0 0.0
    %2071 = vmatprep.subr.mxu0 0.0
    %2072 = vmatpush1.msra.mxu0 0.0
    %2073 = vmatprep.subr.mxu0 0.0
    %2074 = vmatpush1.msra.mxu0 0.0
    %2075 = vmatprep.subr.mxu0 0.0
    %2076 = vmatpush1.msra.mxu0 0.0
    %2077 = vmatprep.subr.mxu0 0.0
    %2078 = vmatpush1.msra.mxu0 0.0
    %2079 = vmatprep.subr.mxu0 0.0
    %2080 = vmatpush1.msra.mxu0 0.0
    %2081 = vmatprep.subr.mxu0 0.0
    %2082 = vmatpush1.msra.mxu0 0.0
    %2083 = vmatprep.subr.mxu0 0.0
    %2084 = vmatpush1.msra.mxu0 0.0
    %2085 = vmatprep.subr.mxu0 0.0
    %2086 = vmatpush1.msra.mxu0 %v2053
    %2087 = vmatprep.subr.mxu0 0.0
    %2088 = vmatpush1.msra.mxu0 %v2052
    %2089 = vmatprep.subr.mxu0 0.0
    %2090 = vmatpush2.msra.mxu0 0.0
    %2091 = vmatprep.subr.mxu0 0.0
    %2092 = vmatpush2.msra.mxu0 0.0
    %2093 = vmatprep.subr.mxu0 0.0
    %2094 = vmatpush2.msra.mxu0 0.0
    %2095 = vmatprep.subr.mxu0 0.0
    %2096 = vmatpush2.msra.mxu0 0.0
    %2097 = vmatprep.subr.mxu0 0.0
    %2098 = vmatpush2.msra.mxu0 0.0
    %2099 = vmatprep.subr.mxu0 0.0
    %2100 = vmatpush2.msra.mxu0 0.0
    %2101 = vmatprep.subr.mxu0 0.0
    %2102 = vmatpush2.msra.mxu0 0.0
    %2103 = vmatprep.subr.mxu0 0.0
    %2104 = vmatpush2.msra.mxu0 0.0
    %2105 = vmatprep.subr.mxu0 0.0
    %2106 = vmatpush2.msra.mxu0 0.0
    %2107 = vmatprep.subr.mxu0 0.0
    %2108 = vmatpush2.msra.mxu0 0.0
    %2109 = vmatprep.subr.mxu0 0.0
    %2110 = vmatpush2.msra.mxu0 0.0
    %2111 = vmatprep.subr.mxu0 0.0
    %2112 = vmatpush2.msra.mxu0 0.0
    %2113 = vmatprep.subr.mxu0 0.0
    %2114 = vmatpush2.msra.mxu0 0.0
    %2115 = vmatprep.subr.mxu0 0.0
    %2116 = vmatpush2.msra.mxu0 0.0
    %2117 = vmatprep.subr.mxu0 0.0
    %2118 = vmatpush2.msra.mxu0 0.0
    %2119 = vmatprep.subr.mxu0 0.0
    %2120 = vmatpush2.msra.mxu0 0.0
    %2121 = vmatprep.mubr.f32.mxu0 0.0
    %2122 = vmatmul.mubr.f32.gmra.mxu0 %v2055
    %v2123 = vpop.f32.mrf.mxu0
    %v2124 = vadd.f32 0.0, %v2123
    %v2125 = vpop.f32.mrf.mxu0
    %2126 = vdwg.mxu0
    %v2127 = vadd.f32 %v2050, %v2124
    %s2128 = scalar_lea.vmem %s5, 96
    %v2129 = vld [vmem:[%s2128] sm:$0xff]
    %v2130 = vld [vmem:[%s2128 + $0x8] sm:$0xff]
    %v2131 = vrot.slane %v1654, 7
    %v2132 = vsel %vm47, %v2131, 0
    %2134 = vmatprep.subr.mxu0 0.0
    %2135 = vmatpush1.msra.mxu0 0.0
    %2136 = vmatprep.subr.mxu0 0.0
    %2137 = vmatpush1.msra.mxu0 0.0
    %2138 = vmatprep.subr.mxu0 0.0
    %2139 = vmatpush1.msra.mxu0 0.0
    %2140 = vmatprep.subr.mxu0 0.0
    %2141 = vmatpush1.msra.mxu0 0.0
    %2142 = vmatprep.subr.mxu0 0.0
    %2143 = vmatpush1.msra.mxu0 0.0
    %2144 = vmatprep.subr.mxu0 0.0
    %2145 = vmatpush1.msra.mxu0 0.0
    %2146 = vmatprep.subr.mxu0 0.0
    %2147 = vmatpush1.msra.mxu0 0.0
    %2148 = vmatprep.subr.mxu0 0.0
    %2149 = vmatpush1.msra.mxu0 0.0
    %2150 = vmatprep.subr.mxu0 0.0
    %2151 = vmatpush1.msra.mxu0 0.0
    %2152 = vmatprep.subr.mxu0 0.0
    %2153 = vmatpush1.msra.mxu0 0.0
    %2154 = vmatprep.subr.mxu0 0.0
    %2155 = vmatpush1.msra.mxu0 0.0
    %2156 = vmatprep.subr.mxu0 0.0
    %2157 = vmatpush1.msra.mxu0 0.0
    %2158 = vmatprep.subr.mxu0 0.0
    %2159 = vmatpush1.msra.mxu0 0.0
    %2160 = vmatprep.subr.mxu0 0.0
    %2161 = vmatpush1.msra.mxu0 0.0
    %2162 = vmatprep.subr.mxu0 0.0
    %2163 = vmatpush1.msra.mxu0 %v2130
    %2164 = vmatprep.subr.mxu0 0.0
    %2165 = vmatpush1.msra.mxu0 %v2129
    %2166 = vmatprep.subr.mxu0 0.0
    %2167 = vmatpush2.msra.mxu0 0.0
    %2168 = vmatprep.subr.mxu0 0.0
    %2169 = vmatpush2.msra.mxu0 0.0
    %2170 = vmatprep.subr.mxu0 0.0
    %2171 = vmatpush2.msra.mxu0 0.0
    %2172 = vmatprep.subr.mxu0 0.0
    %2173 = vmatpush2.msra.mxu0 0.0
    %2174 = vmatprep.subr.mxu0 0.0
    %2175 = vmatpush2.msra.mxu0 0.0
    %2176 = vmatprep.subr.mxu0 0.0
    %2177 = vmatpush2.msra.mxu0 0.0
    %2178 = vmatprep.subr.mxu0 0.0
    %2179 = vmatpush2.msra.mxu0 0.0
    %2180 = vmatprep.subr.mxu0 0.0
    %2181 = vmatpush2.msra.mxu0 0.0
    %2182 = vmatprep.subr.mxu0 0.0
    %2183 = vmatpush2.msra.mxu0 0.0
    %2184 = vmatprep.subr.mxu0 0.0
    %2185 = vmatpush2.msra.mxu0 0.0
    %2186 = vmatprep.subr.mxu0 0.0
    %2187 = vmatpush2.msra.mxu0 0.0
    %2188 = vmatprep.subr.mxu0 0.0
    %2189 = vmatpush2.msra.mxu0 0.0
    %2190 = vmatprep.subr.mxu0 0.0
    %2191 = vmatpush2.msra.mxu0 0.0
    %2192 = vmatprep.subr.mxu0 0.0
    %2193 = vmatpush2.msra.mxu0 0.0
    %2194 = vmatprep.subr.mxu0 0.0
    %2195 = vmatpush2.msra.mxu0 0.0
    %2196 = vmatprep.subr.mxu0 0.0
    %2197 = vmatpush2.msra.mxu0 0.0
    %2198 = vmatprep.mubr.f32.mxu0 0.0
    %2199 = vmatmul.mubr.f32.gmra.mxu0 %v2132
    %v2200 = vpop.f32.mrf.mxu0
    %v2201 = vadd.f32 0.0, %v2200
    %v2202 = vpop.f32.mrf.mxu0
    %2203 = vdwg.mxu0
    %v2204 = vadd.f32 %v2127, %v2201
    %s2205 = scalar_lea.vmem %s5, 112
    %v2206 = vld [vmem:[%s2205] sm:$0xff]
    %v2207 = vld [vmem:[%s2205 + $0x8] sm:$0xff]
    %v2209 = vsel %vm47, %v1655, 0
    %2211 = vmatprep.subr.mxu0 0.0
    %2212 = vmatpush1.msra.mxu0 0.0
    %2213 = vmatprep.subr.mxu0 0.0
    %2214 = vmatpush1.msra.mxu0 0.0
    %2215 = vmatprep.subr.mxu0 0.0
    %2216 = vmatpush1.msra.mxu0 0.0
    %2217 = vmatprep.subr.mxu0 0.0
    %2218 = vmatpush1.msra.mxu0 0.0
    %2219 = vmatprep.subr.mxu0 0.0
    %2220 = vmatpush1.msra.mxu0 0.0
    %2221 = vmatprep.subr.mxu0 0.0
    %2222 = vmatpush1.msra.mxu0 0.0
    %2223 = vmatprep.subr.mxu0 0.0
    %2224 = vmatpush1.msra.mxu0 0.0
    %2225 = vmatprep.subr.mxu0 0.0
    %2226 = vmatpush1.msra.mxu0 0.0
    %2227 = vmatprep.subr.mxu0 0.0
    %2228 = vmatpush1.msra.mxu0 0.0
    %2229 = vmatprep.subr.mxu0 0.0
    %2230 = vmatpush1.msra.mxu0 0.0
    %2231 = vmatprep.subr.mxu0 0.0
    %2232 = vmatpush1.msra.mxu0 0.0
    %2233 = vmatprep.subr.mxu0 0.0
    %2234 = vmatpush1.msra.mxu0 0.0
    %2235 = vmatprep.subr.mxu0 0.0
    %2236 = vmatpush1.msra.mxu0 0.0
    %2237 = vmatprep.subr.mxu0 0.0
    %2238 = vmatpush1.msra.mxu0 0.0
    %2239 = vmatprep.subr.mxu0 0.0
    %2240 = vmatpush1.msra.mxu0 %v2207
    %2241 = vmatprep.subr.mxu0 0.0
    %2242 = vmatpush1.msra.mxu0 %v2206
    %2243 = vmatprep.subr.mxu0 0.0
    %2244 = vmatpush2.msra.mxu0 0.0
    %2245 = vmatprep.subr.mxu0 0.0
    %2246 = vmatpush2.msra.mxu0 0.0
    %2247 = vmatprep.subr.mxu0 0.0
    %2248 = vmatpush2.msra.mxu0 0.0
    %2249 = vmatprep.subr.mxu0 0.0
    %2250 = vmatpush2.msra.mxu0 0.0
    %2251 = vmatprep.subr.mxu0 0.0
    %2252 = vmatpush2.msra.mxu0 0.0
    %2253 = vmatprep.subr.mxu0 0.0
    %2254 = vmatpush2.msra.mxu0 0.0
    %2255 = vmatprep.subr.mxu0 0.0
    %2256 = vmatpush2.msra.mxu0 0.0
    %2257 = vmatprep.subr.mxu0 0.0
    %2258 = vmatpush2.msra.mxu0 0.0
    %2259 = vmatprep.subr.mxu0 0.0
    %2260 = vmatpush2.msra.mxu0 0.0
    %2261 = vmatprep.subr.mxu0 0.0
    %2262 = vmatpush2.msra.mxu0 0.0
    %2263 = vmatprep.subr.mxu0 0.0
    %2264 = vmatpush2.msra.mxu0 0.0
    %2265 = vmatprep.subr.mxu0 0.0
    %2266 = vmatpush2.msra.mxu0 0.0
    %2267 = vmatprep.subr.mxu0 0.0
    %2268 = vmatpush2.msra.mxu0 0.0
    %2269 = vmatprep.subr.mxu0 0.0
    %2270 = vmatpush2.msra.mxu0 0.0
    %2271 = vmatprep.subr.mxu0 0.0
    %2272 = vmatpush2.msra.mxu0 0.0
    %2273 = vmatprep.subr.mxu0 0.0
    %2274 = vmatpush2.msra.mxu0 0.0
    %2275 = vmatprep.mubr.f32.mxu0 0.0
    %2276 = vmatmul.mubr.f32.gmra.mxu0 %v2209
    %v2277 = vpop.f32.mrf.mxu0
    %v2278 = vadd.f32 0.0, %v2277
    %v2279 = vpop.f32.mrf.mxu0
    %2280 = vdwg.mxu0
    %v2281 = vadd.f32 %v2204, %v2278
    %s2282 = scalar_lea.vmem %s5, 128
    %v2283 = vld [vmem:[%s2282] sm:$0xff]
    %v2284 = vld [vmem:[%s2282 + $0x8] sm:$0xff]
    %v2285 = vrot.slane %v1655, 1
    %v2286 = vsel %vm47, %v2285, 0
    %2288 = vmatprep.subr.mxu0 0.0
    %2289 = vmatpush1.msra.mxu0 0.0
    %2290 = vmatprep.subr.mxu0 0.0
    %2291 = vmatpush1.msra.mxu0 0.0
    %2292 = vmatprep.subr.mxu0 0.0
    %2293 = vmatpush1.msra.mxu0 0.0
    %2294 = vmatprep.subr.mxu0 0.0
    %2295 = vmatpush1.msra.mxu0 0.0
    %2296 = vmatprep.subr.mxu0 0.0
    %2297 = vmatpush1.msra.mxu0 0.0
    %2298 = vmatprep.subr.mxu0 0.0
    %2299 = vmatpush1.msra.mxu0 0.0
    %2300 = vmatprep.subr.mxu0 0.0
    %2301 = vmatpush1.msra.mxu0 0.0
    %2302 = vmatprep.subr.mxu0 0.0
    %2303 = vmatpush1.msra.mxu0 0.0
    %2304 = vmatprep.subr.mxu0 0.0
    %2305 = vmatpush1.msra.mxu0 0.0
    %2306 = vmatprep.subr.mxu0 0.0
    %2307 = vmatpush1.msra.mxu0 0.0
    %2308 = vmatprep.subr.mxu0 0.0
    %2309 = vmatpush1.msra.mxu0 0.0
    %2310 = vmatprep.subr.mxu0 0.0
    %2311 = vmatpush1.msra.mxu0 0.0
    %2312 = vmatprep.subr.mxu0 0.0
    %2313 = vmatpush1.msra.mxu0 0.0
    %2314 = vmatprep.subr.mxu0 0.0
    %2315 = vmatpush1.msra.mxu0 0.0
    %2316 = vmatprep.subr.mxu0 0.0
    %2317 = vmatpush1.msra.mxu0 %v2284
    %2318 = vmatprep.subr.mxu0 0.0
    %2319 = vmatpush1.msra.mxu0 %v2283
    %2320 = vmatprep.subr.mxu0 0.0
    %2321 = vmatpush2.msra.mxu0 0.0
    %2322 = vmatprep.subr.mxu0 0.0
    %2323 = vmatpush2.msra.mxu0 0.0
    %2324 = vmatprep.subr.mxu0 0.0
    %2325 = vmatpush2.msra.mxu0 0.0
    %2326 = vmatprep.subr.mxu0 0.0
    %2327 = vmatpush2.msra.mxu0 0.0
    %2328 = vmatprep.subr.mxu0 0.0
    %2329 = vmatpush2.msra.mxu0 0.0
    %2330 = vmatprep.subr.mxu0 0.0
    %2331 = vmatpush2.msra.mxu0 0.0
    %2332 = vmatprep.subr.mxu0 0.0
    %2333 = vmatpush2.msra.mxu0 0.0
    %2334 = vmatprep.subr.mxu0 0.0
    %2335 = vmatpush2.msra.mxu0 0.0
    %2336 = vmatprep.subr.mxu0 0.0
    %2337 = vmatpush2.msra.mxu0 0.0
    %2338 = vmatprep.subr.mxu0 0.0
    %2339 = vmatpush2.msra.mxu0 0.0
    %2340 = vmatprep.subr.mxu0 0.0
    %2341 = vmatpush2.msra.mxu0 0.0
    %2342 = vmatprep.subr.mxu0 0.0
    %2343 = vmatpush2.msra.mxu0 0.0
    %2344 = vmatprep.subr.mxu0 0.0
    %2345 = vmatpush2.msra.mxu0 0.0
    %2346 = vmatprep.subr.mxu0 0.0
    %2347 = vmatpush2.msra.mxu0 0.0
    %2348 = vmatprep.subr.mxu0 0.0
    %2349 = vmatpush2.msra.mxu0 0.0
    %2350 = vmatprep.subr.mxu0 0.0
    %2351 = vmatpush2.msra.mxu0 0.0
    %2352 = vmatprep.mubr.f32.mxu0 0.0
    %2353 = vmatmul.mubr.f32.gmra.mxu0 %v2286
    %v2354 = vpop.f32.mrf.mxu0
    %v2355 = vadd.f32 0.0, %v2354
    %v2356 = vpop.f32.mrf.mxu0
    %2357 = vdwg.mxu0
    %v2358 = vadd.f32 %v2281, %v2355
    %s2359 = scalar_lea.vmem %s5, 144
    %v2360 = vld [vmem:[%s2359] sm:$0xff]
    %v2361 = vld [vmem:[%s2359 + $0x8] sm:$0xff]
    %v2362 = vrot.slane %v1655, 2
    %v2363 = vsel %vm47, %v2362, 0
    %2365 = vmatprep.subr.mxu0 0.0
    %2366 = vmatpush1.msra.mxu0 0.0
    %2367 = vmatprep.subr.mxu0 0.0
    %2368 = vmatpush1.msra.mxu0 0.0
    %2369 = vmatprep.subr.mxu0 0.0
    %2370 = vmatpush1.msra.mxu0 0.0
    %2371 = vmatprep.subr.mxu0 0.0
    %2372 = vmatpush1.msra.mxu0 0.0
    %2373 = vmatprep.subr.mxu0 0.0
    %2374 = vmatpush1.msra.mxu0 0.0
    %2375 = vmatprep.subr.mxu0 0.0
    %2376 = vmatpush1.msra.mxu0 0.0
    %2377 = vmatprep.subr.mxu0 0.0
    %2378 = vmatpush1.msra.mxu0 0.0
    %2379 = vmatprep.subr.mxu0 0.0
    %2380 = vmatpush1.msra.mxu0 0.0
    %2381 = vmatprep.subr.mxu0 0.0
    %2382 = vmatpush1.msra.mxu0 0.0
    %2383 = vmatprep.subr.mxu0 0.0
    %2384 = vmatpush1.msra.mxu0 0.0
    %2385 = vmatprep.subr.mxu0 0.0
    %2386 = vmatpush1.msra.mxu0 0.0
    %2387 = vmatprep.subr.mxu0 0.0
    %2388 = vmatpush1.msra.mxu0 0.0
    %2389 = vmatprep.subr.mxu0 0.0
    %2390 = vmatpush1.msra.mxu0 0.0
    %2391 = vmatprep.subr.mxu0 0.0
    %2392 = vmatpush1.msra.mxu0 0.0
    %2393 = vmatprep.subr.mxu0 0.0
    %2394 = vmatpush1.msra.mxu0 %v2361
    %2395 = vmatprep.subr.mxu0 0.0
    %2396 = vmatpush1.msra.mxu0 %v2360
    %2397 = vmatprep.subr.mxu0 0.0
    %2398 = vmatpush2.msra.mxu0 0.0
    %2399 = vmatprep.subr.mxu0 0.0
    %2400 = vmatpush2.msra.mxu0 0.0
    %2401 = vmatprep.subr.mxu0 0.0
    %2402 = vmatpush2.msra.mxu0 0.0
    %2403 = vmatprep.subr.mxu0 0.0
    %2404 = vmatpush2.msra.mxu0 0.0
    %2405 = vmatprep.subr.mxu0 0.0
    %2406 = vmatpush2.msra.mxu0 0.0
    %2407 = vmatprep.subr.mxu0 0.0
    %2408 = vmatpush2.msra.mxu0 0.0
    %2409 = vmatprep.subr.mxu0 0.0
    %2410 = vmatpush2.msra.mxu0 0.0
    %2411 = vmatprep.subr.mxu0 0.0
    %2412 = vmatpush2.msra.mxu0 0.0
    %2413 = vmatprep.subr.mxu0 0.0
    %2414 = vmatpush2.msra.mxu0 0.0
    %2415 = vmatprep.subr.mxu0 0.0
    %2416 = vmatpush2.msra.mxu0 0.0
    %2417 = vmatprep.subr.mxu0 0.0
    %2418 = vmatpush2.msra.mxu0 0.0
    %2419 = vmatprep.subr.mxu0 0.0
    %2420 = vmatpush2.msra.mxu0 0.0
    %2421 = vmatprep.subr.mxu0 0.0
    %2422 = vmatpush2.msra.mxu0 0.0
    %2423 = vmatprep.subr.mxu0 0.0
    %2424 = vmatpush2.msra.mxu0 0.0
    %2425 = vmatprep.subr.mxu0 0.0
    %2426 = vmatpush2.msra.mxu0 0.0
    %2427 = vmatprep.subr.mxu0 0.0
    %2428 = vmatpush2.msra.mxu0 0.0
    %2429 = vmatprep.mubr.f32.mxu0 0.0
    %2430 = vmatmul.mubr.f32.gmra.mxu0 %v2363
    %v2431 = vpop.f32.mrf.mxu0
    %v2432 = vadd.f32 0.0, %v2431
    %v2433 = vpop.f32.mrf.mxu0
    %2434 = vdwg.mxu0
    %v2435 = vadd.f32 %v2358, %v2432
    %s2436 = scalar_lea.vmem %s5, 160
    %v2437 = vld [vmem:[%s2436] sm:$0xff]
    %v2438 = vld [vmem:[%s2436 + $0x8] sm:$0xff]
    %v2439 = vrot.slane %v1655, 3
    %v2440 = vsel %vm47, %v2439, 0
    %2442 = vmatprep.subr.mxu0 0.0
    %2443 = vmatpush1.msra.mxu0 0.0
    %2444 = vmatprep.subr.mxu0 0.0
    %2445 = vmatpush1.msra.mxu0 0.0
    %2446 = vmatprep.subr.mxu0 0.0
    %2447 = vmatpush1.msra.mxu0 0.0
    %2448 = vmatprep.subr.mxu0 0.0
    %2449 = vmatpush1.msra.mxu0 0.0
    %2450 = vmatprep.subr.mxu0 0.0
    %2451 = vmatpush1.msra.mxu0 0.0
    %2452 = vmatprep.subr.mxu0 0.0
    %2453 = vmatpush1.msra.mxu0 0.0
    %2454 = vmatprep.subr.mxu0 0.0
    %2455 = vmatpush1.msra.mxu0 0.0
    %2456 = vmatprep.subr.mxu0 0.0
    %2457 = vmatpush1.msra.mxu0 0.0
    %2458 = vmatprep.subr.mxu0 0.0
    %2459 = vmatpush1.msra.mxu0 0.0
    %2460 = vmatprep.subr.mxu0 0.0
    %2461 = vmatpush1.msra.mxu0 0.0
    %2462 = vmatprep.subr.mxu0 0.0
    %2463 = vmatpush1.msra.mxu0 0.0
    %2464 = vmatprep.subr.mxu0 0.0
    %2465 = vmatpush1.msra.mxu0 0.0
    %2466 = vmatprep.subr.mxu0 0.0
    %2467 = vmatpush1.msra.mxu0 0.0
    %2468 = vmatprep.subr.mxu0 0.0
    %2469 = vmatpush1.msra.mxu0 0.0
    %2470 = vmatprep.subr.mxu0 0.0
    %2471 = vmatpush1.msra.mxu0 %v2438
    %2472 = vmatprep.subr.mxu0 0.0
    %2473 = vmatpush1.msra.mxu0 %v2437
    %2474 = vmatprep.subr.mxu0 0.0
    %2475 = vmatpush2.msra.mxu0 0.0
    %2476 = vmatprep.subr.mxu0 0.0
    %2477 = vmatpush2.msra.mxu0 0.0
    %2478 = vmatprep.subr.mxu0 0.0
    %2479 = vmatpush2.msra.mxu0 0.0
    %2480 = vmatprep.subr.mxu0 0.0
    %2481 = vmatpush2.msra.mxu0 0.0
    %2482 = vmatprep.subr.mxu0 0.0
    %2483 = vmatpush2.msra.mxu0 0.0
    %2484 = vmatprep.subr.mxu0 0.0
    %2485 = vmatpush2.msra.mxu0 0.0
    %2486 = vmatprep.subr.mxu0 0.0
    %2487 = vmatpush2.msra.mxu0 0.0
    %2488 = vmatprep.subr.mxu0 0.0
    %2489 = vmatpush2.msra.mxu0 0.0
    %2490 = vmatprep.subr.mxu0 0.0
    %2491 = vmatpush2.msra.mxu0 0.0
    %2492 = vmatprep.subr.mxu0 0.0
    %2493 = vmatpush2.msra.mxu0 0.0
    %2494 = vmatprep.subr.mxu0 0.0
    %2495 = vmatpush2.msra.mxu0 0.0
    %2496 = vmatprep.subr.mxu0 0.0
    %2497 = vmatpush2.msra.mxu0 0.0
    %2498 = vmatprep.subr.mxu0 0.0
    %2499 = vmatpush2.msra.mxu0 0.0
    %2500 = vmatprep.subr.mxu0 0.0
    %2501 = vmatpush2.msra.mxu0 0.0
    %2502 = vmatprep.subr.mxu0 0.0
    %2503 = vmatpush2.msra.mxu0 0.0
    %2504 = vmatprep.subr.mxu0 0.0
    %2505 = vmatpush2.msra.mxu0 0.0
    %2506 = vmatprep.mubr.f32.mxu0 0.0
    %2507 = vmatmul.mubr.f32.gmra.mxu0 %v2440
    %v2508 = vpop.f32.mrf.mxu0
    %v2509 = vadd.f32 0.0, %v2508
    %v2510 = vpop.f32.mrf.mxu0
    %2511 = vdwg.mxu0
    %v2512 = vadd.f32 %v2435, %v2509
    %s2513 = scalar_lea.vmem %s5, 176
    %v2514 = vld [vmem:[%s2513] sm:$0xff]
    %v2515 = vld [vmem:[%s2513 + $0x8] sm:$0xff]
    %v2516 = vrot.slane %v1655, 4
    %v2517 = vsel %vm47, %v2516, 0
    %2519 = vmatprep.subr.mxu0 0.0
    %2520 = vmatpush1.msra.mxu0 0.0
    %2521 = vmatprep.subr.mxu0 0.0
    %2522 = vmatpush1.msra.mxu0 0.0
    %2523 = vmatprep.subr.mxu0 0.0
    %2524 = vmatpush1.msra.mxu0 0.0
    %2525 = vmatprep.subr.mxu0 0.0
    %2526 = vmatpush1.msra.mxu0 0.0
    %2527 = vmatprep.subr.mxu0 0.0
    %2528 = vmatpush1.msra.mxu0 0.0
    %2529 = vmatprep.subr.mxu0 0.0
    %2530 = vmatpush1.msra.mxu0 0.0
    %2531 = vmatprep.subr.mxu0 0.0
    %2532 = vmatpush1.msra.mxu0 0.0
    %2533 = vmatprep.subr.mxu0 0.0
    %2534 = vmatpush1.msra.mxu0 0.0
    %2535 = vmatprep.subr.mxu0 0.0
    %2536 = vmatpush1.msra.mxu0 0.0
    %2537 = vmatprep.subr.mxu0 0.0
    %2538 = vmatpush1.msra.mxu0 0.0
    %2539 = vmatprep.subr.mxu0 0.0
    %2540 = vmatpush1.msra.mxu0 0.0
    %2541 = vmatprep.subr.mxu0 0.0
    %2542 = vmatpush1.msra.mxu0 0.0
    %2543 = vmatprep.subr.mxu0 0.0
    %2544 = vmatpush1.msra.mxu0 0.0
    %2545 = vmatprep.subr.mxu0 0.0
    %2546 = vmatpush1.msra.mxu0 0.0
    %2547 = vmatprep.subr.mxu0 0.0
    %2548 = vmatpush1.msra.mxu0 %v2515
    %2549 = vmatprep.subr.mxu0 0.0
    %2550 = vmatpush1.msra.mxu0 %v2514
    %2551 = vmatprep.subr.mxu0 0.0
    %2552 = vmatpush2.msra.mxu0 0.0
    %2553 = vmatprep.subr.mxu0 0.0
    %2554 = vmatpush2.msra.mxu0 0.0
    %2555 = vmatprep.subr.mxu0 0.0
    %2556 = vmatpush2.msra.mxu0 0.0
    %2557 = vmatprep.subr.mxu0 0.0
    %2558 = vmatpush2.msra.mxu0 0.0
    %2559 = vmatprep.subr.mxu0 0.0
    %2560 = vmatpush2.msra.mxu0 0.0
    %2561 = vmatprep.subr.mxu0 0.0
    %2562 = vmatpush2.msra.mxu0 0.0
    %2563 = vmatprep.subr.mxu0 0.0
    %2564 = vmatpush2.msra.mxu0 0.0
    %2565 = vmatprep.subr.mxu0 0.0
    %2566 = vmatpush2.msra.mxu0 0.0
    %2567 = vmatprep.subr.mxu0 0.0
    %2568 = vmatpush2.msra.mxu0 0.0
    %2569 = vmatprep.subr.mxu0 0.0
    %2570 = vmatpush2.msra.mxu0 0.0
    %2571 = vmatprep.subr.mxu0 0.0
    %2572 = vmatpush2.msra.mxu0 0.0
    %2573 = vmatprep.subr.mxu0 0.0
    %2574 = vmatpush2.msra.mxu0 0.0
    %2575 = vmatprep.subr.mxu0 0.0
    %2576 = vmatpush2.msra.mxu0 0.0
    %2577 = vmatprep.subr.mxu0 0.0
    %2578 = vmatpush2.msra.mxu0 0.0
    %2579 = vmatprep.subr.mxu0 0.0
    %2580 = vmatpush2.msra.mxu0 0.0
    %2581 = vmatprep.subr.mxu0 0.0
    %2582 = vmatpush2.msra.mxu0 0.0
    %2583 = vmatprep.mubr.f32.mxu0 0.0
    %2584 = vmatmul.mubr.f32.gmra.mxu0 %v2517
    %v2585 = vpop.f32.mrf.mxu0
    %v2586 = vadd.f32 0.0, %v2585
    %v2587 = vpop.f32.mrf.mxu0
    %2588 = vdwg.mxu0
    %v2589 = vadd.f32 %v2512, %v2586
    %s2590 = scalar_lea.vmem %s5, 192
    %v2591 = vld [vmem:[%s2590] sm:$0xff]
    %v2592 = vld [vmem:[%s2590 + $0x8] sm:$0xff]
    %v2593 = vrot.slane %v1655, 5
    %v2594 = vsel %vm47, %v2593, 0
    %2596 = vmatprep.subr.mxu0 0.0
    %2597 = vmatpush1.msra.mxu0 0.0
    %2598 = vmatprep.subr.mxu0 0.0
    %2599 = vmatpush1.msra.mxu0 0.0
    %2600 = vmatprep.subr.mxu0 0.0
    %2601 = vmatpush1.msra.mxu0 0.0
    %2602 = vmatprep.subr.mxu0 0.0
    %2603 = vmatpush1.msra.mxu0 0.0
    %2604 = vmatprep.subr.mxu0 0.0
    %2605 = vmatpush1.msra.mxu0 0.0
    %2606 = vmatprep.subr.mxu0 0.0
    %2607 = vmatpush1.msra.mxu0 0.0
    %2608 = vmatprep.subr.mxu0 0.0
    %2609 = vmatpush1.msra.mxu0 0.0
    %2610 = vmatprep.subr.mxu0 0.0
    %2611 = vmatpush1.msra.mxu0 0.0
    %2612 = vmatprep.subr.mxu0 0.0
    %2613 = vmatpush1.msra.mxu0 0.0
    %2614 = vmatprep.subr.mxu0 0.0
    %2615 = vmatpush1.msra.mxu0 0.0
    %2616 = vmatprep.subr.mxu0 0.0
    %2617 = vmatpush1.msra.mxu0 0.0
    %2618 = vmatprep.subr.mxu0 0.0
    %2619 = vmatpush1.msra.mxu0 0.0
    %2620 = vmatprep.subr.mxu0 0.0
    %2621 = vmatpush1.msra.mxu0 0.0
    %2622 = vmatprep.subr.mxu0 0.0
    %2623 = vmatpush1.msra.mxu0 0.0
    %2624 = vmatprep.subr.mxu0 0.0
    %2625 = vmatpush1.msra.mxu0 %v2592
    %2626 = vmatprep.subr.mxu0 0.0
    %2627 = vmatpush1.msra.mxu0 %v2591
    %2628 = vmatprep.subr.mxu0 0.0
    %2629 = vmatpush2.msra.mxu0 0.0
    %2630 = vmatprep.subr.mxu0 0.0
    %2631 = vmatpush2.msra.mxu0 0.0
    %2632 = vmatprep.subr.mxu0 0.0
    %2633 = vmatpush2.msra.mxu0 0.0
    %2634 = vmatprep.subr.mxu0 0.0
    %2635 = vmatpush2.msra.mxu0 0.0
    %2636 = vmatprep.subr.mxu0 0.0
    %2637 = vmatpush2.msra.mxu0 0.0
    %2638 = vmatprep.subr.mxu0 0.0
    %2639 = vmatpush2.msra.mxu0 0.0
    %2640 = vmatprep.subr.mxu0 0.0
    %2641 = vmatpush2.msra.mxu0 0.0
    %2642 = vmatprep.subr.mxu0 0.0
    %2643 = vmatpush2.msra.mxu0 0.0
    %2644 = vmatprep.subr.mxu0 0.0
    %2645 = vmatpush2.msra.mxu0 0.0
    %2646 = vmatprep.subr.mxu0 0.0
    %2647 = vmatpush2.msra.mxu0 0.0
    %2648 = vmatprep.subr.mxu0 0.0
    %2649 = vmatpush2.msra.mxu0 0.0
    %2650 = vmatprep.subr.mxu0 0.0
    %2651 = vmatpush2.msra.mxu0 0.0
    %2652 = vmatprep.subr.mxu0 0.0
    %2653 = vmatpush2.msra.mxu0 0.0
    %2654 = vmatprep.subr.mxu0 0.0
    %2655 = vmatpush2.msra.mxu0 0.0
    %2656 = vmatprep.subr.mxu0 0.0
    %2657 = vmatpush2.msra.mxu0 0.0
    %2658 = vmatprep.subr.mxu0 0.0
    %2659 = vmatpush2.msra.mxu0 0.0
    %2660 = vmatprep.mubr.f32.mxu0 0.0
    %2661 = vmatmul.mubr.f32.gmra.mxu0 %v2594
    %v2662 = vpop.f32.mrf.mxu0
    %v2663 = vadd.f32 0.0, %v2662
    %v2664 = vpop.f32.mrf.mxu0
    %2665 = vdwg.mxu0
    %v2666 = vadd.f32 %v2589, %v2663
    %s2667 = scalar_lea.vmem %s5, 208
    %v2668 = vld [vmem:[%s2667] sm:$0xff]
    %v2669 = vld [vmem:[%s2667 + $0x8] sm:$0xff]
    %v2670 = vrot.slane %v1655, 6
    %v2671 = vsel %vm47, %v2670, 0
    %2673 = vmatprep.subr.mxu0 0.0
    %2674 = vmatpush1.msra.mxu0 0.0
    %2675 = vmatprep.subr.mxu0 0.0
    %2676 = vmatpush1.msra.mxu0 0.0
    %2677 = vmatprep.subr.mxu0 0.0
    %2678 = vmatpush1.msra.mxu0 0.0
    %2679 = vmatprep.subr.mxu0 0.0
    %2680 = vmatpush1.msra.mxu0 0.0
    %2681 = vmatprep.subr.mxu0 0.0
    %2682 = vmatpush1.msra.mxu0 0.0
    %2683 = vmatprep.subr.mxu0 0.0
    %2684 = vmatpush1.msra.mxu0 0.0
    %2685 = vmatprep.subr.mxu0 0.0
    %2686 = vmatpush1.msra.mxu0 0.0
    %2687 = vmatprep.subr.mxu0 0.0
    %2688 = vmatpush1.msra.mxu0 0.0
    %2689 = vmatprep.subr.mxu0 0.0
    %2690 = vmatpush1.msra.mxu0 0.0
    %2691 = vmatprep.subr.mxu0 0.0
    %2692 = vmatpush1.msra.mxu0 0.0
    %2693 = vmatprep.subr.mxu0 0.0
    %2694 = vmatpush1.msra.mxu0 0.0
    %2695 = vmatprep.subr.mxu0 0.0
    %2696 = vmatpush1.msra.mxu0 0.0
    %2697 = vmatprep.subr.mxu0 0.0
    %2698 = vmatpush1.msra.mxu0 0.0
    %2699 = vmatprep.subr.mxu0 0.0
    %2700 = vmatpush1.msra.mxu0 0.0
    %2701 = vmatprep.subr.mxu0 0.0
    %2702 = vmatpush1.msra.mxu0 %v2669
    %2703 = vmatprep.subr.mxu0 0.0
    %2704 = vmatpush1.msra.mxu0 %v2668
    %2705 = vmatprep.subr.mxu0 0.0
    %2706 = vmatpush2.msra.mxu0 0.0
    %2707 = vmatprep.subr.mxu0 0.0
    %2708 = vmatpush2.msra.mxu0 0.0
    %2709 = vmatprep.subr.mxu0 0.0
    %2710 = vmatpush2.msra.mxu0 0.0
    %2711 = vmatprep.subr.mxu0 0.0
    %2712 = vmatpush2.msra.mxu0 0.0
    %2713 = vmatprep.subr.mxu0 0.0
    %2714 = vmatpush2.msra.mxu0 0.0
    %2715 = vmatprep.subr.mxu0 0.0
    %2716 = vmatpush2.msra.mxu0 0.0
    %2717 = vmatprep.subr.mxu0 0.0
    %2718 = vmatpush2.msra.mxu0 0.0
    %2719 = vmatprep.subr.mxu0 0.0
    %2720 = vmatpush2.msra.mxu0 0.0
    %2721 = vmatprep.subr.mxu0 0.0
    %2722 = vmatpush2.msra.mxu0 0.0
    %2723 = vmatprep.subr.mxu0 0.0
    %2724 = vmatpush2.msra.mxu0 0.0
    %2725 = vmatprep.subr.mxu0 0.0
    %2726 = vmatpush2.msra.mxu0 0.0
    %2727 = vmatprep.subr.mxu0 0.0
    %2728 = vmatpush2.msra.mxu0 0.0
    %2729 = vmatprep.subr.mxu0 0.0
    %2730 = vmatpush2.msra.mxu0 0.0
    %2731 = vmatprep.subr.mxu0 0.0
    %2732 = vmatpush2.msra.mxu0 0.0
    %2733 = vmatprep.subr.mxu0 0.0
    %2734 = vmatpush2.msra.mxu0 0.0
    %2735 = vmatprep.subr.mxu0 0.0
    %2736 = vmatpush2.msra.mxu0 0.0
    %2737 = vmatprep.mubr.f32.mxu0 0.0
    %2738 = vmatmul.mubr.f32.gmra.mxu0 %v2671
    %v2739 = vpop.f32.mrf.mxu0
    %v2740 = vadd.f32 0.0, %v2739
    %v2741 = vpop.f32.mrf.mxu0
    %2742 = vdwg.mxu0
    %v2743 = vadd.f32 %v2666, %v2740
    %s2744 = scalar_lea.vmem %s5, 224
    %v2745 = vld [vmem:[%s2744] sm:$0xff]
    %v2746 = vld [vmem:[%s2744 + $0x8] sm:$0xff]
    %v2747 = vrot.slane %v1655, 7
    %v2748 = vsel %vm47, %v2747, 0
    %2750 = vmatprep.subr.mxu0 0.0
    %2751 = vmatpush1.msra.mxu0 0.0
    %2752 = vmatprep.subr.mxu0 0.0
    %2753 = vmatpush1.msra.mxu0 0.0
    %2754 = vmatprep.subr.mxu0 0.0
    %2755 = vmatpush1.msra.mxu0 0.0
    %2756 = vmatprep.subr.mxu0 0.0
    %2757 = vmatpush1.msra.mxu0 0.0
    %2758 = vmatprep.subr.mxu0 0.0
    %2759 = vmatpush1.msra.mxu0 0.0
    %2760 = vmatprep.subr.mxu0 0.0
    %2761 = vmatpush1.msra.mxu0 0.0
    %2762 = vmatprep.subr.mxu0 0.0
    %2763 = vmatpush1.msra.mxu0 0.0
    %2764 = vmatprep.subr.mxu0 0.0
    %2765 = vmatpush1.msra.mxu0 0.0
    %2766 = vmatprep.subr.mxu0 0.0
    %2767 = vmatpush1.msra.mxu0 0.0
    %2768 = vmatprep.subr.mxu0 0.0
    %2769 = vmatpush1.msra.mxu0 0.0
    %2770 = vmatprep.subr.mxu0 0.0
    %2771 = vmatpush1.msra.mxu0 0.0
    %2772 = vmatprep.subr.mxu0 0.0
    %2773 = vmatpush1.msra.mxu0 0.0
    %2774 = vmatprep.subr.mxu0 0.0
    %2775 = vmatpush1.msra.mxu0 0.0
    %2776 = vmatprep.subr.mxu0 0.0
    %2777 = vmatpush1.msra.mxu0 0.0
    %2778 = vmatprep.subr.mxu0 0.0
    %2779 = vmatpush1.msra.mxu0 %v2746
    %2780 = vmatprep.subr.mxu0 0.0
    %2781 = vmatpush1.msra.mxu0 %v2745
    %2782 = vmatprep.subr.mxu0 0.0
    %2783 = vmatpush2.msra.mxu0 0.0
    %2784 = vmatprep.subr.mxu0 0.0
    %2785 = vmatpush2.msra.mxu0 0.0
    %2786 = vmatprep.subr.mxu0 0.0
    %2787 = vmatpush2.msra.mxu0 0.0
    %2788 = vmatprep.subr.mxu0 0.0
    %2789 = vmatpush2.msra.mxu0 0.0
    %2790 = vmatprep.subr.mxu0 0.0
    %2791 = vmatpush2.msra.mxu0 0.0
    %2792 = vmatprep.subr.mxu0 0.0
    %2793 = vmatpush2.msra.mxu0 0.0
    %2794 = vmatprep.subr.mxu0 0.0
    %2795 = vmatpush2.msra.mxu0 0.0
    %2796 = vmatprep.subr.mxu0 0.0
    %2797 = vmatpush2.msra.mxu0 0.0
    %2798 = vmatprep.subr.mxu0 0.0
    %2799 = vmatpush2.msra.mxu0 0.0
    %2800 = vmatprep.subr.mxu0 0.0
    %2801 = vmatpush2.msra.mxu0 0.0
    %2802 = vmatprep.subr.mxu0 0.0
    %2803 = vmatpush2.msra.mxu0 0.0
    %2804 = vmatprep.subr.mxu0 0.0
    %2805 = vmatpush2.msra.mxu0 0.0
    %2806 = vmatprep.subr.mxu0 0.0
    %2807 = vmatpush2.msra.mxu0 0.0
    %2808 = vmatprep.subr.mxu0 0.0
    %2809 = vmatpush2.msra.mxu0 0.0
    %2810 = vmatprep.subr.mxu0 0.0
    %2811 = vmatpush2.msra.mxu0 0.0
    %2812 = vmatprep.subr.mxu0 0.0
    %2813 = vmatpush2.msra.mxu0 0.0
    %2814 = vmatprep.mubr.f32.mxu0 0.0
    %2815 = vmatmul.mubr.f32.gmra.mxu0 %v2748
    %v2816 = vpop.f32.mrf.mxu0
    %v2817 = vadd.f32 0.0, %v2816
    %v2818 = vpop.f32.mrf.mxu0
    %2819 = vdwg.mxu0
    %v2820 = vadd.f32 %v2743, %v2817
    %s2821 = scalar_lea.vmem %s5, 240
    %v2822 = vld [vmem:[%s2821] sm:$0xff]
    %v2823 = vld [vmem:[%s2821 + $0x8] sm:$0xff]
    %v2825 = vsel %vm47, %v1656, 0
    %2827 = vmatprep.subr.mxu0 0.0
    %2828 = vmatpush1.msra.mxu0 0.0
    %2829 = vmatprep.subr.mxu0 0.0
    %2830 = vmatpush1.msra.mxu0 0.0
    %2831 = vmatprep.subr.mxu0 0.0
    %2832 = vmatpush1.msra.mxu0 0.0
    %2833 = vmatprep.subr.mxu0 0.0
    %2834 = vmatpush1.msra.mxu0 0.0
    %2835 = vmatprep.subr.mxu0 0.0
    %2836 = vmatpush1.msra.mxu0 0.0
    %2837 = vmatprep.subr.mxu0 0.0
    %2838 = vmatpush1.msra.mxu0 0.0
    %2839 = vmatprep.subr.mxu0 0.0
    %2840 = vmatpush1.msra.mxu0 0.0
    %2841 = vmatprep.subr.mxu0 0.0
    %2842 = vmatpush1.msra.mxu0 0.0
    %2843 = vmatprep.subr.mxu0 0.0
    %2844 = vmatpush1.msra.mxu0 0.0
    %2845 = vmatprep.subr.mxu0 0.0
    %2846 = vmatpush1.msra.mxu0 0.0
    %2847 = vmatprep.subr.mxu0 0.0
    %2848 = vmatpush1.msra.mxu0 0.0
    %2849 = vmatprep.subr.mxu0 0.0
    %2850 = vmatpush1.msra.mxu0 0.0
    %2851 = vmatprep.subr.mxu0 0.0
    %2852 = vmatpush1.msra.mxu0 0.0
    %2853 = vmatprep.subr.mxu0 0.0
    %2854 = vmatpush1.msra.mxu0 0.0
    %2855 = vmatprep.subr.mxu0 0.0
    %2856 = vmatpush1.msra.mxu0 %v2823
    %2857 = vmatprep.subr.mxu0 0.0
    %2858 = vmatpush1.msra.mxu0 %v2822
    %2859 = vmatprep.subr.mxu0 0.0
    %2860 = vmatpush2.msra.mxu0 0.0
    %2861 = vmatprep.subr.mxu0 0.0
    %2862 = vmatpush2.msra.mxu0 0.0
    %2863 = vmatprep.subr.mxu0 0.0
    %2864 = vmatpush2.msra.mxu0 0.0
    %2865 = vmatprep.subr.mxu0 0.0
    %2866 = vmatpush2.msra.mxu0 0.0
    %2867 = vmatprep.subr.mxu0 0.0
    %2868 = vmatpush2.msra.mxu0 0.0
    %2869 = vmatprep.subr.mxu0 0.0
    %2870 = vmatpush2.msra.mxu0 0.0
    %2871 = vmatprep.subr.mxu0 0.0
    %2872 = vmatpush2.msra.mxu0 0.0
    %2873 = vmatprep.subr.mxu0 0.0
    %2874 = vmatpush2.msra.mxu0 0.0
    %2875 = vmatprep.subr.mxu0 0.0
    %2876 = vmatpush2.msra.mxu0 0.0
    %2877 = vmatprep.subr.mxu0 0.0
    %2878 = vmatpush2.msra.mxu0 0.0
    %2879 = vmatprep.subr.mxu0 0.0
    %2880 = vmatpush2.msra.mxu0 0.0
    %2881 = vmatprep.subr.mxu0 0.0
    %2882 = vmatpush2.msra.mxu0 0.0
    %2883 = vmatprep.subr.mxu0 0.0
    %2884 = vmatpush2.msra.mxu0 0.0
    %2885 = vmatprep.subr.mxu0 0.0
    %2886 = vmatpush2.msra.mxu0 0.0
    %2887 = vmatprep.subr.mxu0 0.0
    %2888 = vmatpush2.msra.mxu0 0.0
    %2889 = vmatprep.subr.mxu0 0.0
    %2890 = vmatpush2.msra.mxu0 0.0
    %2891 = vmatprep.mubr.f32.mxu0 0.0
    %2892 = vmatmul.mubr.f32.gmra.mxu0 %v2825
    %v2893 = vpop.f32.mrf.mxu0
    %v2894 = vadd.f32 0.0, %v2893
    %v2895 = vpop.f32.mrf.mxu0
    %2896 = vdwg.mxu0
    %v2897 = vadd.f32 %v2820, %v2894
    %2898 = vst [vmem:[#allocation4] sm:$0x1] %v2897
    %s2899 = scalar_lea.vmem %s6, 16
    %vm2900 = vcmask 130051
    %2901 = vst.msk [vmem:[%s2899 - $0x3] sm:$0xf8] %vm2900, %v1656
    %2902 = vst.msk [vmem:[%s2899 + $0x5] sm:$0xff] %vm47, %v1657
    %vm2903 = vcmask 124928
    %2904 = vst.msk [vmem:[%s2899 + $0xd] sm:$0x7] %vm2903, %v1658
    %v2905 = vld [vmem:[%s5] sm:$0xff]
    %v2906 = vld [vmem:[%s5 + $0x8] sm:$0xff]
    %v2907 = vld [vmem:[%s1670] sm:$0xff]
    %v2908 = vld [vmem:[%s1670 + $0x8] sm:$0xff]
    %v2909 = vrot.slane %v1656, 4
    %v2910 = vsel %vm47, %v2909, 0
    %2912 = vmatprep.subr.mxu0 0.0
    %2913 = vmatpush1.msra.mxu0 0.0
    %2914 = vmatprep.subr.mxu0 0.0
    %2915 = vmatpush1.msra.mxu0 0.0
    %2916 = vmatprep.subr.mxu0 0.0
    %2917 = vmatpush1.msra.mxu0 0.0
    %2918 = vmatprep.subr.mxu0 0.0
    %2919 = vmatpush1.msra.mxu0 0.0
    %2920 = vmatprep.subr.mxu0 0.0
    %2921 = vmatpush1.msra.mxu0 0.0
    %2922 = vmatprep.subr.mxu0 0.0
    %2923 = vmatpush1.msra.mxu0 0.0
    %2924 = vmatprep.subr.mxu0 0.0
    %2925 = vmatpush1.msra.mxu0 0.0
    %2926 = vmatprep.subr.mxu0 0.0
    %2927 = vmatpush1.msra.mxu0 0.0
    %2928 = vmatprep.subr.mxu0 0.0
    %2929 = vmatpush1.msra.mxu0 0.0
    %2930 = vmatprep.subr.mxu0 0.0
    %2931 = vmatpush1.msra.mxu0 0.0
    %2932 = vmatprep.subr.mxu0 0.0
    %2933 = vmatpush1.msra.mxu0 0.0
    %2934 = vmatprep.subr.mxu0 0.0
    %2935 = vmatpush1.msra.mxu0 0.0
    %2936 = vmatprep.subr.mxu0 0.0
    %2937 = vmatpush1.msra.mxu0 0.0
    %2938 = vmatprep.subr.mxu0 0.0
    %2939 = vmatpush1.msra.mxu0 0.0
    %2940 = vmatprep.subr.mxu0 0.0
    %2941 = vmatpush1.msra.mxu0 %v2908
    %2942 = vmatprep.subr.mxu0 0.0
    %2943 = vmatpush1.msra.mxu0 %v2907
    %2944 = vmatprep.subr.mxu0 0.0
    %2945 = vmatpush2.msra.mxu0 0.0
    %2946 = vmatprep.subr.mxu0 0.0
    %2947 = vmatpush2.msra.mxu0 0.0
    %2948 = vmatprep.subr.mxu0 0.0
    %2949 = vmatpush2.msra.mxu0 0.0
    %2950 = vmatprep.subr.mxu0 0.0
    %2951 = vmatpush2.msra.mxu0 0.0
    %2952 = vmatprep.subr.mxu0 0.0
    %2953 = vmatpush2.msra.mxu0 0.0
    %2954 = vmatprep.subr.mxu0 0.0
    %2955 = vmatpush2.msra.mxu0 0.0
    %2956 = vmatprep.subr.mxu0 0.0
    %2957 = vmatpush2.msra.mxu0 0.0
    %2958 = vmatprep.subr.mxu0 0.0
    %2959 = vmatpush2.msra.mxu0 0.0
    %2960 = vmatprep.subr.mxu0 0.0
    %2961 = vmatpush2.msra.mxu0 0.0
    %2962 = vmatprep.subr.mxu0 0.0
    %2963 = vmatpush2.msra.mxu0 0.0
    %2964 = vmatprep.subr.mxu0 0.0
    %2965 = vmatpush2.msra.mxu0 0.0
    %2966 = vmatprep.subr.mxu0 0.0
    %2967 = vmatpush2.msra.mxu0 0.0
    %2968 = vmatprep.subr.mxu0 0.0
    %2969 = vmatpush2.msra.mxu0 0.0
    %2970 = vmatprep.subr.mxu0 0.0
    %2971 = vmatpush2.msra.mxu0 0.0
    %2972 = vmatprep.subr.mxu0 0.0
    %2973 = vmatpush2.msra.mxu0 0.0
    %2974 = vmatprep.subr.mxu0 0.0
    %2975 = vmatpush2.msra.mxu0 0.0
    %2976 = vmatprep.mubr.f32.mxu0 0.0
    %2977 = vmatmul.mubr.f32.gmra.mxu0 %v2910
    %v2978 = vpop.f32.mrf.mxu0
    %v2979 = vadd.f32 0.0, %v2978
    %v2980 = vpop.f32.mrf.mxu0
    %2981 = vdwg.mxu0
    %v2982 = vrot.slane %v1656, 3
    %v2983 = vsel %vm47, %v2982, 0
    %2985 = vmatprep.subr.mxu0 0.0
    %2986 = vmatpush1.msra.mxu0 0.0
    %2987 = vmatprep.subr.mxu0 0.0
    %2988 = vmatpush1.msra.mxu0 0.0
    %2989 = vmatprep.subr.mxu0 0.0
    %2990 = vmatpush1.msra.mxu0 0.0
    %2991 = vmatprep.subr.mxu0 0.0
    %2992 = vmatpush1.msra.mxu0 0.0
    %2993 = vmatprep.subr.mxu0 0.0
    %2994 = vmatpush1.msra.mxu0 0.0
    %2995 = vmatprep.subr.mxu0 0.0
    %2996 = vmatpush1.msra.mxu0 0.0
    %2997 = vmatprep.subr.mxu0 0.0
    %2998 = vmatpush1.msra.mxu0 0.0
    %2999 = vmatprep.subr.mxu0 0.0
    %3000 = vmatpush1.msra.mxu0 0.0
    %3001 = vmatprep.subr.mxu0 0.0
    %3002 = vmatpush1.msra.mxu0 0.0
    %3003 = vmatprep.subr.mxu0 0.0
    %3004 = vmatpush1.msra.mxu0 0.0
    %3005 = vmatprep.subr.mxu0 0.0
    %3006 = vmatpush1.msra.mxu0 0.0
    %3007 = vmatprep.subr.mxu0 0.0
    %3008 = vmatpush1.msra.mxu0 0.0
    %3009 = vmatprep.subr.mxu0 0.0
    %3010 = vmatpush1.msra.mxu0 0.0
    %3011 = vmatprep.subr.mxu0 0.0
    %3012 = vmatpush1.msra.mxu0 0.0
    %3013 = vmatprep.subr.mxu0 0.0
    %3014 = vmatpush1.msra.mxu0 %v2906
    %3015 = vmatprep.subr.mxu0 0.0
    %3016 = vmatpush1.msra.mxu0 %v2905
    %3017 = vmatprep.subr.mxu0 0.0
    %3018 = vmatpush2.msra.mxu0 0.0
    %3019 = vmatprep.subr.mxu0 0.0
    %3020 = vmatpush2.msra.mxu0 0.0
    %3021 = vmatprep.subr.mxu0 0.0
    %3022 = vmatpush2.msra.mxu0 0.0
    %3023 = vmatprep.subr.mxu0 0.0
    %3024 = vmatpush2.msra.mxu0 0.0
    %3025 = vmatprep.subr.mxu0 0.0
    %3026 = vmatpush2.msra.mxu0 0.0
    %3027 = vmatprep.subr.mxu0 0.0
    %3028 = vmatpush2.msra.mxu0 0.0
    %3029 = vmatprep.subr.mxu0 0.0
    %3030 = vmatpush2.msra.mxu0 0.0
    %3031 = vmatprep.subr.mxu0 0.0
    %3032 = vmatpush2.msra.mxu0 0.0
    %3033 = vmatprep.subr.mxu0 0.0
    %3034 = vmatpush2.msra.mxu0 0.0
    %3035 = vmatprep.subr.mxu0 0.0
    %3036 = vmatpush2.msra.mxu0 0.0
    %3037 = vmatprep.subr.mxu0 0.0
    %3038 = vmatpush2.msra.mxu0 0.0
    %3039 = vmatprep.subr.mxu0 0.0
    %3040 = vmatpush2.msra.mxu0 0.0
    %3041 = vmatprep.subr.mxu0 0.0
    %3042 = vmatpush2.msra.mxu0 0.0
    %3043 = vmatprep.subr.mxu0 0.0
    %3044 = vmatpush2.msra.mxu0 0.0
    %3045 = vmatprep.subr.mxu0 0.0
    %3046 = vmatpush2.msra.mxu0 0.0
    %3047 = vmatprep.subr.mxu0 0.0
    %3048 = vmatpush2.msra.mxu0 0.0
    %3049 = vmatprep.mubr.f32.mxu0 0.0
    %3050 = vmatmul.mubr.f32.gmra.mxu0 %v2983
    %v3051 = vpop.f32.mrf.mxu0
    %v3052 = vadd.f32 %v2979, %v3051
    %v3053 = vpop.f32.mrf.mxu0
    %3054 = vdwg.mxu0
    %v3055 = vld [vmem:[%s1820] sm:$0xff]
    %v3056 = vld [vmem:[%s1820 + $0x8] sm:$0xff]
    %v3057 = vrot.slane %v1656, 5
    %v3058 = vsel %vm47, %v3057, 0
    %3060 = vmatprep.subr.mxu0 0.0
    %3061 = vmatpush1.msra.mxu0 0.0
    %3062 = vmatprep.subr.mxu0 0.0
    %3063 = vmatpush1.msra.mxu0 0.0
    %3064 = vmatprep.subr.mxu0 0.0
    %3065 = vmatpush1.msra.mxu0 0.0
    %3066 = vmatprep.subr.mxu0 0.0
    %3067 = vmatpush1.msra.mxu0 0.0
    %3068 = vmatprep.subr.mxu0 0.0
    %3069 = vmatpush1.msra.mxu0 0.0
    %3070 = vmatprep.subr.mxu0 0.0
    %3071 = vmatpush1.msra.mxu0 0.0
    %3072 = vmatprep.subr.mxu0 0.0
    %3073 = vmatpush1.msra.mxu0 0.0
    %3074 = vmatprep.subr.mxu0 0.0
    %3075 = vmatpush1.msra.mxu0 0.0
    %3076 = vmatprep.subr.mxu0 0.0
    %3077 = vmatpush1.msra.mxu0 0.0
    %3078 = vmatprep.subr.mxu0 0.0
    %3079 = vmatpush1.msra.mxu0 0.0
    %3080 = vmatprep.subr.mxu0 0.0
    %3081 = vmatpush1.msra.mxu0 0.0
    %3082 = vmatprep.subr.mxu0 0.0
    %3083 = vmatpush1.msra.mxu0 0.0
    %3084 = vmatprep.subr.mxu0 0.0
    %3085 = vmatpush1.msra.mxu0 0.0
    %3086 = vmatprep.subr.mxu0 0.0
    %3087 = vmatpush1.msra.mxu0 0.0
    %3088 = vmatprep.subr.mxu0 0.0
    %3089 = vmatpush1.msra.mxu0 %v3056
    %3090 = vmatprep.subr.mxu0 0.0
    %3091 = vmatpush1.msra.mxu0 %v3055
    %3092 = vmatprep.subr.mxu0 0.0
    %3093 = vmatpush2.msra.mxu0 0.0
    %3094 = vmatprep.subr.mxu0 0.0
    %3095 = vmatpush2.msra.mxu0 0.0
    %3096 = vmatprep.subr.mxu0 0.0
    %3097 = vmatpush2.msra.mxu0 0.0
    %3098 = vmatprep.subr.mxu0 0.0
    %3099 = vmatpush2.msra.mxu0 0.0
    %3100 = vmatprep.subr.mxu0 0.0
    %3101 = vmatpush2.msra.mxu0 0.0
    %3102 = vmatprep.subr.mxu0 0.0
    %3103 = vmatpush2.msra.mxu0 0.0
    %3104 = vmatprep.subr.mxu0 0.0
    %3105 = vmatpush2.msra.mxu0 0.0
    %3106 = vmatprep.subr.mxu0 0.0
    %3107 = vmatpush2.msra.mxu0 0.0
    %3108 = vmatprep.subr.mxu0 0.0
    %3109 = vmatpush2.msra.mxu0 0.0
    %3110 = vmatprep.subr.mxu0 0.0
    %3111 = vmatpush2.msra.mxu0 0.0
    %3112 = vmatprep.subr.mxu0 0.0
    %3113 = vmatpush2.msra.mxu0 0.0
    %3114 = vmatprep.subr.mxu0 0.0
    %3115 = vmatpush2.msra.mxu0 0.0
    %3116 = vmatprep.subr.mxu0 0.0
    %3117 = vmatpush2.msra.mxu0 0.0
    %3118 = vmatprep.subr.mxu0 0.0
    %3119 = vmatpush2.msra.mxu0 0.0
    %3120 = vmatprep.subr.mxu0 0.0
    %3121 = vmatpush2.msra.mxu0 0.0
    %3122 = vmatprep.subr.mxu0 0.0
    %3123 = vmatpush2.msra.mxu0 0.0
    %3124 = vmatprep.mubr.f32.mxu0 0.0
    %3125 = vmatmul.mubr.f32.gmra.mxu0 %v3058
    %v3126 = vpop.f32.mrf.mxu0
    %v3127 = vadd.f32 0.0, %v3126
    %v3128 = vpop.f32.mrf.mxu0
    %3129 = vdwg.mxu0
    %v3130 = vadd.f32 %v3052, %v3127
    %v3131 = vld [vmem:[%s1897] sm:$0xff]
    %v3132 = vld [vmem:[%s1897 + $0x8] sm:$0xff]
    %v3133 = vrot.slane %v1656, 6
    %v3134 = vsel %vm47, %v3133, 0
    %3136 = vmatprep.subr.mxu0 0.0
    %3137 = vmatpush1.msra.mxu0 0.0
    %3138 = vmatprep.subr.mxu0 0.0
    %3139 = vmatpush1.msra.mxu0 0.0
    %3140 = vmatprep.subr.mxu0 0.0
    %3141 = vmatpush1.msra.mxu0 0.0
    %3142 = vmatprep.subr.mxu0 0.0
    %3143 = vmatpush1.msra.mxu0 0.0
    %3144 = vmatprep.subr.mxu0 0.0
    %3145 = vmatpush1.msra.mxu0 0.0
    %3146 = vmatprep.subr.mxu0 0.0
    %3147 = vmatpush1.msra.mxu0 0.0
    %3148 = vmatprep.subr.mxu0 0.0
    %3149 = vmatpush1.msra.mxu0 0.0
    %3150 = vmatprep.subr.mxu0 0.0
    %3151 = vmatpush1.msra.mxu0 0.0
    %3152 = vmatprep.subr.mxu0 0.0
    %3153 = vmatpush1.msra.mxu0 0.0
    %3154 = vmatprep.subr.mxu0 0.0
    %3155 = vmatpush1.msra.mxu0 0.0
    %3156 = vmatprep.subr.mxu0 0.0
    %3157 = vmatpush1.msra.mxu0 0.0
    %3158 = vmatprep.subr.mxu0 0.0
    %3159 = vmatpush1.msra.mxu0 0.0
    %3160 = vmatprep.subr.mxu0 0.0
    %3161 = vmatpush1.msra.mxu0 0.0
    %3162 = vmatprep.subr.mxu0 0.0
    %3163 = vmatpush1.msra.mxu0 0.0
    %3164 = vmatprep.subr.mxu0 0.0
    %3165 = vmatpush1.msra.mxu0 %v3132
    %3166 = vmatprep.subr.mxu0 0.0
    %3167 = vmatpush1.msra.mxu0 %v3131
    %3168 = vmatprep.subr.mxu0 0.0
    %3169 = vmatpush2.msra.mxu0 0.0
    %3170 = vmatprep.subr.mxu0 0.0
    %3171 = vmatpush2.msra.mxu0 0.0
    %3172 = vmatprep.subr.mxu0 0.0
    %3173 = vmatpush2.msra.mxu0 0.0
    %3174 = vmatprep.subr.mxu0 0.0
    %3175 = vmatpush2.msra.mxu0 0.0
    %3176 = vmatprep.subr.mxu0 0.0
    %3177 = vmatpush2.msra.mxu0 0.0
    %3178 = vmatprep.subr.mxu0 0.0
    %3179 = vmatpush2.msra.mxu0 0.0
    %3180 = vmatprep.subr.mxu0 0.0
    %3181 = vmatpush2.msra.mxu0 0.0
    %3182 = vmatprep.subr.mxu0 0.0
    %3183 = vmatpush2.msra.mxu0 0.0
    %3184 = vmatprep.subr.mxu0 0.0
    %3185 = vmatpush2.msra.mxu0 0.0
    %3186 = vmatprep.subr.mxu0 0.0
    %3187 = vmatpush2.msra.mxu0 0.0
    %3188 = vmatprep.subr.mxu0 0.0
    %3189 = vmatpush2.msra.mxu0 0.0
    %3190 = vmatprep.subr.mxu0 0.0
    %3191 = vmatpush2.msra.mxu0 0.0
    %3192 = vmatprep.subr.mxu0 0.0
    %3193 = vmatpush2.msra.mxu0 0.0
    %3194 = vmatprep.subr.mxu0 0.0
    %3195 = vmatpush2.msra.mxu0 0.0
    %3196 = vmatprep.subr.mxu0 0.0
    %3197 = vmatpush2.msra.mxu0 0.0
    %3198 = vmatprep.subr.mxu0 0.0
    %3199 = vmatpush2.msra.mxu0 0.0
    %3200 = vmatprep.mubr.f32.mxu0 0.0
    %3201 = vmatmul.mubr.f32.gmra.mxu0 %v3134
    %v3202 = vpop.f32.mrf.mxu0
    %v3203 = vadd.f32 0.0, %v3202
    %v3204 = vpop.f32.mrf.mxu0
    %3205 = vdwg.mxu0
    %v3206 = vadd.f32 %v3130, %v3203
    %v3207 = vld [vmem:[%s1974] sm:$0xff]
    %v3208 = vld [vmem:[%s1974 + $0x8] sm:$0xff]
    %v3209 = vrot.slane %v1656, 7
    %v3210 = vsel %vm47, %v3209, 0
    %3212 = vmatprep.subr.mxu0 0.0
    %3213 = vmatpush1.msra.mxu0 0.0
    %3214 = vmatprep.subr.mxu0 0.0
    %3215 = vmatpush1.msra.mxu0 0.0
    %3216 = vmatprep.subr.mxu0 0.0
    %3217 = vmatpush1.msra.mxu0 0.0
    %3218 = vmatprep.subr.mxu0 0.0
    %3219 = vmatpush1.msra.mxu0 0.0
    %3220 = vmatprep.subr.mxu0 0.0
    %3221 = vmatpush1.msra.mxu0 0.0
    %3222 = vmatprep.subr.mxu0 0.0
    %3223 = vmatpush1.msra.mxu0 0.0
    %3224 = vmatprep.subr.mxu0 0.0
    %3225 = vmatpush1.msra.mxu0 0.0
    %3226 = vmatprep.subr.mxu0 0.0
    %3227 = vmatpush1.msra.mxu0 0.0
    %3228 = vmatprep.subr.mxu0 0.0
    %3229 = vmatpush1.msra.mxu0 0.0
    %3230 = vmatprep.subr.mxu0 0.0
    %3231 = vmatpush1.msra.mxu0 0.0
    %3232 = vmatprep.subr.mxu0 0.0
    %3233 = vmatpush1.msra.mxu0 0.0
    %3234 = vmatprep.subr.mxu0 0.0
    %3235 = vmatpush1.msra.mxu0 0.0
    %3236 = vmatprep.subr.mxu0 0.0
    %3237 = vmatpush1.msra.mxu0 0.0
    %3238 = vmatprep.subr.mxu0 0.0
    %3239 = vmatpush1.msra.mxu0 0.0
    %3240 = vmatprep.subr.mxu0 0.0
    %3241 = vmatpush1.msra.mxu0 %v3208
    %3242 = vmatprep.subr.mxu0 0.0
    %3243 = vmatpush1.msra.mxu0 %v3207
    %3244 = vmatprep.subr.mxu0 0.0
    %3245 = vmatpush2.msra.mxu0 0.0
    %3246 = vmatprep.subr.mxu0 0.0
    %3247 = vmatpush2.msra.mxu0 0.0
    %3248 = vmatprep.subr.mxu0 0.0
    %3249 = vmatpush2.msra.mxu0 0.0
    %3250 = vmatprep.subr.mxu0 0.0
    %3251 = vmatpush2.msra.mxu0 0.0
    %3252 = vmatprep.subr.mxu0 0.0
    %3253 = vmatpush2.msra.mxu0 0.0
    %3254 = vmatprep.subr.mxu0 0.0
    %3255 = vmatpush2.msra.mxu0 0.0
    %3256 = vmatprep.subr.mxu0 0.0
    %3257 = vmatpush2.msra.mxu0 0.0
    %3258 = vmatprep.subr.mxu0 0.0
    %3259 = vmatpush2.msra.mxu0 0.0
    %3260 = vmatprep.subr.mxu0 0.0
    %3261 = vmatpush2.msra.mxu0 0.0
    %3262 = vmatprep.subr.mxu0 0.0
    %3263 = vmatpush2.msra.mxu0 0.0
    %3264 = vmatprep.subr.mxu0 0.0
    %3265 = vmatpush2.msra.mxu0 0.0
    %3266 = vmatprep.subr.mxu0 0.0
    %3267 = vmatpush2.msra.mxu0 0.0
    %3268 = vmatprep.subr.mxu0 0.0
    %3269 = vmatpush2.msra.mxu0 0.0
    %3270 = vmatprep.subr.mxu0 0.0
    %3271 = vmatpush2.msra.mxu0 0.0
    %3272 = vmatprep.subr.mxu0 0.0
    %3273 = vmatpush2.msra.mxu0 0.0
    %3274 = vmatprep.subr.mxu0 0.0
    %3275 = vmatpush2.msra.mxu0 0.0
    %3276 = vmatprep.mubr.f32.mxu0 0.0
    %3277 = vmatmul.mubr.f32.gmra.mxu0 %v3210
    %v3278 = vpop.f32.mrf.mxu0
    %v3279 = vadd.f32 0.0, %v3278
    %v3280 = vpop.f32.mrf.mxu0
    %3281 = vdwg.mxu0
    %v3282 = vadd.f32 %v3206, %v3279
    %v3283 = vld [vmem:[%s2051] sm:$0xff]
    %v3284 = vld [vmem:[%s2051 + $0x8] sm:$0xff]
    %v3286 = vsel %vm47, %v1657, 0
    %3288 = vmatprep.subr.mxu0 0.0
    %3289 = vmatpush1.msra.mxu0 0.0
    %3290 = vmatprep.subr.mxu0 0.0
    %3291 = vmatpush1.msra.mxu0 0.0
    %3292 = vmatprep.subr.mxu0 0.0
    %3293 = vmatpush1.msra.mxu0 0.0
    %3294 = vmatprep.subr.mxu0 0.0
    %3295 = vmatpush1.msra.mxu0 0.0
    %3296 = vmatprep.subr.mxu0 0.0
    %3297 = vmatpush1.msra.mxu0 0.0
    %3298 = vmatprep.subr.mxu0 0.0
    %3299 = vmatpush1.msra.mxu0 0.0
    %3300 = vmatprep.subr.mxu0 0.0
    %3301 = vmatpush1.msra.mxu0 0.0
    %3302 = vmatprep.subr.mxu0 0.0
    %3303 = vmatpush1.msra.mxu0 0.0
    %3304 = vmatprep.subr.mxu0 0.0
    %3305 = vmatpush1.msra.mxu0 0.0
    %3306 = vmatprep.subr.mxu0 0.0
    %3307 = vmatpush1.msra.mxu0 0.0
    %3308 = vmatprep.subr.mxu0 0.0
    %3309 = vmatpush1.msra.mxu0 0.0
    %3310 = vmatprep.subr.mxu0 0.0
    %3311 = vmatpush1.msra.mxu0 0.0
    %3312 = vmatprep.subr.mxu0 0.0
    %3313 = vmatpush1.msra.mxu0 0.0
    %3314 = vmatprep.subr.mxu0 0.0
    %3315 = vmatpush1.msra.mxu0 0.0
    %3316 = vmatprep.subr.mxu0 0.0
    %3317 = vmatpush1.msra.mxu0 %v3284
    %3318 = vmatprep.subr.mxu0 0.0
    %3319 = vmatpush1.msra.mxu0 %v3283
    %3320 = vmatprep.subr.mxu0 0.0
    %3321 = vmatpush2.msra.mxu0 0.0
    %3322 = vmatprep.subr.mxu0 0.0
    %3323 = vmatpush2.msra.mxu0 0.0
    %3324 = vmatprep.subr.mxu0 0.0
    %3325 = vmatpush2.msra.mxu0 0.0
    %3326 = vmatprep.subr.mxu0 0.0
    %3327 = vmatpush2.msra.mxu0 0.0
    %3328 = vmatprep.subr.mxu0 0.0
    %3329 = vmatpush2.msra.mxu0 0.0
    %3330 = vmatprep.subr.mxu0 0.0
    %3331 = vmatpush2.msra.mxu0 0.0
    %3332 = vmatprep.subr.mxu0 0.0
    %3333 = vmatpush2.msra.mxu0 0.0
    %3334 = vmatprep.subr.mxu0 0.0
    %3335 = vmatpush2.msra.mxu0 0.0
    %3336 = vmatprep.subr.mxu0 0.0
    %3337 = vmatpush2.msra.mxu0 0.0
    %3338 = vmatprep.subr.mxu0 0.0
    %3339 = vmatpush2.msra.mxu0 0.0
    %3340 = vmatprep.subr.mxu0 0.0
    %3341 = vmatpush2.msra.mxu0 0.0
    %3342 = vmatprep.subr.mxu0 0.0
    %3343 = vmatpush2.msra.mxu0 0.0
    %3344 = vmatprep.subr.mxu0 0.0
    %3345 = vmatpush2.msra.mxu0 0.0
    %3346 = vmatprep.subr.mxu0 0.0
    %3347 = vmatpush2.msra.mxu0 0.0
    %3348 = vmatprep.subr.mxu0 0.0
    %3349 = vmatpush2.msra.mxu0 0.0
    %3350 = vmatprep.subr.mxu0 0.0
    %3351 = vmatpush2.msra.mxu0 0.0
    %3352 = vmatprep.mubr.f32.mxu0 0.0
    %3353 = vmatmul.mubr.f32.gmra.mxu0 %v3286
    %v3354 = vpop.f32.mrf.mxu0
    %v3355 = vadd.f32 0.0, %v3354
    %v3356 = vpop.f32.mrf.mxu0
    %3357 = vdwg.mxu0
    %v3358 = vadd.f32 %v3282, %v3355
    %v3359 = vld [vmem:[%s2128] sm:$0xff]
    %v3360 = vld [vmem:[%s2128 + $0x8] sm:$0xff]
    %v3361 = vrot.slane %v1657, 1
    %v3362 = vsel %vm47, %v3361, 0
    %3364 = vmatprep.subr.mxu0 0.0
    %3365 = vmatpush1.msra.mxu0 0.0
    %3366 = vmatprep.subr.mxu0 0.0
    %3367 = vmatpush1.msra.mxu0 0.0
    %3368 = vmatprep.subr.mxu0 0.0
    %3369 = vmatpush1.msra.mxu0 0.0
    %3370 = vmatprep.subr.mxu0 0.0
    %3371 = vmatpush1.msra.mxu0 0.0
    %3372 = vmatprep.subr.mxu0 0.0
    %3373 = vmatpush1.msra.mxu0 0.0
    %3374 = vmatprep.subr.mxu0 0.0
    %3375 = vmatpush1.msra.mxu0 0.0
    %3376 = vmatprep.subr.mxu0 0.0
    %3377 = vmatpush1.msra.mxu0 0.0
    %3378 = vmatprep.subr.mxu0 0.0
    %3379 = vmatpush1.msra.mxu0 0.0
    %3380 = vmatprep.subr.mxu0 0.0
    %3381 = vmatpush1.msra.mxu0 0.0
    %3382 = vmatprep.subr.mxu0 0.0
    %3383 = vmatpush1.msra.mxu0 0.0
    %3384 = vmatprep.subr.mxu0 0.0
    %3385 = vmatpush1.msra.mxu0 0.0
    %3386 = vmatprep.subr.mxu0 0.0
    %3387 = vmatpush1.msra.mxu0 0.0
    %3388 = vmatprep.subr.mxu0 0.0
    %3389 = vmatpush1.msra.mxu0 0.0
    %3390 = vmatprep.subr.mxu0 0.0
    %3391 = vmatpush1.msra.mxu0 0.0
    %3392 = vmatprep.subr.mxu0 0.0
    %3393 = vmatpush1.msra.mxu0 %v3360
    %3394 = vmatprep.subr.mxu0 0.0
    %3395 = vmatpush1.msra.mxu0 %v3359
    %3396 = vmatprep.subr.mxu0 0.0
    %3397 = vmatpush2.msra.mxu0 0.0
    %3398 = vmatprep.subr.mxu0 0.0
    %3399 = vmatpush2.msra.mxu0 0.0
    %3400 = vmatprep.subr.mxu0 0.0
    %3401 = vmatpush2.msra.mxu0 0.0
    %3402 = vmatprep.subr.mxu0 0.0
    %3403 = vmatpush2.msra.mxu0 0.0
    %3404 = vmatprep.subr.mxu0 0.0
    %3405 = vmatpush2.msra.mxu0 0.0
    %3406 = vmatprep.subr.mxu0 0.0
    %3407 = vmatpush2.msra.mxu0 0.0
    %3408 = vmatprep.subr.mxu0 0.0
    %3409 = vmatpush2.msra.mxu0 0.0
    %3410 = vmatprep.subr.mxu0 0.0
    %3411 = vmatpush2.msra.mxu0 0.0
    %3412 = vmatprep.subr.mxu0 0.0
    %3413 = vmatpush2.msra.mxu0 0.0
    %3414 = vmatprep.subr.mxu0 0.0
    %3415 = vmatpush2.msra.mxu0 0.0
    %3416 = vmatprep.subr.mxu0 0.0
    %3417 = vmatpush2.msra.mxu0 0.0
    %3418 = vmatprep.subr.mxu0 0.0
    %3419 = vmatpush2.msra.mxu0 0.0
    %3420 = vmatprep.subr.mxu0 0.0
    %3421 = vmatpush2.msra.mxu0 0.0
    %3422 = vmatprep.subr.mxu0 0.0
    %3423 = vmatpush2.msra.mxu0 0.0
    %3424 = vmatprep.subr.mxu0 0.0
    %3425 = vmatpush2.msra.mxu0 0.0
    %3426 = vmatprep.subr.mxu0 0.0
    %3427 = vmatpush2.msra.mxu0 0.0
    %3428 = vmatprep.mubr.f32.mxu0 0.0
    %3429 = vmatmul.mubr.f32.gmra.mxu0 %v3362
    %v3430 = vpop.f32.mrf.mxu0
    %v3431 = vadd.f32 0.0, %v3430
    %v3432 = vpop.f32.mrf.mxu0
    %3433 = vdwg.mxu0
    %v3434 = vadd.f32 %v3358, %v3431
    %v3435 = vld [vmem:[%s2205] sm:$0xff]
    %v3436 = vld [vmem:[%s2205 + $0x8] sm:$0xff]
    %v3437 = vrot.slane %v1657, 2
    %v3438 = vsel %vm47, %v3437, 0
    %3440 = vmatprep.subr.mxu0 0.0
    %3441 = vmatpush1.msra.mxu0 0.0
    %3442 = vmatprep.subr.mxu0 0.0
    %3443 = vmatpush1.msra.mxu0 0.0
    %3444 = vmatprep.subr.mxu0 0.0
    %3445 = vmatpush1.msra.mxu0 0.0
    %3446 = vmatprep.subr.mxu0 0.0
    %3447 = vmatpush1.msra.mxu0 0.0
    %3448 = vmatprep.subr.mxu0 0.0
    %3449 = vmatpush1.msra.mxu0 0.0
    %3450 = vmatprep.subr.mxu0 0.0
    %3451 = vmatpush1.msra.mxu0 0.0
    %3452 = vmatprep.subr.mxu0 0.0
    %3453 = vmatpush1.msra.mxu0 0.0
    %3454 = vmatprep.subr.mxu0 0.0
    %3455 = vmatpush1.msra.mxu0 0.0
    %3456 = vmatprep.subr.mxu0 0.0
    %3457 = vmatpush1.msra.mxu0 0.0
    %3458 = vmatprep.subr.mxu0 0.0
    %3459 = vmatpush1.msra.mxu0 0.0
    %3460 = vmatprep.subr.mxu0 0.0
    %3461 = vmatpush1.msra.mxu0 0.0
    %3462 = vmatprep.subr.mxu0 0.0
    %3463 = vmatpush1.msra.mxu0 0.0
    %3464 = vmatprep.subr.mxu0 0.0
    %3465 = vmatpush1.msra.mxu0 0.0
    %3466 = vmatprep.subr.mxu0 0.0
    %3467 = vmatpush1.msra.mxu0 0.0
    %3468 = vmatprep.subr.mxu0 0.0
    %3469 = vmatpush1.msra.mxu0 %v3436
    %3470 = vmatprep.subr.mxu0 0.0
    %3471 = vmatpush1.msra.mxu0 %v3435
    %3472 = vmatprep.subr.mxu0 0.0
    %3473 = vmatpush2.msra.mxu0 0.0
    %3474 = vmatprep.subr.mxu0 0.0
    %3475 = vmatpush2.msra.mxu0 0.0
    %3476 = vmatprep.subr.mxu0 0.0
    %3477 = vmatpush2.msra.mxu0 0.0
    %3478 = vmatprep.subr.mxu0 0.0
    %3479 = vmatpush2.msra.mxu0 0.0
    %3480 = vmatprep.subr.mxu0 0.0
    %3481 = vmatpush2.msra.mxu0 0.0
    %3482 = vmatprep.subr.mxu0 0.0
    %3483 = vmatpush2.msra.mxu0 0.0
    %3484 = vmatprep.subr.mxu0 0.0
    %3485 = vmatpush2.msra.mxu0 0.0
    %3486 = vmatprep.subr.mxu0 0.0
    %3487 = vmatpush2.msra.mxu0 0.0
    %3488 = vmatprep.subr.mxu0 0.0
    %3489 = vmatpush2.msra.mxu0 0.0
    %3490 = vmatprep.subr.mxu0 0.0
    %3491 = vmatpush2.msra.mxu0 0.0
    %3492 = vmatprep.subr.mxu0 0.0
    %3493 = vmatpush2.msra.mxu0 0.0
    %3494 = vmatprep.subr.mxu0 0.0
    %3495 = vmatpush2.msra.mxu0 0.0
    %3496 = vmatprep.subr.mxu0 0.0
    %3497 = vmatpush2.msra.mxu0 0.0
    %3498 = vmatprep.subr.mxu0 0.0
    %3499 = vmatpush2.msra.mxu0 0.0
    %3500 = vmatprep.subr.mxu0 0.0
    %3501 = vmatpush2.msra.mxu0 0.0
    %3502 = vmatprep.subr.mxu0 0.0
    %3503 = vmatpush2.msra.mxu0 0.0
    %3504 = vmatprep.mubr.f32.mxu0 0.0
    %3505 = vmatmul.mubr.f32.gmra.mxu0 %v3438
    %v3506 = vpop.f32.mrf.mxu0
    %v3507 = vadd.f32 0.0, %v3506
    %v3508 = vpop.f32.mrf.mxu0
    %3509 = vdwg.mxu0
    %v3510 = vadd.f32 %v3434, %v3507
    %v3511 = vld [vmem:[%s2282] sm:$0xff]
    %v3512 = vld [vmem:[%s2282 + $0x8] sm:$0xff]
    %v3513 = vrot.slane %v1657, 3
    %v3514 = vsel %vm47, %v3513, 0
    %3516 = vmatprep.subr.mxu0 0.0
    %3517 = vmatpush1.msra.mxu0 0.0
    %3518 = vmatprep.subr.mxu0 0.0
    %3519 = vmatpush1.msra.mxu0 0.0
    %3520 = vmatprep.subr.mxu0 0.0
    %3521 = vmatpush1.msra.mxu0 0.0
    %3522 = vmatprep.subr.mxu0 0.0
    %3523 = vmatpush1.msra.mxu0 0.0
    %3524 = vmatprep.subr.mxu0 0.0
    %3525 = vmatpush1.msra.mxu0 0.0
    %3526 = vmatprep.subr.mxu0 0.0
    %3527 = vmatpush1.msra.mxu0 0.0
    %3528 = vmatprep.subr.mxu0 0.0
    %3529 = vmatpush1.msra.mxu0 0.0
    %3530 = vmatprep.subr.mxu0 0.0
    %3531 = vmatpush1.msra.mxu0 0.0
    %3532 = vmatprep.subr.mxu0 0.0
    %3533 = vmatpush1.msra.mxu0 0.0
    %3534 = vmatprep.subr.mxu0 0.0
    %3535 = vmatpush1.msra.mxu0 0.0
    %3536 = vmatprep.subr.mxu0 0.0
    %3537 = vmatpush1.msra.mxu0 0.0
    %3538 = vmatprep.subr.mxu0 0.0
    %3539 = vmatpush1.msra.mxu0 0.0
    %3540 = vmatprep.subr.mxu0 0.0
    %3541 = vmatpush1.msra.mxu0 0.0
    %3542 = vmatprep.subr.mxu0 0.0
    %3543 = vmatpush1.msra.mxu0 0.0
    %3544 = vmatprep.subr.mxu0 0.0
    %3545 = vmatpush1.msra.mxu0 %v3512
    %3546 = vmatprep.subr.mxu0 0.0
    %3547 = vmatpush1.msra.mxu0 %v3511
    %3548 = vmatprep.subr.mxu0 0.0
    %3549 = vmatpush2.msra.mxu0 0.0
    %3550 = vmatprep.subr.mxu0 0.0
    %3551 = vmatpush2.msra.mxu0 0.0
    %3552 = vmatprep.subr.mxu0 0.0
    %3553 = vmatpush2.msra.mxu0 0.0
    %3554 = vmatprep.subr.mxu0 0.0
    %3555 = vmatpush2.msra.mxu0 0.0
    %3556 = vmatprep.subr.mxu0 0.0
    %3557 = vmatpush2.msra.mxu0 0.0
    %3558 = vmatprep.subr.mxu0 0.0
    %3559 = vmatpush2.msra.mxu0 0.0
    %3560 = vmatprep.subr.mxu0 0.0
    %3561 = vmatpush2.msra.mxu0 0.0
    %3562 = vmatprep.subr.mxu0 0.0
    %3563 = vmatpush2.msra.mxu0 0.0
    %3564 = vmatprep.subr.mxu0 0.0
    %3565 = vmatpush2.msra.mxu0 0.0
    %3566 = vmatprep.subr.mxu0 0.0
    %3567 = vmatpush2.msra.mxu0 0.0
    %3568 = vmatprep.subr.mxu0 0.0
    %3569 = vmatpush2.msra.mxu0 0.0
    %3570 = vmatprep.subr.mxu0 0.0
    %3571 = vmatpush2.msra.mxu0 0.0
    %3572 = vmatprep.subr.mxu0 0.0
    %3573 = vmatpush2.msra.mxu0 0.0
    %3574 = vmatprep.subr.mxu0 0.0
    %3575 = vmatpush2.msra.mxu0 0.0
    %3576 = vmatprep.subr.mxu0 0.0
    %3577 = vmatpush2.msra.mxu0 0.0
    %3578 = vmatprep.subr.mxu0 0.0
    %3579 = vmatpush2.msra.mxu0 0.0
    %3580 = vmatprep.mubr.f32.mxu0 0.0
    %3581 = vmatmul.mubr.f32.gmra.mxu0 %v3514
    %v3582 = vpop.f32.mrf.mxu0
    %v3583 = vadd.f32 0.0, %v3582
    %v3584 = vpop.f32.mrf.mxu0
    %3585 = vdwg.mxu0
    %v3586 = vadd.f32 %v3510, %v3583
    %v3587 = vld [vmem:[%s2359] sm:$0xff]
    %v3588 = vld [vmem:[%s2359 + $0x8] sm:$0xff]
    %v3589 = vrot.slane %v1657, 4
    %v3590 = vsel %vm47, %v3589, 0
    %3592 = vmatprep.subr.mxu0 0.0
    %3593 = vmatpush1.msra.mxu0 0.0
    %3594 = vmatprep.subr.mxu0 0.0
    %3595 = vmatpush1.msra.mxu0 0.0
    %3596 = vmatprep.subr.mxu0 0.0
    %3597 = vmatpush1.msra.mxu0 0.0
    %3598 = vmatprep.subr.mxu0 0.0
    %3599 = vmatpush1.msra.mxu0 0.0
    %3600 = vmatprep.subr.mxu0 0.0
    %3601 = vmatpush1.msra.mxu0 0.0
    %3602 = vmatprep.subr.mxu0 0.0
    %3603 = vmatpush1.msra.mxu0 0.0
    %3604 = vmatprep.subr.mxu0 0.0
    %3605 = vmatpush1.msra.mxu0 0.0
    %3606 = vmatprep.subr.mxu0 0.0
    %3607 = vmatpush1.msra.mxu0 0.0
    %3608 = vmatprep.subr.mxu0 0.0
    %3609 = vmatpush1.msra.mxu0 0.0
    %3610 = vmatprep.subr.mxu0 0.0
    %3611 = vmatpush1.msra.mxu0 0.0
    %3612 = vmatprep.subr.mxu0 0.0
    %3613 = vmatpush1.msra.mxu0 0.0
    %3614 = vmatprep.subr.mxu0 0.0
    %3615 = vmatpush1.msra.mxu0 0.0
    %3616 = vmatprep.subr.mxu0 0.0
    %3617 = vmatpush1.msra.mxu0 0.0
    %3618 = vmatprep.subr.mxu0 0.0
    %3619 = vmatpush1.msra.mxu0 0.0
    %3620 = vmatprep.subr.mxu0 0.0
    %3621 = vmatpush1.msra.mxu0 %v3588
    %3622 = vmatprep.subr.mxu0 0.0
    %3623 = vmatpush1.msra.mxu0 %v3587
    %3624 = vmatprep.subr.mxu0 0.0
    %3625 = vmatpush2.msra.mxu0 0.0
    %3626 = vmatprep.subr.mxu0 0.0
    %3627 = vmatpush2.msra.mxu0 0.0
    %3628 = vmatprep.subr.mxu0 0.0
    %3629 = vmatpush2.msra.mxu0 0.0
    %3630 = vmatprep.subr.mxu0 0.0
    %3631 = vmatpush2.msra.mxu0 0.0
    %3632 = vmatprep.subr.mxu0 0.0
    %3633 = vmatpush2.msra.mxu0 0.0
    %3634 = vmatprep.subr.mxu0 0.0
    %3635 = vmatpush2.msra.mxu0 0.0
    %3636 = vmatprep.subr.mxu0 0.0
    %3637 = vmatpush2.msra.mxu0 0.0
    %3638 = vmatprep.subr.mxu0 0.0
    %3639 = vmatpush2.msra.mxu0 0.0
    %3640 = vmatprep.subr.mxu0 0.0
    %3641 = vmatpush2.msra.mxu0 0.0
    %3642 = vmatprep.subr.mxu0 0.0
    %3643 = vmatpush2.msra.mxu0 0.0
    %3644 = vmatprep.subr.mxu0 0.0
    %3645 = vmatpush2.msra.mxu0 0.0
    %3646 = vmatprep.subr.mxu0 0.0
    %3647 = vmatpush2.msra.mxu0 0.0
    %3648 = vmatprep.subr.mxu0 0.0
    %3649 = vmatpush2.msra.mxu0 0.0
    %3650 = vmatprep.subr.mxu0 0.0
    %3651 = vmatpush2.msra.mxu0 0.0
    %3652 = vmatprep.subr.mxu0 0.0
    %3653 = vmatpush2.msra.mxu0 0.0
    %3654 = vmatprep.subr.mxu0 0.0
    %3655 = vmatpush2.msra.mxu0 0.0
    %3656 = vmatprep.mubr.f32.mxu0 0.0
    %3657 = vmatmul.mubr.f32.gmra.mxu0 %v3590
    %v3658 = vpop.f32.mrf.mxu0
    %v3659 = vadd.f32 0.0, %v3658
    %v3660 = vpop.f32.mrf.mxu0
    %3661 = vdwg.mxu0
    %v3662 = vadd.f32 %v3586, %v3659
    %v3663 = vld [vmem:[%s2436] sm:$0xff]
    %v3664 = vld [vmem:[%s2436 + $0x8] sm:$0xff]
    %v3665 = vrot.slane %v1657, 5
    %v3666 = vsel %vm47, %v3665, 0
    %3668 = vmatprep.subr.mxu0 0.0
    %3669 = vmatpush1.msra.mxu0 0.0
    %3670 = vmatprep.subr.mxu0 0.0
    %3671 = vmatpush1.msra.mxu0 0.0
    %3672 = vmatprep.subr.mxu0 0.0
    %3673 = vmatpush1.msra.mxu0 0.0
    %3674 = vmatprep.subr.mxu0 0.0
    %3675 = vmatpush1.msra.mxu0 0.0
    %3676 = vmatprep.subr.mxu0 0.0
    %3677 = vmatpush1.msra.mxu0 0.0
    %3678 = vmatprep.subr.mxu0 0.0
    %3679 = vmatpush1.msra.mxu0 0.0
    %3680 = vmatprep.subr.mxu0 0.0
    %3681 = vmatpush1.msra.mxu0 0.0
    %3682 = vmatprep.subr.mxu0 0.0
    %3683 = vmatpush1.msra.mxu0 0.0
    %3684 = vmatprep.subr.mxu0 0.0
    %3685 = vmatpush1.msra.mxu0 0.0
    %3686 = vmatprep.subr.mxu0 0.0
    %3687 = vmatpush1.msra.mxu0 0.0
    %3688 = vmatprep.subr.mxu0 0.0
    %3689 = vmatpush1.msra.mxu0 0.0
    %3690 = vmatprep.subr.mxu0 0.0
    %3691 = vmatpush1.msra.mxu0 0.0
    %3692 = vmatprep.subr.mxu0 0.0
    %3693 = vmatpush1.msra.mxu0 0.0
    %3694 = vmatprep.subr.mxu0 0.0
    %3695 = vmatpush1.msra.mxu0 0.0
    %3696 = vmatprep.subr.mxu0 0.0
    %3697 = vmatpush1.msra.mxu0 %v3664
    %3698 = vmatprep.subr.mxu0 0.0
    %3699 = vmatpush1.msra.mxu0 %v3663
    %3700 = vmatprep.subr.mxu0 0.0
    %3701 = vmatpush2.msra.mxu0 0.0
    %3702 = vmatprep.subr.mxu0 0.0
    %3703 = vmatpush2.msra.mxu0 0.0
    %3704 = vmatprep.subr.mxu0 0.0
    %3705 = vmatpush2.msra.mxu0 0.0
    %3706 = vmatprep.subr.mxu0 0.0
    %3707 = vmatpush2.msra.mxu0 0.0
    %3708 = vmatprep.subr.mxu0 0.0
    %3709 = vmatpush2.msra.mxu0 0.0
    %3710 = vmatprep.subr.mxu0 0.0
    %3711 = vmatpush2.msra.mxu0 0.0
    %3712 = vmatprep.subr.mxu0 0.0
    %3713 = vmatpush2.msra.mxu0 0.0
    %3714 = vmatprep.subr.mxu0 0.0
    %3715 = vmatpush2.msra.mxu0 0.0
    %3716 = vmatprep.subr.mxu0 0.0
    %3717 = vmatpush2.msra.mxu0 0.0
    %3718 = vmatprep.subr.mxu0 0.0
    %3719 = vmatpush2.msra.mxu0 0.0
    %3720 = vmatprep.subr.mxu0 0.0
    %3721 = vmatpush2.msra.mxu0 0.0
    %3722 = vmatprep.subr.mxu0 0.0
    %3723 = vmatpush2.msra.mxu0 0.0
    %3724 = vmatprep.subr.mxu0 0.0
    %3725 = vmatpush2.msra.mxu0 0.0
    %3726 = vmatprep.subr.mxu0 0.0
    %3727 = vmatpush2.msra.mxu0 0.0
    %3728 = vmatprep.subr.mxu0 0.0
    %3729 = vmatpush2.msra.mxu0 0.0
    %3730 = vmatprep.subr.mxu0 0.0
    %3731 = vmatpush2.msra.mxu0 0.0
    %3732 = vmatprep.mubr.f32.mxu0 0.0
    %3733 = vmatmul.mubr.f32.gmra.mxu0 %v3666
    %v3734 = vpop.f32.mrf.mxu0
    %v3735 = vadd.f32 0.0, %v3734
    %v3736 = vpop.f32.mrf.mxu0
    %3737 = vdwg.mxu0
    %v3738 = vadd.f32 %v3662, %v3735
    %v3739 = vld [vmem:[%s2513] sm:$0xff]
    %v3740 = vld [vmem:[%s2513 + $0x8] sm:$0xff]
    %v3741 = vrot.slane %v1657, 6
    %v3742 = vsel %vm47, %v3741, 0
    %3744 = vmatprep.subr.mxu0 0.0
    %3745 = vmatpush1.msra.mxu0 0.0
    %3746 = vmatprep.subr.mxu0 0.0
    %3747 = vmatpush1.msra.mxu0 0.0
    %3748 = vmatprep.subr.mxu0 0.0
    %3749 = vmatpush1.msra.mxu0 0.0
    %3750 = vmatprep.subr.mxu0 0.0
    %3751 = vmatpush1.msra.mxu0 0.0
    %3752 = vmatprep.subr.mxu0 0.0
    %3753 = vmatpush1.msra.mxu0 0.0
    %3754 = vmatprep.subr.mxu0 0.0
    %3755 = vmatpush1.msra.mxu0 0.0
    %3756 = vmatprep.subr.mxu0 0.0
    %3757 = vmatpush1.msra.mxu0 0.0
    %3758 = vmatprep.subr.mxu0 0.0
    %3759 = vmatpush1.msra.mxu0 0.0
    %3760 = vmatprep.subr.mxu0 0.0
    %3761 = vmatpush1.msra.mxu0 0.0
    %3762 = vmatprep.subr.mxu0 0.0
    %3763 = vmatpush1.msra.mxu0 0.0
    %3764 = vmatprep.subr.mxu0 0.0
    %3765 = vmatpush1.msra.mxu0 0.0
    %3766 = vmatprep.subr.mxu0 0.0
    %3767 = vmatpush1.msra.mxu0 0.0
    %3768 = vmatprep.subr.mxu0 0.0
    %3769 = vmatpush1.msra.mxu0 0.0
    %3770 = vmatprep.subr.mxu0 0.0
    %3771 = vmatpush1.msra.mxu0 0.0
    %3772 = vmatprep.subr.mxu0 0.0
    %3773 = vmatpush1.msra.mxu0 %v3740
    %3774 = vmatprep.subr.mxu0 0.0
    %3775 = vmatpush1.msra.mxu0 %v3739
    %3776 = vmatprep.subr.mxu0 0.0
    %3777 = vmatpush2.msra.mxu0 0.0
    %3778 = vmatprep.subr.mxu0 0.0
    %3779 = vmatpush2.msra.mxu0 0.0
    %3780 = vmatprep.subr.mxu0 0.0
    %3781 = vmatpush2.msra.mxu0 0.0
    %3782 = vmatprep.subr.mxu0 0.0
    %3783 = vmatpush2.msra.mxu0 0.0
    %3784 = vmatprep.subr.mxu0 0.0
    %3785 = vmatpush2.msra.mxu0 0.0
    %3786 = vmatprep.subr.mxu0 0.0
    %3787 = vmatpush2.msra.mxu0 0.0
    %3788 = vmatprep.subr.mxu0 0.0
    %3789 = vmatpush2.msra.mxu0 0.0
    %3790 = vmatprep.subr.mxu0 0.0
    %3791 = vmatpush2.msra.mxu0 0.0
    %3792 = vmatprep.subr.mxu0 0.0
    %3793 = vmatpush2.msra.mxu0 0.0
    %3794 = vmatprep.subr.mxu0 0.0
    %3795 = vmatpush2.msra.mxu0 0.0
    %3796 = vmatprep.subr.mxu0 0.0
    %3797 = vmatpush2.msra.mxu0 0.0
    %3798 = vmatprep.subr.mxu0 0.0
    %3799 = vmatpush2.msra.mxu0 0.0
    %3800 = vmatprep.subr.mxu0 0.0
    %3801 = vmatpush2.msra.mxu0 0.0
    %3802 = vmatprep.subr.mxu0 0.0
    %3803 = vmatpush2.msra.mxu0 0.0
    %3804 = vmatprep.subr.mxu0 0.0
    %3805 = vmatpush2.msra.mxu0 0.0
    %3806 = vmatprep.subr.mxu0 0.0
    %3807 = vmatpush2.msra.mxu0 0.0
    %3808 = vmatprep.mubr.f32.mxu0 0.0
    %3809 = vmatmul.mubr.f32.gmra.mxu0 %v3742
    %v3810 = vpop.f32.mrf.mxu0
    %v3811 = vadd.f32 0.0, %v3810
    %v3812 = vpop.f32.mrf.mxu0
    %3813 = vdwg.mxu0
    %v3814 = vadd.f32 %v3738, %v3811
    %v3815 = vld [vmem:[%s2590] sm:$0xff]
    %v3816 = vld [vmem:[%s2590 + $0x8] sm:$0xff]
    %v3817 = vrot.slane %v1657, 7
    %v3818 = vsel %vm47, %v3817, 0
    %3820 = vmatprep.subr.mxu0 0.0
    %3821 = vmatpush1.msra.mxu0 0.0
    %3822 = vmatprep.subr.mxu0 0.0
    %3823 = vmatpush1.msra.mxu0 0.0
    %3824 = vmatprep.subr.mxu0 0.0
    %3825 = vmatpush1.msra.mxu0 0.0
    %3826 = vmatprep.subr.mxu0 0.0
    %3827 = vmatpush1.msra.mxu0 0.0
    %3828 = vmatprep.subr.mxu0 0.0
    %3829 = vmatpush1.msra.mxu0 0.0
    %3830 = vmatprep.subr.mxu0 0.0
    %3831 = vmatpush1.msra.mxu0 0.0
    %3832 = vmatprep.subr.mxu0 0.0
    %3833 = vmatpush1.msra.mxu0 0.0
    %3834 = vmatprep.subr.mxu0 0.0
    %3835 = vmatpush1.msra.mxu0 0.0
    %3836 = vmatprep.subr.mxu0 0.0
    %3837 = vmatpush1.msra.mxu0 0.0
    %3838 = vmatprep.subr.mxu0 0.0
    %3839 = vmatpush1.msra.mxu0 0.0
    %3840 = vmatprep.subr.mxu0 0.0
    %3841 = vmatpush1.msra.mxu0 0.0
    %3842 = vmatprep.subr.mxu0 0.0
    %3843 = vmatpush1.msra.mxu0 0.0
    %3844 = vmatprep.subr.mxu0 0.0
    %3845 = vmatpush1.msra.mxu0 0.0
    %3846 = vmatprep.subr.mxu0 0.0
    %3847 = vmatpush1.msra.mxu0 0.0
    %3848 = vmatprep.subr.mxu0 0.0
    %3849 = vmatpush1.msra.mxu0 %v3816
    %3850 = vmatprep.subr.mxu0 0.0
    %3851 = vmatpush1.msra.mxu0 %v3815
    %3852 = vmatprep.subr.mxu0 0.0
    %3853 = vmatpush2.msra.mxu0 0.0
    %3854 = vmatprep.subr.mxu0 0.0
    %3855 = vmatpush2.msra.mxu0 0.0
    %3856 = vmatprep.subr.mxu0 0.0
    %3857 = vmatpush2.msra.mxu0 0.0
    %3858 = vmatprep.subr.mxu0 0.0
    %3859 = vmatpush2.msra.mxu0 0.0
    %3860 = vmatprep.subr.mxu0 0.0
    %3861 = vmatpush2.msra.mxu0 0.0
    %3862 = vmatprep.subr.mxu0 0.0
    %3863 = vmatpush2.msra.mxu0 0.0
    %3864 = vmatprep.subr.mxu0 0.0
    %3865 = vmatpush2.msra.mxu0 0.0
    %3866 = vmatprep.subr.mxu0 0.0
    %3867 = vmatpush2.msra.mxu0 0.0
    %3868 = vmatprep.subr.mxu0 0.0
    %3869 = vmatpush2.msra.mxu0 0.0
    %3870 = vmatprep.subr.mxu0 0.0
    %3871 = vmatpush2.msra.mxu0 0.0
    %3872 = vmatprep.subr.mxu0 0.0
    %3873 = vmatpush2.msra.mxu0 0.0
    %3874 = vmatprep.subr.mxu0 0.0
    %3875 = vmatpush2.msra.mxu0 0.0
    %3876 = vmatprep.subr.mxu0 0.0
    %3877 = vmatpush2.msra.mxu0 0.0
    %3878 = vmatprep.subr.mxu0 0.0
    %3879 = vmatpush2.msra.mxu0 0.0
    %3880 = vmatprep.subr.mxu0 0.0
    %3881 = vmatpush2.msra.mxu0 0.0
    %3882 = vmatprep.subr.mxu0 0.0
    %3883 = vmatpush2.msra.mxu0 0.0
    %3884 = vmatprep.mubr.f32.mxu0 0.0
    %3885 = vmatmul.mubr.f32.gmra.mxu0 %v3818
    %v3886 = vpop.f32.mrf.mxu0
    %v3887 = vadd.f32 0.0, %v3886
    %v3888 = vpop.f32.mrf.mxu0
    %3889 = vdwg.mxu0
    %v3890 = vadd.f32 %v3814, %v3887
    %v3891 = vld [vmem:[%s2667] sm:$0xff]
    %v3892 = vld [vmem:[%s2667 + $0x8] sm:$0xff]
    %v3894 = vsel %vm47, %v1658, 0
    %3896 = vmatprep.subr.mxu0 0.0
    %3897 = vmatpush1.msra.mxu0 0.0
    %3898 = vmatprep.subr.mxu0 0.0
    %3899 = vmatpush1.msra.mxu0 0.0
    %3900 = vmatprep.subr.mxu0 0.0
    %3901 = vmatpush1.msra.mxu0 0.0
    %3902 = vmatprep.subr.mxu0 0.0
    %3903 = vmatpush1.msra.mxu0 0.0
    %3904 = vmatprep.subr.mxu0 0.0
    %3905 = vmatpush1.msra.mxu0 0.0
    %3906 = vmatprep.subr.mxu0 0.0
    %3907 = vmatpush1.msra.mxu0 0.0
    %3908 = vmatprep.subr.mxu0 0.0
    %3909 = vmatpush1.msra.mxu0 0.0
    %3910 = vmatprep.subr.mxu0 0.0
    %3911 = vmatpush1.msra.mxu0 0.0
    %3912 = vmatprep.subr.mxu0 0.0
    %3913 = vmatpush1.msra.mxu0 0.0
    %3914 = vmatprep.subr.mxu0 0.0
    %3915 = vmatpush1.msra.mxu0 0.0
    %3916 = vmatprep.subr.mxu0 0.0
    %3917 = vmatpush1.msra.mxu0 0.0
    %3918 = vmatprep.subr.mxu0 0.0
    %3919 = vmatpush1.msra.mxu0 0.0
    %3920 = vmatprep.subr.mxu0 0.0
    %3921 = vmatpush1.msra.mxu0 0.0
    %3922 = vmatprep.subr.mxu0 0.0
    %3923 = vmatpush1.msra.mxu0 0.0
    %3924 = vmatprep.subr.mxu0 0.0
    %3925 = vmatpush1.msra.mxu0 %v3892
    %3926 = vmatprep.subr.mxu0 0.0
    %3927 = vmatpush1.msra.mxu0 %v3891
    %3928 = vmatprep.subr.mxu0 0.0
    %3929 = vmatpush2.msra.mxu0 0.0
    %3930 = vmatprep.subr.mxu0 0.0
    %3931 = vmatpush2.msra.mxu0 0.0
    %3932 = vmatprep.subr.mxu0 0.0
    %3933 = vmatpush2.msra.mxu0 0.0
    %3934 = vmatprep.subr.mxu0 0.0
    %3935 = vmatpush2.msra.mxu0 0.0
    %3936 = vmatprep.subr.mxu0 0.0
    %3937 = vmatpush2.msra.mxu0 0.0
    %3938 = vmatprep.subr.mxu0 0.0
    %3939 = vmatpush2.msra.mxu0 0.0
    %3940 = vmatprep.subr.mxu0 0.0
    %3941 = vmatpush2.msra.mxu0 0.0
    %3942 = vmatprep.subr.mxu0 0.0
    %3943 = vmatpush2.msra.mxu0 0.0
    %3944 = vmatprep.subr.mxu0 0.0
    %3945 = vmatpush2.msra.mxu0 0.0
    %3946 = vmatprep.subr.mxu0 0.0
    %3947 = vmatpush2.msra.mxu0 0.0
    %3948 = vmatprep.subr.mxu0 0.0
    %3949 = vmatpush2.msra.mxu0 0.0
    %3950 = vmatprep.subr.mxu0 0.0
    %3951 = vmatpush2.msra.mxu0 0.0
    %3952 = vmatprep.subr.mxu0 0.0
    %3953 = vmatpush2.msra.mxu0 0.0
    %3954 = vmatprep.subr.mxu0 0.0
    %3955 = vmatpush2.msra.mxu0 0.0
    %3956 = vmatprep.subr.mxu0 0.0
    %3957 = vmatpush2.msra.mxu0 0.0
    %3958 = vmatprep.subr.mxu0 0.0
    %3959 = vmatpush2.msra.mxu0 0.0
    %3960 = vmatprep.mubr.f32.mxu0 0.0
    %3961 = vmatmul.mubr.f32.gmra.mxu0 %v3894
    %v3962 = vpop.f32.mrf.mxu0
    %v3963 = vadd.f32 0.0, %v3962
    %v3964 = vpop.f32.mrf.mxu0
    %3965 = vdwg.mxu0
    %v3966 = vadd.f32 %v3890, %v3963
    %v3967 = vld [vmem:[%s2744] sm:$0xff]
    %v3968 = vld [vmem:[%s2744 + $0x8] sm:$0xff]
    %v3969 = vrot.slane %v1658, 1
    %v3970 = vsel %vm47, %v3969, 0
    %3972 = vmatprep.subr.mxu0 0.0
    %3973 = vmatpush1.msra.mxu0 0.0
    %3974 = vmatprep.subr.mxu0 0.0
    %3975 = vmatpush1.msra.mxu0 0.0
    %3976 = vmatprep.subr.mxu0 0.0
    %3977 = vmatpush1.msra.mxu0 0.0
    %3978 = vmatprep.subr.mxu0 0.0
    %3979 = vmatpush1.msra.mxu0 0.0
    %3980 = vmatprep.subr.mxu0 0.0
    %3981 = vmatpush1.msra.mxu0 0.0
    %3982 = vmatprep.subr.mxu0 0.0
    %3983 = vmatpush1.msra.mxu0 0.0
    %3984 = vmatprep.subr.mxu0 0.0
    %3985 = vmatpush1.msra.mxu0 0.0
    %3986 = vmatprep.subr.mxu0 0.0
    %3987 = vmatpush1.msra.mxu0 0.0
    %3988 = vmatprep.subr.mxu0 0.0
    %3989 = vmatpush1.msra.mxu0 0.0
    %3990 = vmatprep.subr.mxu0 0.0
    %3991 = vmatpush1.msra.mxu0 0.0
    %3992 = vmatprep.subr.mxu0 0.0
    %3993 = vmatpush1.msra.mxu0 0.0
    %3994 = vmatprep.subr.mxu0 0.0
    %3995 = vmatpush1.msra.mxu0 0.0
    %3996 = vmatprep.subr.mxu0 0.0
    %3997 = vmatpush1.msra.mxu0 0.0
    %3998 = vmatprep.subr.mxu0 0.0
    %3999 = vmatpush1.msra.mxu0 0.0
    %4000 = vmatprep.subr.mxu0 0.0
    %4001 = vmatpush1.msra.mxu0 %v3968
    %4002 = vmatprep.subr.mxu0 0.0
    %4003 = vmatpush1.msra.mxu0 %v3967
    %4004 = vmatprep.subr.mxu0 0.0
    %4005 = vmatpush2.msra.mxu0 0.0
    %4006 = vmatprep.subr.mxu0 0.0
    %4007 = vmatpush2.msra.mxu0 0.0
    %4008 = vmatprep.subr.mxu0 0.0
    %4009 = vmatpush2.msra.mxu0 0.0
    %4010 = vmatprep.subr.mxu0 0.0
    %4011 = vmatpush2.msra.mxu0 0.0
    %4012 = vmatprep.subr.mxu0 0.0
    %4013 = vmatpush2.msra.mxu0 0.0
    %4014 = vmatprep.subr.mxu0 0.0
    %4015 = vmatpush2.msra.mxu0 0.0
    %4016 = vmatprep.subr.mxu0 0.0
    %4017 = vmatpush2.msra.mxu0 0.0
    %4018 = vmatprep.subr.mxu0 0.0
    %4019 = vmatpush2.msra.mxu0 0.0
    %4020 = vmatprep.subr.mxu0 0.0
    %4021 = vmatpush2.msra.mxu0 0.0
    %4022 = vmatprep.subr.mxu0 0.0
    %4023 = vmatpush2.msra.mxu0 0.0
    %4024 = vmatprep.subr.mxu0 0.0
    %4025 = vmatpush2.msra.mxu0 0.0
    %4026 = vmatprep.subr.mxu0 0.0
    %4027 = vmatpush2.msra.mxu0 0.0
    %4028 = vmatprep.subr.mxu0 0.0
    %4029 = vmatpush2.msra.mxu0 0.0
    %4030 = vmatprep.subr.mxu0 0.0
    %4031 = vmatpush2.msra.mxu0 0.0
    %4032 = vmatprep.subr.mxu0 0.0
    %4033 = vmatpush2.msra.mxu0 0.0
    %4034 = vmatprep.subr.mxu0 0.0
    %4035 = vmatpush2.msra.mxu0 0.0
    %4036 = vmatprep.mubr.f32.mxu0 0.0
    %4037 = vmatmul.mubr.f32.gmra.mxu0 %v3970
    %v4038 = vpop.f32.mrf.mxu0
    %v4039 = vadd.f32 0.0, %v4038
    %v4040 = vpop.f32.mrf.mxu0
    %4041 = vdwg.mxu0
    %v4042 = vadd.f32 %v3966, %v4039
    %v4043 = vld [vmem:[%s2821] sm:$0xff]
    %v4044 = vld [vmem:[%s2821 + $0x8] sm:$0xff]
    %v4045 = vrot.slane %v1658, 2
    %v4046 = vsel %vm47, %v4045, 0
    %4048 = vmatprep.subr.mxu0 0.0
    %4049 = vmatpush1.msra.mxu0 0.0
    %4050 = vmatprep.subr.mxu0 0.0
    %4051 = vmatpush1.msra.mxu0 0.0
    %4052 = vmatprep.subr.mxu0 0.0
    %4053 = vmatpush1.msra.mxu0 0.0
    %4054 = vmatprep.subr.mxu0 0.0
    %4055 = vmatpush1.msra.mxu0 0.0
    %4056 = vmatprep.subr.mxu0 0.0
    %4057 = vmatpush1.msra.mxu0 0.0
    %4058 = vmatprep.subr.mxu0 0.0
    %4059 = vmatpush1.msra.mxu0 0.0
    %4060 = vmatprep.subr.mxu0 0.0
    %4061 = vmatpush1.msra.mxu0 0.0
    %4062 = vmatprep.subr.mxu0 0.0
    %4063 = vmatpush1.msra.mxu0 0.0
    %4064 = vmatprep.subr.mxu0 0.0
    %4065 = vmatpush1.msra.mxu0 0.0
    %4066 = vmatprep.subr.mxu0 0.0
    %4067 = vmatpush1.msra.mxu0 0.0
    %4068 = vmatprep.subr.mxu0 0.0
    %4069 = vmatpush1.msra.mxu0 0.0
    %4070 = vmatprep.subr.mxu0 0.0
    %4071 = vmatpush1.msra.mxu0 0.0
    %4072 = vmatprep.subr.mxu0 0.0
    %4073 = vmatpush1.msra.mxu0 0.0
    %4074 = vmatprep.subr.mxu0 0.0
    %4075 = vmatpush1.msra.mxu0 0.0
    %4076 = vmatprep.subr.mxu0 0.0
    %4077 = vmatpush1.msra.mxu0 %v4044
    %4078 = vmatprep.subr.mxu0 0.0
    %4079 = vmatpush1.msra.mxu0 %v4043
    %4080 = vmatprep.subr.mxu0 0.0
    %4081 = vmatpush2.msra.mxu0 0.0
    %4082 = vmatprep.subr.mxu0 0.0
    %4083 = vmatpush2.msra.mxu0 0.0
    %4084 = vmatprep.subr.mxu0 0.0
    %4085 = vmatpush2.msra.mxu0 0.0
    %4086 = vmatprep.subr.mxu0 0.0
    %4087 = vmatpush2.msra.mxu0 0.0
    %4088 = vmatprep.subr.mxu0 0.0
    %4089 = vmatpush2.msra.mxu0 0.0
    %4090 = vmatprep.subr.mxu0 0.0
    %4091 = vmatpush2.msra.mxu0 0.0
    %4092 = vmatprep.subr.mxu0 0.0
    %4093 = vmatpush2.msra.mxu0 0.0
    %4094 = vmatprep.subr.mxu0 0.0
    %4095 = vmatpush2.msra.mxu0 0.0
    %4096 = vmatprep.subr.mxu0 0.0
    %4097 = vmatpush2.msra.mxu0 0.0
    %4098 = vmatprep.subr.mxu0 0.0
    %4099 = vmatpush2.msra.mxu0 0.0
    %4100 = vmatprep.subr.mxu0 0.0
    %4101 = vmatpush2.msra.mxu0 0.0
    %4102 = vmatprep.subr.mxu0 0.0
    %4103 = vmatpush2.msra.mxu0 0.0
    %4104 = vmatprep.subr.mxu0 0.0
    %4105 = vmatpush2.msra.mxu0 0.0
    %4106 = vmatprep.subr.mxu0 0.0
    %4107 = vmatpush2.msra.mxu0 0.0
    %4108 = vmatprep.subr.mxu0 0.0
    %4109 = vmatpush2.msra.mxu0 0.0
    %4110 = vmatprep.subr.mxu0 0.0
    %4111 = vmatpush2.msra.mxu0 0.0
    %4112 = vmatprep.mubr.f32.mxu0 0.0
    %4113 = vmatmul.mubr.f32.gmra.mxu0 %v4046
    %v4114 = vpop.f32.mrf.mxu0
    %v4115 = vadd.f32 0.0, %v4114
    %v4116 = vpop.f32.mrf.mxu0
    %4117 = vdwg.mxu0
    %v4118 = vadd.f32 %v4042, %v4115
    %4119 = vst [vmem:[#allocation4 + $0x1] sm:$0x1] %v4118
    %s4120 = scalar_lea.vmem %s6, 32
    %vm4121 = vcmask 130053
    %4122 = vst.msk [vmem:[%s4120 - $0x5] sm:$0xe0] %vm4121, %v1658
    %4123 = vst.msk [vmem:[%s4120 + $0x3] sm:$0xff] %vm47, %v1659
    %vm4124 = vcmask 126976
    %4125 = vst.msk [vmem:[%s4120 + $0xb] sm:$0x1f] %vm4124, %v1660
    %v4126 = vld [vmem:[%s5] sm:$0xff]
    %v4127 = vld [vmem:[%s5 + $0x8] sm:$0xff]
    %v4128 = vld [vmem:[%s1670] sm:$0xff]
    %v4129 = vld [vmem:[%s1670 + $0x8] sm:$0xff]
    %v4130 = vrot.slane %v1658, 6
    %v4131 = vsel %vm47, %v4130, 0
    %4133 = vmatprep.subr.mxu0 0.0
    %4134 = vmatpush1.msra.mxu0 0.0
    %4135 = vmatprep.subr.mxu0 0.0
    %4136 = vmatpush1.msra.mxu0 0.0
    %4137 = vmatprep.subr.mxu0 0.0
    %4138 = vmatpush1.msra.mxu0 0.0
    %4139 = vmatprep.subr.mxu0 0.0
    %4140 = vmatpush1.msra.mxu0 0.0
    %4141 = vmatprep.subr.mxu0 0.0
    %4142 = vmatpush1.msra.mxu0 0.0
    %4143 = vmatprep.subr.mxu0 0.0
    %4144 = vmatpush1.msra.mxu0 0.0
    %4145 = vmatprep.subr.mxu0 0.0
    %4146 = vmatpush1.msra.mxu0 0.0
    %4147 = vmatprep.subr.mxu0 0.0
    %4148 = vmatpush1.msra.mxu0 0.0
    %4149 = vmatprep.subr.mxu0 0.0
    %4150 = vmatpush1.msra.mxu0 0.0
    %4151 = vmatprep.subr.mxu0 0.0
    %4152 = vmatpush1.msra.mxu0 0.0
    %4153 = vmatprep.subr.mxu0 0.0
    %4154 = vmatpush1.msra.mxu0 0.0
    %4155 = vmatprep.subr.mxu0 0.0
    %4156 = vmatpush1.msra.mxu0 0.0
    %4157 = vmatprep.subr.mxu0 0.0
    %4158 = vmatpush1.msra.mxu0 0.0
    %4159 = vmatprep.subr.mxu0 0.0
    %4160 = vmatpush1.msra.mxu0 0.0
    %4161 = vmatprep.subr.mxu0 0.0
    %4162 = vmatpush1.msra.mxu0 %v4129
    %4163 = vmatprep.subr.mxu0 0.0
    %4164 = vmatpush1.msra.mxu0 %v4128
    %4165 = vmatprep.subr.mxu0 0.0
    %4166 = vmatpush2.msra.mxu0 0.0
    %4167 = vmatprep.subr.mxu0 0.0
    %4168 = vmatpush2.msra.mxu0 0.0
    %4169 = vmatprep.subr.mxu0 0.0
    %4170 = vmatpush2.msra.mxu0 0.0
    %4171 = vmatprep.subr.mxu0 0.0
    %4172 = vmatpush2.msra.mxu0 0.0
    %4173 = vmatprep.subr.mxu0 0.0
    %4174 = vmatpush2.msra.mxu0 0.0
    %4175 = vmatprep.subr.mxu0 0.0
    %4176 = vmatpush2.msra.mxu0 0.0
    %4177 = vmatprep.subr.mxu0 0.0
    %4178 = vmatpush2.msra.mxu0 0.0
    %4179 = vmatprep.subr.mxu0 0.0
    %4180 = vmatpush2.msra.mxu0 0.0
    %4181 = vmatprep.subr.mxu0 0.0
    %4182 = vmatpush2.msra.mxu0 0.0
    %4183 = vmatprep.subr.mxu0 0.0
    %4184 = vmatpush2.msra.mxu0 0.0
    %4185 = vmatprep.subr.mxu0 0.0
    %4186 = vmatpush2.msra.mxu0 0.0
    %4187 = vmatprep.subr.mxu0 0.0
    %4188 = vmatpush2.msra.mxu0 0.0
    %4189 = vmatprep.subr.mxu0 0.0
    %4190 = vmatpush2.msra.mxu0 0.0
    %4191 = vmatprep.subr.mxu0 0.0
    %4192 = vmatpush2.msra.mxu0 0.0
    %4193 = vmatprep.subr.mxu0 0.0
    %4194 = vmatpush2.msra.mxu0 0.0
    %4195 = vmatprep.subr.mxu0 0.0
    %4196 = vmatpush2.msra.mxu0 0.0
    %4197 = vmatprep.mubr.f32.mxu0 0.0
    %4198 = vmatmul.mubr.f32.gmra.mxu0 %v4131
    %v4199 = vpop.f32.mrf.mxu0
    %v4200 = vadd.f32 0.0, %v4199
    %v4201 = vpop.f32.mrf.mxu0
    %4202 = vdwg.mxu0
    %v4203 = vrot.slane %v1658, 5
    %v4204 = vsel %vm47, %v4203, 0
    %4206 = vmatprep.subr.mxu0 0.0
    %4207 = vmatpush1.msra.mxu0 0.0
    %4208 = vmatprep.subr.mxu0 0.0
    %4209 = vmatpush1.msra.mxu0 0.0
    %4210 = vmatprep.subr.mxu0 0.0
    %4211 = vmatpush1.msra.mxu0 0.0
    %4212 = vmatprep.subr.mxu0 0.0
    %4213 = vmatpush1.msra.mxu0 0.0
    %4214 = vmatprep.subr.mxu0 0.0
    %4215 = vmatpush1.msra.mxu0 0.0
    %4216 = vmatprep.subr.mxu0 0.0
    %4217 = vmatpush1.msra.mxu0 0.0
    %4218 = vmatprep.subr.mxu0 0.0
    %4219 = vmatpush1.msra.mxu0 0.0
    %4220 = vmatprep.subr.mxu0 0.0
    %4221 = vmatpush1.msra.mxu0 0.0
    %4222 = vmatprep.subr.mxu0 0.0
    %4223 = vmatpush1.msra.mxu0 0.0
    %4224 = vmatprep.subr.mxu0 0.0
    %4225 = vmatpush1.msra.mxu0 0.0
    %4226 = vmatprep.subr.mxu0 0.0
    %4227 = vmatpush1.msra.mxu0 0.0
    %4228 = vmatprep.subr.mxu0 0.0
    %4229 = vmatpush1.msra.mxu0 0.0
    %4230 = vmatprep.subr.mxu0 0.0
    %4231 = vmatpush1.msra.mxu0 0.0
    %4232 = vmatprep.subr.mxu0 0.0
    %4233 = vmatpush1.msra.mxu0 0.0
    %4234 = vmatprep.subr.mxu0 0.0
    %4235 = vmatpush1.msra.mxu0 %v4127
    %4236 = vmatprep.subr.mxu0 0.0
    %4237 = vmatpush1.msra.mxu0 %v4126
    %4238 = vmatprep.subr.mxu0 0.0
    %4239 = vmatpush2.msra.mxu0 0.0
    %4240 = vmatprep.subr.mxu0 0.0
    %4241 = vmatpush2.msra.mxu0 0.0
    %4242 = vmatprep.subr.mxu0 0.0
    %4243 = vmatpush2.msra.mxu0 0.0
    %4244 = vmatprep.subr.mxu0 0.0
    %4245 = vmatpush2.msra.mxu0 0.0
    %4246 = vmatprep.subr.mxu0 0.0
    %4247 = vmatpush2.msra.mxu0 0.0
    %4248 = vmatprep.subr.mxu0 0.0
    %4249 = vmatpush2.msra.mxu0 0.0
    %4250 = vmatprep.subr.mxu0 0.0
    %4251 = vmatpush2.msra.mxu0 0.0
    %4252 = vmatprep.subr.mxu0 0.0
    %4253 = vmatpush2.msra.mxu0 0.0
    %4254 = vmatprep.subr.mxu0 0.0
    %4255 = vmatpush2.msra.mxu0 0.0
    %4256 = vmatprep.subr.mxu0 0.0
    %4257 = vmatpush2.msra.mxu0 0.0
    %4258 = vmatprep.subr.mxu0 0.0
    %4259 = vmatpush2.msra.mxu0 0.0
    %4260 = vmatprep.subr.mxu0 0.0
    %4261 = vmatpush2.msra.mxu0 0.0
    %4262 = vmatprep.subr.mxu0 0.0
    %4263 = vmatpush2.msra.mxu0 0.0
    %4264 = vmatprep.subr.mxu0 0.0
    %4265 = vmatpush2.msra.mxu0 0.0
    %4266 = vmatprep.subr.mxu0 0.0
    %4267 = vmatpush2.msra.mxu0 0.0
    %4268 = vmatprep.subr.mxu0 0.0
    %4269 = vmatpush2.msra.mxu0 0.0
    %4270 = vmatprep.mubr.f32.mxu0 0.0
    %4271 = vmatmul.mubr.f32.gmra.mxu0 %v4204
    %v4272 = vpop.f32.mrf.mxu0
    %v4273 = vadd.f32 %v4200, %v4272
    %v4274 = vpop.f32.mrf.mxu0
    %4275 = vdwg.mxu0
    %v4276 = vld [vmem:[%s1820] sm:$0xff]
    %v4277 = vld [vmem:[%s1820 + $0x8] sm:$0xff]
    %v4278 = vrot.slane %v1658, 7
    %v4279 = vsel %vm47, %v4278, 0
    %4281 = vmatprep.subr.mxu0 0.0
    %4282 = vmatpush1.msra.mxu0 0.0
    %4283 = vmatprep.subr.mxu0 0.0
    %4284 = vmatpush1.msra.mxu0 0.0
    %4285 = vmatprep.subr.mxu0 0.0
    %4286 = vmatpush1.msra.mxu0 0.0
    %4287 = vmatprep.subr.mxu0 0.0
    %4288 = vmatpush1.msra.mxu0 0.0
    %4289 = vmatprep.subr.mxu0 0.0
    %4290 = vmatpush1.msra.mxu0 0.0
    %4291 = vmatprep.subr.mxu0 0.0
    %4292 = vmatpush1.msra.mxu0 0.0
    %4293 = vmatprep.subr.mxu0 0.0
    %4294 = vmatpush1.msra.mxu0 0.0
    %4295 = vmatprep.subr.mxu0 0.0
    %4296 = vmatpush1.msra.mxu0 0.0
    %4297 = vmatprep.subr.mxu0 0.0
    %4298 = vmatpush1.msra.mxu0 0.0
    %4299 = vmatprep.subr.mxu0 0.0
    %4300 = vmatpush1.msra.mxu0 0.0
    %4301 = vmatprep.subr.mxu0 0.0
    %4302 = vmatpush1.msra.mxu0 0.0
    %4303 = vmatprep.subr.mxu0 0.0
    %4304 = vmatpush1.msra.mxu0 0.0
    %4305 = vmatprep.subr.mxu0 0.0
    %4306 = vmatpush1.msra.mxu0 0.0
    %4307 = vmatprep.subr.mxu0 0.0
    %4308 = vmatpush1.msra.mxu0 0.0
    %4309 = vmatprep.subr.mxu0 0.0
    %4310 = vmatpush1.msra.mxu0 %v4277
    %4311 = vmatprep.subr.mxu0 0.0
    %4312 = vmatpush1.msra.mxu0 %v4276
    %4313 = vmatprep.subr.mxu0 0.0
    %4314 = vmatpush2.msra.mxu0 0.0
    %4315 = vmatprep.subr.mxu0 0.0
    %4316 = vmatpush2.msra.mxu0 0.0
    %4317 = vmatprep.subr.mxu0 0.0
    %4318 = vmatpush2.msra.mxu0 0.0
    %4319 = vmatprep.subr.mxu0 0.0
    %4320 = vmatpush2.msra.mxu0 0.0
    %4321 = vmatprep.subr.mxu0 0.0
    %4322 = vmatpush2.msra.mxu0 0.0
    %4323 = vmatprep.subr.mxu0 0.0
    %4324 = vmatpush2.msra.mxu0 0.0
    %4325 = vmatprep.subr.mxu0 0.0
    %4326 = vmatpush2.msra.mxu0 0.0
    %4327 = vmatprep.subr.mxu0 0.0
    %4328 = vmatpush2.msra.mxu0 0.0
    %4329 = vmatprep.subr.mxu0 0.0
    %4330 = vmatpush2.msra.mxu0 0.0
    %4331 = vmatprep.subr.mxu0 0.0
    %4332 = vmatpush2.msra.mxu0 0.0
    %4333 = vmatprep.subr.mxu0 0.0
    %4334 = vmatpush2.msra.mxu0 0.0
    %4335 = vmatprep.subr.mxu0 0.0
    %4336 = vmatpush2.msra.mxu0 0.0
    %4337 = vmatprep.subr.mxu0 0.0
    %4338 = vmatpush2.msra.mxu0 0.0
    %4339 = vmatprep.subr.mxu0 0.0
    %4340 = vmatpush2.msra.mxu0 0.0
    %4341 = vmatprep.subr.mxu0 0.0
    %4342 = vmatpush2.msra.mxu0 0.0
    %4343 = vmatprep.subr.mxu0 0.0
    %4344 = vmatpush2.msra.mxu0 0.0
    %4345 = vmatprep.mubr.f32.mxu0 0.0
    %4346 = vmatmul.mubr.f32.gmra.mxu0 %v4279
    %v4347 = vpop.f32.mrf.mxu0
    %v4348 = vadd.f32 0.0, %v4347
    %v4349 = vpop.f32.mrf.mxu0
    %4350 = vdwg.mxu0
    %v4351 = vadd.f32 %v4273, %v4348
    %v4352 = vld [vmem:[%s1897] sm:$0xff]
    %v4353 = vld [vmem:[%s1897 + $0x8] sm:$0xff]
    %v4355 = vsel %vm47, %v1659, 0
    %4357 = vmatprep.subr.mxu0 0.0
    %4358 = vmatpush1.msra.mxu0 0.0
    %4359 = vmatprep.subr.mxu0 0.0
    %4360 = vmatpush1.msra.mxu0 0.0
    %4361 = vmatprep.subr.mxu0 0.0
    %4362 = vmatpush1.msra.mxu0 0.0
    %4363 = vmatprep.subr.mxu0 0.0
    %4364 = vmatpush1.msra.mxu0 0.0
    %4365 = vmatprep.subr.mxu0 0.0
    %4366 = vmatpush1.msra.mxu0 0.0
    %4367 = vmatprep.subr.mxu0 0.0
    %4368 = vmatpush1.msra.mxu0 0.0
    %4369 = vmatprep.subr.mxu0 0.0
    %4370 = vmatpush1.msra.mxu0 0.0
    %4371 = vmatprep.subr.mxu0 0.0
    %4372 = vmatpush1.msra.mxu0 0.0
    %4373 = vmatprep.subr.mxu0 0.0
    %4374 = vmatpush1.msra.mxu0 0.0
    %4375 = vmatprep.subr.mxu0 0.0
    %4376 = vmatpush1.msra.mxu0 0.0
    %4377 = vmatprep.subr.mxu0 0.0
    %4378 = vmatpush1.msra.mxu0 0.0
    %4379 = vmatprep.subr.mxu0 0.0
    %4380 = vmatpush1.msra.mxu0 0.0
    %4381 = vmatprep.subr.mxu0 0.0
    %4382 = vmatpush1.msra.mxu0 0.0
    %4383 = vmatprep.subr.mxu0 0.0
    %4384 = vmatpush1.msra.mxu0 0.0
    %4385 = vmatprep.subr.mxu0 0.0
    %4386 = vmatpush1.msra.mxu0 %v4353
    %4387 = vmatprep.subr.mxu0 0.0
    %4388 = vmatpush1.msra.mxu0 %v4352
    %4389 = vmatprep.subr.mxu0 0.0
    %4390 = vmatpush2.msra.mxu0 0.0
    %4391 = vmatprep.subr.mxu0 0.0
    %4392 = vmatpush2.msra.mxu0 0.0
    %4393 = vmatprep.subr.mxu0 0.0
    %4394 = vmatpush2.msra.mxu0 0.0
    %4395 = vmatprep.subr.mxu0 0.0
    %4396 = vmatpush2.msra.mxu0 0.0
    %4397 = vmatprep.subr.mxu0 0.0
    %4398 = vmatpush2.msra.mxu0 0.0
    %4399 = vmatprep.subr.mxu0 0.0
    %4400 = vmatpush2.msra.mxu0 0.0
    %4401 = vmatprep.subr.mxu0 0.0
    %4402 = vmatpush2.msra.mxu0 0.0
    %4403 = vmatprep.subr.mxu0 0.0
    %4404 = vmatpush2.msra.mxu0 0.0
    %4405 = vmatprep.subr.mxu0 0.0
    %4406 = vmatpush2.msra.mxu0 0.0
    %4407 = vmatprep.subr.mxu0 0.0
    %4408 = vmatpush2.msra.mxu0 0.0
    %4409 = vmatprep.subr.mxu0 0.0
    %4410 = vmatpush2.msra.mxu0 0.0
    %4411 = vmatprep.subr.mxu0 0.0
    %4412 = vmatpush2.msra.mxu0 0.0
    %4413 = vmatprep.subr.mxu0 0.0
    %4414 = vmatpush2.msra.mxu0 0.0
    %4415 = vmatprep.subr.mxu0 0.0
    %4416 = vmatpush2.msra.mxu0 0.0
    %4417 = vmatprep.subr.mxu0 0.0
    %4418 = vmatpush2.msra.mxu0 0.0
    %4419 = vmatprep.subr.mxu0 0.0
    %4420 = vmatpush2.msra.mxu0 0.0
    %4421 = vmatprep.mubr.f32.mxu0 0.0
    %4422 = vmatmul.mubr.f32.gmra.mxu0 %v4355
    %v4423 = vpop.f32.mrf.mxu0
    %v4424 = vadd.f32 0.0, %v4423
    %v4425 = vpop.f32.mrf.mxu0
    %4426 = vdwg.mxu0
    %v4427 = vadd.f32 %v4351, %v4424
    %v4428 = vld [vmem:[%s1974] sm:$0xff]
    %v4429 = vld [vmem:[%s1974 + $0x8] sm:$0xff]
    %v4430 = vrot.slane %v1659, 1
    %v4431 = vsel %vm47, %v4430, 0
    %4433 = vmatprep.subr.mxu0 0.0
    %4434 = vmatpush1.msra.mxu0 0.0
    %4435 = vmatprep.subr.mxu0 0.0
    %4436 = vmatpush1.msra.mxu0 0.0
    %4437 = vmatprep.subr.mxu0 0.0
    %4438 = vmatpush1.msra.mxu0 0.0
    %4439 = vmatprep.subr.mxu0 0.0
    %4440 = vmatpush1.msra.mxu0 0.0
    %4441 = vmatprep.subr.mxu0 0.0
    %4442 = vmatpush1.msra.mxu0 0.0
    %4443 = vmatprep.subr.mxu0 0.0
    %4444 = vmatpush1.msra.mxu0 0.0
    %4445 = vmatprep.subr.mxu0 0.0
    %4446 = vmatpush1.msra.mxu0 0.0
    %4447 = vmatprep.subr.mxu0 0.0
    %4448 = vmatpush1.msra.mxu0 0.0
    %4449 = vmatprep.subr.mxu0 0.0
    %4450 = vmatpush1.msra.mxu0 0.0
    %4451 = vmatprep.subr.mxu0 0.0
    %4452 = vmatpush1.msra.mxu0 0.0
    %4453 = vmatprep.subr.mxu0 0.0
    %4454 = vmatpush1.msra.mxu0 0.0
    %4455 = vmatprep.subr.mxu0 0.0
    %4456 = vmatpush1.msra.mxu0 0.0
    %4457 = vmatprep.subr.mxu0 0.0
    %4458 = vmatpush1.msra.mxu0 0.0
    %4459 = vmatprep.subr.mxu0 0.0
    %4460 = vmatpush1.msra.mxu0 0.0
    %4461 = vmatprep.subr.mxu0 0.0
    %4462 = vmatpush1.msra.mxu0 %v4429
    %4463 = vmatprep.subr.mxu0 0.0
    %4464 = vmatpush1.msra.mxu0 %v4428
    %4465 = vmatprep.subr.mxu0 0.0
    %4466 = vmatpush2.msra.mxu0 0.0
    %4467 = vmatprep.subr.mxu0 0.0
    %4468 = vmatpush2.msra.mxu0 0.0
    %4469 = vmatprep.subr.mxu0 0.0
    %4470 = vmatpush2.msra.mxu0 0.0
    %4471 = vmatprep.subr.mxu0 0.0
    %4472 = vmatpush2.msra.mxu0 0.0
    %4473 = vmatprep.subr.mxu0 0.0
    %4474 = vmatpush2.msra.mxu0 0.0
    %4475 = vmatprep.subr.mxu0 0.0
    %4476 = vmatpush2.msra.mxu0 0.0
    %4477 = vmatprep.subr.mxu0 0.0
    %4478 = vmatpush2.msra.mxu0 0.0
    %4479 = vmatprep.subr.mxu0 0.0
    %4480 = vmatpush2.msra.mxu0 0.0
    %4481 = vmatprep.subr.mxu0 0.0
    %4482 = vmatpush2.msra.mxu0 0.0
    %4483 = vmatprep.subr.mxu0 0.0
    %4484 = vmatpush2.msra.mxu0 0.0
    %4485 = vmatprep.subr.mxu0 0.0
    %4486 = vmatpush2.msra.mxu0 0.0
    %4487 = vmatprep.subr.mxu0 0.0
    %4488 = vmatpush2.msra.mxu0 0.0
    %4489 = vmatprep.subr.mxu0 0.0
    %4490 = vmatpush2.msra.mxu0 0.0
    %4491 = vmatprep.subr.mxu0 0.0
    %4492 = vmatpush2.msra.mxu0 0.0
    %4493 = vmatprep.subr.mxu0 0.0
    %4494 = vmatpush2.msra.mxu0 0.0
    %4495 = vmatprep.subr.mxu0 0.0
    %4496 = vmatpush2.msra.mxu0 0.0
    %4497 = vmatprep.mubr.f32.mxu0 0.0
    %4498 = vmatmul.mubr.f32.gmra.mxu0 %v4431
    %v4499 = vpop.f32.mrf.mxu0
    %v4500 = vadd.f32 0.0, %v4499
    %v4501 = vpop.f32.mrf.mxu0
    %4502 = vdwg.mxu0
    %v4503 = vadd.f32 %v4427, %v4500
    %v4504 = vld [vmem:[%s2051] sm:$0xff]
    %v4505 = vld [vmem:[%s2051 + $0x8] sm:$0xff]
    %v4506 = vrot.slane %v1659, 2
    %v4507 = vsel %vm47, %v4506, 0
    %4509 = vmatprep.subr.mxu0 0.0
    %4510 = vmatpush1.msra.mxu0 0.0
    %4511 = vmatprep.subr.mxu0 0.0
    %4512 = vmatpush1.msra.mxu0 0.0
    %4513 = vmatprep.subr.mxu0 0.0
    %4514 = vmatpush1.msra.mxu0 0.0
    %4515 = vmatprep.subr.mxu0 0.0
    %4516 = vmatpush1.msra.mxu0 0.0
    %4517 = vmatprep.subr.mxu0 0.0
    %4518 = vmatpush1.msra.mxu0 0.0
    %4519 = vmatprep.subr.mxu0 0.0
    %4520 = vmatpush1.msra.mxu0 0.0
    %4521 = vmatprep.subr.mxu0 0.0
    %4522 = vmatpush1.msra.mxu0 0.0
    %4523 = vmatprep.subr.mxu0 0.0
    %4524 = vmatpush1.msra.mxu0 0.0
    %4525 = vmatprep.subr.mxu0 0.0
    %4526 = vmatpush1.msra.mxu0 0.0
    %4527 = vmatprep.subr.mxu0 0.0
    %4528 = vmatpush1.msra.mxu0 0.0
    %4529 = vmatprep.subr.mxu0 0.0
    %4530 = vmatpush1.msra.mxu0 0.0
    %4531 = vmatprep.subr.mxu0 0.0
    %4532 = vmatpush1.msra.mxu0 0.0
    %4533 = vmatprep.subr.mxu0 0.0
    %4534 = vmatpush1.msra.mxu0 0.0
    %4535 = vmatprep.subr.mxu0 0.0
    %4536 = vmatpush1.msra.mxu0 0.0
    %4537 = vmatprep.subr.mxu0 0.0
    %4538 = vmatpush1.msra.mxu0 %v4505
    %4539 = vmatprep.subr.mxu0 0.0
    %4540 = vmatpush1.msra.mxu0 %v4504
    %4541 = vmatprep.subr.mxu0 0.0
    %4542 = vmatpush2.msra.mxu0 0.0
    %4543 = vmatprep.subr.mxu0 0.0
    %4544 = vmatpush2.msra.mxu0 0.0
    %4545 = vmatprep.subr.mxu0 0.0
    %4546 = vmatpush2.msra.mxu0 0.0
    %4547 = vmatprep.subr.mxu0 0.0
    %4548 = vmatpush2.msra.mxu0 0.0
    %4549 = vmatprep.subr.mxu0 0.0
    %4550 = vmatpush2.msra.mxu0 0.0
    %4551 = vmatprep.subr.mxu0 0.0
    %4552 = vmatpush2.msra.mxu0 0.0
    %4553 = vmatprep.subr.mxu0 0.0
    %4554 = vmatpush2.msra.mxu0 0.0
    %4555 = vmatprep.subr.mxu0 0.0
    %4556 = vmatpush2.msra.mxu0 0.0
    %4557 = vmatprep.subr.mxu0 0.0
    %4558 = vmatpush2.msra.mxu0 0.0
    %4559 = vmatprep.subr.mxu0 0.0
    %4560 = vmatpush2.msra.mxu0 0.0
    %4561 = vmatprep.subr.mxu0 0.0
    %4562 = vmatpush2.msra.mxu0 0.0
    %4563 = vmatprep.subr.mxu0 0.0
    %4564 = vmatpush2.msra.mxu0 0.0
    %4565 = vmatprep.subr.mxu0 0.0
    %4566 = vmatpush2.msra.mxu0 0.0
    %4567 = vmatprep.subr.mxu0 0.0
    %4568 = vmatpush2.msra.mxu0 0.0
    %4569 = vmatprep.subr.mxu0 0.0
    %4570 = vmatpush2.msra.mxu0 0.0
    %4571 = vmatprep.subr.mxu0 0.0
    %4572 = vmatpush2.msra.mxu0 0.0
    %4573 = vmatprep.mubr.f32.mxu0 0.0
    %4574 = vmatmul.mubr.f32.gmra.mxu0 %v4507
    %v4575 = vpop.f32.mrf.mxu0
    %v4576 = vadd.f32 0.0, %v4575
    %v4577 = vpop.f32.mrf.mxu0
    %4578 = vdwg.mxu0
    %v4579 = vadd.f32 %v4503, %v4576
    %v4580 = vld [vmem:[%s2128] sm:$0xff]
    %v4581 = vld [vmem:[%s2128 + $0x8] sm:$0xff]
    %v4582 = vrot.slane %v1659, 3
    %v4583 = vsel %vm47, %v4582, 0
    %4585 = vmatprep.subr.mxu0 0.0
    %4586 = vmatpush1.msra.mxu0 0.0
    %4587 = vmatprep.subr.mxu0 0.0
    %4588 = vmatpush1.msra.mxu0 0.0
    %4589 = vmatprep.subr.mxu0 0.0
    %4590 = vmatpush1.msra.mxu0 0.0
    %4591 = vmatprep.subr.mxu0 0.0
    %4592 = vmatpush1.msra.mxu0 0.0
    %4593 = vmatprep.subr.mxu0 0.0
    %4594 = vmatpush1.msra.mxu0 0.0
    %4595 = vmatprep.subr.mxu0 0.0
    %4596 = vmatpush1.msra.mxu0 0.0
    %4597 = vmatprep.subr.mxu0 0.0
    %4598 = vmatpush1.msra.mxu0 0.0
    %4599 = vmatprep.subr.mxu0 0.0
    %4600 = vmatpush1.msra.mxu0 0.0
    %4601 = vmatprep.subr.mxu0 0.0
    %4602 = vmatpush1.msra.mxu0 0.0
    %4603 = vmatprep.subr.mxu0 0.0
    %4604 = vmatpush1.msra.mxu0 0.0
    %4605 = vmatprep.subr.mxu0 0.0
    %4606 = vmatpush1.msra.mxu0 0.0
    %4607 = vmatprep.subr.mxu0 0.0
    %4608 = vmatpush1.msra.mxu0 0.0
    %4609 = vmatprep.subr.mxu0 0.0
    %4610 = vmatpush1.msra.mxu0 0.0
    %4611 = vmatprep.subr.mxu0 0.0
    %4612 = vmatpush1.msra.mxu0 0.0
    %4613 = vmatprep.subr.mxu0 0.0
    %4614 = vmatpush1.msra.mxu0 %v4581
    %4615 = vmatprep.subr.mxu0 0.0
    %4616 = vmatpush1.msra.mxu0 %v4580
    %4617 = vmatprep.subr.mxu0 0.0
    %4618 = vmatpush2.msra.mxu0 0.0
    %4619 = vmatprep.subr.mxu0 0.0
    %4620 = vmatpush2.msra.mxu0 0.0
    %4621 = vmatprep.subr.mxu0 0.0
    %4622 = vmatpush2.msra.mxu0 0.0
    %4623 = vmatprep.subr.mxu0 0.0
    %4624 = vmatpush2.msra.mxu0 0.0
    %4625 = vmatprep.subr.mxu0 0.0
    %4626 = vmatpush2.msra.mxu0 0.0
    %4627 = vmatprep.subr.mxu0 0.0
    %4628 = vmatpush2.msra.mxu0 0.0
    %4629 = vmatprep.subr.mxu0 0.0
    %4630 = vmatpush2.msra.mxu0 0.0
    %4631 = vmatprep.subr.mxu0 0.0
    %4632 = vmatpush2.msra.mxu0 0.0
    %4633 = vmatprep.subr.mxu0 0.0
    %4634 = vmatpush2.msra.mxu0 0.0
    %4635 = vmatprep.subr.mxu0 0.0
    %4636 = vmatpush2.msra.mxu0 0.0
    %4637 = vmatprep.subr.mxu0 0.0
    %4638 = vmatpush2.msra.mxu0 0.0
    %4639 = vmatprep.subr.mxu0 0.0
    %4640 = vmatpush2.msra.mxu0 0.0
    %4641 = vmatprep.subr.mxu0 0.0
    %4642 = vmatpush2.msra.mxu0 0.0
    %4643 = vmatprep.subr.mxu0 0.0
    %4644 = vmatpush2.msra.mxu0 0.0
    %4645 = vmatprep.subr.mxu0 0.0
    %4646 = vmatpush2.msra.mxu0 0.0
    %4647 = vmatprep.subr.mxu0 0.0
    %4648 = vmatpush2.msra.mxu0 0.0
    %4649 = vmatprep.mubr.f32.mxu0 0.0
    %4650 = vmatmul.mubr.f32.gmra.mxu0 %v4583
    %v4651 = vpop.f32.mrf.mxu0
    %v4652 = vadd.f32 0.0, %v4651
    %v4653 = vpop.f32.mrf.mxu0
    %4654 = vdwg.mxu0
    %v4655 = vadd.f32 %v4579, %v4652
    %v4656 = vld [vmem:[%s2205] sm:$0xff]
    %v4657 = vld [vmem:[%s2205 + $0x8] sm:$0xff]
    %v4658 = vrot.slane %v1659, 4
    %v4659 = vsel %vm47, %v4658, 0
    %4661 = vmatprep.subr.mxu0 0.0
    %4662 = vmatpush1.msra.mxu0 0.0
    %4663 = vmatprep.subr.mxu0 0.0
    %4664 = vmatpush1.msra.mxu0 0.0
    %4665 = vmatprep.subr.mxu0 0.0
    %4666 = vmatpush1.msra.mxu0 0.0
    %4667 = vmatprep.subr.mxu0 0.0
    %4668 = vmatpush1.msra.mxu0 0.0
    %4669 = vmatprep.subr.mxu0 0.0
    %4670 = vmatpush1.msra.mxu0 0.0
    %4671 = vmatprep.subr.mxu0 0.0
    %4672 = vmatpush1.msra.mxu0 0.0
    %4673 = vmatprep.subr.mxu0 0.0
    %4674 = vmatpush1.msra.mxu0 0.0
    %4675 = vmatprep.subr.mxu0 0.0
    %4676 = vmatpush1.msra.mxu0 0.0
    %4677 = vmatprep.subr.mxu0 0.0
    %4678 = vmatpush1.msra.mxu0 0.0
    %4679 = vmatprep.subr.mxu0 0.0
    %4680 = vmatpush1.msra.mxu0 0.0
    %4681 = vmatprep.subr.mxu0 0.0
    %4682 = vmatpush1.msra.mxu0 0.0
    %4683 = vmatprep.subr.mxu0 0.0
    %4684 = vmatpush1.msra.mxu0 0.0
    %4685 = vmatprep.subr.mxu0 0.0
    %4686 = vmatpush1.msra.mxu0 0.0
    %4687 = vmatprep.subr.mxu0 0.0
    %4688 = vmatpush1.msra.mxu0 0.0
    %4689 = vmatprep.subr.mxu0 0.0
    %4690 = vmatpush1.msra.mxu0 %v4657
    %4691 = vmatprep.subr.mxu0 0.0
    %4692 = vmatpush1.msra.mxu0 %v4656
    %4693 = vmatprep.subr.mxu0 0.0
    %4694 = vmatpush2.msra.mxu0 0.0
    %4695 = vmatprep.subr.mxu0 0.0
    %4696 = vmatpush2.msra.mxu0 0.0
    %4697 = vmatprep.subr.mxu0 0.0
    %4698 = vmatpush2.msra.mxu0 0.0
    %4699 = vmatprep.subr.mxu0 0.0
    %4700 = vmatpush2.msra.mxu0 0.0
    %4701 = vmatprep.subr.mxu0 0.0
    %4702 = vmatpush2.msra.mxu0 0.0
    %4703 = vmatprep.subr.mxu0 0.0
    %4704 = vmatpush2.msra.mxu0 0.0
    %4705 = vmatprep.subr.mxu0 0.0
    %4706 = vmatpush2.msra.mxu0 0.0
    %4707 = vmatprep.subr.mxu0 0.0
    %4708 = vmatpush2.msra.mxu0 0.0
    %4709 = vmatprep.subr.mxu0 0.0
    %4710 = vmatpush2.msra.mxu0 0.0
    %4711 = vmatprep.subr.mxu0 0.0
    %4712 = vmatpush2.msra.mxu0 0.0
    %4713 = vmatprep.subr.mxu0 0.0
    %4714 = vmatpush2.msra.mxu0 0.0
    %4715 = vmatprep.subr.mxu0 0.0
    %4716 = vmatpush2.msra.mxu0 0.0
    %4717 = vmatprep.subr.mxu0 0.0
    %4718 = vmatpush2.msra.mxu0 0.0
    %4719 = vmatprep.subr.mxu0 0.0
    %4720 = vmatpush2.msra.mxu0 0.0
    %4721 = vmatprep.subr.mxu0 0.0
    %4722 = vmatpush2.msra.mxu0 0.0
    %4723 = vmatprep.subr.mxu0 0.0
    %4724 = vmatpush2.msra.mxu0 0.0
    %4725 = vmatprep.mubr.f32.mxu0 0.0
    %4726 = vmatmul.mubr.f32.gmra.mxu0 %v4659
    %v4727 = vpop.f32.mrf.mxu0
    %v4728 = vadd.f32 0.0, %v4727
    %v4729 = vpop.f32.mrf.mxu0
    %4730 = vdwg.mxu0
    %v4731 = vadd.f32 %v4655, %v4728
    %v4732 = vld [vmem:[%s2282] sm:$0xff]
    %v4733 = vld [vmem:[%s2282 + $0x8] sm:$0xff]
    %v4734 = vrot.slane %v1659, 5
    %v4735 = vsel %vm47, %v4734, 0
    %4737 = vmatprep.subr.mxu0 0.0
    %4738 = vmatpush1.msra.mxu0 0.0
    %4739 = vmatprep.subr.mxu0 0.0
    %4740 = vmatpush1.msra.mxu0 0.0
    %4741 = vmatprep.subr.mxu0 0.0
    %4742 = vmatpush1.msra.mxu0 0.0
    %4743 = vmatprep.subr.mxu0 0.0
    %4744 = vmatpush1.msra.mxu0 0.0
    %4745 = vmatprep.subr.mxu0 0.0
    %4746 = vmatpush1.msra.mxu0 0.0
    %4747 = vmatprep.subr.mxu0 0.0
    %4748 = vmatpush1.msra.mxu0 0.0
    %4749 = vmatprep.subr.mxu0 0.0
    %4750 = vmatpush1.msra.mxu0 0.0
    %4751 = vmatprep.subr.mxu0 0.0
    %4752 = vmatpush1.msra.mxu0 0.0
    %4753 = vmatprep.subr.mxu0 0.0
    %4754 = vmatpush1.msra.mxu0 0.0
    %4755 = vmatprep.subr.mxu0 0.0
    %4756 = vmatpush1.msra.mxu0 0.0
    %4757 = vmatprep.subr.mxu0 0.0
    %4758 = vmatpush1.msra.mxu0 0.0
    %4759 = vmatprep.subr.mxu0 0.0
    %4760 = vmatpush1.msra.mxu0 0.0
    %4761 = vmatprep.subr.mxu0 0.0
    %4762 = vmatpush1.msra.mxu0 0.0
    %4763 = vmatprep.subr.mxu0 0.0
    %4764 = vmatpush1.msra.mxu0 0.0
    %4765 = vmatprep.subr.mxu0 0.0
    %4766 = vmatpush1.msra.mxu0 %v4733
    %4767 = vmatprep.subr.mxu0 0.0
    %4768 = vmatpush1.msra.mxu0 %v4732
    %4769 = vmatprep.subr.mxu0 0.0
    %4770 = vmatpush2.msra.mxu0 0.0
    %4771 = vmatprep.subr.mxu0 0.0
    %4772 = vmatpush2.msra.mxu0 0.0
    %4773 = vmatprep.subr.mxu0 0.0
    %4774 = vmatpush2.msra.mxu0 0.0
    %4775 = vmatprep.subr.mxu0 0.0
    %4776 = vmatpush2.msra.mxu0 0.0
    %4777 = vmatprep.subr.mxu0 0.0
    %4778 = vmatpush2.msra.mxu0 0.0
    %4779 = vmatprep.subr.mxu0 0.0
    %4780 = vmatpush2.msra.mxu0 0.0
    %4781 = vmatprep.subr.mxu0 0.0
    %4782 = vmatpush2.msra.mxu0 0.0
    %4783 = vmatprep.subr.mxu0 0.0
    %4784 = vmatpush2.msra.mxu0 0.0
    %4785 = vmatprep.subr.mxu0 0.0
    %4786 = vmatpush2.msra.mxu0 0.0
    %4787 = vmatprep.subr.mxu0 0.0
    %4788 = vmatpush2.msra.mxu0 0.0
    %4789 = vmatprep.subr.mxu0 0.0
    %4790 = vmatpush2.msra.mxu0 0.0
    %4791 = vmatprep.subr.mxu0 0.0
    %4792 = vmatpush2.msra.mxu0 0.0
    %4793 = vmatprep.subr.mxu0 0.0
    %4794 = vmatpush2.msra.mxu0 0.0
    %4795 = vmatprep.subr.mxu0 0.0
    %4796 = vmatpush2.msra.mxu0 0.0
    %4797 = vmatprep.subr.mxu0 0.0
    %4798 = vmatpush2.msra.mxu0 0.0
    %4799 = vmatprep.subr.mxu0 0.0
    %4800 = vmatpush2.msra.mxu0 0.0
    %4801 = vmatprep.mubr.f32.mxu0 0.0
    %4802 = vmatmul.mubr.f32.gmra.mxu0 %v4735
    %v4803 = vpop.f32.mrf.mxu0
    %v4804 = vadd.f32 0.0, %v4803
    %v4805 = vpop.f32.mrf.mxu0
    %4806 = vdwg.mxu0
    %v4807 = vadd.f32 %v4731, %v4804
    %v4808 = vld [vmem:[%s2359] sm:$0xff]
    %v4809 = vld [vmem:[%s2359 + $0x8] sm:$0xff]
    %v4810 = vrot.slane %v1659, 6
    %v4811 = vsel %vm47, %v4810, 0
    %4813 = vmatprep.subr.mxu0 0.0
    %4814 = vmatpush1.msra.mxu0 0.0
    %4815 = vmatprep.subr.mxu0 0.0
    %4816 = vmatpush1.msra.mxu0 0.0
    %4817 = vmatprep.subr.mxu0 0.0
    %4818 = vmatpush1.msra.mxu0 0.0
    %4819 = vmatprep.subr.mxu0 0.0
    %4820 = vmatpush1.msra.mxu0 0.0
    %4821 = vmatprep.subr.mxu0 0.0
    %4822 = vmatpush1.msra.mxu0 0.0
    %4823 = vmatprep.subr.mxu0 0.0
    %4824 = vmatpush1.msra.mxu0 0.0
    %4825 = vmatprep.subr.mxu0 0.0
    %4826 = vmatpush1.msra.mxu0 0.0
    %4827 = vmatprep.subr.mxu0 0.0
    %4828 = vmatpush1.msra.mxu0 0.0
    %4829 = vmatprep.subr.mxu0 0.0
    %4830 = vmatpush1.msra.mxu0 0.0
    %4831 = vmatprep.subr.mxu0 0.0
    %4832 = vmatpush1.msra.mxu0 0.0
    %4833 = vmatprep.subr.mxu0 0.0
    %4834 = vmatpush1.msra.mxu0 0.0
    %4835 = vmatprep.subr.mxu0 0.0
    %4836 = vmatpush1.msra.mxu0 0.0
    %4837 = vmatprep.subr.mxu0 0.0
    %4838 = vmatpush1.msra.mxu0 0.0
    %4839 = vmatprep.subr.mxu0 0.0
    %4840 = vmatpush1.msra.mxu0 0.0
    %4841 = vmatprep.subr.mxu0 0.0
    %4842 = vmatpush1.msra.mxu0 %v4809
    %4843 = vmatprep.subr.mxu0 0.0
    %4844 = vmatpush1.msra.mxu0 %v4808
    %4845 = vmatprep.subr.mxu0 0.0
    %4846 = vmatpush2.msra.mxu0 0.0
    %4847 = vmatprep.subr.mxu0 0.0
    %4848 = vmatpush2.msra.mxu0 0.0
    %4849 = vmatprep.subr.mxu0 0.0
    %4850 = vmatpush2.msra.mxu0 0.0
    %4851 = vmatprep.subr.mxu0 0.0
    %4852 = vmatpush2.msra.mxu0 0.0
    %4853 = vmatprep.subr.mxu0 0.0
    %4854 = vmatpush2.msra.mxu0 0.0
    %4855 = vmatprep.subr.mxu0 0.0
    %4856 = vmatpush2.msra.mxu0 0.0
    %4857 = vmatprep.subr.mxu0 0.0
    %4858 = vmatpush2.msra.mxu0 0.0
    %4859 = vmatprep.subr.mxu0 0.0
    %4860 = vmatpush2.msra.mxu0 0.0
    %4861 = vmatprep.subr.mxu0 0.0
    %4862 = vmatpush2.msra.mxu0 0.0
    %4863 = vmatprep.subr.mxu0 0.0
    %4864 = vmatpush2.msra.mxu0 0.0
    %4865 = vmatprep.subr.mxu0 0.0
    %4866 = vmatpush2.msra.mxu0 0.0
    %4867 = vmatprep.subr.mxu0 0.0
    %4868 = vmatpush2.msra.mxu0 0.0
    %4869 = vmatprep.subr.mxu0 0.0
    %4870 = vmatpush2.msra.mxu0 0.0
    %4871 = vmatprep.subr.mxu0 0.0
    %4872 = vmatpush2.msra.mxu0 0.0
    %4873 = vmatprep.subr.mxu0 0.0
    %4874 = vmatpush2.msra.mxu0 0.0
    %4875 = vmatprep.subr.mxu0 0.0
    %4876 = vmatpush2.msra.mxu0 0.0
    %4877 = vmatprep.mubr.f32.mxu0 0.0
    %4878 = vmatmul.mubr.f32.gmra.mxu0 %v4811
    %v4879 = vpop.f32.mrf.mxu0
    %v4880 = vadd.f32 0.0, %v4879
    %v4881 = vpop.f32.mrf.mxu0
    %4882 = vdwg.mxu0
    %v4883 = vadd.f32 %v4807, %v4880
    %v4884 = vld [vmem:[%s2436] sm:$0xff]
    %v4885 = vld [vmem:[%s2436 + $0x8] sm:$0xff]
    %v4886 = vrot.slane %v1659, 7
    %v4887 = vsel %vm47, %v4886, 0
    %4889 = vmatprep.subr.mxu0 0.0
    %4890 = vmatpush1.msra.mxu0 0.0
    %4891 = vmatprep.subr.mxu0 0.0
    %4892 = vmatpush1.msra.mxu0 0.0
    %4893 = vmatprep.subr.mxu0 0.0
    %4894 = vmatpush1.msra.mxu0 0.0
    %4895 = vmatprep.subr.mxu0 0.0
    %4896 = vmatpush1.msra.mxu0 0.0
    %4897 = vmatprep.subr.mxu0 0.0
    %4898 = vmatpush1.msra.mxu0 0.0
    %4899 = vmatprep.subr.mxu0 0.0
    %4900 = vmatpush1.msra.mxu0 0.0
    %4901 = vmatprep.subr.mxu0 0.0
    %4902 = vmatpush1.msra.mxu0 0.0
    %4903 = vmatprep.subr.mxu0 0.0
    %4904 = vmatpush1.msra.mxu0 0.0
    %4905 = vmatprep.subr.mxu0 0.0
    %4906 = vmatpush1.msra.mxu0 0.0
    %4907 = vmatprep.subr.mxu0 0.0
    %4908 = vmatpush1.msra.mxu0 0.0
    %4909 = vmatprep.subr.mxu0 0.0
    %4910 = vmatpush1.msra.mxu0 0.0
    %4911 = vmatprep.subr.mxu0 0.0
    %4912 = vmatpush1.msra.mxu0 0.0
    %4913 = vmatprep.subr.mxu0 0.0
    %4914 = vmatpush1.msra.mxu0 0.0
    %4915 = vmatprep.subr.mxu0 0.0
    %4916 = vmatpush1.msra.mxu0 0.0
    %4917 = vmatprep.subr.mxu0 0.0
    %4918 = vmatpush1.msra.mxu0 %v4885
    %4919 = vmatprep.subr.mxu0 0.0
    %4920 = vmatpush1.msra.mxu0 %v4884
    %4921 = vmatprep.subr.mxu0 0.0
    %4922 = vmatpush2.msra.mxu0 0.0
    %4923 = vmatprep.subr.mxu0 0.0
    %4924 = vmatpush2.msra.mxu0 0.0
    %4925 = vmatprep.subr.mxu0 0.0
    %4926 = vmatpush2.msra.mxu0 0.0
    %4927 = vmatprep.subr.mxu0 0.0
    %4928 = vmatpush2.msra.mxu0 0.0
    %4929 = vmatprep.subr.mxu0 0.0
    %4930 = vmatpush2.msra.mxu0 0.0
    %4931 = vmatprep.subr.mxu0 0.0
    %4932 = vmatpush2.msra.mxu0 0.0
    %4933 = vmatprep.subr.mxu0 0.0
    %4934 = vmatpush2.msra.mxu0 0.0
    %4935 = vmatprep.subr.mxu0 0.0
    %4936 = vmatpush2.msra.mxu0 0.0
    %4937 = vmatprep.subr.mxu0 0.0
    %4938 = vmatpush2.msra.mxu0 0.0
    %4939 = vmatprep.subr.mxu0 0.0
    %4940 = vmatpush2.msra.mxu0 0.0
    %4941 = vmatprep.subr.mxu0 0.0
    %4942 = vmatpush2.msra.mxu0 0.0
    %4943 = vmatprep.subr.mxu0 0.0
    %4944 = vmatpush2.msra.mxu0 0.0
    %4945 = vmatprep.subr.mxu0 0.0
    %4946 = vmatpush2.msra.mxu0 0.0
    %4947 = vmatprep.subr.mxu0 0.0
    %4948 = vmatpush2.msra.mxu0 0.0
    %4949 = vmatprep.subr.mxu0 0.0
    %4950 = vmatpush2.msra.mxu0 0.0
    %4951 = vmatprep.subr.mxu0 0.0
    %4952 = vmatpush2.msra.mxu0 0.0
    %4953 = vmatprep.mubr.f32.mxu0 0.0
    %4954 = vmatmul.mubr.f32.gmra.mxu0 %v4887
    %v4955 = vpop.f32.mrf.mxu0
    %v4956 = vadd.f32 0.0, %v4955
    %v4957 = vpop.f32.mrf.mxu0
    %4958 = vdwg.mxu0
    %v4959 = vadd.f32 %v4883, %v4956
    %v4960 = vld [vmem:[%s2513] sm:$0xff]
    %v4961 = vld [vmem:[%s2513 + $0x8] sm:$0xff]
    %v4963 = vsel %vm47, %v1660, 0
    %4965 = vmatprep.subr.mxu0 0.0
    %4966 = vmatpush1.msra.mxu0 0.0
    %4967 = vmatprep.subr.mxu0 0.0
    %4968 = vmatpush1.msra.mxu0 0.0
    %4969 = vmatprep.subr.mxu0 0.0
    %4970 = vmatpush1.msra.mxu0 0.0
    %4971 = vmatprep.subr.mxu0 0.0
    %4972 = vmatpush1.msra.mxu0 0.0
    %4973 = vmatprep.subr.mxu0 0.0
    %4974 = vmatpush1.msra.mxu0 0.0
    %4975 = vmatprep.subr.mxu0 0.0
    %4976 = vmatpush1.msra.mxu0 0.0
    %4977 = vmatprep.subr.mxu0 0.0
    %4978 = vmatpush1.msra.mxu0 0.0
    %4979 = vmatprep.subr.mxu0 0.0
    %4980 = vmatpush1.msra.mxu0 0.0
    %4981 = vmatprep.subr.mxu0 0.0
    %4982 = vmatpush1.msra.mxu0 0.0
    %4983 = vmatprep.subr.mxu0 0.0
    %4984 = vmatpush1.msra.mxu0 0.0
    %4985 = vmatprep.subr.mxu0 0.0
    %4986 = vmatpush1.msra.mxu0 0.0
    %4987 = vmatprep.subr.mxu0 0.0
    %4988 = vmatpush1.msra.mxu0 0.0
    %4989 = vmatprep.subr.mxu0 0.0
    %4990 = vmatpush1.msra.mxu0 0.0
    %4991 = vmatprep.subr.mxu0 0.0
    %4992 = vmatpush1.msra.mxu0 0.0
    %4993 = vmatprep.subr.mxu0 0.0
    %4994 = vmatpush1.msra.mxu0 %v4961
    %4995 = vmatprep.subr.mxu0 0.0
    %4996 = vmatpush1.msra.mxu0 %v4960
    %4997 = vmatprep.subr.mxu0 0.0
    %4998 = vmatpush2.msra.mxu0 0.0
    %4999 = vmatprep.subr.mxu0 0.0
    %5000 = vmatpush2.msra.mxu0 0.0
    %5001 = vmatprep.subr.mxu0 0.0
    %5002 = vmatpush2.msra.mxu0 0.0
    %5003 = vmatprep.subr.mxu0 0.0
    %5004 = vmatpush2.msra.mxu0 0.0
    %5005 = vmatprep.subr.mxu0 0.0
    %5006 = vmatpush2.msra.mxu0 0.0
    %5007 = vmatprep.subr.mxu0 0.0
    %5008 = vmatpush2.msra.mxu0 0.0
    %5009 = vmatprep.subr.mxu0 0.0
    %5010 = vmatpush2.msra.mxu0 0.0
    %5011 = vmatprep.subr.mxu0 0.0
    %5012 = vmatpush2.msra.mxu0 0.0
    %5013 = vmatprep.subr.mxu0 0.0
    %5014 = vmatpush2.msra.mxu0 0.0
    %5015 = vmatprep.subr.mxu0 0.0
    %5016 = vmatpush2.msra.mxu0 0.0
    %5017 = vmatprep.subr.mxu0 0.0
    %5018 = vmatpush2.msra.mxu0 0.0
    %5019 = vmatprep.subr.mxu0 0.0
    %5020 = vmatpush2.msra.mxu0 0.0
    %5021 = vmatprep.subr.mxu0 0.0
    %5022 = vmatpush2.msra.mxu0 0.0
    %5023 = vmatprep.subr.mxu0 0.0
    %5024 = vmatpush2.msra.mxu0 0.0
    %5025 = vmatprep.subr.mxu0 0.0
    %5026 = vmatpush2.msra.mxu0 0.0
    %5027 = vmatprep.subr.mxu0 0.0
    %5028 = vmatpush2.msra.mxu0 0.0
    %5029 = vmatprep.mubr.f32.mxu0 0.0
    %5030 = vmatmul.mubr.f32.gmra.mxu0 %v4963
    %v5031 = vpop.f32.mrf.mxu0
    %v5032 = vadd.f32 0.0, %v5031
    %v5033 = vpop.f32.mrf.mxu0
    %5034 = vdwg.mxu0
    %v5035 = vadd.f32 %v4959, %v5032
    %v5036 = vld [vmem:[%s2590] sm:$0xff]
    %v5037 = vld [vmem:[%s2590 + $0x8] sm:$0xff]
    %v5038 = vrot.slane %v1660, 1
    %v5039 = vsel %vm47, %v5038, 0
    %5041 = vmatprep.subr.mxu0 0.0
    %5042 = vmatpush1.msra.mxu0 0.0
    %5043 = vmatprep.subr.mxu0 0.0
    %5044 = vmatpush1.msra.mxu0 0.0
    %5045 = vmatprep.subr.mxu0 0.0
    %5046 = vmatpush1.msra.mxu0 0.0
    %5047 = vmatprep.subr.mxu0 0.0
    %5048 = vmatpush1.msra.mxu0 0.0
    %5049 = vmatprep.subr.mxu0 0.0
    %5050 = vmatpush1.msra.mxu0 0.0
    %5051 = vmatprep.subr.mxu0 0.0
    %5052 = vmatpush1.msra.mxu0 0.0
    %5053 = vmatprep.subr.mxu0 0.0
    %5054 = vmatpush1.msra.mxu0 0.0
    %5055 = vmatprep.subr.mxu0 0.0
    %5056 = vmatpush1.msra.mxu0 0.0
    %5057 = vmatprep.subr.mxu0 0.0
    %5058 = vmatpush1.msra.mxu0 0.0
    %5059 = vmatprep.subr.mxu0 0.0
    %5060 = vmatpush1.msra.mxu0 0.0
    %5061 = vmatprep.subr.mxu0 0.0
    %5062 = vmatpush1.msra.mxu0 0.0
    %5063 = vmatprep.subr.mxu0 0.0
    %5064 = vmatpush1.msra.mxu0 0.0
    %5065 = vmatprep.subr.mxu0 0.0
    %5066 = vmatpush1.msra.mxu0 0.0
    %5067 = vmatprep.subr.mxu0 0.0
    %5068 = vmatpush1.msra.mxu0 0.0
    %5069 = vmatprep.subr.mxu0 0.0
    %5070 = vmatpush1.msra.mxu0 %v5037
    %5071 = vmatprep.subr.mxu0 0.0
    %5072 = vmatpush1.msra.mxu0 %v5036
    %5073 = vmatprep.subr.mxu0 0.0
    %5074 = vmatpush2.msra.mxu0 0.0
    %5075 = vmatprep.subr.mxu0 0.0
    %5076 = vmatpush2.msra.mxu0 0.0
    %5077 = vmatprep.subr.mxu0 0.0
    %5078 = vmatpush2.msra.mxu0 0.0
    %5079 = vmatprep.subr.mxu0 0.0
    %5080 = vmatpush2.msra.mxu0 0.0
    %5081 = vmatprep.subr.mxu0 0.0
    %5082 = vmatpush2.msra.mxu0 0.0
    %5083 = vmatprep.subr.mxu0 0.0
    %5084 = vmatpush2.msra.mxu0 0.0
    %5085 = vmatprep.subr.mxu0 0.0
    %5086 = vmatpush2.msra.mxu0 0.0
    %5087 = vmatprep.subr.mxu0 0.0
    %5088 = vmatpush2.msra.mxu0 0.0
    %5089 = vmatprep.subr.mxu0 0.0
    %5090 = vmatpush2.msra.mxu0 0.0
    %5091 = vmatprep.subr.mxu0 0.0
    %5092 = vmatpush2.msra.mxu0 0.0
    %5093 = vmatprep.subr.mxu0 0.0
    %5094 = vmatpush2.msra.mxu0 0.0
    %5095 = vmatprep.subr.mxu0 0.0
    %5096 = vmatpush2.msra.mxu0 0.0
    %5097 = vmatprep.subr.mxu0 0.0
    %5098 = vmatpush2.msra.mxu0 0.0
    %5099 = vmatprep.subr.mxu0 0.0
    %5100 = vmatpush2.msra.mxu0 0.0
    %5101 = vmatprep.subr.mxu0 0.0
    %5102 = vmatpush2.msra.mxu0 0.0
    %5103 = vmatprep.subr.mxu0 0.0
    %5104 = vmatpush2.msra.mxu0 0.0
    %5105 = vmatprep.mubr.f32.mxu0 0.0
    %5106 = vmatmul.mubr.f32.gmra.mxu0 %v5039
    %v5107 = vpop.f32.mrf.mxu0
    %v5108 = vadd.f32 0.0, %v5107
    %v5109 = vpop.f32.mrf.mxu0
    %5110 = vdwg.mxu0
    %v5111 = vadd.f32 %v5035, %v5108
    %v5112 = vld [vmem:[%s2667] sm:$0xff]
    %v5113 = vld [vmem:[%s2667 + $0x8] sm:$0xff]
    %v5114 = vrot.slane %v1660, 2
    %v5115 = vsel %vm47, %v5114, 0
    %5117 = vmatprep.subr.mxu0 0.0
    %5118 = vmatpush1.msra.mxu0 0.0
    %5119 = vmatprep.subr.mxu0 0.0
    %5120 = vmatpush1.msra.mxu0 0.0
    %5121 = vmatprep.subr.mxu0 0.0
    %5122 = vmatpush1.msra.mxu0 0.0
    %5123 = vmatprep.subr.mxu0 0.0
    %5124 = vmatpush1.msra.mxu0 0.0
    %5125 = vmatprep.subr.mxu0 0.0
    %5126 = vmatpush1.msra.mxu0 0.0
    %5127 = vmatprep.subr.mxu0 0.0
    %5128 = vmatpush1.msra.mxu0 0.0
    %5129 = vmatprep.subr.mxu0 0.0
    %5130 = vmatpush1.msra.mxu0 0.0
    %5131 = vmatprep.subr.mxu0 0.0
    %5132 = vmatpush1.msra.mxu0 0.0
    %5133 = vmatprep.subr.mxu0 0.0
    %5134 = vmatpush1.msra.mxu0 0.0
    %5135 = vmatprep.subr.mxu0 0.0
    %5136 = vmatpush1.msra.mxu0 0.0
    %5137 = vmatprep.subr.mxu0 0.0
    %5138 = vmatpush1.msra.mxu0 0.0
    %5139 = vmatprep.subr.mxu0 0.0
    %5140 = vmatpush1.msra.mxu0 0.0
    %5141 = vmatprep.subr.mxu0 0.0
    %5142 = vmatpush1.msra.mxu0 0.0
    %5143 = vmatprep.subr.mxu0 0.0
    %5144 = vmatpush1.msra.mxu0 0.0
    %5145 = vmatprep.subr.mxu0 0.0
    %5146 = vmatpush1.msra.mxu0 %v5113
    %5147 = vmatprep.subr.mxu0 0.0
    %5148 = vmatpush1.msra.mxu0 %v5112
    %5149 = vmatprep.subr.mxu0 0.0
    %5150 = vmatpush2.msra.mxu0 0.0
    %5151 = vmatprep.subr.mxu0 0.0
    %5152 = vmatpush2.msra.mxu0 0.0
    %5153 = vmatprep.subr.mxu0 0.0
    %5154 = vmatpush2.msra.mxu0 0.0
    %5155 = vmatprep.subr.mxu0 0.0
    %5156 = vmatpush2.msra.mxu0 0.0
    %5157 = vmatprep.subr.mxu0 0.0
    %5158 = vmatpush2.msra.mxu0 0.0
    %5159 = vmatprep.subr.mxu0 0.0
    %5160 = vmatpush2.msra.mxu0 0.0
    %5161 = vmatprep.subr.mxu0 0.0
    %5162 = vmatpush2.msra.mxu0 0.0
    %5163 = vmatprep.subr.mxu0 0.0
    %5164 = vmatpush2.msra.mxu0 0.0
    %5165 = vmatprep.subr.mxu0 0.0
    %5166 = vmatpush2.msra.mxu0 0.0
    %5167 = vmatprep.subr.mxu0 0.0
    %5168 = vmatpush2.msra.mxu0 0.0
    %5169 = vmatprep.subr.mxu0 0.0
    %5170 = vmatpush2.msra.mxu0 0.0
    %5171 = vmatprep.subr.mxu0 0.0
    %5172 = vmatpush2.msra.mxu0 0.0
    %5173 = vmatprep.subr.mxu0 0.0
    %5174 = vmatpush2.msra.mxu0 0.0
    %5175 = vmatprep.subr.mxu0 0.0
    %5176 = vmatpush2.msra.mxu0 0.0
    %5177 = vmatprep.subr.mxu0 0.0
    %5178 = vmatpush2.msra.mxu0 0.0
    %5179 = vmatprep.subr.mxu0 0.0
    %5180 = vmatpush2.msra.mxu0 0.0
    %5181 = vmatprep.mubr.f32.mxu0 0.0
    %5182 = vmatmul.mubr.f32.gmra.mxu0 %v5115
    %v5183 = vpop.f32.mrf.mxu0
    %v5184 = vadd.f32 0.0, %v5183
    %v5185 = vpop.f32.mrf.mxu0
    %5186 = vdwg.mxu0
    %v5187 = vadd.f32 %v5111, %v5184
    %v5188 = vld [vmem:[%s2744] sm:$0xff]
    %v5189 = vld [vmem:[%s2744 + $0x8] sm:$0xff]
    %v5190 = vrot.slane %v1660, 3
    %v5191 = vsel %vm47, %v5190, 0
    %5193 = vmatprep.subr.mxu0 0.0
    %5194 = vmatpush1.msra.mxu0 0.0
    %5195 = vmatprep.subr.mxu0 0.0
    %5196 = vmatpush1.msra.mxu0 0.0
    %5197 = vmatprep.subr.mxu0 0.0
    %5198 = vmatpush1.msra.mxu0 0.0
    %5199 = vmatprep.subr.mxu0 0.0
    %5200 = vmatpush1.msra.mxu0 0.0
    %5201 = vmatprep.subr.mxu0 0.0
    %5202 = vmatpush1.msra.mxu0 0.0
    %5203 = vmatprep.subr.mxu0 0.0
    %5204 = vmatpush1.msra.mxu0 0.0
    %5205 = vmatprep.subr.mxu0 0.0
    %5206 = vmatpush1.msra.mxu0 0.0
    %5207 = vmatprep.subr.mxu0 0.0
    %5208 = vmatpush1.msra.mxu0 0.0
    %5209 = vmatprep.subr.mxu0 0.0
    %5210 = vmatpush1.msra.mxu0 0.0
    %5211 = vmatprep.subr.mxu0 0.0
    %5212 = vmatpush1.msra.mxu0 0.0
    %5213 = vmatprep.subr.mxu0 0.0
    %5214 = vmatpush1.msra.mxu0 0.0
    %5215 = vmatprep.subr.mxu0 0.0
    %5216 = vmatpush1.msra.mxu0 0.0
    %5217 = vmatprep.subr.mxu0 0.0
    %5218 = vmatpush1.msra.mxu0 0.0
    %5219 = vmatprep.subr.mxu0 0.0
    %5220 = vmatpush1.msra.mxu0 0.0
    %5221 = vmatprep.subr.mxu0 0.0
    %5222 = vmatpush1.msra.mxu0 %v5189
    %5223 = vmatprep.subr.mxu0 0.0
    %5224 = vmatpush1.msra.mxu0 %v5188
    %5225 = vmatprep.subr.mxu0 0.0
    %5226 = vmatpush2.msra.mxu0 0.0
    %5227 = vmatprep.subr.mxu0 0.0
    %5228 = vmatpush2.msra.mxu0 0.0
    %5229 = vmatprep.subr.mxu0 0.0
    %5230 = vmatpush2.msra.mxu0 0.0
    %5231 = vmatprep.subr.mxu0 0.0
    %5232 = vmatpush2.msra.mxu0 0.0
    %5233 = vmatprep.subr.mxu0 0.0
    %5234 = vmatpush2.msra.mxu0 0.0
    %5235 = vmatprep.subr.mxu0 0.0
    %5236 = vmatpush2.msra.mxu0 0.0
    %5237 = vmatprep.subr.mxu0 0.0
    %5238 = vmatpush2.msra.mxu0 0.0
    %5239 = vmatprep.subr.mxu0 0.0
    %5240 = vmatpush2.msra.mxu0 0.0
    %5241 = vmatprep.subr.mxu0 0.0
    %5242 = vmatpush2.msra.mxu0 0.0
    %5243 = vmatprep.subr.mxu0 0.0
    %5244 = vmatpush2.msra.mxu0 0.0
    %5245 = vmatprep.subr.mxu0 0.0
    %5246 = vmatpush2.msra.mxu0 0.0
    %5247 = vmatprep.subr.mxu0 0.0
    %5248 = vmatpush2.msra.mxu0 0.0
    %5249 = vmatprep.subr.mxu0 0.0
    %5250 = vmatpush2.msra.mxu0 0.0
    %5251 = vmatprep.subr.mxu0 0.0
    %5252 = vmatpush2.msra.mxu0 0.0
    %5253 = vmatprep.subr.mxu0 0.0
    %5254 = vmatpush2.msra.mxu0 0.0
    %5255 = vmatprep.subr.mxu0 0.0
    %5256 = vmatpush2.msra.mxu0 0.0
    %5257 = vmatprep.mubr.f32.mxu0 0.0
    %5258 = vmatmul.mubr.f32.gmra.mxu0 %v5191
    %v5259 = vpop.f32.mrf.mxu0
    %v5260 = vadd.f32 0.0, %v5259
    %v5261 = vpop.f32.mrf.mxu0
    %5262 = vdwg.mxu0
    %v5263 = vadd.f32 %v5187, %v5260
    %v5264 = vld [vmem:[%s2821] sm:$0xff]
    %v5265 = vld [vmem:[%s2821 + $0x8] sm:$0xff]
    %v5266 = vrot.slane %v1660, 4
    %v5267 = vsel %vm47, %v5266, 0
    %5269 = vmatprep.subr.mxu0 0.0
    %5270 = vmatpush1.msra.mxu0 0.0
    %5271 = vmatprep.subr.mxu0 0.0
    %5272 = vmatpush1.msra.mxu0 0.0
    %5273 = vmatprep.subr.mxu0 0.0
    %5274 = vmatpush1.msra.mxu0 0.0
    %5275 = vmatprep.subr.mxu0 0.0
    %5276 = vmatpush1.msra.mxu0 0.0
    %5277 = vmatprep.subr.mxu0 0.0
    %5278 = vmatpush1.msra.mxu0 0.0
    %5279 = vmatprep.subr.mxu0 0.0
    %5280 = vmatpush1.msra.mxu0 0.0
    %5281 = vmatprep.subr.mxu0 0.0
    %5282 = vmatpush1.msra.mxu0 0.0
    %5283 = vmatprep.subr.mxu0 0.0
    %5284 = vmatpush1.msra.mxu0 0.0
    %5285 = vmatprep.subr.mxu0 0.0
    %5286 = vmatpush1.msra.mxu0 0.0
    %5287 = vmatprep.subr.mxu0 0.0
    %5288 = vmatpush1.msra.mxu0 0.0
    %5289 = vmatprep.subr.mxu0 0.0
    %5290 = vmatpush1.msra.mxu0 0.0
    %5291 = vmatprep.subr.mxu0 0.0
    %5292 = vmatpush1.msra.mxu0 0.0
    %5293 = vmatprep.subr.mxu0 0.0
    %5294 = vmatpush1.msra.mxu0 0.0
    %5295 = vmatprep.subr.mxu0 0.0
    %5296 = vmatpush1.msra.mxu0 0.0
    %5297 = vmatprep.subr.mxu0 0.0
    %5298 = vmatpush1.msra.mxu0 %v5265
    %5299 = vmatprep.subr.mxu0 0.0
    %5300 = vmatpush1.msra.mxu0 %v5264
    %5301 = vmatprep.subr.mxu0 0.0
    %5302 = vmatpush2.msra.mxu0 0.0
    %5303 = vmatprep.subr.mxu0 0.0
    %5304 = vmatpush2.msra.mxu0 0.0
    %5305 = vmatprep.subr.mxu0 0.0
    %5306 = vmatpush2.msra.mxu0 0.0
    %5307 = vmatprep.subr.mxu0 0.0
    %5308 = vmatpush2.msra.mxu0 0.0
    %5309 = vmatprep.subr.mxu0 0.0
    %5310 = vmatpush2.msra.mxu0 0.0
    %5311 = vmatprep.subr.mxu0 0.0
    %5312 = vmatpush2.msra.mxu0 0.0
    %5313 = vmatprep.subr.mxu0 0.0
    %5314 = vmatpush2.msra.mxu0 0.0
    %5315 = vmatprep.subr.mxu0 0.0
    %5316 = vmatpush2.msra.mxu0 0.0
    %5317 = vmatprep.subr.mxu0 0.0
    %5318 = vmatpush2.msra.mxu0 0.0
    %5319 = vmatprep.subr.mxu0 0.0
    %5320 = vmatpush2.msra.mxu0 0.0
    %5321 = vmatprep.subr.mxu0 0.0
    %5322 = vmatpush2.msra.mxu0 0.0
    %5323 = vmatprep.subr.mxu0 0.0
    %5324 = vmatpush2.msra.mxu0 0.0
    %5325 = vmatprep.subr.mxu0 0.0
    %5326 = vmatpush2.msra.mxu0 0.0
    %5327 = vmatprep.subr.mxu0 0.0
    %5328 = vmatpush2.msra.mxu0 0.0
    %5329 = vmatprep.subr.mxu0 0.0
    %5330 = vmatpush2.msra.mxu0 0.0
    %5331 = vmatprep.subr.mxu0 0.0
    %5332 = vmatpush2.msra.mxu0 0.0
    %5333 = vmatprep.mubr.f32.mxu0 0.0
    %5334 = vmatmul.mubr.f32.gmra.mxu0 %v5267
    %v5335 = vpop.f32.mrf.mxu0
    %v5336 = vadd.f32 0.0, %v5335
    %v5337 = vpop.f32.mrf.mxu0
    %5338 = vdwg.mxu0
    %v5339 = vadd.f32 %v5263, %v5336
    %5340 = vst [vmem:[#allocation4 + $0x2] sm:$0x1] %v5339
    %s5341 = scalar_lea.vmem %s6, 48
    %vm5342 = vcmask 130055
    %5343 = vst.msk [vmem:[%s5341 - $0x7] sm:$0x80] %vm5342, %v1660
    %5344 = vst.msk [vmem:[%s5341 + $0x1] sm:$0xff] %vm47, %v1661
    %vm5345 = vcmask 129024
    %5346 = vst.msk [vmem:[%s5341 + $0x9] sm:$0x7f] %vm5345, %v1662
    %v5347 = vld [vmem:[%s5] sm:$0xff]
    %v5348 = vld [vmem:[%s5 + $0x8] sm:$0xff]
    %v5349 = vld [vmem:[%s1670] sm:$0xff]
    %v5350 = vld [vmem:[%s1670 + $0x8] sm:$0xff]
    %v5352 = vsel %vm47, %v1661, 0
    %5354 = vmatprep.subr.mxu0 0.0
    %5355 = vmatpush1.msra.mxu0 0.0
    %5356 = vmatprep.subr.mxu0 0.0
    %5357 = vmatpush1.msra.mxu0 0.0
    %5358 = vmatprep.subr.mxu0 0.0
    %5359 = vmatpush1.msra.mxu0 0.0
    %5360 = vmatprep.subr.mxu0 0.0
    %5361 = vmatpush1.msra.mxu0 0.0
    %5362 = vmatprep.subr.mxu0 0.0
    %5363 = vmatpush1.msra.mxu0 0.0
    %5364 = vmatprep.subr.mxu0 0.0
    %5365 = vmatpush1.msra.mxu0 0.0
    %5366 = vmatprep.subr.mxu0 0.0
    %5367 = vmatpush1.msra.mxu0 0.0
    %5368 = vmatprep.subr.mxu0 0.0
    %5369 = vmatpush1.msra.mxu0 0.0
    %5370 = vmatprep.subr.mxu0 0.0
    %5371 = vmatpush1.msra.mxu0 0.0
    %5372 = vmatprep.subr.mxu0 0.0
    %5373 = vmatpush1.msra.mxu0 0.0
    %5374 = vmatprep.subr.mxu0 0.0
    %5375 = vmatpush1.msra.mxu0 0.0
    %5376 = vmatprep.subr.mxu0 0.0
    %5377 = vmatpush1.msra.mxu0 0.0
    %5378 = vmatprep.subr.mxu0 0.0
    %5379 = vmatpush1.msra.mxu0 0.0
    %5380 = vmatprep.subr.mxu0 0.0
    %5381 = vmatpush1.msra.mxu0 0.0
    %5382 = vmatprep.subr.mxu0 0.0
    %5383 = vmatpush1.msra.mxu0 %v5350
    %5384 = vmatprep.subr.mxu0 0.0
    %5385 = vmatpush1.msra.mxu0 %v5349
    %5386 = vmatprep.subr.mxu0 0.0
    %5387 = vmatpush2.msra.mxu0 0.0
    %5388 = vmatprep.subr.mxu0 0.0
    %5389 = vmatpush2.msra.mxu0 0.0
    %5390 = vmatprep.subr.mxu0 0.0
    %5391 = vmatpush2.msra.mxu0 0.0
    %5392 = vmatprep.subr.mxu0 0.0
    %5393 = vmatpush2.msra.mxu0 0.0
    %5394 = vmatprep.subr.mxu0 0.0
    %5395 = vmatpush2.msra.mxu0 0.0
    %5396 = vmatprep.subr.mxu0 0.0
    %5397 = vmatpush2.msra.mxu0 0.0
    %5398 = vmatprep.subr.mxu0 0.0
    %5399 = vmatpush2.msra.mxu0 0.0
    %5400 = vmatprep.subr.mxu0 0.0
    %5401 = vmatpush2.msra.mxu0 0.0
    %5402 = vmatprep.subr.mxu0 0.0
    %5403 = vmatpush2.msra.mxu0 0.0
    %5404 = vmatprep.subr.mxu0 0.0
    %5405 = vmatpush2.msra.mxu0 0.0
    %5406 = vmatprep.subr.mxu0 0.0
    %5407 = vmatpush2.msra.mxu0 0.0
    %5408 = vmatprep.subr.mxu0 0.0
    %5409 = vmatpush2.msra.mxu0 0.0
    %5410 = vmatprep.subr.mxu0 0.0
    %5411 = vmatpush2.msra.mxu0 0.0
    %5412 = vmatprep.subr.mxu0 0.0
    %5413 = vmatpush2.msra.mxu0 0.0
    %5414 = vmatprep.subr.mxu0 0.0
    %5415 = vmatpush2.msra.mxu0 0.0
    %5416 = vmatprep.subr.mxu0 0.0
    %5417 = vmatpush2.msra.mxu0 0.0
    %5418 = vmatprep.mubr.f32.mxu0 0.0
    %5419 = vmatmul.mubr.f32.gmra.mxu0 %v5352
    %v5420 = vpop.f32.mrf.mxu0
    %v5421 = vadd.f32 0.0, %v5420
    %v5422 = vpop.f32.mrf.mxu0
    %5423 = vdwg.mxu0
    %v5424 = vrot.slane %v1660, 7
    %v5425 = vsel %vm47, %v5424, 0
    %5427 = vmatprep.subr.mxu0 0.0
    %5428 = vmatpush1.msra.mxu0 0.0
    %5429 = vmatprep.subr.mxu0 0.0
    %5430 = vmatpush1.msra.mxu0 0.0
    %5431 = vmatprep.subr.mxu0 0.0
    %5432 = vmatpush1.msra.mxu0 0.0
    %5433 = vmatprep.subr.mxu0 0.0
    %5434 = vmatpush1.msra.mxu0 0.0
    %5435 = vmatprep.subr.mxu0 0.0
    %5436 = vmatpush1.msra.mxu0 0.0
    %5437 = vmatprep.subr.mxu0 0.0
    %5438 = vmatpush1.msra.mxu0 0.0
    %5439 = vmatprep.subr.mxu0 0.0
    %5440 = vmatpush1.msra.mxu0 0.0
    %5441 = vmatprep.subr.mxu0 0.0
    %5442 = vmatpush1.msra.mxu0 0.0
    %5443 = vmatprep.subr.mxu0 0.0
    %5444 = vmatpush1.msra.mxu0 0.0
    %5445 = vmatprep.subr.mxu0 0.0
    %5446 = vmatpush1.msra.mxu0 0.0
    %5447 = vmatprep.subr.mxu0 0.0
    %5448 = vmatpush1.msra.mxu0 0.0
    %5449 = vmatprep.subr.mxu0 0.0
    %5450 = vmatpush1.msra.mxu0 0.0
    %5451 = vmatprep.subr.mxu0 0.0
    %5452 = vmatpush1.msra.mxu0 0.0
    %5453 = vmatprep.subr.mxu0 0.0
    %5454 = vmatpush1.msra.mxu0 0.0
    %5455 = vmatprep.subr.mxu0 0.0
    %5456 = vmatpush1.msra.mxu0 %v5348
    %5457 = vmatprep.subr.mxu0 0.0
    %5458 = vmatpush1.msra.mxu0 %v5347
    %5459 = vmatprep.subr.mxu0 0.0
    %5460 = vmatpush2.msra.mxu0 0.0
    %5461 = vmatprep.subr.mxu0 0.0
    %5462 = vmatpush2.msra.mxu0 0.0
    %5463 = vmatprep.subr.mxu0 0.0
    %5464 = vmatpush2.msra.mxu0 0.0
    %5465 = vmatprep.subr.mxu0 0.0
    %5466 = vmatpush2.msra.mxu0 0.0
    %5467 = vmatprep.subr.mxu0 0.0
    %5468 = vmatpush2.msra.mxu0 0.0
    %5469 = vmatprep.subr.mxu0 0.0
    %5470 = vmatpush2.msra.mxu0 0.0
    %5471 = vmatprep.subr.mxu0 0.0
    %5472 = vmatpush2.msra.mxu0 0.0
    %5473 = vmatprep.subr.mxu0 0.0
    %5474 = vmatpush2.msra.mxu0 0.0
    %5475 = vmatprep.subr.mxu0 0.0
    %5476 = vmatpush2.msra.mxu0 0.0
    %5477 = vmatprep.subr.mxu0 0.0
    %5478 = vmatpush2.msra.mxu0 0.0
    %5479 = vmatprep.subr.mxu0 0.0
    %5480 = vmatpush2.msra.mxu0 0.0
    %5481 = vmatprep.subr.mxu0 0.0
    %5482 = vmatpush2.msra.mxu0 0.0
    %5483 = vmatprep.subr.mxu0 0.0
    %5484 = vmatpush2.msra.mxu0 0.0
    %5485 = vmatprep.subr.mxu0 0.0
    %5486 = vmatpush2.msra.mxu0 0.0
    %5487 = vmatprep.subr.mxu0 0.0
    %5488 = vmatpush2.msra.mxu0 0.0
    %5489 = vmatprep.subr.mxu0 0.0
    %5490 = vmatpush2.msra.mxu0 0.0
    %5491 = vmatprep.mubr.f32.mxu0 0.0
    %5492 = vmatmul.mubr.f32.gmra.mxu0 %v5425
    %v5493 = vpop.f32.mrf.mxu0
    %v5494 = vadd.f32 %v5421, %v5493
    %v5495 = vpop.f32.mrf.mxu0
    %5496 = vdwg.mxu0
    %v5497 = vld [vmem:[%s1820] sm:$0xff]
    %v5498 = vld [vmem:[%s1820 + $0x8] sm:$0xff]
    %v5499 = vrot.slane %v1661, 1
    %v5500 = vsel %vm47, %v5499, 0
    %5502 = vmatprep.subr.mxu0 0.0
    %5503 = vmatpush1.msra.mxu0 0.0
    %5504 = vmatprep.subr.mxu0 0.0
    %5505 = vmatpush1.msra.mxu0 0.0
    %5506 = vmatprep.subr.mxu0 0.0
    %5507 = vmatpush1.msra.mxu0 0.0
    %5508 = vmatprep.subr.mxu0 0.0
    %5509 = vmatpush1.msra.mxu0 0.0
    %5510 = vmatprep.subr.mxu0 0.0
    %5511 = vmatpush1.msra.mxu0 0.0
    %5512 = vmatprep.subr.mxu0 0.0
    %5513 = vmatpush1.msra.mxu0 0.0
    %5514 = vmatprep.subr.mxu0 0.0
    %5515 = vmatpush1.msra.mxu0 0.0
    %5516 = vmatprep.subr.mxu0 0.0
    %5517 = vmatpush1.msra.mxu0 0.0
    %5518 = vmatprep.subr.mxu0 0.0
    %5519 = vmatpush1.msra.mxu0 0.0
    %5520 = vmatprep.subr.mxu0 0.0
    %5521 = vmatpush1.msra.mxu0 0.0
    %5522 = vmatprep.subr.mxu0 0.0
    %5523 = vmatpush1.msra.mxu0 0.0
    %5524 = vmatprep.subr.mxu0 0.0
    %5525 = vmatpush1.msra.mxu0 0.0
    %5526 = vmatprep.subr.mxu0 0.0
    %5527 = vmatpush1.msra.mxu0 0.0
    %5528 = vmatprep.subr.mxu0 0.0
    %5529 = vmatpush1.msra.mxu0 0.0
    %5530 = vmatprep.subr.mxu0 0.0
    %5531 = vmatpush1.msra.mxu0 %v5498
    %5532 = vmatprep.subr.mxu0 0.0
    %5533 = vmatpush1.msra.mxu0 %v5497
    %5534 = vmatprep.subr.mxu0 0.0
    %5535 = vmatpush2.msra.mxu0 0.0
    %5536 = vmatprep.subr.mxu0 0.0
    %5537 = vmatpush2.msra.mxu0 0.0
    %5538 = vmatprep.subr.mxu0 0.0
    %5539 = vmatpush2.msra.mxu0 0.0
    %5540 = vmatprep.subr.mxu0 0.0
    %5541 = vmatpush2.msra.mxu0 0.0
    %5542 = vmatprep.subr.mxu0 0.0
    %5543 = vmatpush2.msra.mxu0 0.0
    %5544 = vmatprep.subr.mxu0 0.0
    %5545 = vmatpush2.msra.mxu0 0.0
    %5546 = vmatprep.subr.mxu0 0.0
    %5547 = vmatpush2.msra.mxu0 0.0
    %5548 = vmatprep.subr.mxu0 0.0
    %5549 = vmatpush2.msra.mxu0 0.0
    %5550 = vmatprep.subr.mxu0 0.0
    %5551 = vmatpush2.msra.mxu0 0.0
    %5552 = vmatprep.subr.mxu0 0.0
    %5553 = vmatpush2.msra.mxu0 0.0
    %5554 = vmatprep.subr.mxu0 0.0
    %5555 = vmatpush2.msra.mxu0 0.0
    %5556 = vmatprep.subr.mxu0 0.0
    %5557 = vmatpush2.msra.mxu0 0.0
    %5558 = vmatprep.subr.mxu0 0.0
    %5559 = vmatpush2.msra.mxu0 0.0
    %5560 = vmatprep.subr.mxu0 0.0
    %5561 = vmatpush2.msra.mxu0 0.0
    %5562 = vmatprep.subr.mxu0 0.0
    %5563 = vmatpush2.msra.mxu0 0.0
    %5564 = vmatprep.subr.mxu0 0.0
    %5565 = vmatpush2.msra.mxu0 0.0
    %5566 = vmatprep.mubr.f32.mxu0 0.0
    %5567 = vmatmul.mubr.f32.gmra.mxu0 %v5500
    %v5568 = vpop.f32.mrf.mxu0
    %v5569 = vadd.f32 0.0, %v5568
    %v5570 = vpop.f32.mrf.mxu0
    %5571 = vdwg.mxu0
    %v5572 = vadd.f32 %v5494, %v5569
    %v5573 = vld [vmem:[%s1897] sm:$0xff]
    %v5574 = vld [vmem:[%s1897 + $0x8] sm:$0xff]
    %v5575 = vrot.slane %v1661, 2
    %v5576 = vsel %vm47, %v5575, 0
    %5578 = vmatprep.subr.mxu0 0.0
    %5579 = vmatpush1.msra.mxu0 0.0
    %5580 = vmatprep.subr.mxu0 0.0
    %5581 = vmatpush1.msra.mxu0 0.0
    %5582 = vmatprep.subr.mxu0 0.0
    %5583 = vmatpush1.msra.mxu0 0.0
    %5584 = vmatprep.subr.mxu0 0.0
    %5585 = vmatpush1.msra.mxu0 0.0
    %5586 = vmatprep.subr.mxu0 0.0
    %5587 = vmatpush1.msra.mxu0 0.0
    %5588 = vmatprep.subr.mxu0 0.0
    %5589 = vmatpush1.msra.mxu0 0.0
    %5590 = vmatprep.subr.mxu0 0.0
    %5591 = vmatpush1.msra.mxu0 0.0
    %5592 = vmatprep.subr.mxu0 0.0
    %5593 = vmatpush1.msra.mxu0 0.0
    %5594 = vmatprep.subr.mxu0 0.0
    %5595 = vmatpush1.msra.mxu0 0.0
    %5596 = vmatprep.subr.mxu0 0.0
    %5597 = vmatpush1.msra.mxu0 0.0
    %5598 = vmatprep.subr.mxu0 0.0
    %5599 = vmatpush1.msra.mxu0 0.0
    %5600 = vmatprep.subr.mxu0 0.0
    %5601 = vmatpush1.msra.mxu0 0.0
    %5602 = vmatprep.subr.mxu0 0.0
    %5603 = vmatpush1.msra.mxu0 0.0
    %5604 = vmatprep.subr.mxu0 0.0
    %5605 = vmatpush1.msra.mxu0 0.0
    %5606 = vmatprep.subr.mxu0 0.0
    %5607 = vmatpush1.msra.mxu0 %v5574
    %5608 = vmatprep.subr.mxu0 0.0
    %5609 = vmatpush1.msra.mxu0 %v5573
    %5610 = vmatprep.subr.mxu0 0.0
    %5611 = vmatpush2.msra.mxu0 0.0
    %5612 = vmatprep.subr.mxu0 0.0
    %5613 = vmatpush2.msra.mxu0 0.0
    %5614 = vmatprep.subr.mxu0 0.0
    %5615 = vmatpush2.msra.mxu0 0.0
    %5616 = vmatprep.subr.mxu0 0.0
    %5617 = vmatpush2.msra.mxu0 0.0
    %5618 = vmatprep.subr.mxu0 0.0
    %5619 = vmatpush2.msra.mxu0 0.0
    %5620 = vmatprep.subr.mxu0 0.0
    %5621 = vmatpush2.msra.mxu0 0.0
    %5622 = vmatprep.subr.mxu0 0.0
    %5623 = vmatpush2.msra.mxu0 0.0
    %5624 = vmatprep.subr.mxu0 0.0
    %5625 = vmatpush2.msra.mxu0 0.0
    %5626 = vmatprep.subr.mxu0 0.0
    %5627 = vmatpush2.msra.mxu0 0.0
    %5628 = vmatprep.subr.mxu0 0.0
    %5629 = vmatpush2.msra.mxu0 0.0
    %5630 = vmatprep.subr.mxu0 0.0
    %5631 = vmatpush2.msra.mxu0 0.0
    %5632 = vmatprep.subr.mxu0 0.0
    %5633 = vmatpush2.msra.mxu0 0.0
    %5634 = vmatprep.subr.mxu0 0.0
    %5635 = vmatpush2.msra.mxu0 0.0
    %5636 = vmatprep.subr.mxu0 0.0
    %5637 = vmatpush2.msra.mxu0 0.0
    %5638 = vmatprep.subr.mxu0 0.0
    %5639 = vmatpush2.msra.mxu0 0.0
    %5640 = vmatprep.subr.mxu0 0.0
    %5641 = vmatpush2.msra.mxu0 0.0
    %5642 = vmatprep.mubr.f32.mxu0 0.0
    %5643 = vmatmul.mubr.f32.gmra.mxu0 %v5576
    %v5644 = vpop.f32.mrf.mxu0
    %v5645 = vadd.f32 0.0, %v5644
    %v5646 = vpop.f32.mrf.mxu0
    %5647 = vdwg.mxu0
    %v5648 = vadd.f32 %v5572, %v5645
    %v5649 = vld [vmem:[%s1974] sm:$0xff]
    %v5650 = vld [vmem:[%s1974 + $0x8] sm:$0xff]
    %v5651 = vrot.slane %v1661, 3
    %v5652 = vsel %vm47, %v5651, 0
    %5654 = vmatprep.subr.mxu0 0.0
    %5655 = vmatpush1.msra.mxu0 0.0
    %5656 = vmatprep.subr.mxu0 0.0
    %5657 = vmatpush1.msra.mxu0 0.0
    %5658 = vmatprep.subr.mxu0 0.0
    %5659 = vmatpush1.msra.mxu0 0.0
    %5660 = vmatprep.subr.mxu0 0.0
    %5661 = vmatpush1.msra.mxu0 0.0
    %5662 = vmatprep.subr.mxu0 0.0
    %5663 = vmatpush1.msra.mxu0 0.0
    %5664 = vmatprep.subr.mxu0 0.0
    %5665 = vmatpush1.msra.mxu0 0.0
    %5666 = vmatprep.subr.mxu0 0.0
    %5667 = vmatpush1.msra.mxu0 0.0
    %5668 = vmatprep.subr.mxu0 0.0
    %5669 = vmatpush1.msra.mxu0 0.0
    %5670 = vmatprep.subr.mxu0 0.0
    %5671 = vmatpush1.msra.mxu0 0.0
    %5672 = vmatprep.subr.mxu0 0.0
    %5673 = vmatpush1.msra.mxu0 0.0
    %5674 = vmatprep.subr.mxu0 0.0
    %5675 = vmatpush1.msra.mxu0 0.0
    %5676 = vmatprep.subr.mxu0 0.0
    %5677 = vmatpush1.msra.mxu0 0.0
    %5678 = vmatprep.subr.mxu0 0.0
    %5679 = vmatpush1.msra.mxu0 0.0
    %5680 = vmatprep.subr.mxu0 0.0
    %5681 = vmatpush1.msra.mxu0 0.0
    %5682 = vmatprep.subr.mxu0 0.0
    %5683 = vmatpush1.msra.mxu0 %v5650
    %5684 = vmatprep.subr.mxu0 0.0
    %5685 = vmatpush1.msra.mxu0 %v5649
    %5686 = vmatprep.subr.mxu0 0.0
    %5687 = vmatpush2.msra.mxu0 0.0
    %5688 = vmatprep.subr.mxu0 0.0
    %5689 = vmatpush2.msra.mxu0 0.0
    %5690 = vmatprep.subr.mxu0 0.0
    %5691 = vmatpush2.msra.mxu0 0.0
    %5692 = vmatprep.subr.mxu0 0.0
    %5693 = vmatpush2.msra.mxu0 0.0
    %5694 = vmatprep.subr.mxu0 0.0
    %5695 = vmatpush2.msra.mxu0 0.0
    %5696 = vmatprep.subr.mxu0 0.0
    %5697 = vmatpush2.msra.mxu0 0.0
    %5698 = vmatprep.subr.mxu0 0.0
    %5699 = vmatpush2.msra.mxu0 0.0
    %5700 = vmatprep.subr.mxu0 0.0
    %5701 = vmatpush2.msra.mxu0 0.0
    %5702 = vmatprep.subr.mxu0 0.0
    %5703 = vmatpush2.msra.mxu0 0.0
    %5704 = vmatprep.subr.mxu0 0.0
    %5705 = vmatpush2.msra.mxu0 0.0
    %5706 = vmatprep.subr.mxu0 0.0
    %5707 = vmatpush2.msra.mxu0 0.0
    %5708 = vmatprep.subr.mxu0 0.0
    %5709 = vmatpush2.msra.mxu0 0.0
    %5710 = vmatprep.subr.mxu0 0.0
    %5711 = vmatpush2.msra.mxu0 0.0
    %5712 = vmatprep.subr.mxu0 0.0
    %5713 = vmatpush2.msra.mxu0 0.0
    %5714 = vmatprep.subr.mxu0 0.0
    %5715 = vmatpush2.msra.mxu0 0.0
    %5716 = vmatprep.subr.mxu0 0.0
    %5717 = vmatpush2.msra.mxu0 0.0
    %5718 = vmatprep.mubr.f32.mxu0 0.0
    %5719 = vmatmul.mubr.f32.gmra.mxu0 %v5652
    %v5720 = vpop.f32.mrf.mxu0
    %v5721 = vadd.f32 0.0, %v5720
    %v5722 = vpop.f32.mrf.mxu0
    %5723 = vdwg.mxu0
    %v5724 = vadd.f32 %v5648, %v5721
    %v5725 = vld [vmem:[%s2051] sm:$0xff]
    %v5726 = vld [vmem:[%s2051 + $0x8] sm:$0xff]
    %v5727 = vrot.slane %v1661, 4
    %v5728 = vsel %vm47, %v5727, 0
    %5730 = vmatprep.subr.mxu0 0.0
    %5731 = vmatpush1.msra.mxu0 0.0
    %5732 = vmatprep.subr.mxu0 0.0
    %5733 = vmatpush1.msra.mxu0 0.0
    %5734 = vmatprep.subr.mxu0 0.0
    %5735 = vmatpush1.msra.mxu0 0.0
    %5736 = vmatprep.subr.mxu0 0.0
    %5737 = vmatpush1.msra.mxu0 0.0
    %5738 = vmatprep.subr.mxu0 0.0
    %5739 = vmatpush1.msra.mxu0 0.0
    %5740 = vmatprep.subr.mxu0 0.0
    %5741 = vmatpush1.msra.mxu0 0.0
    %5742 = vmatprep.subr.mxu0 0.0
    %5743 = vmatpush1.msra.mxu0 0.0
    %5744 = vmatprep.subr.mxu0 0.0
    %5745 = vmatpush1.msra.mxu0 0.0
    %5746 = vmatprep.subr.mxu0 0.0
    %5747 = vmatpush1.msra.mxu0 0.0
    %5748 = vmatprep.subr.mxu0 0.0
    %5749 = vmatpush1.msra.mxu0 0.0
    %5750 = vmatprep.subr.mxu0 0.0
    %5751 = vmatpush1.msra.mxu0 0.0
    %5752 = vmatprep.subr.mxu0 0.0
    %5753 = vmatpush1.msra.mxu0 0.0
    %5754 = vmatprep.subr.mxu0 0.0
    %5755 = vmatpush1.msra.mxu0 0.0
    %5756 = vmatprep.subr.mxu0 0.0
    %5757 = vmatpush1.msra.mxu0 0.0
    %5758 = vmatprep.subr.mxu0 0.0
    %5759 = vmatpush1.msra.mxu0 %v5726
    %5760 = vmatprep.subr.mxu0 0.0
    %5761 = vmatpush1.msra.mxu0 %v5725
    %5762 = vmatprep.subr.mxu0 0.0
    %5763 = vmatpush2.msra.mxu0 0.0
    %5764 = vmatprep.subr.mxu0 0.0
    %5765 = vmatpush2.msra.mxu0 0.0
    %5766 = vmatprep.subr.mxu0 0.0
    %5767 = vmatpush2.msra.mxu0 0.0
    %5768 = vmatprep.subr.mxu0 0.0
    %5769 = vmatpush2.msra.mxu0 0.0
    %5770 = vmatprep.subr.mxu0 0.0
    %5771 = vmatpush2.msra.mxu0 0.0
    %5772 = vmatprep.subr.mxu0 0.0
    %5773 = vmatpush2.msra.mxu0 0.0
    %5774 = vmatprep.subr.mxu0 0.0
    %5775 = vmatpush2.msra.mxu0 0.0
    %5776 = vmatprep.subr.mxu0 0.0
    %5777 = vmatpush2.msra.mxu0 0.0
    %5778 = vmatprep.subr.mxu0 0.0
    %5779 = vmatpush2.msra.mxu0 0.0
    %5780 = vmatprep.subr.mxu0 0.0
    %5781 = vmatpush2.msra.mxu0 0.0
    %5782 = vmatprep.subr.mxu0 0.0
    %5783 = vmatpush2.msra.mxu0 0.0
    %5784 = vmatprep.subr.mxu0 0.0
    %5785 = vmatpush2.msra.mxu0 0.0
    %5786 = vmatprep.subr.mxu0 0.0
    %5787 = vmatpush2.msra.mxu0 0.0
    %5788 = vmatprep.subr.mxu0 0.0
    %5789 = vmatpush2.msra.mxu0 0.0
    %5790 = vmatprep.subr.mxu0 0.0
    %5791 = vmatpush2.msra.mxu0 0.0
    %5792 = vmatprep.subr.mxu0 0.0
    %5793 = vmatpush2.msra.mxu0 0.0
    %5794 = vmatprep.mubr.f32.mxu0 0.0
    %5795 = vmatmul.mubr.f32.gmra.mxu0 %v5728
    %v5796 = vpop.f32.mrf.mxu0
    %v5797 = vadd.f32 0.0, %v5796
    %v5798 = vpop.f32.mrf.mxu0
    %5799 = vdwg.mxu0
    %v5800 = vadd.f32 %v5724, %v5797
    %v5801 = vld [vmem:[%s2128] sm:$0xff]
    %v5802 = vld [vmem:[%s2128 + $0x8] sm:$0xff]
    %v5803 = vrot.slane %v1661, 5
    %v5804 = vsel %vm47, %v5803, 0
    %5806 = vmatprep.subr.mxu0 0.0
    %5807 = vmatpush1.msra.mxu0 0.0
    %5808 = vmatprep.subr.mxu0 0.0
    %5809 = vmatpush1.msra.mxu0 0.0
    %5810 = vmatprep.subr.mxu0 0.0
    %5811 = vmatpush1.msra.mxu0 0.0
    %5812 = vmatprep.subr.mxu0 0.0
    %5813 = vmatpush1.msra.mxu0 0.0
    %5814 = vmatprep.subr.mxu0 0.0
    %5815 = vmatpush1.msra.mxu0 0.0
    %5816 = vmatprep.subr.mxu0 0.0
    %5817 = vmatpush1.msra.mxu0 0.0
    %5818 = vmatprep.subr.mxu0 0.0
    %5819 = vmatpush1.msra.mxu0 0.0
    %5820 = vmatprep.subr.mxu0 0.0
    %5821 = vmatpush1.msra.mxu0 0.0
    %5822 = vmatprep.subr.mxu0 0.0
    %5823 = vmatpush1.msra.mxu0 0.0
    %5824 = vmatprep.subr.mxu0 0.0
    %5825 = vmatpush1.msra.mxu0 0.0
    %5826 = vmatprep.subr.mxu0 0.0
    %5827 = vmatpush1.msra.mxu0 0.0
    %5828 = vmatprep.subr.mxu0 0.0
    %5829 = vmatpush1.msra.mxu0 0.0
    %5830 = vmatprep.subr.mxu0 0.0
    %5831 = vmatpush1.msra.mxu0 0.0
    %5832 = vmatprep.subr.mxu0 0.0
    %5833 = vmatpush1.msra.mxu0 0.0
    %5834 = vmatprep.subr.mxu0 0.0
    %5835 = vmatpush1.msra.mxu0 %v5802
    %5836 = vmatprep.subr.mxu0 0.0
    %5837 = vmatpush1.msra.mxu0 %v5801
    %5838 = vmatprep.subr.mxu0 0.0
    %5839 = vmatpush2.msra.mxu0 0.0
    %5840 = vmatprep.subr.mxu0 0.0
    %5841 = vmatpush2.msra.mxu0 0.0
    %5842 = vmatprep.subr.mxu0 0.0
    %5843 = vmatpush2.msra.mxu0 0.0
    %5844 = vmatprep.subr.mxu0 0.0
    %5845 = vmatpush2.msra.mxu0 0.0
    %5846 = vmatprep.subr.mxu0 0.0
    %5847 = vmatpush2.msra.mxu0 0.0
    %5848 = vmatprep.subr.mxu0 0.0
    %5849 = vmatpush2.msra.mxu0 0.0
    %5850 = vmatprep.subr.mxu0 0.0
    %5851 = vmatpush2.msra.mxu0 0.0
    %5852 = vmatprep.subr.mxu0 0.0
    %5853 = vmatpush2.msra.mxu0 0.0
    %5854 = vmatprep.subr.mxu0 0.0
    %5855 = vmatpush2.msra.mxu0 0.0
    %5856 = vmatprep.subr.mxu0 0.0
    %5857 = vmatpush2.msra.mxu0 0.0
    %5858 = vmatprep.subr.mxu0 0.0
    %5859 = vmatpush2.msra.mxu0 0.0
    %5860 = vmatprep.subr.mxu0 0.0
    %5861 = vmatpush2.msra.mxu0 0.0
    %5862 = vmatprep.subr.mxu0 0.0
    %5863 = vmatpush2.msra.mxu0 0.0
    %5864 = vmatprep.subr.mxu0 0.0
    %5865 = vmatpush2.msra.mxu0 0.0
    %5866 = vmatprep.subr.mxu0 0.0
    %5867 = vmatpush2.msra.mxu0 0.0
    %5868 = vmatprep.subr.mxu0 0.0
    %5869 = vmatpush2.msra.mxu0 0.0
    %5870 = vmatprep.mubr.f32.mxu0 0.0
    %5871 = vmatmul.mubr.f32.gmra.mxu0 %v5804
    %v5872 = vpop.f32.mrf.mxu0
    %v5873 = vadd.f32 0.0, %v5872
    %v5874 = vpop.f32.mrf.mxu0
    %5875 = vdwg.mxu0
    %v5876 = vadd.f32 %v5800, %v5873
    %v5877 = vld [vmem:[%s2205] sm:$0xff]
    %v5878 = vld [vmem:[%s2205 + $0x8] sm:$0xff]
    %v5879 = vrot.slane %v1661, 6
    %v5880 = vsel %vm47, %v5879, 0
    %5882 = vmatprep.subr.mxu0 0.0
    %5883 = vmatpush1.msra.mxu0 0.0
    %5884 = vmatprep.subr.mxu0 0.0
    %5885 = vmatpush1.msra.mxu0 0.0
    %5886 = vmatprep.subr.mxu0 0.0
    %5887 = vmatpush1.msra.mxu0 0.0
    %5888 = vmatprep.subr.mxu0 0.0
    %5889 = vmatpush1.msra.mxu0 0.0
    %5890 = vmatprep.subr.mxu0 0.0
    %5891 = vmatpush1.msra.mxu0 0.0
    %5892 = vmatprep.subr.mxu0 0.0
    %5893 = vmatpush1.msra.mxu0 0.0
    %5894 = vmatprep.subr.mxu0 0.0
    %5895 = vmatpush1.msra.mxu0 0.0
    %5896 = vmatprep.subr.mxu0 0.0
    %5897 = vmatpush1.msra.mxu0 0.0
    %5898 = vmatprep.subr.mxu0 0.0
    %5899 = vmatpush1.msra.mxu0 0.0
    %5900 = vmatprep.subr.mxu0 0.0
    %5901 = vmatpush1.msra.mxu0 0.0
    %5902 = vmatprep.subr.mxu0 0.0
    %5903 = vmatpush1.msra.mxu0 0.0
    %5904 = vmatprep.subr.mxu0 0.0
    %5905 = vmatpush1.msra.mxu0 0.0
    %5906 = vmatprep.subr.mxu0 0.0
    %5907 = vmatpush1.msra.mxu0 0.0
    %5908 = vmatprep.subr.mxu0 0.0
    %5909 = vmatpush1.msra.mxu0 0.0
    %5910 = vmatprep.subr.mxu0 0.0
    %5911 = vmatpush1.msra.mxu0 %v5878
    %5912 = vmatprep.subr.mxu0 0.0
    %5913 = vmatpush1.msra.mxu0 %v5877
    %5914 = vmatprep.subr.mxu0 0.0
    %5915 = vmatpush2.msra.mxu0 0.0
    %5916 = vmatprep.subr.mxu0 0.0
    %5917 = vmatpush2.msra.mxu0 0.0
    %5918 = vmatprep.subr.mxu0 0.0
    %5919 = vmatpush2.msra.mxu0 0.0
    %5920 = vmatprep.subr.mxu0 0.0
    %5921 = vmatpush2.msra.mxu0 0.0
    %5922 = vmatprep.subr.mxu0 0.0
    %5923 = vmatpush2.msra.mxu0 0.0
    %5924 = vmatprep.subr.mxu0 0.0
    %5925 = vmatpush2.msra.mxu0 0.0
    %5926 = vmatprep.subr.mxu0 0.0
    %5927 = vmatpush2.msra.mxu0 0.0
    %5928 = vmatprep.subr.mxu0 0.0
    %5929 = vmatpush2.msra.mxu0 0.0
    %5930 = vmatprep.subr.mxu0 0.0
    %5931 = vmatpush2.msra.mxu0 0.0
    %5932 = vmatprep.subr.mxu0 0.0
    %5933 = vmatpush2.msra.mxu0 0.0
    %5934 = vmatprep.subr.mxu0 0.0
    %5935 = vmatpush2.msra.mxu0 0.0
    %5936 = vmatprep.subr.mxu0 0.0
    %5937 = vmatpush2.msra.mxu0 0.0
    %5938 = vmatprep.subr.mxu0 0.0
    %5939 = vmatpush2.msra.mxu0 0.0
    %5940 = vmatprep.subr.mxu0 0.0
    %5941 = vmatpush2.msra.mxu0 0.0
    %5942 = vmatprep.subr.mxu0 0.0
    %5943 = vmatpush2.msra.mxu0 0.0
    %5944 = vmatprep.subr.mxu0 0.0
    %5945 = vmatpush2.msra.mxu0 0.0
    %5946 = vmatprep.mubr.f32.mxu0 0.0
    %5947 = vmatmul.mubr.f32.gmra.mxu0 %v5880
    %v5948 = vpop.f32.mrf.mxu0
    %v5949 = vadd.f32 0.0, %v5948
    %v5950 = vpop.f32.mrf.mxu0
    %5951 = vdwg.mxu0
    %v5952 = vadd.f32 %v5876, %v5949
    %v5953 = vld [vmem:[%s2282] sm:$0xff]
    %v5954 = vld [vmem:[%s2282 + $0x8] sm:$0xff]
    %v5955 = vrot.slane %v1661, 7
    %v5956 = vsel %vm47, %v5955, 0
    %5958 = vmatprep.subr.mxu0 0.0
    %5959 = vmatpush1.msra.mxu0 0.0
    %5960 = vmatprep.subr.mxu0 0.0
    %5961 = vmatpush1.msra.mxu0 0.0
    %5962 = vmatprep.subr.mxu0 0.0
    %5963 = vmatpush1.msra.mxu0 0.0
    %5964 = vmatprep.subr.mxu0 0.0
    %5965 = vmatpush1.msra.mxu0 0.0
    %5966 = vmatprep.subr.mxu0 0.0
    %5967 = vmatpush1.msra.mxu0 0.0
    %5968 = vmatprep.subr.mxu0 0.0
    %5969 = vmatpush1.msra.mxu0 0.0
    %5970 = vmatprep.subr.mxu0 0.0
    %5971 = vmatpush1.msra.mxu0 0.0
    %5972 = vmatprep.subr.mxu0 0.0
    %5973 = vmatpush1.msra.mxu0 0.0
    %5974 = vmatprep.subr.mxu0 0.0
    %5975 = vmatpush1.msra.mxu0 0.0
    %5976 = vmatprep.subr.mxu0 0.0
    %5977 = vmatpush1.msra.mxu0 0.0
    %5978 = vmatprep.subr.mxu0 0.0
    %5979 = vmatpush1.msra.mxu0 0.0
    %5980 = vmatprep.subr.mxu0 0.0
    %5981 = vmatpush1.msra.mxu0 0.0
    %5982 = vmatprep.subr.mxu0 0.0
    %5983 = vmatpush1.msra.mxu0 0.0
    %5984 = vmatprep.subr.mxu0 0.0
    %5985 = vmatpush1.msra.mxu0 0.0
    %5986 = vmatprep.subr.mxu0 0.0
    %5987 = vmatpush1.msra.mxu0 %v5954
    %5988 = vmatprep.subr.mxu0 0.0
    %5989 = vmatpush1.msra.mxu0 %v5953
    %5990 = vmatprep.subr.mxu0 0.0
    %5991 = vmatpush2.msra.mxu0 0.0
    %5992 = vmatprep.subr.mxu0 0.0
    %5993 = vmatpush2.msra.mxu0 0.0
    %5994 = vmatprep.subr.mxu0 0.0
    %5995 = vmatpush2.msra.mxu0 0.0
    %5996 = vmatprep.subr.mxu0 0.0
    %5997 = vmatpush2.msra.mxu0 0.0
    %5998 = vmatprep.subr.mxu0 0.0
    %5999 = vmatpush2.msra.mxu0 0.0
    %6000 = vmatprep.subr.mxu0 0.0
    %6001 = vmatpush2.msra.mxu0 0.0
    %6002 = vmatprep.subr.mxu0 0.0
    %6003 = vmatpush2.msra.mxu0 0.0
    %6004 = vmatprep.subr.mxu0 0.0
    %6005 = vmatpush2.msra.mxu0 0.0
    %6006 = vmatprep.subr.mxu0 0.0
    %6007 = vmatpush2.msra.mxu0 0.0
    %6008 = vmatprep.subr.mxu0 0.0
    %6009 = vmatpush2.msra.mxu0 0.0
    %6010 = vmatprep.subr.mxu0 0.0
    %6011 = vmatpush2.msra.mxu0 0.0
    %6012 = vmatprep.subr.mxu0 0.0
    %6013 = vmatpush2.msra.mxu0 0.0
    %6014 = vmatprep.subr.mxu0 0.0
    %6015 = vmatpush2.msra.mxu0 0.0
    %6016 = vmatprep.subr.mxu0 0.0
    %6017 = vmatpush2.msra.mxu0 0.0
    %6018 = vmatprep.subr.mxu0 0.0
    %6019 = vmatpush2.msra.mxu0 0.0
    %6020 = vmatprep.subr.mxu0 0.0
    %6021 = vmatpush2.msra.mxu0 0.0
    %6022 = vmatprep.mubr.f32.mxu0 0.0
    %6023 = vmatmul.mubr.f32.gmra.mxu0 %v5956
    %v6024 = vpop.f32.mrf.mxu0
    %v6025 = vadd.f32 0.0, %v6024
    %v6026 = vpop.f32.mrf.mxu0
    %6027 = vdwg.mxu0
    %v6028 = vadd.f32 %v5952, %v6025
    %v6029 = vld [vmem:[%s2359] sm:$0xff]
    %v6030 = vld [vmem:[%s2359 + $0x8] sm:$0xff]
    %v6032 = vsel %vm47, %v1662, 0
    %6034 = vmatprep.subr.mxu0 0.0
    %6035 = vmatpush1.msra.mxu0 0.0
    %6036 = vmatprep.subr.mxu0 0.0
    %6037 = vmatpush1.msra.mxu0 0.0
    %6038 = vmatprep.subr.mxu0 0.0
    %6039 = vmatpush1.msra.mxu0 0.0
    %6040 = vmatprep.subr.mxu0 0.0
    %6041 = vmatpush1.msra.mxu0 0.0
    %6042 = vmatprep.subr.mxu0 0.0
    %6043 = vmatpush1.msra.mxu0 0.0
    %6044 = vmatprep.subr.mxu0 0.0
    %6045 = vmatpush1.msra.mxu0 0.0
    %6046 = vmatprep.subr.mxu0 0.0
    %6047 = vmatpush1.msra.mxu0 0.0
    %6048 = vmatprep.subr.mxu0 0.0
    %6049 = vmatpush1.msra.mxu0 0.0
    %6050 = vmatprep.subr.mxu0 0.0
    %6051 = vmatpush1.msra.mxu0 0.0
    %6052 = vmatprep.subr.mxu0 0.0
    %6053 = vmatpush1.msra.mxu0 0.0
    %6054 = vmatprep.subr.mxu0 0.0
    %6055 = vmatpush1.msra.mxu0 0.0
    %6056 = vmatprep.subr.mxu0 0.0
    %6057 = vmatpush1.msra.mxu0 0.0
    %6058 = vmatprep.subr.mxu0 0.0
    %6059 = vmatpush1.msra.mxu0 0.0
    %6060 = vmatprep.subr.mxu0 0.0
    %6061 = vmatpush1.msra.mxu0 0.0
    %6062 = vmatprep.subr.mxu0 0.0
    %6063 = vmatpush1.msra.mxu0 %v6030
    %6064 = vmatprep.subr.mxu0 0.0
    %6065 = vmatpush1.msra.mxu0 %v6029
    %6066 = vmatprep.subr.mxu0 0.0
    %6067 = vmatpush2.msra.mxu0 0.0
    %6068 = vmatprep.subr.mxu0 0.0
    %6069 = vmatpush2.msra.mxu0 0.0
    %6070 = vmatprep.subr.mxu0 0.0
    %6071 = vmatpush2.msra.mxu0 0.0
    %6072 = vmatprep.subr.mxu0 0.0
    %6073 = vmatpush2.msra.mxu0 0.0
    %6074 = vmatprep.subr.mxu0 0.0
    %6075 = vmatpush2.msra.mxu0 0.0
    %6076 = vmatprep.subr.mxu0 0.0
    %6077 = vmatpush2.msra.mxu0 0.0
    %6078 = vmatprep.subr.mxu0 0.0
    %6079 = vmatpush2.msra.mxu0 0.0
    %6080 = vmatprep.subr.mxu0 0.0
    %6081 = vmatpush2.msra.mxu0 0.0
    %6082 = vmatprep.subr.mxu0 0.0
    %6083 = vmatpush2.msra.mxu0 0.0
    %6084 = vmatprep.subr.mxu0 0.0
    %6085 = vmatpush2.msra.mxu0 0.0
    %6086 = vmatprep.subr.mxu0 0.0
    %6087 = vmatpush2.msra.mxu0 0.0
    %6088 = vmatprep.subr.mxu0 0.0
    %6089 = vmatpush2.msra.mxu0 0.0
    %6090 = vmatprep.subr.mxu0 0.0
    %6091 = vmatpush2.msra.mxu0 0.0
    %6092 = vmatprep.subr.mxu0 0.0
    %6093 = vmatpush2.msra.mxu0 0.0
    %6094 = vmatprep.subr.mxu0 0.0
    %6095 = vmatpush2.msra.mxu0 0.0
    %6096 = vmatprep.subr.mxu0 0.0
    %6097 = vmatpush2.msra.mxu0 0.0
    %6098 = vmatprep.mubr.f32.mxu0 0.0
    %6099 = vmatmul.mubr.f32.gmra.mxu0 %v6032
    %v6100 = vpop.f32.mrf.mxu0
    %v6101 = vadd.f32 0.0, %v6100
    %v6102 = vpop.f32.mrf.mxu0
    %6103 = vdwg.mxu0
    %v6104 = vadd.f32 %v6028, %v6101
    %v6105 = vld [vmem:[%s2436] sm:$0xff]
    %v6106 = vld [vmem:[%s2436 + $0x8] sm:$0xff]
    %v6107 = vrot.slane %v1662, 1
    %v6108 = vsel %vm47, %v6107, 0
    %6110 = vmatprep.subr.mxu0 0.0
    %6111 = vmatpush1.msra.mxu0 0.0
    %6112 = vmatprep.subr.mxu0 0.0
    %6113 = vmatpush1.msra.mxu0 0.0
    %6114 = vmatprep.subr.mxu0 0.0
    %6115 = vmatpush1.msra.mxu0 0.0
    %6116 = vmatprep.subr.mxu0 0.0
    %6117 = vmatpush1.msra.mxu0 0.0
    %6118 = vmatprep.subr.mxu0 0.0
    %6119 = vmatpush1.msra.mxu0 0.0
    %6120 = vmatprep.subr.mxu0 0.0
    %6121 = vmatpush1.msra.mxu0 0.0
    %6122 = vmatprep.subr.mxu0 0.0
    %6123 = vmatpush1.msra.mxu0 0.0
    %6124 = vmatprep.subr.mxu0 0.0
    %6125 = vmatpush1.msra.mxu0 0.0
    %6126 = vmatprep.subr.mxu0 0.0
    %6127 = vmatpush1.msra.mxu0 0.0
    %6128 = vmatprep.subr.mxu0 0.0
    %6129 = vmatpush1.msra.mxu0 0.0
    %6130 = vmatprep.subr.mxu0 0.0
    %6131 = vmatpush1.msra.mxu0 0.0
    %6132 = vmatprep.subr.mxu0 0.0
    %6133 = vmatpush1.msra.mxu0 0.0
    %6134 = vmatprep.subr.mxu0 0.0
    %6135 = vmatpush1.msra.mxu0 0.0
    %6136 = vmatprep.subr.mxu0 0.0
    %6137 = vmatpush1.msra.mxu0 0.0
    %6138 = vmatprep.subr.mxu0 0.0
    %6139 = vmatpush1.msra.mxu0 %v6106
    %6140 = vmatprep.subr.mxu0 0.0
    %6141 = vmatpush1.msra.mxu0 %v6105
    %6142 = vmatprep.subr.mxu0 0.0
    %6143 = vmatpush2.msra.mxu0 0.0
    %6144 = vmatprep.subr.mxu0 0.0
    %6145 = vmatpush2.msra.mxu0 0.0
    %6146 = vmatprep.subr.mxu0 0.0
    %6147 = vmatpush2.msra.mxu0 0.0
    %6148 = vmatprep.subr.mxu0 0.0
    %6149 = vmatpush2.msra.mxu0 0.0
    %6150 = vmatprep.subr.mxu0 0.0
    %6151 = vmatpush2.msra.mxu0 0.0
    %6152 = vmatprep.subr.mxu0 0.0
    %6153 = vmatpush2.msra.mxu0 0.0
    %6154 = vmatprep.subr.mxu0 0.0
    %6155 = vmatpush2.msra.mxu0 0.0
    %6156 = vmatprep.subr.mxu0 0.0
    %6157 = vmatpush2.msra.mxu0 0.0
    %6158 = vmatprep.subr.mxu0 0.0
    %6159 = vmatpush2.msra.mxu0 0.0
    %6160 = vmatprep.subr.mxu0 0.0
    %6161 = vmatpush2.msra.mxu0 0.0
    %6162 = vmatprep.subr.mxu0 0.0
    %6163 = vmatpush2.msra.mxu0 0.0
    %6164 = vmatprep.subr.mxu0 0.0
    %6165 = vmatpush2.msra.mxu0 0.0
    %6166 = vmatprep.subr.mxu0 0.0
    %6167 = vmatpush2.msra.mxu0 0.0
    %6168 = vmatprep.subr.mxu0 0.0
    %6169 = vmatpush2.msra.mxu0 0.0
    %6170 = vmatprep.subr.mxu0 0.0
    %6171 = vmatpush2.msra.mxu0 0.0
    %6172 = vmatprep.subr.mxu0 0.0
    %6173 = vmatpush2.msra.mxu0 0.0
    %6174 = vmatprep.mubr.f32.mxu0 0.0
    %6175 = vmatmul.mubr.f32.gmra.mxu0 %v6108
    %v6176 = vpop.f32.mrf.mxu0
    %v6177 = vadd.f32 0.0, %v6176
    %v6178 = vpop.f32.mrf.mxu0
    %6179 = vdwg.mxu0
    %v6180 = vadd.f32 %v6104, %v6177
    %v6181 = vld [vmem:[%s2513] sm:$0xff]
    %v6182 = vld [vmem:[%s2513 + $0x8] sm:$0xff]
    %v6183 = vrot.slane %v1662, 2
    %v6184 = vsel %vm47, %v6183, 0
    %6186 = vmatprep.subr.mxu0 0.0
    %6187 = vmatpush1.msra.mxu0 0.0
    %6188 = vmatprep.subr.mxu0 0.0
    %6189 = vmatpush1.msra.mxu0 0.0
    %6190 = vmatprep.subr.mxu0 0.0
    %6191 = vmatpush1.msra.mxu0 0.0
    %6192 = vmatprep.subr.mxu0 0.0
    %6193 = vmatpush1.msra.mxu0 0.0
    %6194 = vmatprep.subr.mxu0 0.0
    %6195 = vmatpush1.msra.mxu0 0.0
    %6196 = vmatprep.subr.mxu0 0.0
    %6197 = vmatpush1.msra.mxu0 0.0
    %6198 = vmatprep.subr.mxu0 0.0
    %6199 = vmatpush1.msra.mxu0 0.0
    %6200 = vmatprep.subr.mxu0 0.0
    %6201 = vmatpush1.msra.mxu0 0.0
    %6202 = vmatprep.subr.mxu0 0.0
    %6203 = vmatpush1.msra.mxu0 0.0
    %6204 = vmatprep.subr.mxu0 0.0
    %6205 = vmatpush1.msra.mxu0 0.0
    %6206 = vmatprep.subr.mxu0 0.0
    %6207 = vmatpush1.msra.mxu0 0.0
    %6208 = vmatprep.subr.mxu0 0.0
    %6209 = vmatpush1.msra.mxu0 0.0
    %6210 = vmatprep.subr.mxu0 0.0
    %6211 = vmatpush1.msra.mxu0 0.0
    %6212 = vmatprep.subr.mxu0 0.0
    %6213 = vmatpush1.msra.mxu0 0.0
    %6214 = vmatprep.subr.mxu0 0.0
    %6215 = vmatpush1.msra.mxu0 %v6182
    %6216 = vmatprep.subr.mxu0 0.0
    %6217 = vmatpush1.msra.mxu0 %v6181
    %6218 = vmatprep.subr.mxu0 0.0
    %6219 = vmatpush2.msra.mxu0 0.0
    %6220 = vmatprep.subr.mxu0 0.0
    %6221 = vmatpush2.msra.mxu0 0.0
    %6222 = vmatprep.subr.mxu0 0.0
    %6223 = vmatpush2.msra.mxu0 0.0
    %6224 = vmatprep.subr.mxu0 0.0
    %6225 = vmatpush2.msra.mxu0 0.0
    %6226 = vmatprep.subr.mxu0 0.0
    %6227 = vmatpush2.msra.mxu0 0.0
    %6228 = vmatprep.subr.mxu0 0.0
    %6229 = vmatpush2.msra.mxu0 0.0
    %6230 = vmatprep.subr.mxu0 0.0
    %6231 = vmatpush2.msra.mxu0 0.0
    %6232 = vmatprep.subr.mxu0 0.0
    %6233 = vmatpush2.msra.mxu0 0.0
    %6234 = vmatprep.subr.mxu0 0.0
    %6235 = vmatpush2.msra.mxu0 0.0
    %6236 = vmatprep.subr.mxu0 0.0
    %6237 = vmatpush2.msra.mxu0 0.0
    %6238 = vmatprep.subr.mxu0 0.0
    %6239 = vmatpush2.msra.mxu0 0.0
    %6240 = vmatprep.subr.mxu0 0.0
    %6241 = vmatpush2.msra.mxu0 0.0
    %6242 = vmatprep.subr.mxu0 0.0
    %6243 = vmatpush2.msra.mxu0 0.0
    %6244 = vmatprep.subr.mxu0 0.0
    %6245 = vmatpush2.msra.mxu0 0.0
    %6246 = vmatprep.subr.mxu0 0.0
    %6247 = vmatpush2.msra.mxu0 0.0
    %6248 = vmatprep.subr.mxu0 0.0
    %6249 = vmatpush2.msra.mxu0 0.0
    %6250 = vmatprep.mubr.f32.mxu0 0.0
    %6251 = vmatmul.mubr.f32.gmra.mxu0 %v6184
    %v6252 = vpop.f32.mrf.mxu0
    %v6253 = vadd.f32 0.0, %v6252
    %v6254 = vpop.f32.mrf.mxu0
    %6255 = vdwg.mxu0
    %v6256 = vadd.f32 %v6180, %v6253
    %v6257 = vld [vmem:[%s2590] sm:$0xff]
    %v6258 = vld [vmem:[%s2590 + $0x8] sm:$0xff]
    %v6259 = vrot.slane %v1662, 3
    %v6260 = vsel %vm47, %v6259, 0
    %6262 = vmatprep.subr.mxu0 0.0
    %6263 = vmatpush1.msra.mxu0 0.0
    %6264 = vmatprep.subr.mxu0 0.0
    %6265 = vmatpush1.msra.mxu0 0.0
    %6266 = vmatprep.subr.mxu0 0.0
    %6267 = vmatpush1.msra.mxu0 0.0
    %6268 = vmatprep.subr.mxu0 0.0
    %6269 = vmatpush1.msra.mxu0 0.0
    %6270 = vmatprep.subr.mxu0 0.0
    %6271 = vmatpush1.msra.mxu0 0.0
    %6272 = vmatprep.subr.mxu0 0.0
    %6273 = vmatpush1.msra.mxu0 0.0
    %6274 = vmatprep.subr.mxu0 0.0
    %6275 = vmatpush1.msra.mxu0 0.0
    %6276 = vmatprep.subr.mxu0 0.0
    %6277 = vmatpush1.msra.mxu0 0.0
    %6278 = vmatprep.subr.mxu0 0.0
    %6279 = vmatpush1.msra.mxu0 0.0
    %6280 = vmatprep.subr.mxu0 0.0
    %6281 = vmatpush1.msra.mxu0 0.0
    %6282 = vmatprep.subr.mxu0 0.0
    %6283 = vmatpush1.msra.mxu0 0.0
    %6284 = vmatprep.subr.mxu0 0.0
    %6285 = vmatpush1.msra.mxu0 0.0
    %6286 = vmatprep.subr.mxu0 0.0
    %6287 = vmatpush1.msra.mxu0 0.0
    %6288 = vmatprep.subr.mxu0 0.0
    %6289 = vmatpush1.msra.mxu0 0.0
    %6290 = vmatprep.subr.mxu0 0.0
    %6291 = vmatpush1.msra.mxu0 %v6258
    %6292 = vmatprep.subr.mxu0 0.0
    %6293 = vmatpush1.msra.mxu0 %v6257
    %6294 = vmatprep.subr.mxu0 0.0
    %6295 = vmatpush2.msra.mxu0 0.0
    %6296 = vmatprep.subr.mxu0 0.0
    %6297 = vmatpush2.msra.mxu0 0.0
    %6298 = vmatprep.subr.mxu0 0.0
    %6299 = vmatpush2.msra.mxu0 0.0
    %6300 = vmatprep.subr.mxu0 0.0
    %6301 = vmatpush2.msra.mxu0 0.0
    %6302 = vmatprep.subr.mxu0 0.0
    %6303 = vmatpush2.msra.mxu0 0.0
    %6304 = vmatprep.subr.mxu0 0.0
    %6305 = vmatpush2.msra.mxu0 0.0
    %6306 = vmatprep.subr.mxu0 0.0
    %6307 = vmatpush2.msra.mxu0 0.0
    %6308 = vmatprep.subr.mxu0 0.0
    %6309 = vmatpush2.msra.mxu0 0.0
    %6310 = vmatprep.subr.mxu0 0.0
    %6311 = vmatpush2.msra.mxu0 0.0
    %6312 = vmatprep.subr.mxu0 0.0
    %6313 = vmatpush2.msra.mxu0 0.0
    %6314 = vmatprep.subr.mxu0 0.0
    %6315 = vmatpush2.msra.mxu0 0.0
    %6316 = vmatprep.subr.mxu0 0.0
    %6317 = vmatpush2.msra.mxu0 0.0
    %6318 = vmatprep.subr.mxu0 0.0
    %6319 = vmatpush2.msra.mxu0 0.0
    %6320 = vmatprep.subr.mxu0 0.0
    %6321 = vmatpush2.msra.mxu0 0.0
    %6322 = vmatprep.subr.mxu0 0.0
    %6323 = vmatpush2.msra.mxu0 0.0
    %6324 = vmatprep.subr.mxu0 0.0
    %6325 = vmatpush2.msra.mxu0 0.0
    %6326 = vmatprep.mubr.f32.mxu0 0.0
    %6327 = vmatmul.mubr.f32.gmra.mxu0 %v6260
    %v6328 = vpop.f32.mrf.mxu0
    %v6329 = vadd.f32 0.0, %v6328
    %v6330 = vpop.f32.mrf.mxu0
    %6331 = vdwg.mxu0
    %v6332 = vadd.f32 %v6256, %v6329
    %v6333 = vld [vmem:[%s2667] sm:$0xff]
    %v6334 = vld [vmem:[%s2667 + $0x8] sm:$0xff]
    %v6335 = vrot.slane %v1662, 4
    %v6336 = vsel %vm47, %v6335, 0
    %6338 = vmatprep.subr.mxu0 0.0
    %6339 = vmatpush1.msra.mxu0 0.0
    %6340 = vmatprep.subr.mxu0 0.0
    %6341 = vmatpush1.msra.mxu0 0.0
    %6342 = vmatprep.subr.mxu0 0.0
    %6343 = vmatpush1.msra.mxu0 0.0
    %6344 = vmatprep.subr.mxu0 0.0
    %6345 = vmatpush1.msra.mxu0 0.0
    %6346 = vmatprep.subr.mxu0 0.0
    %6347 = vmatpush1.msra.mxu0 0.0
    %6348 = vmatprep.subr.mxu0 0.0
    %6349 = vmatpush1.msra.mxu0 0.0
    %6350 = vmatprep.subr.mxu0 0.0
    %6351 = vmatpush1.msra.mxu0 0.0
    %6352 = vmatprep.subr.mxu0 0.0
    %6353 = vmatpush1.msra.mxu0 0.0
    %6354 = vmatprep.subr.mxu0 0.0
    %6355 = vmatpush1.msra.mxu0 0.0
    %6356 = vmatprep.subr.mxu0 0.0
    %6357 = vmatpush1.msra.mxu0 0.0
    %6358 = vmatprep.subr.mxu0 0.0
    %6359 = vmatpush1.msra.mxu0 0.0
    %6360 = vmatprep.subr.mxu0 0.0
    %6361 = vmatpush1.msra.mxu0 0.0
    %6362 = vmatprep.subr.mxu0 0.0
    %6363 = vmatpush1.msra.mxu0 0.0
    %6364 = vmatprep.subr.mxu0 0.0
    %6365 = vmatpush1.msra.mxu0 0.0
    %6366 = vmatprep.subr.mxu0 0.0
    %6367 = vmatpush1.msra.mxu0 %v6334
    %6368 = vmatprep.subr.mxu0 0.0
    %6369 = vmatpush1.msra.mxu0 %v6333
    %6370 = vmatprep.subr.mxu0 0.0
    %6371 = vmatpush2.msra.mxu0 0.0
    %6372 = vmatprep.subr.mxu0 0.0
    %6373 = vmatpush2.msra.mxu0 0.0
    %6374 = vmatprep.subr.mxu0 0.0
    %6375 = vmatpush2.msra.mxu0 0.0
    %6376 = vmatprep.subr.mxu0 0.0
    %6377 = vmatpush2.msra.mxu0 0.0
    %6378 = vmatprep.subr.mxu0 0.0
    %6379 = vmatpush2.msra.mxu0 0.0
    %6380 = vmatprep.subr.mxu0 0.0
    %6381 = vmatpush2.msra.mxu0 0.0
    %6382 = vmatprep.subr.mxu0 0.0
    %6383 = vmatpush2.msra.mxu0 0.0
    %6384 = vmatprep.subr.mxu0 0.0
    %6385 = vmatpush2.msra.mxu0 0.0
    %6386 = vmatprep.subr.mxu0 0.0
    %6387 = vmatpush2.msra.mxu0 0.0
    %6388 = vmatprep.subr.mxu0 0.0
    %6389 = vmatpush2.msra.mxu0 0.0
    %6390 = vmatprep.subr.mxu0 0.0
    %6391 = vmatpush2.msra.mxu0 0.0
    %6392 = vmatprep.subr.mxu0 0.0
    %6393 = vmatpush2.msra.mxu0 0.0
    %6394 = vmatprep.subr.mxu0 0.0
    %6395 = vmatpush2.msra.mxu0 0.0
    %6396 = vmatprep.subr.mxu0 0.0
    %6397 = vmatpush2.msra.mxu0 0.0
    %6398 = vmatprep.subr.mxu0 0.0
    %6399 = vmatpush2.msra.mxu0 0.0
    %6400 = vmatprep.subr.mxu0 0.0
    %6401 = vmatpush2.msra.mxu0 0.0
    %6402 = vmatprep.mubr.f32.mxu0 0.0
    %6403 = vmatmul.mubr.f32.gmra.mxu0 %v6336
    %v6404 = vpop.f32.mrf.mxu0
    %v6405 = vadd.f32 0.0, %v6404
    %v6406 = vpop.f32.mrf.mxu0
    %6407 = vdwg.mxu0
    %v6408 = vadd.f32 %v6332, %v6405
    %v6409 = vld [vmem:[%s2744] sm:$0xff]
    %v6410 = vld [vmem:[%s2744 + $0x8] sm:$0xff]
    %v6411 = vrot.slane %v1662, 5
    %v6412 = vsel %vm47, %v6411, 0
    %6414 = vmatprep.subr.mxu0 0.0
    %6415 = vmatpush1.msra.mxu0 0.0
    %6416 = vmatprep.subr.mxu0 0.0
    %6417 = vmatpush1.msra.mxu0 0.0
    %6418 = vmatprep.subr.mxu0 0.0
    %6419 = vmatpush1.msra.mxu0 0.0
    %6420 = vmatprep.subr.mxu0 0.0
    %6421 = vmatpush1.msra.mxu0 0.0
    %6422 = vmatprep.subr.mxu0 0.0
    %6423 = vmatpush1.msra.mxu0 0.0
    %6424 = vmatprep.subr.mxu0 0.0
    %6425 = vmatpush1.msra.mxu0 0.0
    %6426 = vmatprep.subr.mxu0 0.0
    %6427 = vmatpush1.msra.mxu0 0.0
    %6428 = vmatprep.subr.mxu0 0.0
    %6429 = vmatpush1.msra.mxu0 0.0
    %6430 = vmatprep.subr.mxu0 0.0
    %6431 = vmatpush1.msra.mxu0 0.0
    %6432 = vmatprep.subr.mxu0 0.0
    %6433 = vmatpush1.msra.mxu0 0.0
    %6434 = vmatprep.subr.mxu0 0.0
    %6435 = vmatpush1.msra.mxu0 0.0
    %6436 = vmatprep.subr.mxu0 0.0
    %6437 = vmatpush1.msra.mxu0 0.0
    %6438 = vmatprep.subr.mxu0 0.0
    %6439 = vmatpush1.msra.mxu0 0.0
    %6440 = vmatprep.subr.mxu0 0.0
    %6441 = vmatpush1.msra.mxu0 0.0
    %6442 = vmatprep.subr.mxu0 0.0
    %6443 = vmatpush1.msra.mxu0 %v6410
    %6444 = vmatprep.subr.mxu0 0.0
    %6445 = vmatpush1.msra.mxu0 %v6409
    %6446 = vmatprep.subr.mxu0 0.0
    %6447 = vmatpush2.msra.mxu0 0.0
    %6448 = vmatprep.subr.mxu0 0.0
    %6449 = vmatpush2.msra.mxu0 0.0
    %6450 = vmatprep.subr.mxu0 0.0
    %6451 = vmatpush2.msra.mxu0 0.0
    %6452 = vmatprep.subr.mxu0 0.0
    %6453 = vmatpush2.msra.mxu0 0.0
    %6454 = vmatprep.subr.mxu0 0.0
    %6455 = vmatpush2.msra.mxu0 0.0
    %6456 = vmatprep.subr.mxu0 0.0
    %6457 = vmatpush2.msra.mxu0 0.0
    %6458 = vmatprep.subr.mxu0 0.0
    %6459 = vmatpush2.msra.mxu0 0.0
    %6460 = vmatprep.subr.mxu0 0.0
    %6461 = vmatpush2.msra.mxu0 0.0
    %6462 = vmatprep.subr.mxu0 0.0
    %6463 = vmatpush2.msra.mxu0 0.0
    %6464 = vmatprep.subr.mxu0 0.0
    %6465 = vmatpush2.msra.mxu0 0.0
    %6466 = vmatprep.subr.mxu0 0.0
    %6467 = vmatpush2.msra.mxu0 0.0
    %6468 = vmatprep.subr.mxu0 0.0
    %6469 = vmatpush2.msra.mxu0 0.0
    %6470 = vmatprep.subr.mxu0 0.0
    %6471 = vmatpush2.msra.mxu0 0.0
    %6472 = vmatprep.subr.mxu0 0.0
    %6473 = vmatpush2.msra.mxu0 0.0
    %6474 = vmatprep.subr.mxu0 0.0
    %6475 = vmatpush2.msra.mxu0 0.0
    %6476 = vmatprep.subr.mxu0 0.0
    %6477 = vmatpush2.msra.mxu0 0.0
    %6478 = vmatprep.mubr.f32.mxu0 0.0
    %6479 = vmatmul.mubr.f32.gmra.mxu0 %v6412
    %v6480 = vpop.f32.mrf.mxu0
    %v6481 = vadd.f32 0.0, %v6480
    %v6482 = vpop.f32.mrf.mxu0
    %6483 = vdwg.mxu0
    %v6484 = vadd.f32 %v6408, %v6481
    %v6485 = vld [vmem:[%s2821] sm:$0xff]
    %v6486 = vld [vmem:[%s2821 + $0x8] sm:$0xff]
    %v6487 = vrot.slane %v1662, 6
    %v6488 = vsel %vm47, %v6487, 0
    %6490 = vmatprep.subr.mxu0 0.0
    %6491 = vmatpush1.msra.mxu0 0.0
    %6492 = vmatprep.subr.mxu0 0.0
    %6493 = vmatpush1.msra.mxu0 0.0
    %6494 = vmatprep.subr.mxu0 0.0
    %6495 = vmatpush1.msra.mxu0 0.0
    %6496 = vmatprep.subr.mxu0 0.0
    %6497 = vmatpush1.msra.mxu0 0.0
    %6498 = vmatprep.subr.mxu0 0.0
    %6499 = vmatpush1.msra.mxu0 0.0
    %6500 = vmatprep.subr.mxu0 0.0
    %6501 = vmatpush1.msra.mxu0 0.0
    %6502 = vmatprep.subr.mxu0 0.0
    %6503 = vmatpush1.msra.mxu0 0.0
    %6504 = vmatprep.subr.mxu0 0.0
    %6505 = vmatpush1.msra.mxu0 0.0
    %6506 = vmatprep.subr.mxu0 0.0
    %6507 = vmatpush1.msra.mxu0 0.0
    %6508 = vmatprep.subr.mxu0 0.0
    %6509 = vmatpush1.msra.mxu0 0.0
    %6510 = vmatprep.subr.mxu0 0.0
    %6511 = vmatpush1.msra.mxu0 0.0
    %6512 = vmatprep.subr.mxu0 0.0
    %6513 = vmatpush1.msra.mxu0 0.0
    %6514 = vmatprep.subr.mxu0 0.0
    %6515 = vmatpush1.msra.mxu0 0.0
    %6516 = vmatprep.subr.mxu0 0.0
    %6517 = vmatpush1.msra.mxu0 0.0
    %6518 = vmatprep.subr.mxu0 0.0
    %6519 = vmatpush1.msra.mxu0 %v6486
    %6520 = vmatprep.subr.mxu0 0.0
    %6521 = vmatpush1.msra.mxu0 %v6485
    %6522 = vmatprep.subr.mxu0 0.0
    %6523 = vmatpush2.msra.mxu0 0.0
    %6524 = vmatprep.subr.mxu0 0.0
    %6525 = vmatpush2.msra.mxu0 0.0
    %6526 = vmatprep.subr.mxu0 0.0
    %6527 = vmatpush2.msra.mxu0 0.0
    %6528 = vmatprep.subr.mxu0 0.0
    %6529 = vmatpush2.msra.mxu0 0.0
    %6530 = vmatprep.subr.mxu0 0.0
    %6531 = vmatpush2.msra.mxu0 0.0
    %6532 = vmatprep.subr.mxu0 0.0
    %6533 = vmatpush2.msra.mxu0 0.0
    %6534 = vmatprep.subr.mxu0 0.0
    %6535 = vmatpush2.msra.mxu0 0.0
    %6536 = vmatprep.subr.mxu0 0.0
    %6537 = vmatpush2.msra.mxu0 0.0
    %6538 = vmatprep.subr.mxu0 0.0
    %6539 = vmatpush2.msra.mxu0 0.0
    %6540 = vmatprep.subr.mxu0 0.0
    %6541 = vmatpush2.msra.mxu0 0.0
    %6542 = vmatprep.subr.mxu0 0.0
    %6543 = vmatpush2.msra.mxu0 0.0
    %6544 = vmatprep.subr.mxu0 0.0
    %6545 = vmatpush2.msra.mxu0 0.0
    %6546 = vmatprep.subr.mxu0 0.0
    %6547 = vmatpush2.msra.mxu0 0.0
    %6548 = vmatprep.subr.mxu0 0.0
    %6549 = vmatpush2.msra.mxu0 0.0
    %6550 = vmatprep.subr.mxu0 0.0
    %6551 = vmatpush2.msra.mxu0 0.0
    %6552 = vmatprep.subr.mxu0 0.0
    %6553 = vmatpush2.msra.mxu0 0.0
    %6554 = vmatprep.mubr.f32.mxu0 0.0
    %6555 = vmatmul.mubr.f32.gmra.mxu0 %v6488
    %v6556 = vpop.f32.mrf.mxu0
    %v6557 = vadd.f32 0.0, %v6556
    %v6558 = vpop.f32.mrf.mxu0
    %6559 = vdwg.mxu0
    %v6560 = vadd.f32 %v6484, %v6557
    %6561 = vst [vmem:[#allocation4 + $0x3] sm:$0x1] %v6560
    // Predicated region
    $region26: #{transform_forward.1} parent=1 // pred_check
      _
    $region27: #{transform_forward.1} parent=1 // pred_check_branch
      %6563 = sbr.rel (0) target = $region29
    $region28: #{transform_forward.1} parent=1 // pred_region
      _
    $region29: #{transform_forward.1} parent=1 // pred_fallthru
      _
    // Predicated region
    $region30: #{transform_forward.1} parent=1 // pred_check
      _
    $region31: #{transform_forward.1} parent=1 // pred_check_branch
      %6565 = sbr.rel (0) target = $region33
    $region32: #{transform_forward.1} parent=1 // pred_region
      %s6567 = ssub.s32 64, 64
      %6568 = vsyncadd [#allocation5], %s6567
      %s6570 = sshll.u32 [#allocation4], 4
      %s6571 = int_to_ptr.vmem [resolvable:$true] %s6570
      %6573 = dma.vmem_to_hbm [thread:$0]  %s6571, 64, %s7, [#allocation5]
    $region33: #{transform_forward.1} parent=1 // pred_fallthru
      _
    // Predicated region
    $region34: #{transform_forward.1} parent=1 // pred_check
      _
    $region35: #{transform_forward.1} parent=1 // pred_check_branch
      %6575 = sbr.rel (0) target = $region37
    $region36: #{transform_forward.1} parent=1 // pred_region
      _
    $region37: #{transform_forward.1} parent=1 // pred_fallthru
      _
    // Predicated region
    $region38: #{transform_forward.1} parent=1 // pred_check
      _
    $region39: #{transform_forward.1} parent=1 // pred_check_branch
      %6577 = sbr.rel (0) target = $region41
    $region40: #{transform_forward.1} parent=1 // pred_region
      %6578 = dma.done [#allocation5], 64
    $region41: #{transform_forward.1} parent=1 // pred_fallthru
      _
    %6579 = vsyncpa [#allocation5], 1

</llo_original>
